<compile_context>
chip_gen: v7x
topology: tpu7x:2x2x1
jax: 0.10.0
libtpu: 0.0.40
codegen_flags: <defaults>
</compile_context>

<pallas_src>
import functools

import jax
import jax.numpy as jnp
from jax import lax
from jax.experimental import pallas as pl
from jax.experimental.pallas import tpu as pltpu
import numpy as np

_EPS = 1e-5


def _round_up(a, m):
    return ((a + m - 1) // m) * m


def _pick_batch_block(n):
    # Amortize per-grid-step overhead, but keep >= 2 grid steps when possible
    # so both TensorCores get work on megacore parts.
    for cand in (8, 4, 2):
        if n % cand == 0 and n // cand >= 2:
            return cand
    return 1


def _conv_block_kernel(x_ref, w1_ref, s1_ref, t1_ref, w2_ref, s2_ref, t2_ref,
                       out_ref, x128_ref, mid_ref, patch_ref,
                       *, H, W, Cin, Cout, CP_IN, CP_MID, A, B_BLK):
    """B_BLK images per grid step, flat 'wide-row' channel-last layout.

    x_ref:     (B_BLK, (H+3)*(W+2), Cin) bf16  spatially padded input, REAL
               channel width over HBM, flat_row = padded_y*(W+2) + padded_x.
    w*_ref:    (9*CP_k, CP_MID) bf16  im2col weights, row = tap*CP_k + cin
               (zero rows/cols in the channel-pad region).
    s*/t*_ref: (1, CP_MID) f32  folded BN scale / (BN shift + conv bias).
    out_ref:   (B_BLK, H*(W+2), Cout) f32  'wide' conv2 output, REAL channels
               only (junk wide-columns sliced off by the wrapper).
    x128_ref:  VMEM ((H+3)*(W+2), CP_IN) f32  lane-dense staged input.
    mid_ref:   VMEM scratch with the zero-padded conv1 output; interior starts
               at the sublane-aligned row A.
    patch_ref: VMEM (H*(W+2), 9*max(CP_IN,CP_MID)) bf16 shared im2col buffer.
    """
    Wp = W + 2
    Hw = H * Wp
    K1 = 9 * CP_IN
    K2 = 9 * CP_MID
    base2 = A - (Wp + 1)

    # ---- per-step init (hoisted out of the image loop) ----
    # Lane-pad region of the staged input must be zero (it is never rewritten
    # inside the image loop).
    if Cin < CP_IN:
        x128_ref[...] = jnp.zeros_like(x128_ref)
    # Zero only the halo row-bands of the intermediate; the interior rows
    # [A, A+Hw) (including the embedded, masked junk columns) are fully
    # rewritten per image.  Done every step so it stays correct when the batch
    # axis is sharded across TensorCores ("parallel").
    mid_ref[pl.ds(0, A), :] = jnp.zeros((A, CP_MID), jnp.float32)
    tail = mid_ref.shape[0] - (A + Hw)
    mid_ref[pl.ds(A + Hw, tail), :] = jnp.zeros((tail, CP_MID), jnp.float32)
    # 'wide' column index of each flat row; columns >= W are junk/halo.
    wide_col = lax.broadcasted_iota(jnp.int32, (Hw, 1), 0) % Wp
    col_mask = wide_col < W

    for b in range(B_BLK):
        # Stage the narrow-channel bf16 input into the lane-dense f32 buffer
        # (only the real channels travel over HBM).
        x128_ref[:, 0:Cin] = x_ref[b].astype(jnp.float32)

        # ---- conv1 (3x3 / pad=1) -> folded BN affine -> ReLU ----
        for ky in range(3):
            for kx in range(3):
                t = ky * 3 + kx
                patch_ref[:, t * CP_IN:(t + 1) * CP_IN] = (
                    x128_ref[pl.ds(ky * Wp + kx, Hw), :].astype(jnp.bfloat16))
        acc = jnp.dot(patch_ref[:, 0:K1], w1_ref[...],
                      preferred_element_type=jnp.float32)
        y = jnp.maximum(acc * s1_ref[...] + t1_ref[...], 0.0)
        # Junk wide-columns (>= W) become conv2's zero left/right halo.
        y = jnp.where(col_mask, y, 0.0)
        mid_ref[pl.ds(A, Hw), :] = y          # row-aligned interior store

        # ---- conv2 (3x3 / pad=1) -> folded BN affine -> ReLU ----
        for ky in range(3):
            for kx in range(3):
                t = ky * 3 + kx
                patch_ref[:, t * CP_MID:(t + 1) * CP_MID] = (
                    mid_ref[pl.ds(base2 + ky * Wp + kx, Hw), :]
                    .astype(jnp.bfloat16))
        acc = jnp.dot(patch_ref[:, 0:K2], w2_ref[...],
                      preferred_element_type=jnp.float32)
        z = jnp.maximum(acc * s2_ref[...] + t2_ref[...], 0.0)
        # Dropout(p=0.2): identity in inference mode.
        out_ref[b] = z[:, 0:Cout]             # only real channels go to HBM


def one_step_conv_forward(x_nchw, params):
    (w1, b1, g1, be1, rm1, rv1,
     w2, b2, g2, be2, rm2, rv2) = params

    N, Cin, H, W = x_nchw.shape
    Cout = w1.shape[0]

    CP_IN = _round_up(Cin, 128)       # lane-dense K padding for conv1
    CP_MID = _round_up(Cout, 128)     # lane-dense N / conv2-K padding
    CP_MAX = max(CP_IN, CP_MID)
    Wp = W + 2
    Hw = H * Wp
    in_rows = (H + 3) * Wp            # top pad 1, bottom pad 2 (keeps the
                                      # widest taps in bounds)
    A = _round_up(Wp + 1, 8)          # aligned row where conv1's result starts
    mid_rows = A + Hw + Wp + 1
    B_BLK = _pick_batch_block(N)

    # Fold BN (inference stats) and the conv bias into one per-channel affine:
    #   ((acc + b) - rm) * s + be == acc * s + t   with  t = be + (b - rm) * s
    s1 = g1 / jnp.sqrt(rv1 + _EPS)
    t1 = be1 + (b1 - rm1) * s1
    s2 = g2 / jnp.sqrt(rv2 + _EPS)
    t2 = be2 + (b2 - rm2) * s2

    def pad_vec(v, cp):
        return jnp.pad(v, (0, cp - v.shape[0])).reshape(1, cp).astype(jnp.float32)

    def pack_weight(w, cp_k, cp_n):
        # (cout, cin, 3, 3) -> (3, 3, cin, cout) -> zero-pad -> (9*cp_k, cp_n)
        co, ci = w.shape[0], w.shape[1]
        wt = jnp.transpose(w, (2, 3, 1, 0))
        wt = jnp.pad(wt, ((0, 0), (0, 0), (0, cp_k - ci), (0, cp_n - co)))
        return wt.reshape(9 * cp_k, cp_n).astype(jnp.bfloat16)

    # NCHW -> NHWC, spatial halo embedded in "wide rows", REAL channel width
    # and bf16 over HBM (no lane padding shipped over HBM).
    x = jnp.transpose(x_nchw, (0, 2, 3, 1))
    x = jnp.pad(x, ((0, 0), (1, 2), (1, 1), (0, 0)))
    x = x.reshape(N, in_rows, Cin).astype(jnp.bfloat16)

    kernel = functools.partial(_conv_block_kernel, H=H, W=W, Cin=Cin, Cout=Cout,
                               CP_IN=CP_IN, CP_MID=CP_MID, A=A, B_BLK=B_BLK)

    out_flat = pl.pallas_call(
        kernel,
        out_shape=jax.ShapeDtypeStruct((N, Hw, Cout), jnp.float32),
        grid_spec=pltpu.PrefetchScalarGridSpec(
            num_scalar_prefetch=0,
            grid=(N // B_BLK,),
            in_specs=[
                pl.BlockSpec((B_BLK, in_rows, Cin), lambda i: (i, 0, 0)),
                pl.BlockSpec((9 * CP_IN, CP_MID), lambda i: (0, 0)),
                pl.BlockSpec((1, CP_MID), lambda i: (0, 0)),
                pl.BlockSpec((1, CP_MID), lambda i: (0, 0)),
                pl.BlockSpec((9 * CP_MID, CP_MID), lambda i: (0, 0)),
                pl.BlockSpec((1, CP_MID), lambda i: (0, 0)),
                pl.BlockSpec((1, CP_MID), lambda i: (0, 0)),
            ],
            out_specs=pl.BlockSpec((B_BLK, Hw, Cout), lambda i: (i, 0, 0)),
            scratch_shapes=[
                pltpu.VMEM((in_rows, CP_IN), jnp.float32),    # staged input
                pltpu.VMEM((mid_rows, CP_MID), jnp.float32),  # padded conv1 out
                pltpu.VMEM((Hw, 9 * CP_MAX), jnp.bfloat16),   # shared im2col buf
            ],
        ),
        compiler_params=pltpu.CompilerParams(
            dimension_semantics=("parallel",),
            vmem_limit_bytes=32 * 1024 * 1024,
        ),
    )(x,
      pack_weight(w1, CP_IN, CP_MID), pad_vec(s1, CP_MID), pad_vec(t1, CP_MID),
      pack_weight(w2, CP_MID, CP_MID), pad_vec(s2, CP_MID), pad_vec(t2, CP_MID))

    # (N, Hw, Cout) -> (N, H, W+2, Cout) -> drop junk columns -> NCHW
    out = out_flat.reshape(N, H, Wp, Cout)[:, :, :W, :]
    return jnp.transpose(out, (0, 3, 1, 2))


def reference_forward(x, params):
    """Pure-JAX (XLA) reference in NCHW, for correctness checking."""
    (w1, b1, g1, be1, rm1, rv1,
     w2, b2, g2, be2, rm2, rv2) = params

    def conv(x, w, b):
        y = lax.conv_general_dilated(
            x, w, window_strides=(1, 1), padding=((1, 1), (1, 1)),
            dimension_numbers=('NCHW', 'OIHW', 'NCHW'),
            precision=lax.Precision.HIGHEST)
        return y + b[None, :, None, None]

    def bn(x, g, be, rm, rv):
        inv = g / jnp.sqrt(rv + _EPS)
        return (x - rm[None, :, None, None]) * inv[None, :, None, None] \
            + be[None, :, None, None]

    y = jnp.maximum(bn(conv(x, w1, b1), g1, be1, rm1, rv1), 0.0)
    z = jnp.maximum(bn(conv(y, w2, b2), g2, be2, rm2, rv2), 0.0)
    return z  # dropout = identity in eval mode


if __name__ == "__main__":
    key = jax.random.PRNGKey(0)
    N, in_ch, out_ch, H, W = 2, 4, 8, 16, 16

    k = jax.random.split(key, 5)
    x = jax.random.normal(k[0], (N, in_ch, H, W), jnp.float32)

    # Conv weights/biases: deterministic random (kaiming-ish scale).
    w1 = jax.random.normal(k[1], (out_ch, in_ch, 3, 3), jnp.float32) * 0.2
    b1 = jax.random.normal(k[2], (out_ch,), jnp.float32) * 0.1
    w2 = jax.random.normal(k[3], (out_ch, out_ch, 3, 3), jnp.float32) * 0.2
    b2 = jax.random.normal(k[4], (out_ch,), jnp.float32) * 0.1

    # BatchNorm2d parameters exactly as nn.BatchNorm2d.__init__ sets them.
    g1 = jnp.ones((out_ch,), jnp.float32)
    be1 = jnp.zeros((out_ch,), jnp.float32)
    rm1 = jnp.zeros((out_ch,), jnp.float32)
    rv1 = jnp.ones((out_ch,), jnp.float32)
    g2 = jnp.ones((out_ch,), jnp.float32)
    be2 = jnp.zeros((out_ch,), jnp.float32)
    rm2 = jnp.zeros((out_ch,), jnp.float32)
    rv2 = jnp.ones((out_ch,), jnp.float32)

    params = (w1, b1, g1, be1, rm1, rv1, w2, b2, g2, be2, rm2, rv2)

    out = jax.block_until_ready(one_step_conv_forward(x, params))
    ref = jax.block_until_ready(reference_forward(x, params))

    # bf16 MXU operands inside the kernel => relaxed tolerance vs f32 reference.
    np.testing.assert_allclose(np.asarray(out), np.asarray(ref),
                               rtol=3e-2, atol=3e-2)
    assert out.shape == (N, out_ch, H, W)
    print("KERNEL_OK")
</pallas_src>

<mosaic_0001>
module attributes {stable_mosaic.version = 11 : i64} {
  func.func @_conv_block_kernel(%arg0: i32, %arg1: memref<1x342x4xbf16, #tpu.memory_space<vmem>>, %arg2: memref<1152x128xbf16, #tpu.memory_space<vmem>>, %arg3: memref<1x128xf32, #tpu.memory_space<vmem>>, %arg4: memref<1x128xf32, #tpu.memory_space<vmem>>, %arg5: memref<1152x128xbf16, #tpu.memory_space<vmem>>, %arg6: memref<1x128xf32, #tpu.memory_space<vmem>>, %arg7: memref<1x128xf32, #tpu.memory_space<vmem>>, %arg8: memref<1x288x8xf32, #tpu.memory_space<vmem>>, %arg9: memref<342x128xf32, #tpu.memory_space<vmem>>, %arg10: memref<331x128xf32, #tpu.memory_space<vmem>>, %arg11: memref<288x1152xbf16, #tpu.memory_space<vmem>>) attributes {dimension_semantics = [#tpu.dimension_semantics<parallel>], iteration_bounds = array<i64: 2>, scalar_prefetch = 0 : i64, scratch_operands = 3 : i64, tpu.core_type = #tpu.core_type<tc>, window_params = [{transform_indices = @transform_0, window_bounds = array<i64: 1, 342, 4>}, {pipeline_mode = #tpu.pipeline_mode<synchronous>, transform_indices = @transform_1, window_bounds = array<i64: 1152, 128>}, {pipeline_mode = #tpu.pipeline_mode<synchronous>, transform_indices = @transform_2, window_bounds = array<i64: 1, 128>}, {pipeline_mode = #tpu.pipeline_mode<synchronous>, transform_indices = @transform_3, window_bounds = array<i64: 1, 128>}, {pipeline_mode = #tpu.pipeline_mode<synchronous>, transform_indices = @transform_4, window_bounds = array<i64: 1152, 128>}, {pipeline_mode = #tpu.pipeline_mode<synchronous>, transform_indices = @transform_5, window_bounds = array<i64: 1, 128>}, {pipeline_mode = #tpu.pipeline_mode<synchronous>, transform_indices = @transform_6, window_bounds = array<i64: 1, 128>}, {transform_indices = @transform_7, window_bounds = array<i64: 1, 288, 8>}]} {
    %cst = arith.constant 0.000000e+00 : f32
    %0 = vector.broadcast %cst : f32 to vector<342x128xf32>
    %c0 = arith.constant 0 : index
    %c0_0 = arith.constant 0 : index
    %1 = vector.load %arg9[%c0, %c0_0] : memref<342x128xf32, #tpu.memory_space<vmem>>, vector<342x128xf32>
    tpu.vector_store %arg9[%c0, %c0_0], %0 {strides = array<i32>} : memref<342x128xf32, #tpu.memory_space<vmem>>, vector<342x128xf32>,
    %cst_1 = arith.constant 0.000000e+00 : f32
    %2 = vector.broadcast %cst_1 : f32 to vector<24x128xf32>
    %c0_2 = arith.constant 0 : index
    %c0_3 = arith.constant 0 : index
    %3 = vector.load %arg10[%c0_2, %c0_3] : memref<331x128xf32, #tpu.memory_space<vmem>>, vector<24x128xf32>
    tpu.vector_store %arg10[%c0_2, %c0_3], %2 {strides = array<i32>} : memref<331x128xf32, #tpu.memory_space<vmem>>, vector<24x128xf32>,
    %cst_4 = arith.constant 0.000000e+00 : f32
    %4 = vector.broadcast %cst_4 : f32 to vector<19x128xf32>
    %c312 = arith.constant 312 : index
    %c0_5 = arith.constant 0 : index
    %5 = vector.load %arg10[%c312, %c0_5] : memref<331x128xf32, #tpu.memory_space<vmem>>, vector<19x128xf32>
    tpu.vector_store %arg10[%c312, %c0_5], %4 {strides = array<i32>} : memref<331x128xf32, #tpu.memory_space<vmem>>, vector<19x128xf32>,
    %6 = tpu.iota {dimensions = array<i32: 0>} : vector<288x1xi32>
    %c18_i32 = arith.constant 18 : i32
    %c0_i32 = arith.constant 0 : i32
    %7 = arith.cmpi eq, %c18_i32, %c0_i32 : i32
    %c1_i32 = arith.constant 1 : i32
    %8 = arith.select %7, %c1_i32, %c18_i32 : i32
    %9 = vector.broadcast %8 : i32 to vector<288x1xi32>
    %10 = arith.remsi %6, %9 : vector<288x1xi32>
    %c0_i32_6 = arith.constant 0 : i32
    %11 = vector.broadcast %c0_i32_6 : i32 to vector<288x1xi32>
    %12 = arith.cmpi ne, %10, %11 : vector<288x1xi32>
    %c0_i32_7 = arith.constant 0 : i32
    %13 = vector.broadcast %c0_i32_7 : i32 to vector<288x1xi32>
    %14 = arith.cmpi slt, %10, %13 : vector<288x1xi32>
    %c0_i32_8 = arith.constant 0 : i32
    %15 = arith.cmpi slt, %8, %c0_i32_8 : i32
    %16 = vector.broadcast %15 : i1 to vector<288x1xi1>
    %17 = vector.broadcast %16 : vector<288x1xi1> to vector<288x1xi1>
    %18 = arith.xori %14, %17 : vector<288x1xi1>
    %19 = arith.andi %18, %12 : vector<288x1xi1>
    %20 = vector.broadcast %8 : i32 to vector<288x1xi32>
    %21 = arith.addi %10, %20 : vector<288x1xi32>
    %22 = arith.select %19, %21, %10 : vector<288x1xi1>, vector<288x1xi32>
    %c16_i32 = arith.constant 16 : i32
    %23 = vector.broadcast %c16_i32 : i32 to vector<288x1xi32>
    %24 = arith.cmpi slt, %22, %23 : vector<288x1xi32>
    %c0_9 = arith.constant 0 : index
    %c0_10 = arith.constant 0 : index
    %c0_11 = arith.constant 0 : index
    %25 = vector.load %arg1[%c0_9, %c0_10, %c0_11] : memref<1x342x4xbf16, #tpu.memory_space<vmem>>, vector<1x342x4xbf16>
    %26 = vector.shape_cast %25 : vector<1x342x4xbf16> to vector<342x4xbf16>
    %27 = arith.extf %26 : vector<342x4xbf16> to vector<342x4xf32>
    %c0_12 = arith.constant 0 : index
    %c0_13 = arith.constant 0 : index
    %28 = vector.load %arg9[%c0_12, %c0_13] : memref<342x128xf32, #tpu.memory_space<vmem>>, vector<342x4xf32>
    tpu.vector_store %arg9[%c0_12, %c0_13], %27 {strides = array<i32>} : memref<342x128xf32, #tpu.memory_space<vmem>>, vector<342x4xf32>,
    %c0_14 = arith.constant 0 : index
    %c0_15 = arith.constant 0 : index
    %29 = vector.load %arg9[%c0_14, %c0_15] : memref<342x128xf32, #tpu.memory_space<vmem>>, vector<288x128xf32>
    %30 = arith.truncf %29 : vector<288x128xf32> to vector<288x128xbf16>
    %c0_16 = arith.constant 0 : index
    %c0_17 = arith.constant 0 : index
    %31 = vector.load %arg11[%c0_16, %c0_17] : memref<288x1152xbf16, #tpu.memory_space<vmem>>, vector<288x128xbf16>
    tpu.vector_store %arg11[%c0_16, %c0_17], %30 {strides = array<i32>} : memref<288x1152xbf16, #tpu.memory_space<vmem>>, vector<288x128xbf16>,
    %c1 = arith.constant 1 : index
    %c0_18 = arith.constant 0 : index
    %32 = vector.load %arg9[%c1, %c0_18] : memref<342x128xf32, #tpu.memory_space<vmem>>, vector<288x128xf32>
    %33 = arith.truncf %32 : vector<288x128xf32> to vector<288x128xbf16>
    %c0_19 = arith.constant 0 : index
    %c128 = arith.constant 128 : index
    %34 = vector.load %arg11[%c0_19, %c128] : memref<288x1152xbf16, #tpu.memory_space<vmem>>, vector<288x128xbf16>
    tpu.vector_store %arg11[%c0_19, %c128], %33 {strides = array<i32>} : memref<288x1152xbf16, #tpu.memory_space<vmem>>, vector<288x128xbf16>,
    %c2 = arith.constant 2 : index
    %c0_20 = arith.constant 0 : index
    %35 = vector.load %arg9[%c2, %c0_20] : memref<342x128xf32, #tpu.memory_space<vmem>>, vector<288x128xf32>
    %36 = arith.truncf %35 : vector<288x128xf32> to vector<288x128xbf16>
    %c0_21 = arith.constant 0 : index
    %c256 = arith.constant 256 : index
    %37 = vector.load %arg11[%c0_21, %c256] : memref<288x1152xbf16, #tpu.memory_space<vmem>>, vector<288x128xbf16>
    tpu.vector_store %arg11[%c0_21, %c256], %36 {strides = array<i32>} : memref<288x1152xbf16, #tpu.memory_space<vmem>>, vector<288x128xbf16>,
    %c18 = arith.constant 18 : index
    %c0_22 = arith.constant 0 : index
    %38 = vector.load %arg9[%c18, %c0_22] : memref<342x128xf32, #tpu.memory_space<vmem>>, vector<288x128xf32>
    %39 = arith.truncf %38 : vector<288x128xf32> to vector<288x128xbf16>
    %c0_23 = arith.constant 0 : index
    %c384 = arith.constant 384 : index
    %40 = vector.load %arg11[%c0_23, %c384] : memref<288x1152xbf16, #tpu.memory_space<vmem>>, vector<288x128xbf16>
    tpu.vector_store %arg11[%c0_23, %c384], %39 {strides = array<i32>} : memref<288x1152xbf16, #tpu.memory_space<vmem>>, vector<288x128xbf16>,
    %c19 = arith.constant 19 : index
    %c0_24 = arith.constant 0 : index
    %41 = vector.load %arg9[%c19, %c0_24] : memref<342x128xf32, #tpu.memory_space<vmem>>, vector<288x128xf32>
    %42 = arith.truncf %41 : vector<288x128xf32> to vector<288x128xbf16>
    %c0_25 = arith.constant 0 : index
    %c512 = arith.constant 512 : index
    %43 = vector.load %arg11[%c0_25, %c512] : memref<288x1152xbf16, #tpu.memory_space<vmem>>, vector<288x128xbf16>
    tpu.vector_store %arg11[%c0_25, %c512], %42 {strides = array<i32>} : memref<288x1152xbf16, #tpu.memory_space<vmem>>, vector<288x128xbf16>,
    %c20 = arith.constant 20 : index
    %c0_26 = arith.constant 0 : index
    %44 = vector.load %arg9[%c20, %c0_26] : memref<342x128xf32, #tpu.memory_space<vmem>>, vector<288x128xf32>
    %45 = arith.truncf %44 : vector<288x128xf32> to vector<288x128xbf16>
    %c0_27 = arith.constant 0 : index
    %c640 = arith.constant 640 : index
    %46 = vector.load %arg11[%c0_27, %c640] : memref<288x1152xbf16, #tpu.memory_space<vmem>>, vector<288x128xbf16>
    tpu.vector_store %arg11[%c0_27, %c640], %45 {strides = array<i32>} : memref<288x1152xbf16, #tpu.memory_space<vmem>>, vector<288x128xbf16>,
    %c36 = arith.constant 36 : index
    %c0_28 = arith.constant 0 : index
    %47 = vector.load %arg9[%c36, %c0_28] : memref<342x128xf32, #tpu.memory_space<vmem>>, vector<288x128xf32>
    %48 = arith.truncf %47 : vector<288x128xf32> to vector<288x128xbf16>
    %c0_29 = arith.constant 0 : index
    %c768 = arith.constant 768 : index
    %49 = vector.load %arg11[%c0_29, %c768] : memref<288x1152xbf16, #tpu.memory_space<vmem>>, vector<288x128xbf16>
    tpu.vector_store %arg11[%c0_29, %c768], %48 {strides = array<i32>} : memref<288x1152xbf16, #tpu.memory_space<vmem>>, vector<288x128xbf16>,
    %c37 = arith.constant 37 : index
    %c0_30 = arith.constant 0 : index
    %50 = vector.load %arg9[%c37, %c0_30] : memref<342x128xf32, #tpu.memory_space<vmem>>, vector<288x128xf32>
    %51 = arith.truncf %50 : vector<288x128xf32> to vector<288x128xbf16>
    %c0_31 = arith.constant 0 : index
    %c896 = arith.constant 896 : index
    %52 = vector.load %arg11[%c0_31, %c896] : memref<288x1152xbf16, #tpu.memory_space<vmem>>, vector<288x128xbf16>
    tpu.vector_store %arg11[%c0_31, %c896], %51 {strides = array<i32>} : memref<288x1152xbf16, #tpu.memory_space<vmem>>, vector<288x128xbf16>,
    %c38 = arith.constant 38 : index
    %c0_32 = arith.constant 0 : index
    %53 = vector.load %arg9[%c38, %c0_32] : memref<342x128xf32, #tpu.memory_space<vmem>>, vector<288x128xf32>
    %54 = arith.truncf %53 : vector<288x128xf32> to vector<288x128xbf16>
    %c0_33 = arith.constant 0 : index
    %c1024 = arith.constant 1024 : index
    %55 = vector.load %arg11[%c0_33, %c1024] : memref<288x1152xbf16, #tpu.memory_space<vmem>>, vector<288x128xbf16>
    tpu.vector_store %arg11[%c0_33, %c1024], %54 {strides = array<i32>} : memref<288x1152xbf16, #tpu.memory_space<vmem>>, vector<288x128xbf16>,
    %c0_34 = arith.constant 0 : index
    %c0_35 = arith.constant 0 : index
    %56 = vector.load %arg11[%c0_34, %c0_35] : memref<288x1152xbf16, #tpu.memory_space<vmem>>, vector<288x1152xbf16>
    %c0_36 = arith.constant 0 : index
    %c0_37 = arith.constant 0 : index
    %57 = vector.load %arg2[%c0_36, %c0_37] : memref<1152x128xbf16, #tpu.memory_space<vmem>>, vector<1152x128xbf16>
    %cst_38 = arith.constant dense<0.000000e+00> : vector<288x128xf32>
    %58 = tpu.matmul %56, %57, %cst_38 {dimension_numbers = #tpu.dot_dimension_numbers<[1], [0], [0], [1], [0, 0, 1, 1], [], []>} : vector<288x1152xbf16>, vector<1152x128xbf16>, vector<288x128xf32> -> vector<288x128xf32>
    %c0_39 = arith.constant 0 : index
    %c0_40 = arith.constant 0 : index
    %59 = vector.load %arg3[%c0_39, %c0_40] : memref<1x128xf32, #tpu.memory_space<vmem>>, vector<1x128xf32>
    %60 = vector.broadcast %59 : vector<1x128xf32> to vector<288x128xf32>
    %61 = arith.mulf %58, %60 : vector<288x128xf32>
    %c0_41 = arith.constant 0 : index
    %c0_42 = arith.constant 0 : index
    %62 = vector.load %arg4[%c0_41, %c0_42] : memref<1x128xf32, #tpu.memory_space<vmem>>, vector<1x128xf32>
    %63 = vector.broadcast %62 : vector<1x128xf32> to vector<288x128xf32>
    %64 = arith.addf %61, %63 : vector<288x128xf32>
    %cst_43 = arith.constant 0.000000e+00 : f32
    %65 = vector.broadcast %cst_43 : f32 to vector<288x128xf32>
    %66 = arith.maximumf %64, %65 : vector<288x128xf32>
    %cst_44 = arith.constant 0.000000e+00 : f32
    %67 = vector.shape_cast %24 : vector<288x1xi1> to vector<288x1xi1>
    %68 = vector.broadcast %67 : vector<288x1xi1> to vector<288x128xi1>
    %69 = vector.broadcast %cst_44 : f32 to vector<288x128xf32>
    %70 = arith.select %68, %66, %69 : vector<288x128xi1>, vector<288x128xf32>
    %c24 = arith.constant 24 : index
    %c0_45 = arith.constant 0 : index
    %71 = vector.load %arg10[%c24, %c0_45] : memref<331x128xf32, #tpu.memory_space<vmem>>, vector<288x128xf32>
    tpu.vector_store %arg10[%c24, %c0_45], %70 {strides = array<i32>} : memref<331x128xf32, #tpu.memory_space<vmem>>, vector<288x128xf32>,
    %c5 = arith.constant 5 : index
    %c0_46 = arith.constant 0 : index
    %72 = vector.load %arg10[%c5, %c0_46] : memref<331x128xf32, #tpu.memory_space<vmem>>, vector<288x128xf32>
    %73 = arith.truncf %72 : vector<288x128xf32> to vector<288x128xbf16>
    %c0_47 = arith.constant 0 : index
    %c0_48 = arith.constant 0 : index
    %74 = vector.load %arg11[%c0_47, %c0_48] : memref<288x1152xbf16, #tpu.memory_space<vmem>>, vector<288x128xbf16>
    tpu.vector_store %arg11[%c0_47, %c0_48], %73 {strides = array<i32>} : memref<288x1152xbf16, #tpu.memory_space<vmem>>, vector<288x128xbf16>,
    %c6 = arith.constant 6 : index
    %c0_49 = arith.constant 0 : index
    %75 = vector.load %arg10[%c6, %c0_49] : memref<331x128xf32, #tpu.memory_space<vmem>>, vector<288x128xf32>
    %76 = arith.truncf %75 : vector<288x128xf32> to vector<288x128xbf16>
    %c0_50 = arith.constant 0 : index
    %c128_51 = arith.constant 128 : index
    %77 = vector.load %arg11[%c0_50, %c128_51] : memref<288x1152xbf16, #tpu.memory_space<vmem>>, vector<288x128xbf16>
    tpu.vector_store %arg11[%c0_50, %c128_51], %76 {strides = array<i32>} : memref<288x1152xbf16, #tpu.memory_space<vmem>>, vector<288x128xbf16>,
    %c7 = arith.constant 7 : index
    %c0_52 = arith.constant 0 : index
    %78 = vector.load %arg10[%c7, %c0_52] : memref<331x128xf32, #tpu.memory_space<vmem>>, vector<288x128xf32>
    %79 = arith.truncf %78 : vector<288x128xf32> to vector<288x128xbf16>
    %c0_53 = arith.constant 0 : index
    %c256_54 = arith.constant 256 : index
    %80 = vector.load %arg11[%c0_53, %c256_54] : memref<288x1152xbf16, #tpu.memory_space<vmem>>, vector<288x128xbf16>
    tpu.vector_store %arg11[%c0_53, %c256_54], %79 {strides = array<i32>} : memref<288x1152xbf16, #tpu.memory_space<vmem>>, vector<288x128xbf16>,
    %c23 = arith.constant 23 : index
    %c0_55 = arith.constant 0 : index
    %81 = vector.load %arg10[%c23, %c0_55] : memref<331x128xf32, #tpu.memory_space<vmem>>, vector<288x128xf32>
    %82 = arith.truncf %81 : vector<288x128xf32> to vector<288x128xbf16>
    %c0_56 = arith.constant 0 : index
    %c384_57 = arith.constant 384 : index
    %83 = vector.load %arg11[%c0_56, %c384_57] : memref<288x1152xbf16, #tpu.memory_space<vmem>>, vector<288x128xbf16>
    tpu.vector_store %arg11[%c0_56, %c384_57], %82 {strides = array<i32>} : memref<288x1152xbf16, #tpu.memory_space<vmem>>, vector<288x128xbf16>,
    %c24_58 = arith.constant 24 : index
    %c0_59 = arith.constant 0 : index
    %84 = vector.load %arg10[%c24_58, %c0_59] : memref<331x128xf32, #tpu.memory_space<vmem>>, vector<288x128xf32>
    %85 = arith.truncf %84 : vector<288x128xf32> to vector<288x128xbf16>
    %c0_60 = arith.constant 0 : index
    %c512_61 = arith.constant 512 : index
    %86 = vector.load %arg11[%c0_60, %c512_61] : memref<288x1152xbf16, #tpu.memory_space<vmem>>, vector<288x128xbf16>
    tpu.vector_store %arg11[%c0_60, %c512_61], %85 {strides = array<i32>} : memref<288x1152xbf16, #tpu.memory_space<vmem>>, vector<288x128xbf16>,
    %c25 = arith.constant 25 : index
    %c0_62 = arith.constant 0 : index
    %87 = vector.load %arg10[%c25, %c0_62] : memref<331x128xf32, #tpu.memory_space<vmem>>, vector<288x128xf32>
    %88 = arith.truncf %87 : vector<288x128xf32> to vector<288x128xbf16>
    %c0_63 = arith.constant 0 : index
    %c640_64 = arith.constant 640 : index
    %89 = vector.load %arg11[%c0_63, %c640_64] : memref<288x1152xbf16, #tpu.memory_space<vmem>>, vector<288x128xbf16>
    tpu.vector_store %arg11[%c0_63, %c640_64], %88 {strides = array<i32>} : memref<288x1152xbf16, #tpu.memory_space<vmem>>, vector<288x128xbf16>,
    %c41 = arith.constant 41 : index
    %c0_65 = arith.constant 0 : index
    %90 = vector.load %arg10[%c41, %c0_65] : memref<331x128xf32, #tpu.memory_space<vmem>>, vector<288x128xf32>
    %91 = arith.truncf %90 : vector<288x128xf32> to vector<288x128xbf16>
    %c0_66 = arith.constant 0 : index
    %c768_67 = arith.constant 768 : index
    %92 = vector.load %arg11[%c0_66, %c768_67] : memref<288x1152xbf16, #tpu.memory_space<vmem>>, vector<288x128xbf16>
    tpu.vector_store %arg11[%c0_66, %c768_67], %91 {strides = array<i32>} : memref<288x1152xbf16, #tpu.memory_space<vmem>>, vector<288x128xbf16>,
    %c42 = arith.constant 42 : index
    %c0_68 = arith.constant 0 : index
    %93 = vector.load %arg10[%c42, %c0_68] : memref<331x128xf32, #tpu.memory_space<vmem>>, vector<288x128xf32>
    %94 = arith.truncf %93 : vector<288x128xf32> to vector<288x128xbf16>
    %c0_69 = arith.constant 0 : index
    %c896_70 = arith.constant 896 : index
    %95 = vector.load %arg11[%c0_69, %c896_70] : memref<288x1152xbf16, #tpu.memory_space<vmem>>, vector<288x128xbf16>
    tpu.vector_store %arg11[%c0_69, %c896_70], %94 {strides = array<i32>} : memref<288x1152xbf16, #tpu.memory_space<vmem>>, vector<288x128xbf16>,
    %c43 = arith.constant 43 : index
    %c0_71 = arith.constant 0 : index
    %96 = vector.load %arg10[%c43, %c0_71] : memref<331x128xf32, #tpu.memory_space<vmem>>, vector<288x128xf32>
    %97 = arith.truncf %96 : vector<288x128xf32> to vector<288x128xbf16>
    %c0_72 = arith.constant 0 : index
    %c1024_73 = arith.constant 1024 : index
    %98 = vector.load %arg11[%c0_72, %c1024_73] : memref<288x1152xbf16, #tpu.memory_space<vmem>>, vector<288x128xbf16>
    tpu.vector_store %arg11[%c0_72, %c1024_73], %97 {strides = array<i32>} : memref<288x1152xbf16, #tpu.memory_space<vmem>>, vector<288x128xbf16>,
    %c0_74 = arith.constant 0 : index
    %c0_75 = arith.constant 0 : index
    %99 = vector.load %arg11[%c0_74, %c0_75] : memref<288x1152xbf16, #tpu.memory_space<vmem>>, vector<288x1152xbf16>
    %c0_76 = arith.constant 0 : index
    %c0_77 = arith.constant 0 : index
    %100 = vector.load %arg5[%c0_76, %c0_77] : memref<1152x128xbf16, #tpu.memory_space<vmem>>, vector<1152x128xbf16>
    %cst_78 = arith.constant dense<0.000000e+00> : vector<288x128xf32>
    %101 = tpu.matmul %99, %100, %cst_78 {dimension_numbers = #tpu.dot_dimension_numbers<[1], [0], [0], [1], [0, 0, 1, 1], [], []>} : vector<288x1152xbf16>, vector<1152x128xbf16>, vector<288x128xf32> -> vector<288x128xf32>
    %c0_79 = arith.constant 0 : index
    %c0_80 = arith.constant 0 : index
    %102 = vector.load %arg6[%c0_79, %c0_80] : memref<1x128xf32, #tpu.memory_space<vmem>>, vector<1x128xf32>
    %103 = vector.broadcast %102 : vector<1x128xf32> to vector<288x128xf32>
    %104 = arith.mulf %101, %103 : vector<288x128xf32>
    %c0_81 = arith.constant 0 : index
    %c0_82 = arith.constant 0 : index
    %105 = vector.load %arg7[%c0_81, %c0_82] : memref<1x128xf32, #tpu.memory_space<vmem>>, vector<1x128xf32>
    %106 = vector.broadcast %105 : vector<1x128xf32> to vector<288x128xf32>
    %107 = arith.addf %104, %106 : vector<288x128xf32>
    %cst_83 = arith.constant 0.000000e+00 : f32
    %108 = vector.broadcast %cst_83 : f32 to vector<288x128xf32>
    %109 = arith.maximumf %107, %108 : vector<288x128xf32>
    %110 = vector.extract_strided_slice %109 {offsets = [0, 0], sizes = [288, 8], strides = [1, 1]} : vector<288x128xf32> to vector<288x8xf32>
    %c0_84 = arith.constant 0 : index
    %c0_85 = arith.constant 0 : index
    %c0_86 = arith.constant 0 : index
    %111 = vector.load %arg8[%c0_84, %c0_85, %c0_86] : memref<1x288x8xf32, #tpu.memory_space<vmem>>, vector<1x288x8xf32>
    %112 = vector.shape_cast %111 : vector<1x288x8xf32> to vector<288x8xf32>
    %113 = vector.shape_cast %110 : vector<288x8xf32> to vector<1x288x8xf32>
    tpu.vector_store %arg8[%c0_84, %c0_85, %c0_86], %113 {strides = array<i32>} : memref<1x288x8xf32, #tpu.memory_space<vmem>>, vector<1x288x8xf32>,
    return
  }
  func.func @transform_0(%arg0: i32) -> (i32, i32, i32) {
    %c0_i32 = arith.constant 0 : i32
    %c0_i32_0 = arith.constant 0 : i32
    %c0_i32_1 = arith.constant 0 : i32
    return %arg0, %c0_i32, %c0_i32_0 : i32, i32, i32
  }
  func.func @transform_1(%arg0: i32) -> (i32, i32) {
    %c0_i32 = arith.constant 0 : i32
    %c0_i32_0 = arith.constant 0 : i32
    %c0_i32_1 = arith.constant 0 : i32
    return %c0_i32, %c0_i32_0 : i32, i32
  }
  func.func @transform_2(%arg0: i32) -> (i32, i32) {
    %c0_i32 = arith.constant 0 : i32
    %c0_i32_0 = arith.constant 0 : i32
    %c0_i32_1 = arith.constant 0 : i32
    return %c0_i32, %c0_i32_0 : i32, i32
  }
  func.func @transform_3(%arg0: i32) -> (i32, i32) {
    %c0_i32 = arith.constant 0 : i32
    %c0_i32_0 = arith.constant 0 : i32
    %c0_i32_1 = arith.constant 0 : i32
    return %c0_i32, %c0_i32_0 : i32, i32
  }
  func.func @transform_4(%arg0: i32) -> (i32, i32) {
    %c0_i32 = arith.constant 0 : i32
    %c0_i32_0 = arith.constant 0 : i32
    %c0_i32_1 = arith.constant 0 : i32
    return %c0_i32, %c0_i32_0 : i32, i32
  }
  func.func @transform_5(%arg0: i32) -> (i32, i32) {
    %c0_i32 = arith.constant 0 : i32
    %c0_i32_0 = arith.constant 0 : i32
    %c0_i32_1 = arith.constant 0 : i32
    return %c0_i32, %c0_i32_0 : i32, i32
  }
  func.func @transform_6(%arg0: i32) -> (i32, i32) {
    %c0_i32 = arith.constant 0 : i32
    %c0_i32_0 = arith.constant 0 : i32
    %c0_i32_1 = arith.constant 0 : i32
    return %c0_i32, %c0_i32_0 : i32, i32
  }
  func.func @transform_7(%arg0: i32) -> (i32, i32, i32) {
    %c0_i32 = arith.constant 0 : i32
    %c0_i32_0 = arith.constant 0 : i32
    %c0_i32_1 = arith.constant 0 : i32
    return %arg0, %c0_i32, %c0_i32_0 : i32, i32, i32
  }
}

</mosaic_0001>

<llo_original>
// kernel: tpu_custom_call.1
$region0: #{tpu_custom_call.1}
  #allocation0 [shape = 'u32[]', space=smem, size = 0x4, offset = 0x4, fixed_abs, tag = 'smem constant byte address 0x4 - core index']
  #allocation1 [shape = 'u32[144,128]{1,0:T(1,128)}', space=vmem, size = 0x12000, scoped, tag = 'internal scratch']
  #allocation2 [shape = 'f32[342,128]{1,0:T(8,128)}', space=vmem, size = 0x2b000, scoped, tag = 'scratch operand']
  #allocation3 [shape = 'f32[331,128]{1,0:T(8,128)}', space=vmem, size = 0x2a000, scoped, tag = 'scratch operand']
  #allocation4 [shape = 'bf16[288,1152]{1,0:T(16,128)(2,1)}', space=vmem, size = 0xa2000, scoped, tag = 'scratch operand']
  %s0 = inlined_call_operand.vmem [shape: bf16[2,342,4], index: 0, kind: input, shape index: {}]
  %s1 = inlined_call_operand.hbm [shape: bf16[1152,128], index: 1, kind: input, shape index: {}]
  %s2 = inlined_call_operand.vmem [shape: f32[1,128], index: 2, kind: input, shape index: {}]
  %s3 = inlined_call_operand.vmem [shape: f32[1,128], index: 3, kind: input, shape index: {}]
  %s4 = inlined_call_operand.hbm [shape: bf16[1152,128], index: 4, kind: input, shape index: {}]
  %s5 = inlined_call_operand.vmem [shape: f32[1,128], index: 5, kind: input, shape index: {}]
  %s6 = inlined_call_operand.vmem [shape: f32[1,128], index: 6, kind: input, shape index: {}]
  %s7 = inlined_call_operand.vmem [shape: f32[2,288,8], index: 7, kind: output, shape index: {}]
  %s8 = sld [smem:[#allocation0]]
  $region69: #{tpu_custom_call.1} parent=0
    _
  %s10 = ssub.s32 1, %s8
  %s11 = scalar_select 0, %s10, %s8
  $region1: #{tpu_custom_call.1} parent=0
    #allocation5 [shape = 'u8[294912]{0}', space=vmem, size = 0x48000, scoped, tag = 'input window, operand 1, single buffered']
    #allocation6 [shape = 's32[2]{0}', space=sflag, size = 0x8, scoped, tag = 'scoped memory for tpu_custom_call.1']
    #allocation7 [shape = 'u8[294912]{0}', space=vmem, size = 0x48000, scoped, tag = 'input window, operand 4, single buffered']
    #allocation8 [shape = 's32[1]{0}', space=sflag, size = 0x4, scoped, tag = 'scoped memory for tpu_custom_call.1']
    %12 = vsyncpa [#allocation6], 0
    %13 = vsyncpa [#allocation8], 0
    loop: start=0, step=1, limit=4
    $region2: #{tpu_custom_call.1} parent=1 // loop_pre_header
      _
    $region3: #{tpu_custom_call.1} parent=1 // loop_header
      %s15 = sphi 0, %s19
      %p16 = scmp.ge.s32.totalorder %s15, 4
      %s25 = sphi 0, %s27
      %s28 = sphi 0, %s25
      %s29 = sphi 0, %s28
      %s45 = sphi 0, %s29
      %s49 = sphi 0, %s49
      %s51 = sphi 0, %s49
      %s52 = sphi 0, %s51
      %s66 = sphi 0, %s52
      %s70 = sphi 0, %s70
      %s72 = sphi 0, %s70
      %s73 = sphi 0, %s72
      %s87 = sphi 0, %s73
      %s91 = sphi 0, %s91
      %s93 = sphi 0, %s91
      %s94 = sphi 0, %s93
      %s108 = sphi 0, %s94
      %s112 = sphi 0, %s112
      %s114 = sphi 0, %s112
      %s115 = sphi 0, %s114
      %s129 = sphi 0, %s115
      %s133 = sphi 0, %s133
      %s135 = sphi 0, %s133
      %s136 = sphi 0, %s135
      %s150 = sphi 0, %s136
      %s154 = sphi 0, %s154
      %s156 = sphi 0, %s154
      %s157 = sphi 0, %s156
      %s171 = sphi 0, %s157
      %s177 = sphi 0, %s179
      %s180 = sphi 0, %s177
      %s181 = sphi 0, %s180
      %s197 = sphi 0, %s181
    $region4: #{tpu_custom_call.1} parent=1 // loop_header_branch
      %18 = sbr.rel (%p16) target = $region8
    $region5: #{tpu_custom_call.1} parent=1 // loop_body
      %s20 = ssub.s32 %s15, 1
      %s21 = ssub.s32 %s15, 2
      %s22 = sadd.s32 %s15, 1
      %s23 = ssub.s32 %s15, %s22
      %p24 = scmp.eq.s32.totalorder %s23, 0
      %s26 = sadd.s32 %s25, 1
      %s27 = scalar_select %p24, %s25, %s26
      %p30 = pneg %p24
      %p31 = scmp.eq.s32.totalorder %s15, 1
      %p32 = por %p30, %p31
      %p33 = scmp.ne.s32.totalorder %s25, %s28
      %p34 = scmp.eq.s32.totalorder %s15, 0
      %p35 = por %p33, %p34
      %p36 = scmp.ne.s32.totalorder %s25, %s28
      %p37 = scmp.eq.s32.totalorder %s20, 1
      %p38 = por %p36, %p37
      %p39 = scmp.ne.s32.totalorder %s28, %s29
      %p40 = scmp.eq.s32.totalorder %s20, 0
      %p41 = por %p39, %p40
      %p42 = scmp.ne.s32.totalorder %s28, %s29
      %p43 = scmp.eq.s32.totalorder %s21, 1
      %p44 = por %p42, %p43
      %p46 = scmp.ne.s32.totalorder %s29, %s45
      %p47 = scmp.eq.s32.totalorder %s21, 0
      %p48 = por %p46, %p47
      %s50 = sadd.s32 %s49, 1
      %p53 = scmp.eq.s32.totalorder %s15, 1
      %p54 = scmp.ne.s32.totalorder %s49, %s51
      %p55 = scmp.eq.s32.totalorder %s15, 0
      %p56 = por %p54, %p55
      %p57 = scmp.ne.s32.totalorder %s49, %s51
      %p58 = scmp.eq.s32.totalorder %s20, 1
      %p59 = por %p57, %p58
      %p60 = scmp.ne.s32.totalorder %s51, %s52
      %p61 = scmp.eq.s32.totalorder %s20, 0
      %p62 = por %p60, %p61
      %p63 = scmp.ne.s32.totalorder %s51, %s52
      %p64 = scmp.eq.s32.totalorder %s21, 1
      %p65 = por %p63, %p64
      %p67 = scmp.ne.s32.totalorder %s52, %s66
      %p68 = scmp.eq.s32.totalorder %s21, 0
      %p69 = por %p67, %p68
      %s71 = sadd.s32 %s70, 1
      %p74 = scmp.eq.s32.totalorder %s15, 1
      %p75 = scmp.ne.s32.totalorder %s70, %s72
      %p76 = scmp.eq.s32.totalorder %s15, 0
      %p77 = por %p75, %p76
      %p78 = scmp.ne.s32.totalorder %s70, %s72
      %p79 = scmp.eq.s32.totalorder %s20, 1
      %p80 = por %p78, %p79
      %p81 = scmp.ne.s32.totalorder %s72, %s73
      %p82 = scmp.eq.s32.totalorder %s20, 0
      %p83 = por %p81, %p82
      %p84 = scmp.ne.s32.totalorder %s72, %s73
      %p85 = scmp.eq.s32.totalorder %s21, 1
      %p86 = por %p84, %p85
      %p88 = scmp.ne.s32.totalorder %s73, %s87
      %p89 = scmp.eq.s32.totalorder %s21, 0
      %p90 = por %p88, %p89
      %s92 = sadd.s32 %s91, 1
      %p95 = scmp.eq.s32.totalorder %s15, 1
      %p96 = scmp.ne.s32.totalorder %s91, %s93
      %p97 = scmp.eq.s32.totalorder %s15, 0
      %p98 = por %p96, %p97
      %p99 = scmp.ne.s32.totalorder %s91, %s93
      %p100 = scmp.eq.s32.totalorder %s20, 1
      %p101 = por %p99, %p100
      %p102 = scmp.ne.s32.totalorder %s93, %s94
      %p103 = scmp.eq.s32.totalorder %s20, 0
      %p104 = por %p102, %p103
      %p105 = scmp.ne.s32.totalorder %s93, %s94
      %p106 = scmp.eq.s32.totalorder %s21, 1
      %p107 = por %p105, %p106
      %p109 = scmp.ne.s32.totalorder %s94, %s108
      %p110 = scmp.eq.s32.totalorder %s21, 0
      %p111 = por %p109, %p110
      %s113 = sadd.s32 %s112, 1
      %p116 = scmp.eq.s32.totalorder %s15, 1
      %p117 = scmp.ne.s32.totalorder %s112, %s114
      %p118 = scmp.eq.s32.totalorder %s15, 0
      %p119 = por %p117, %p118
      %p120 = scmp.ne.s32.totalorder %s112, %s114
      %p121 = scmp.eq.s32.totalorder %s20, 1
      %p122 = por %p120, %p121
      %p123 = scmp.ne.s32.totalorder %s114, %s115
      %p124 = scmp.eq.s32.totalorder %s20, 0
      %p125 = por %p123, %p124
      %p126 = scmp.ne.s32.totalorder %s114, %s115
      %p127 = scmp.eq.s32.totalorder %s21, 1
      %p128 = por %p126, %p127
      %p130 = scmp.ne.s32.totalorder %s115, %s129
      %p131 = scmp.eq.s32.totalorder %s21, 0
      %p132 = por %p130, %p131
      %s134 = sadd.s32 %s133, 1
      %p137 = scmp.eq.s32.totalorder %s15, 1
      %p138 = scmp.ne.s32.totalorder %s133, %s135
      %p139 = scmp.eq.s32.totalorder %s15, 0
      %p140 = por %p138, %p139
      %p141 = scmp.ne.s32.totalorder %s133, %s135
      %p142 = scmp.eq.s32.totalorder %s20, 1
      %p143 = por %p141, %p142
      %p144 = scmp.ne.s32.totalorder %s135, %s136
      %p145 = scmp.eq.s32.totalorder %s20, 0
      %p146 = por %p144, %p145
      %p147 = scmp.ne.s32.totalorder %s135, %s136
      %p148 = scmp.eq.s32.totalorder %s21, 1
      %p149 = por %p147, %p148
      %p151 = scmp.ne.s32.totalorder %s136, %s150
      %p152 = scmp.eq.s32.totalorder %s21, 0
      %p153 = por %p151, %p152
      %s155 = sadd.s32 %s154, 1
      %p158 = scmp.eq.s32.totalorder %s15, 1
      %p159 = scmp.ne.s32.totalorder %s154, %s156
      %p160 = scmp.eq.s32.totalorder %s15, 0
      %p161 = por %p159, %p160
      %p162 = scmp.ne.s32.totalorder %s154, %s156
      %p163 = scmp.eq.s32.totalorder %s20, 1
      %p164 = por %p162, %p163
      %p165 = scmp.ne.s32.totalorder %s156, %s157
      %p166 = scmp.eq.s32.totalorder %s20, 0
      %p167 = por %p165, %p166
      %p168 = scmp.ne.s32.totalorder %s156, %s157
      %p169 = scmp.eq.s32.totalorder %s21, 1
      %p170 = por %p168, %p169
      %p172 = scmp.ne.s32.totalorder %s157, %s171
      %p173 = scmp.eq.s32.totalorder %s21, 0
      %p174 = por %p172, %p173
      %s175 = ssub.s32 %s15, %s22
      %p176 = scmp.eq.s32.totalorder %s175, 0
      %s178 = sadd.s32 %s177, 1
      %s179 = scalar_select %p176, %s177, %s178
      %p182 = pneg %p176
      %p183 = scmp.eq.s32.totalorder %s15, 1
      %p184 = por %p182, %p183
      %p185 = scmp.ne.s32.totalorder %s177, %s180
      %p186 = scmp.eq.s32.totalorder %s15, 0
      %p187 = por %p185, %p186
      %p188 = scmp.ne.s32.totalorder %s177, %s180
      %p189 = scmp.eq.s32.totalorder %s20, 1
      %p190 = por %p188, %p189
      %p191 = scmp.ne.s32.totalorder %s180, %s181
      %p192 = scmp.eq.s32.totalorder %s20, 0
      %p193 = por %p191, %p192
      %p194 = scmp.ne.s32.totalorder %s180, %s181
      %p195 = scmp.eq.s32.totalorder %s21, 1
      %p196 = por %p194, %p195
      %p198 = scmp.ne.s32.totalorder %s181, %s197
      %p199 = scmp.eq.s32.totalorder %s21, 0
      %p200 = por %p198, %p199
      %p201 = scmp.le.s32.totalorder 1, %s15
      %p202 = scmp.lt.s32.totalorder %s15, 3
      %p203 = pnand %p201, %p202
      %p204 = pneg %p203
      // Predicated region
      $region9: #{tpu_custom_call.1} parent=5 // pred_check
        _
      $region10: #{tpu_custom_call.1} parent=5 // pred_check_branch
        %206 = sbr.rel (%p203) target = $region12
      $region11: #{tpu_custom_call.1} parent=5 // pred_region
        %s207 = ssub.s32 %s15, 1
        // Predicated region
        $region13: #{tpu_custom_call.1} parent=11 // pred_check
          %p208 = pneg %p62
        $region14: #{tpu_custom_call.1} parent=11 // pred_check_branch
          %210 = sbr.rel (%p208) target = $region16
        $region15: #{tpu_custom_call.1} parent=11 // pred_region
          %s212 = ssub.s32 9216, 9216
          %213 = vsyncadd [#allocation6], %s212
          %s214 = sshll.u32 [#allocation5], 4
          %s215 = int_to_ptr.vmem [resolvable:$true] %s214
          %220 = dma.hbm_to_vmem [thread:$0]  %s1, 9216, %s215, [#allocation6], 64, 64, 4
        $region16: #{tpu_custom_call.1} parent=11 // pred_fallthru
          _
        // Predicated region
        $region17: #{tpu_custom_call.1} parent=11 // pred_check
          %p221 = pneg %p83
        $region18: #{tpu_custom_call.1} parent=11 // pred_check_branch
          %223 = sbr.rel (%p221) target = $region20
        $region19: #{tpu_custom_call.1} parent=11 // pred_region
          _
        $region20: #{tpu_custom_call.1} parent=11 // pred_fallthru
          _
        // Predicated region
        $region21: #{tpu_custom_call.1} parent=11 // pred_check
          %p224 = pneg %p104
        $region22: #{tpu_custom_call.1} parent=11 // pred_check_branch
          %226 = sbr.rel (%p224) target = $region24
        $region23: #{tpu_custom_call.1} parent=11 // pred_region
          _
        $region24: #{tpu_custom_call.1} parent=11 // pred_fallthru
          _
        // Predicated region
        $region25: #{tpu_custom_call.1} parent=11 // pred_check
          %p227 = pneg %p125
        $region26: #{tpu_custom_call.1} parent=11 // pred_check_branch
          %229 = sbr.rel (%p227) target = $region28
        $region27: #{tpu_custom_call.1} parent=11 // pred_region
          %s231 = ssub.s32 9216, 9216
          %232 = vsyncadd [#allocation8], %s231
          %s233 = sshll.u32 [#allocation7], 4
          %s234 = int_to_ptr.vmem [resolvable:$true] %s233
          %239 = dma.hbm_to_vmem [thread:$0]  %s4, 9216, %s234, [#allocation8], 64, 64, 4
        $region28: #{tpu_custom_call.1} parent=11 // pred_fallthru
          _
        // Predicated region
        $region29: #{tpu_custom_call.1} parent=11 // pred_check
          %p240 = pneg %p146
        $region30: #{tpu_custom_call.1} parent=11 // pred_check_branch
          %242 = sbr.rel (%p240) target = $region32
        $region31: #{tpu_custom_call.1} parent=11 // pred_region
          _
        $region32: #{tpu_custom_call.1} parent=11 // pred_fallthru
          _
        // Predicated region
        $region33: #{tpu_custom_call.1} parent=11 // pred_check
          %p243 = pneg %p167
        $region34: #{tpu_custom_call.1} parent=11 // pred_check_branch
          %245 = sbr.rel (%p243) target = $region36
        $region35: #{tpu_custom_call.1} parent=11 // pred_region
          _
        $region36: #{tpu_custom_call.1} parent=11 // pred_fallthru
          _
      $region12: #{tpu_custom_call.1} parent=5 // pred_fallthru
        _
      %p246 = scmp.lt.s32.totalorder %s15, 2
      // Predicated region
      $region37: #{tpu_custom_call.1} parent=5 // pred_check
        %p247 = pneg %p246
      $region38: #{tpu_custom_call.1} parent=5 // pred_check_branch
        %249 = sbr.rel (%p247) target = $region40
      $region39: #{tpu_custom_call.1} parent=5 // pred_region
        // Predicated region
        $region41: #{tpu_custom_call.1} parent=39 // pred_check
          %p250 = pneg %p35
        $region42: #{tpu_custom_call.1} parent=39 // pred_check_branch
          %252 = sbr.rel (%p250) target = $region44
        $region43: #{tpu_custom_call.1} parent=39 // pred_region
          %p253 = scmp.lt.s32.totalorder %s15, 1
          %s254 = scalar_select %p253, %s15, 1
          %s255 = smul.addr %s254, 43
          %s256 = smul.addr %s255, 4
          %s257 = scalar_lea.vmem %s0, %s256
        $region44: #{tpu_custom_call.1} parent=39 // pred_fallthru
          _
      $region40: #{tpu_custom_call.1} parent=5 // pred_fallthru
        _
      %p258 = scmp.le.s32.totalorder 1, %s15
      %p259 = scmp.lt.s32.totalorder %s15, 3
      %p260 = pnand %p258, %p259
      %p261 = pneg %p260
      // Predicated region
      $region45: #{tpu_custom_call.1} parent=5 // pred_check
        _
      $region46: #{tpu_custom_call.1} parent=5 // pred_check_branch
        %263 = sbr.rel (%p260) target = $region48
      $region47: #{tpu_custom_call.1} parent=5 // pred_region
        %s264 = ssub.s32 %s15, 1
        // Predicated region
        $region49: #{tpu_custom_call.1} parent=47 // pred_check
          %p265 = pneg %p62
        $region50: #{tpu_custom_call.1} parent=47 // pred_check_branch
          %267 = sbr.rel (%p265) target = $region52
        $region51: #{tpu_custom_call.1} parent=47 // pred_region
          %268 = dma.done [#allocation6], 9216
        $region52: #{tpu_custom_call.1} parent=47 // pred_fallthru
          _
        // Predicated region
        $region53: #{tpu_custom_call.1} parent=47 // pred_check
          %p269 = pneg %p125
        $region54: #{tpu_custom_call.1} parent=47 // pred_check_branch
          %271 = sbr.rel (%p269) target = $region56
        $region55: #{tpu_custom_call.1} parent=47 // pred_region
          %272 = dma.done [#allocation8], 9216
        $region56: #{tpu_custom_call.1} parent=47 // pred_fallthru
          _
        %p273 = scmp.lt.s32.totalorder %s20, 1
        %s274 = scalar_select %p273, %s20, 1
        %s275 = smul.addr %s274, 43
        %s276 = smul.addr %s275, 4
        %s277 = scalar_lea.vmem %s0, %s276
        %p278 = pneg %p41
        %p279 = pneg %p38
        %p280 = pneg %p62
        %p281 = pneg %p59
        %p282 = pneg %p83
        %p283 = pneg %p80
        %p284 = pneg %p104
        %p285 = pneg %p101
        %p286 = pneg %p125
        %p287 = pneg %p122
        %p288 = pneg %p146
        %p289 = pneg %p143
        %p290 = pneg %p167
        %p291 = pneg %p164
        %p292 = pneg %p193
        %p293 = pneg %p190
        %p294 = scmp.lt.s32.totalorder %s20, 1
        %s295 = scalar_select %p294, %s20, 1
        %s296 = smul.addr %s295, 36
        %s297 = smul.addr %s296, 8
        %s298 = scalar_lea.vmem %s7, %s297
        %p299 = scmp.lt.s32.totalorder %s20, 1
        %s300 = scalar_select %p299, %s20, 1
        %s301 = smul.addr %s300, 43
        %s302 = smul.addr %s301, 4
        %s303 = scalar_lea.vmem %s0, %s302
        %p304 = scmp.lt.s32.totalorder %s20, 1
        %s305 = scalar_select %p304, %s20, 1
        %s306 = smul.addr %s305, 36
        %s307 = smul.addr %s306, 8
        %s308 = scalar_lea.vmem %s7, %s307
        %310 = vst [vmem:[#allocation2] sm:$0xff] 0.0
        %311 = vst [vmem:[#allocation2 + $0x8] sm:$0xff] 0.0
        %312 = vst [vmem:[#allocation2 + $0x10] sm:$0xff] 0.0
        %313 = vst [vmem:[#allocation2 + $0x18] sm:$0xff] 0.0
        %314 = vst [vmem:[#allocation2 + $0x20] sm:$0xff] 0.0
        %315 = vst [vmem:[#allocation2 + $0x28] sm:$0xff] 0.0
        %316 = vst [vmem:[#allocation2 + $0x30] sm:$0xff] 0.0
        %317 = vst [vmem:[#allocation2 + $0x38] sm:$0xff] 0.0
        %318 = vst [vmem:[#allocation2 + $0x40] sm:$0xff] 0.0
        %319 = vst [vmem:[#allocation2 + $0x48] sm:$0xff] 0.0
        %320 = vst [vmem:[#allocation2 + $0x50] sm:$0xff] 0.0
        %321 = vst [vmem:[#allocation2 + $0x58] sm:$0xff] 0.0
        %322 = vst [vmem:[#allocation2 + $0x60] sm:$0xff] 0.0
        %323 = vst [vmem:[#allocation2 + $0x68] sm:$0xff] 0.0
        %324 = vst [vmem:[#allocation2 + $0x70] sm:$0xff] 0.0
        %325 = vst [vmem:[#allocation2 + $0x78] sm:$0xff] 0.0
        %326 = vst [vmem:[#allocation2 + $0x80] sm:$0xff] 0.0
        %327 = vst [vmem:[#allocation2 + $0x88] sm:$0xff] 0.0
        %328 = vst [vmem:[#allocation2 + $0x90] sm:$0xff] 0.0
        %329 = vst [vmem:[#allocation2 + $0x98] sm:$0xff] 0.0
        %330 = vst [vmem:[#allocation2 + $0xa0] sm:$0xff] 0.0
        %331 = vst [vmem:[#allocation2 + $0xa8] sm:$0xff] 0.0
        %332 = vst [vmem:[#allocation2 + $0xb0] sm:$0xff] 0.0
        %333 = vst [vmem:[#allocation2 + $0xb8] sm:$0xff] 0.0
        %334 = vst [vmem:[#allocation2 + $0xc0] sm:$0xff] 0.0
        %335 = vst [vmem:[#allocation2 + $0xc8] sm:$0xff] 0.0
        %336 = vst [vmem:[#allocation2 + $0xd0] sm:$0xff] 0.0
        %337 = vst [vmem:[#allocation2 + $0xd8] sm:$0xff] 0.0
        %338 = vst [vmem:[#allocation2 + $0xe0] sm:$0xff] 0.0
        %339 = vst [vmem:[#allocation2 + $0xe8] sm:$0xff] 0.0
        %340 = vst [vmem:[#allocation2 + $0xf0] sm:$0xff] 0.0
        %341 = vst [vmem:[#allocation2 + $0xf8] sm:$0xff] 0.0
        %342 = vst [vmem:[#allocation2 + $0x100] sm:$0xff] 0.0
        %343 = vst [vmem:[#allocation2 + $0x108] sm:$0xff] 0.0
        %344 = vst [vmem:[#allocation2 + $0x110] sm:$0xff] 0.0
        %345 = vst [vmem:[#allocation2 + $0x118] sm:$0xff] 0.0
        %346 = vst [vmem:[#allocation2 + $0x120] sm:$0xff] 0.0
        %347 = vst [vmem:[#allocation2 + $0x128] sm:$0xff] 0.0
        %348 = vst [vmem:[#allocation2 + $0x130] sm:$0xff] 0.0
        %349 = vst [vmem:[#allocation2 + $0x138] sm:$0xff] 0.0
        %350 = vst [vmem:[#allocation2 + $0x140] sm:$0xff] 0.0
        %351 = vst [vmem:[#allocation2 + $0x148] sm:$0xff] 0.0
        %352 = vst [vmem:[#allocation2 + $0x150] sm:$0x3f] 0.0
        %353 = vst [vmem:[#allocation3] sm:$0xff] 0.0
        %354 = vst [vmem:[#allocation3 + $0x8] sm:$0xff] 0.0
        %355 = vst [vmem:[#allocation3 + $0x10] sm:$0xff] 0.0
        %356 = vst [vmem:[#allocation3 + $0x138] sm:$0xff] 0.0
        %357 = vst [vmem:[#allocation3 + $0x140] sm:$0xff] 0.0
        %358 = vst [vmem:[#allocation3 + $0x148] sm:$0x7] 0.0
        %v359 = vlaneseq
        %v360 = vshrl.u32 %v359, 7
        %v361 = vadd.s32 %v360, 8
        %v362 = vadd.s32 %v360, 16
        %v363 = vadd.s32 %v360, 24
        %v364 = vadd.s32 %v360, 32
        %v365 = vadd.s32 %v360, 40
        %v366 = vadd.s32 %v360, 48
        %v367 = vadd.s32 %v360, 56
        %v368 = vadd.s32 %v360, 64
        %v369 = vadd.s32 %v360, 72
        %v370 = vadd.s32 %v360, 80
        %v371 = vadd.s32 %v360, 88
        %v372 = vadd.s32 %v360, 96
        %v373 = vadd.s32 %v360, 104
        %v374 = vadd.s32 %v360, 112
        %v375 = vadd.s32 %v360, 120
        %v376 = vadd.s32 %v360, 128
        %v377 = vadd.s32 %v360, 136
        %v378 = vadd.s32 %v360, 144
        %v379 = vadd.s32 %v360, 152
        %v380 = vadd.s32 %v360, 160
        %v381 = vadd.s32 %v360, 168
        %v382 = vadd.s32 %v360, 176
        %v383 = vadd.s32 %v360, 184
        %v384 = vadd.s32 %v360, 192
        %v385 = vadd.s32 %v360, 200
        %v386 = vadd.s32 %v360, 208
        %v387 = vadd.s32 %v360, 216
        %v388 = vadd.s32 %v360, 224
        %v389 = vadd.s32 %v360, 232
        %v390 = vadd.s32 %v360, 240
        %v391 = vadd.s32 %v360, 248
        %v392 = vadd.s32 %v360, 256
        %v393 = vadd.s32 %v360, 264
        %v394 = vadd.s32 %v360, 272
        %v395 = vadd.s32 %v360, 280
        %vm396 = vcmp.lt.s32.totalorder %v360, 0
        %v397 = vsub.s32 0, %v360
        %v398 = vsel %vm396, %v397, %v360
        %v399 = vmul.u32.u64.compose %v398, 3817748708
        %v400 = vextract.low.u32 %v399
        %v401 = vextract.high.u32 %v399
        %v402 = vshrl.u32 %v401, 4
        %v403 = vmul.u32 %v402, 18
        %v404 = vsub.s32 %v398, %v403
        %v405 = vsub.s32 0, %v404
        %v406 = vsel %vm396, %v405, %v404
        %vm407 = vcmp.lt.s32.totalorder %v361, 0
        %v408 = vsub.s32 0, %v361
        %v409 = vsel %vm407, %v408, %v361
        %v410 = vmul.u32.u64.compose %v409, 3817748708
        %v411 = vextract.low.u32 %v410
        %v412 = vextract.high.u32 %v410
        %v413 = vshrl.u32 %v412, 4
        %v414 = vmul.u32 %v413, 18
        %v415 = vsub.s32 %v409, %v414
        %v416 = vsub.s32 0, %v415
        %v417 = vsel %vm407, %v416, %v415
        %vm418 = vcmp.lt.s32.totalorder %v362, 0
        %v419 = vsub.s32 0, %v362
        %v420 = vsel %vm418, %v419, %v362
        %v421 = vmul.u32.u64.compose %v420, 3817748708
        %v422 = vextract.low.u32 %v421
        %v423 = vextract.high.u32 %v421
        %v424 = vshrl.u32 %v423, 4
        %v425 = vmul.u32 %v424, 18
        %v426 = vsub.s32 %v420, %v425
        %v427 = vsub.s32 0, %v426
        %v428 = vsel %vm418, %v427, %v426
        %vm429 = vcmp.lt.s32.totalorder %v363, 0
        %v430 = vsub.s32 0, %v363
        %v431 = vsel %vm429, %v430, %v363
        %v432 = vmul.u32.u64.compose %v431, 3817748708
        %v433 = vextract.low.u32 %v432
        %v434 = vextract.high.u32 %v432
        %v435 = vshrl.u32 %v434, 4
        %v436 = vmul.u32 %v435, 18
        %v437 = vsub.s32 %v431, %v436
        %v438 = vsub.s32 0, %v437
        %v439 = vsel %vm429, %v438, %v437
        %vm440 = vcmp.lt.s32.totalorder %v364, 0
        %v441 = vsub.s32 0, %v364
        %v442 = vsel %vm440, %v441, %v364
        %v443 = vmul.u32.u64.compose %v442, 3817748708
        %v444 = vextract.low.u32 %v443
        %v445 = vextract.high.u32 %v443
        %v446 = vshrl.u32 %v445, 4
        %v447 = vmul.u32 %v446, 18
        %v448 = vsub.s32 %v442, %v447
        %v449 = vsub.s32 0, %v448
        %v450 = vsel %vm440, %v449, %v448
        %vm451 = vcmp.lt.s32.totalorder %v365, 0
        %v452 = vsub.s32 0, %v365
        %v453 = vsel %vm451, %v452, %v365
        %v454 = vmul.u32.u64.compose %v453, 3817748708
        %v455 = vextract.low.u32 %v454
        %v456 = vextract.high.u32 %v454
        %v457 = vshrl.u32 %v456, 4
        %v458 = vmul.u32 %v457, 18
        %v459 = vsub.s32 %v453, %v458
        %v460 = vsub.s32 0, %v459
        %v461 = vsel %vm451, %v460, %v459
        %vm462 = vcmp.lt.s32.totalorder %v366, 0
        %v463 = vsub.s32 0, %v366
        %v464 = vsel %vm462, %v463, %v366
        %v465 = vmul.u32.u64.compose %v464, 3817748708
        %v466 = vextract.low.u32 %v465
        %v467 = vextract.high.u32 %v465
        %v468 = vshrl.u32 %v467, 4
        %v469 = vmul.u32 %v468, 18
        %v470 = vsub.s32 %v464, %v469
        %v471 = vsub.s32 0, %v470
        %v472 = vsel %vm462, %v471, %v470
        %vm473 = vcmp.lt.s32.totalorder %v367, 0
        %v474 = vsub.s32 0, %v367
        %v475 = vsel %vm473, %v474, %v367
        %v476 = vmul.u32.u64.compose %v475, 3817748708
        %v477 = vextract.low.u32 %v476
        %v478 = vextract.high.u32 %v476
        %v479 = vshrl.u32 %v478, 4
        %v480 = vmul.u32 %v479, 18
        %v481 = vsub.s32 %v475, %v480
        %v482 = vsub.s32 0, %v481
        %v483 = vsel %vm473, %v482, %v481
        %vm484 = vcmp.lt.s32.totalorder %v368, 0
        %v485 = vsub.s32 0, %v368
        %v486 = vsel %vm484, %v485, %v368
        %v487 = vmul.u32.u64.compose %v486, 3817748708
        %v488 = vextract.low.u32 %v487
        %v489 = vextract.high.u32 %v487
        %v490 = vshrl.u32 %v489, 4
        %v491 = vmul.u32 %v490, 18
        %v492 = vsub.s32 %v486, %v491
        %v493 = vsub.s32 0, %v492
        %v494 = vsel %vm484, %v493, %v492
        %vm495 = vcmp.lt.s32.totalorder %v369, 0
        %v496 = vsub.s32 0, %v369
        %v497 = vsel %vm495, %v496, %v369
        %v498 = vmul.u32.u64.compose %v497, 3817748708
        %v499 = vextract.low.u32 %v498
        %v500 = vextract.high.u32 %v498
        %v501 = vshrl.u32 %v500, 4
        %v502 = vmul.u32 %v501, 18
        %v503 = vsub.s32 %v497, %v502
        %v504 = vsub.s32 0, %v503
        %v505 = vsel %vm495, %v504, %v503
        %vm506 = vcmp.lt.s32.totalorder %v370, 0
        %v507 = vsub.s32 0, %v370
        %v508 = vsel %vm506, %v507, %v370
        %v509 = vmul.u32.u64.compose %v508, 3817748708
        %v510 = vextract.low.u32 %v509
        %v511 = vextract.high.u32 %v509
        %v512 = vshrl.u32 %v511, 4
        %v513 = vmul.u32 %v512, 18
        %v514 = vsub.s32 %v508, %v513
        %v515 = vsub.s32 0, %v514
        %v516 = vsel %vm506, %v515, %v514
        %vm517 = vcmp.lt.s32.totalorder %v371, 0
        %v518 = vsub.s32 0, %v371
        %v519 = vsel %vm517, %v518, %v371
        %v520 = vmul.u32.u64.compose %v519, 3817748708
        %v521 = vextract.low.u32 %v520
        %v522 = vextract.high.u32 %v520
        %v523 = vshrl.u32 %v522, 4
        %v524 = vmul.u32 %v523, 18
        %v525 = vsub.s32 %v519, %v524
        %v526 = vsub.s32 0, %v525
        %v527 = vsel %vm517, %v526, %v525
        %vm528 = vcmp.lt.s32.totalorder %v372, 0
        %v529 = vsub.s32 0, %v372
        %v530 = vsel %vm528, %v529, %v372
        %v531 = vmul.u32.u64.compose %v530, 3817748708
        %v532 = vextract.low.u32 %v531
        %v533 = vextract.high.u32 %v531
        %v534 = vshrl.u32 %v533, 4
        %v535 = vmul.u32 %v534, 18
        %v536 = vsub.s32 %v530, %v535
        %v537 = vsub.s32 0, %v536
        %v538 = vsel %vm528, %v537, %v536
        %vm539 = vcmp.lt.s32.totalorder %v373, 0
        %v540 = vsub.s32 0, %v373
        %v541 = vsel %vm539, %v540, %v373
        %v542 = vmul.u32.u64.compose %v541, 3817748708
        %v543 = vextract.low.u32 %v542
        %v544 = vextract.high.u32 %v542
        %v545 = vshrl.u32 %v544, 4
        %v546 = vmul.u32 %v545, 18
        %v547 = vsub.s32 %v541, %v546
        %v548 = vsub.s32 0, %v547
        %v549 = vsel %vm539, %v548, %v547
        %vm550 = vcmp.lt.s32.totalorder %v374, 0
        %v551 = vsub.s32 0, %v374
        %v552 = vsel %vm550, %v551, %v374
        %v553 = vmul.u32.u64.compose %v552, 3817748708
        %v554 = vextract.low.u32 %v553
        %v555 = vextract.high.u32 %v553
        %v556 = vshrl.u32 %v555, 4
        %v557 = vmul.u32 %v556, 18
        %v558 = vsub.s32 %v552, %v557
        %v559 = vsub.s32 0, %v558
        %v560 = vsel %vm550, %v559, %v558
        %vm561 = vcmp.lt.s32.totalorder %v375, 0
        %v562 = vsub.s32 0, %v375
        %v563 = vsel %vm561, %v562, %v375
        %v564 = vmul.u32.u64.compose %v563, 3817748708
        %v565 = vextract.low.u32 %v564
        %v566 = vextract.high.u32 %v564
        %v567 = vshrl.u32 %v566, 4
        %v568 = vmul.u32 %v567, 18
        %v569 = vsub.s32 %v563, %v568
        %v570 = vsub.s32 0, %v569
        %v571 = vsel %vm561, %v570, %v569
        %vm572 = vcmp.lt.s32.totalorder %v376, 0
        %v573 = vsub.s32 0, %v376
        %v574 = vsel %vm572, %v573, %v376
        %v575 = vmul.u32.u64.compose %v574, 3817748708
        %v576 = vextract.low.u32 %v575
        %v577 = vextract.high.u32 %v575
        %v578 = vshrl.u32 %v577, 4
        %v579 = vmul.u32 %v578, 18
        %v580 = vsub.s32 %v574, %v579
        %v581 = vsub.s32 0, %v580
        %v582 = vsel %vm572, %v581, %v580
        %vm583 = vcmp.lt.s32.totalorder %v377, 0
        %v584 = vsub.s32 0, %v377
        %v585 = vsel %vm583, %v584, %v377
        %v586 = vmul.u32.u64.compose %v585, 3817748708
        %v587 = vextract.low.u32 %v586
        %v588 = vextract.high.u32 %v586
        %v589 = vshrl.u32 %v588, 4
        %v590 = vmul.u32 %v589, 18
        %v591 = vsub.s32 %v585, %v590
        %v592 = vsub.s32 0, %v591
        %v593 = vsel %vm583, %v592, %v591
        %vm594 = vcmp.lt.s32.totalorder %v378, 0
        %v595 = vsub.s32 0, %v378
        %v596 = vsel %vm594, %v595, %v378
        %v597 = vmul.u32.u64.compose %v596, 3817748708
        %v598 = vextract.low.u32 %v597
        %v599 = vextract.high.u32 %v597
        %v600 = vshrl.u32 %v599, 4
        %v601 = vmul.u32 %v600, 18
        %v602 = vsub.s32 %v596, %v601
        %v603 = vsub.s32 0, %v602
        %v604 = vsel %vm594, %v603, %v602
        %vm605 = vcmp.lt.s32.totalorder %v379, 0
        %v606 = vsub.s32 0, %v379
        %v607 = vsel %vm605, %v606, %v379
        %v608 = vmul.u32.u64.compose %v607, 3817748708
        %v609 = vextract.low.u32 %v608
        %v610 = vextract.high.u32 %v608
        %v611 = vshrl.u32 %v610, 4
        %v612 = vmul.u32 %v611, 18
        %v613 = vsub.s32 %v607, %v612
        %v614 = vsub.s32 0, %v613
        %v615 = vsel %vm605, %v614, %v613
        %vm616 = vcmp.lt.s32.totalorder %v380, 0
        %v617 = vsub.s32 0, %v380
        %v618 = vsel %vm616, %v617, %v380
        %v619 = vmul.u32.u64.compose %v618, 3817748708
        %v620 = vextract.low.u32 %v619
        %v621 = vextract.high.u32 %v619
        %v622 = vshrl.u32 %v621, 4
        %v623 = vmul.u32 %v622, 18
        %v624 = vsub.s32 %v618, %v623
        %v625 = vsub.s32 0, %v624
        %v626 = vsel %vm616, %v625, %v624
        %vm627 = vcmp.lt.s32.totalorder %v381, 0
        %v628 = vsub.s32 0, %v381
        %v629 = vsel %vm627, %v628, %v381
        %v630 = vmul.u32.u64.compose %v629, 3817748708
        %v631 = vextract.low.u32 %v630
        %v632 = vextract.high.u32 %v630
        %v633 = vshrl.u32 %v632, 4
        %v634 = vmul.u32 %v633, 18
        %v635 = vsub.s32 %v629, %v634
        %v636 = vsub.s32 0, %v635
        %v637 = vsel %vm627, %v636, %v635
        %vm638 = vcmp.lt.s32.totalorder %v382, 0
        %v639 = vsub.s32 0, %v382
        %v640 = vsel %vm638, %v639, %v382
        %v641 = vmul.u32.u64.compose %v640, 3817748708
        %v642 = vextract.low.u32 %v641
        %v643 = vextract.high.u32 %v641
        %v644 = vshrl.u32 %v643, 4
        %v645 = vmul.u32 %v644, 18
        %v646 = vsub.s32 %v640, %v645
        %v647 = vsub.s32 0, %v646
        %v648 = vsel %vm638, %v647, %v646
        %vm649 = vcmp.lt.s32.totalorder %v383, 0
        %v650 = vsub.s32 0, %v383
        %v651 = vsel %vm649, %v650, %v383
        %v652 = vmul.u32.u64.compose %v651, 3817748708
        %v653 = vextract.low.u32 %v652
        %v654 = vextract.high.u32 %v652
        %v655 = vshrl.u32 %v654, 4
        %v656 = vmul.u32 %v655, 18
        %v657 = vsub.s32 %v651, %v656
        %v658 = vsub.s32 0, %v657
        %v659 = vsel %vm649, %v658, %v657
        %vm660 = vcmp.lt.s32.totalorder %v384, 0
        %v661 = vsub.s32 0, %v384
        %v662 = vsel %vm660, %v661, %v384
        %v663 = vmul.u32.u64.compose %v662, 3817748708
        %v664 = vextract.low.u32 %v663
        %v665 = vextract.high.u32 %v663
        %v666 = vshrl.u32 %v665, 4
        %v667 = vmul.u32 %v666, 18
        %v668 = vsub.s32 %v662, %v667
        %v669 = vsub.s32 0, %v668
        %v670 = vsel %vm660, %v669, %v668
        %vm671 = vcmp.lt.s32.totalorder %v385, 0
        %v672 = vsub.s32 0, %v385
        %v673 = vsel %vm671, %v672, %v385
        %v674 = vmul.u32.u64.compose %v673, 3817748708
        %v675 = vextract.low.u32 %v674
        %v676 = vextract.high.u32 %v674
        %v677 = vshrl.u32 %v676, 4
        %v678 = vmul.u32 %v677, 18
        %v679 = vsub.s32 %v673, %v678
        %v680 = vsub.s32 0, %v679
        %v681 = vsel %vm671, %v680, %v679
        %vm682 = vcmp.lt.s32.totalorder %v386, 0
        %v683 = vsub.s32 0, %v386
        %v684 = vsel %vm682, %v683, %v386
        %v685 = vmul.u32.u64.compose %v684, 3817748708
        %v686 = vextract.low.u32 %v685
        %v687 = vextract.high.u32 %v685
        %v688 = vshrl.u32 %v687, 4
        %v689 = vmul.u32 %v688, 18
        %v690 = vsub.s32 %v684, %v689
        %v691 = vsub.s32 0, %v690
        %v692 = vsel %vm682, %v691, %v690
        %vm693 = vcmp.lt.s32.totalorder %v387, 0
        %v694 = vsub.s32 0, %v387
        %v695 = vsel %vm693, %v694, %v387
        %v696 = vmul.u32.u64.compose %v695, 3817748708
        %v697 = vextract.low.u32 %v696
        %v698 = vextract.high.u32 %v696
        %v699 = vshrl.u32 %v698, 4
        %v700 = vmul.u32 %v699, 18
        %v701 = vsub.s32 %v695, %v700
        %v702 = vsub.s32 0, %v701
        %v703 = vsel %vm693, %v702, %v701
        %vm704 = vcmp.lt.s32.totalorder %v388, 0
        %v705 = vsub.s32 0, %v388
        %v706 = vsel %vm704, %v705, %v388
        %v707 = vmul.u32.u64.compose %v706, 3817748708
        %v708 = vextract.low.u32 %v707
        %v709 = vextract.high.u32 %v707
        %v710 = vshrl.u32 %v709, 4
        %v711 = vmul.u32 %v710, 18
        %v712 = vsub.s32 %v706, %v711
        %v713 = vsub.s32 0, %v712
        %v714 = vsel %vm704, %v713, %v712
        %vm715 = vcmp.lt.s32.totalorder %v389, 0
        %v716 = vsub.s32 0, %v389
        %v717 = vsel %vm715, %v716, %v389
        %v718 = vmul.u32.u64.compose %v717, 3817748708
        %v719 = vextract.low.u32 %v718
        %v720 = vextract.high.u32 %v718
        %v721 = vshrl.u32 %v720, 4
        %v722 = vmul.u32 %v721, 18
        %v723 = vsub.s32 %v717, %v722
        %v724 = vsub.s32 0, %v723
        %v725 = vsel %vm715, %v724, %v723
        %vm726 = vcmp.lt.s32.totalorder %v390, 0
        %v727 = vsub.s32 0, %v390
        %v728 = vsel %vm726, %v727, %v390
        %v729 = vmul.u32.u64.compose %v728, 3817748708
        %v730 = vextract.low.u32 %v729
        %v731 = vextract.high.u32 %v729
        %v732 = vshrl.u32 %v731, 4
        %v733 = vmul.u32 %v732, 18
        %v734 = vsub.s32 %v728, %v733
        %v735 = vsub.s32 0, %v734
        %v736 = vsel %vm726, %v735, %v734
        %vm737 = vcmp.lt.s32.totalorder %v391, 0
        %v738 = vsub.s32 0, %v391
        %v739 = vsel %vm737, %v738, %v391
        %v740 = vmul.u32.u64.compose %v739, 3817748708
        %v741 = vextract.low.u32 %v740
        %v742 = vextract.high.u32 %v740
        %v743 = vshrl.u32 %v742, 4
        %v744 = vmul.u32 %v743, 18
        %v745 = vsub.s32 %v739, %v744
        %v746 = vsub.s32 0, %v745
        %v747 = vsel %vm737, %v746, %v745
        %vm748 = vcmp.lt.s32.totalorder %v392, 0
        %v749 = vsub.s32 0, %v392
        %v750 = vsel %vm748, %v749, %v392
        %v751 = vmul.u32.u64.compose %v750, 3817748708
        %v752 = vextract.low.u32 %v751
        %v753 = vextract.high.u32 %v751
        %v754 = vshrl.u32 %v753, 4
        %v755 = vmul.u32 %v754, 18
        %v756 = vsub.s32 %v750, %v755
        %v757 = vsub.s32 0, %v756
        %v758 = vsel %vm748, %v757, %v756
        %vm759 = vcmp.lt.s32.totalorder %v393, 0
        %v760 = vsub.s32 0, %v393
        %v761 = vsel %vm759, %v760, %v393
        %v762 = vmul.u32.u64.compose %v761, 3817748708
        %v763 = vextract.low.u32 %v762
        %v764 = vextract.high.u32 %v762
        %v765 = vshrl.u32 %v764, 4
        %v766 = vmul.u32 %v765, 18
        %v767 = vsub.s32 %v761, %v766
        %v768 = vsub.s32 0, %v767
        %v769 = vsel %vm759, %v768, %v767
        %vm770 = vcmp.lt.s32.totalorder %v394, 0
        %v771 = vsub.s32 0, %v394
        %v772 = vsel %vm770, %v771, %v394
        %v773 = vmul.u32.u64.compose %v772, 3817748708
        %v774 = vextract.low.u32 %v773
        %v775 = vextract.high.u32 %v773
        %v776 = vshrl.u32 %v775, 4
        %v777 = vmul.u32 %v776, 18
        %v778 = vsub.s32 %v772, %v777
        %v779 = vsub.s32 0, %v778
        %v780 = vsel %vm770, %v779, %v778
        %vm781 = vcmp.lt.s32.totalorder %v395, 0
        %v782 = vsub.s32 0, %v395
        %v783 = vsel %vm781, %v782, %v395
        %v784 = vmul.u32.u64.compose %v783, 3817748708
        %v785 = vextract.low.u32 %v784
        %v786 = vextract.high.u32 %v784
        %v787 = vshrl.u32 %v786, 4
        %v788 = vmul.u32 %v787, 18
        %v789 = vsub.s32 %v783, %v788
        %v790 = vsub.s32 0, %v789
        %v791 = vsel %vm781, %v790, %v789
        %vm792 = vcmp.ne.s32.totalorder %v406, 0
        %vm793 = vcmp.ne.s32.totalorder %v417, 0
        %vm794 = vcmp.ne.s32.totalorder %v428, 0
        %vm795 = vcmp.ne.s32.totalorder %v439, 0
        %vm796 = vcmp.ne.s32.totalorder %v450, 0
        %vm797 = vcmp.ne.s32.totalorder %v461, 0
        %vm798 = vcmp.ne.s32.totalorder %v472, 0
        %vm799 = vcmp.ne.s32.totalorder %v483, 0
        %vm800 = vcmp.ne.s32.totalorder %v494, 0
        %vm801 = vcmp.ne.s32.totalorder %v505, 0
        %vm802 = vcmp.ne.s32.totalorder %v516, 0
        %vm803 = vcmp.ne.s32.totalorder %v527, 0
        %vm804 = vcmp.ne.s32.totalorder %v538, 0
        %vm805 = vcmp.ne.s32.totalorder %v549, 0
        %vm806 = vcmp.ne.s32.totalorder %v560, 0
        %vm807 = vcmp.ne.s32.totalorder %v571, 0
        %vm808 = vcmp.ne.s32.totalorder %v582, 0
        %vm809 = vcmp.ne.s32.totalorder %v593, 0
        %vm810 = vcmp.ne.s32.totalorder %v604, 0
        %vm811 = vcmp.ne.s32.totalorder %v615, 0
        %vm812 = vcmp.ne.s32.totalorder %v626, 0
        %vm813 = vcmp.ne.s32.totalorder %v637, 0
        %vm814 = vcmp.ne.s32.totalorder %v648, 0
        %vm815 = vcmp.ne.s32.totalorder %v659, 0
        %vm816 = vcmp.ne.s32.totalorder %v670, 0
        %vm817 = vcmp.ne.s32.totalorder %v681, 0
        %vm818 = vcmp.ne.s32.totalorder %v692, 0
        %vm819 = vcmp.ne.s32.totalorder %v703, 0
        %vm820 = vcmp.ne.s32.totalorder %v714, 0
        %vm821 = vcmp.ne.s32.totalorder %v725, 0
        %vm822 = vcmp.ne.s32.totalorder %v736, 0
        %vm823 = vcmp.ne.s32.totalorder %v747, 0
        %vm824 = vcmp.ne.s32.totalorder %v758, 0
        %vm825 = vcmp.ne.s32.totalorder %v769, 0
        %vm826 = vcmp.ne.s32.totalorder %v780, 0
        %vm827 = vcmp.ne.s32.totalorder %v791, 0
        %vm828 = vcmp.lt.s32.totalorder %v406, 0
        %vm829 = vcmp.lt.s32.totalorder %v417, 0
        %vm830 = vcmp.lt.s32.totalorder %v428, 0
        %vm831 = vcmp.lt.s32.totalorder %v439, 0
        %vm832 = vcmp.lt.s32.totalorder %v450, 0
        %vm833 = vcmp.lt.s32.totalorder %v461, 0
        %vm834 = vcmp.lt.s32.totalorder %v472, 0
        %vm835 = vcmp.lt.s32.totalorder %v483, 0
        %vm836 = vcmp.lt.s32.totalorder %v494, 0
        %vm837 = vcmp.lt.s32.totalorder %v505, 0
        %vm838 = vcmp.lt.s32.totalorder %v516, 0
        %vm839 = vcmp.lt.s32.totalorder %v527, 0
        %vm840 = vcmp.lt.s32.totalorder %v538, 0
        %vm841 = vcmp.lt.s32.totalorder %v549, 0
        %vm842 = vcmp.lt.s32.totalorder %v560, 0
        %vm843 = vcmp.lt.s32.totalorder %v571, 0
        %vm844 = vcmp.lt.s32.totalorder %v582, 0
        %vm845 = vcmp.lt.s32.totalorder %v593, 0
        %vm846 = vcmp.lt.s32.totalorder %v604, 0
        %vm847 = vcmp.lt.s32.totalorder %v615, 0
        %vm848 = vcmp.lt.s32.totalorder %v626, 0
        %vm849 = vcmp.lt.s32.totalorder %v637, 0
        %vm850 = vcmp.lt.s32.totalorder %v648, 0
        %vm851 = vcmp.lt.s32.totalorder %v659, 0
        %vm852 = vcmp.lt.s32.totalorder %v670, 0
        %vm853 = vcmp.lt.s32.totalorder %v681, 0
        %vm854 = vcmp.lt.s32.totalorder %v692, 0
        %vm855 = vcmp.lt.s32.totalorder %v703, 0
        %vm856 = vcmp.lt.s32.totalorder %v714, 0
        %vm857 = vcmp.lt.s32.totalorder %v725, 0
        %vm858 = vcmp.lt.s32.totalorder %v736, 0
        %vm859 = vcmp.lt.s32.totalorder %v747, 0
        %vm860 = vcmp.lt.s32.totalorder %v758, 0
        %vm861 = vcmp.lt.s32.totalorder %v769, 0
        %vm862 = vcmp.lt.s32.totalorder %v780, 0
        %vm863 = vcmp.lt.s32.totalorder %v791, 0
        %vm864 = vmand %vm828, %vm792
        %vm865 = vmand %vm829, %vm793
        %vm866 = vmand %vm830, %vm794
        %vm867 = vmand %vm831, %vm795
        %vm868 = vmand %vm832, %vm796
        %vm869 = vmand %vm833, %vm797
        %vm870 = vmand %vm834, %vm798
        %vm871 = vmand %vm835, %vm799
        %vm872 = vmand %vm836, %vm800
        %vm873 = vmand %vm837, %vm801
        %vm874 = vmand %vm838, %vm802
        %vm875 = vmand %vm839, %vm803
        %vm876 = vmand %vm840, %vm804
        %vm877 = vmand %vm841, %vm805
        %vm878 = vmand %vm842, %vm806
        %vm879 = vmand %vm843, %vm807
        %vm880 = vmand %vm844, %vm808
        %vm881 = vmand %vm845, %vm809
        %vm882 = vmand %vm846, %vm810
        %vm883 = vmand %vm847, %vm811
        %vm884 = vmand %vm848, %vm812
        %vm885 = vmand %vm849, %vm813
        %vm886 = vmand %vm850, %vm814
        %vm887 = vmand %vm851, %vm815
        %vm888 = vmand %vm852, %vm816
        %vm889 = vmand %vm853, %vm817
        %vm890 = vmand %vm854, %vm818
        %vm891 = vmand %vm855, %vm819
        %vm892 = vmand %vm856, %vm820
        %vm893 = vmand %vm857, %vm821
        %vm894 = vmand %vm858, %vm822
        %vm895 = vmand %vm859, %vm823
        %vm896 = vmand %vm860, %vm824
        %vm897 = vmand %vm861, %vm825
        %vm898 = vmand %vm862, %vm826
        %vm899 = vmand %vm863, %vm827
        %v900 = vadd.s32 %v406, 18
        %v901 = vadd.s32 %v417, 18
        %v902 = vadd.s32 %v428, 18
        %v903 = vadd.s32 %v439, 18
        %v904 = vadd.s32 %v450, 18
        %v905 = vadd.s32 %v461, 18
        %v906 = vadd.s32 %v472, 18
        %v907 = vadd.s32 %v483, 18
        %v908 = vadd.s32 %v494, 18
        %v909 = vadd.s32 %v505, 18
        %v910 = vadd.s32 %v516, 18
        %v911 = vadd.s32 %v527, 18
        %v912 = vadd.s32 %v538, 18
        %v913 = vadd.s32 %v549, 18
        %v914 = vadd.s32 %v560, 18
        %v915 = vadd.s32 %v571, 18
        %v916 = vadd.s32 %v582, 18
        %v917 = vadd.s32 %v593, 18
        %v918 = vadd.s32 %v604, 18
        %v919 = vadd.s32 %v615, 18
        %v920 = vadd.s32 %v626, 18
        %v921 = vadd.s32 %v637, 18
        %v922 = vadd.s32 %v648, 18
        %v923 = vadd.s32 %v659, 18
        %v924 = vadd.s32 %v670, 18
        %v925 = vadd.s32 %v681, 18
        %v926 = vadd.s32 %v692, 18
        %v927 = vadd.s32 %v703, 18
        %v928 = vadd.s32 %v714, 18
        %v929 = vadd.s32 %v725, 18
        %v930 = vadd.s32 %v736, 18
        %v931 = vadd.s32 %v747, 18
        %v932 = vadd.s32 %v758, 18
        %v933 = vadd.s32 %v769, 18
        %v934 = vadd.s32 %v780, 18
        %v935 = vadd.s32 %v791, 18
        %v936 = vsel %vm864, %v900, %v406
        %v937 = vsel %vm865, %v901, %v417
        %v938 = vsel %vm866, %v902, %v428
        %v939 = vsel %vm867, %v903, %v439
        %v940 = vsel %vm868, %v904, %v450
        %v941 = vsel %vm869, %v905, %v461
        %v942 = vsel %vm870, %v906, %v472
        %v943 = vsel %vm871, %v907, %v483
        %v944 = vsel %vm872, %v908, %v494
        %v945 = vsel %vm873, %v909, %v505
        %v946 = vsel %vm874, %v910, %v516
        %v947 = vsel %vm875, %v911, %v527
        %v948 = vsel %vm876, %v912, %v538
        %v949 = vsel %vm877, %v913, %v549
        %v950 = vsel %vm878, %v914, %v560
        %v951 = vsel %vm879, %v915, %v571
        %v952 = vsel %vm880, %v916, %v582
        %v953 = vsel %vm881, %v917, %v593
        %v954 = vsel %vm882, %v918, %v604
        %v955 = vsel %vm883, %v919, %v615
        %v956 = vsel %vm884, %v920, %v626
        %v957 = vsel %vm885, %v921, %v637
        %v958 = vsel %vm886, %v922, %v648
        %v959 = vsel %vm887, %v923, %v659
        %v960 = vsel %vm888, %v924, %v670
        %v961 = vsel %vm889, %v925, %v681
        %v962 = vsel %vm890, %v926, %v692
        %v963 = vsel %vm891, %v927, %v703
        %v964 = vsel %vm892, %v928, %v714
        %v965 = vsel %vm893, %v929, %v725
        %v966 = vsel %vm894, %v930, %v736
        %v967 = vsel %vm895, %v931, %v747
        %v968 = vsel %vm896, %v932, %v758
        %v969 = vsel %vm897, %v933, %v769
        %v970 = vsel %vm898, %v934, %v780
        %v971 = vsel %vm899, %v935, %v791
        %vm972 = vcmp.lt.s32.totalorder %v936, 16
        %vm973 = vcmp.lt.s32.totalorder %v937, 16
        %vm974 = vcmp.lt.s32.totalorder %v938, 16
        %vm975 = vcmp.lt.s32.totalorder %v939, 16
        %vm976 = vcmp.lt.s32.totalorder %v940, 16
        %vm977 = vcmp.lt.s32.totalorder %v941, 16
        %vm978 = vcmp.lt.s32.totalorder %v942, 16
        %vm979 = vcmp.lt.s32.totalorder %v943, 16
        %vm980 = vcmp.lt.s32.totalorder %v944, 16
        %vm981 = vcmp.lt.s32.totalorder %v945, 16
        %vm982 = vcmp.lt.s32.totalorder %v946, 16
        %vm983 = vcmp.lt.s32.totalorder %v947, 16
        %vm984 = vcmp.lt.s32.totalorder %v948, 16
        %vm985 = vcmp.lt.s32.totalorder %v949, 16
        %vm986 = vcmp.lt.s32.totalorder %v950, 16
        %vm987 = vcmp.lt.s32.totalorder %v951, 16
        %vm988 = vcmp.lt.s32.totalorder %v952, 16
        %vm989 = vcmp.lt.s32.totalorder %v953, 16
        %vm990 = vcmp.lt.s32.totalorder %v954, 16
        %vm991 = vcmp.lt.s32.totalorder %v955, 16
        %vm992 = vcmp.lt.s32.totalorder %v956, 16
        %vm993 = vcmp.lt.s32.totalorder %v957, 16
        %vm994 = vcmp.lt.s32.totalorder %v958, 16
        %vm995 = vcmp.lt.s32.totalorder %v959, 16
        %vm996 = vcmp.lt.s32.totalorder %v960, 16
        %vm997 = vcmp.lt.s32.totalorder %v961, 16
        %vm998 = vcmp.lt.s32.totalorder %v962, 16
        %vm999 = vcmp.lt.s32.totalorder %v963, 16
        %vm1000 = vcmp.lt.s32.totalorder %v964, 16
        %vm1001 = vcmp.lt.s32.totalorder %v965, 16
        %vm1002 = vcmp.lt.s32.totalorder %v966, 16
        %vm1003 = vcmp.lt.s32.totalorder %v967, 16
        %vm1004 = vcmp.lt.s32.totalorder %v968, 16
        %vm1005 = vcmp.lt.s32.totalorder %v969, 16
        %vm1006 = vcmp.lt.s32.totalorder %v970, 16
        %vm1007 = vcmp.lt.s32.totalorder %v971, 16
        %v1008 = vld [vmem:[%s303] sm:$0xf]
        %v1009 = vld [vmem:[%s303 + $0x4] sm:$0xf]
        %v1010 = vld [vmem:[%s303 + $0x8] sm:$0xf]
        %v1011 = vld [vmem:[%s303 + $0xc] sm:$0xf]
        %v1012 = vld [vmem:[%s303 + $0x10] sm:$0xf]
        %v1013 = vld [vmem:[%s303 + $0x14] sm:$0xf]
        %v1014 = vld [vmem:[%s303 + $0x18] sm:$0xf]
        %v1015 = vld [vmem:[%s303 + $0x1c] sm:$0xf]
        %v1016 = vld [vmem:[%s303 + $0x20] sm:$0xf]
        %v1017 = vld [vmem:[%s303 + $0x24] sm:$0xf]
        %v1018 = vld [vmem:[%s303 + $0x28] sm:$0xf]
        %v1019 = vld [vmem:[%s303 + $0x2c] sm:$0xf]
        %v1020 = vld [vmem:[%s303 + $0x30] sm:$0xf]
        %v1021 = vld [vmem:[%s303 + $0x34] sm:$0xf]
        %v1022 = vld [vmem:[%s303 + $0x38] sm:$0xf]
        %v1023 = vld [vmem:[%s303 + $0x3c] sm:$0xf]
        %v1024 = vld [vmem:[%s303 + $0x40] sm:$0xf]
        %v1025 = vld [vmem:[%s303 + $0x44] sm:$0xf]
        %v1026 = vld [vmem:[%s303 + $0x48] sm:$0xf]
        %v1027 = vld [vmem:[%s303 + $0x4c] sm:$0xf]
        %v1028 = vld [vmem:[%s303 + $0x50] sm:$0xf]
        %v1029 = vld [vmem:[%s303 + $0x54] sm:$0xf]
        %v1030 = vld [vmem:[%s303 + $0x58] sm:$0xf]
        %v1031 = vld [vmem:[%s303 + $0x5c] sm:$0xf]
        %v1032 = vld [vmem:[%s303 + $0x60] sm:$0xf]
        %v1033 = vld [vmem:[%s303 + $0x64] sm:$0xf]
        %v1034 = vld [vmem:[%s303 + $0x68] sm:$0xf]
        %v1035 = vld [vmem:[%s303 + $0x6c] sm:$0xf]
        %v1036 = vld [vmem:[%s303 + $0x70] sm:$0xf]
        %v1037 = vld [vmem:[%s303 + $0x74] sm:$0xf]
        %v1038 = vld [vmem:[%s303 + $0x78] sm:$0xf]
        %v1039 = vld [vmem:[%s303 + $0x7c] sm:$0xf]
        %v1040 = vld [vmem:[%s303 + $0x80] sm:$0xf]
        %v1041 = vld [vmem:[%s303 + $0x84] sm:$0xf]
        %v1042 = vld [vmem:[%s303 + $0x88] sm:$0xf]
        %v1043 = vld [vmem:[%s303 + $0x8c] sm:$0xf]
        %v1044 = vld [vmem:[%s303 + $0x90] sm:$0xf]
        %v1045 = vld [vmem:[%s303 + $0x94] sm:$0xf]
        %v1046 = vld [vmem:[%s303 + $0x98] sm:$0xf]
        %v1047 = vld [vmem:[%s303 + $0x9c] sm:$0xf]
        %v1048 = vld [vmem:[%s303 + $0xa0] sm:$0xf]
        %v1049 = vld [vmem:[%s303 + $0xa4] sm:$0xf]
        %v1050 = vld [vmem:[%s303 + $0xa8] sm:$0x7]
        %v1051 = vunpack.c.l.bf16 %v1008
        %v1052 = vunpack.c.l.bf16 %v1009
        %v1053 = vunpack.c.l.bf16 %v1010
        %v1054 = vunpack.c.l.bf16 %v1011
        %v1055 = vunpack.c.l.bf16 %v1012
        %v1056 = vunpack.c.l.bf16 %v1013
        %v1057 = vunpack.c.l.bf16 %v1014
        %v1058 = vunpack.c.l.bf16 %v1015
        %v1059 = vunpack.c.l.bf16 %v1016
        %v1060 = vunpack.c.l.bf16 %v1017
        %v1061 = vunpack.c.l.bf16 %v1018
        %v1062 = vunpack.c.l.bf16 %v1019
        %v1063 = vunpack.c.l.bf16 %v1020
        %v1064 = vunpack.c.l.bf16 %v1021
        %v1065 = vunpack.c.l.bf16 %v1022
        %v1066 = vunpack.c.l.bf16 %v1023
        %v1067 = vunpack.c.l.bf16 %v1024
        %v1068 = vunpack.c.l.bf16 %v1025
        %v1069 = vunpack.c.l.bf16 %v1026
        %v1070 = vunpack.c.l.bf16 %v1027
        %v1071 = vunpack.c.l.bf16 %v1028
        %v1072 = vunpack.c.l.bf16 %v1029
        %v1073 = vunpack.c.l.bf16 %v1030
        %v1074 = vunpack.c.l.bf16 %v1031
        %v1075 = vunpack.c.l.bf16 %v1032
        %v1076 = vunpack.c.l.bf16 %v1033
        %v1077 = vunpack.c.l.bf16 %v1034
        %v1078 = vunpack.c.l.bf16 %v1035
        %v1079 = vunpack.c.l.bf16 %v1036
        %v1080 = vunpack.c.l.bf16 %v1037
        %v1081 = vunpack.c.l.bf16 %v1038
        %v1082 = vunpack.c.l.bf16 %v1039
        %v1083 = vunpack.c.l.bf16 %v1040
        %v1084 = vunpack.c.l.bf16 %v1041
        %v1085 = vunpack.c.l.bf16 %v1042
        %v1086 = vunpack.c.l.bf16 %v1043
        %v1087 = vunpack.c.l.bf16 %v1044
        %v1088 = vunpack.c.l.bf16 %v1045
        %v1089 = vunpack.c.l.bf16 %v1046
        %v1090 = vunpack.c.l.bf16 %v1047
        %v1091 = vunpack.c.l.bf16 %v1048
        %v1092 = vunpack.c.l.bf16 %v1049
        %v1093 = vunpack.c.l.bf16 %v1050
        %vm1094 = vcmask 31744
        %1095 = vst.msk [vmem:[#allocation2] sm:$0xff] %vm1094, %v1051
        %1096 = vst.msk [vmem:[#allocation2 + $0x8] sm:$0xff] %vm1094, %v1052
        %1097 = vst.msk [vmem:[#allocation2 + $0x10] sm:$0xff] %vm1094, %v1053
        %1098 = vst.msk [vmem:[#allocation2 + $0x18] sm:$0xff] %vm1094, %v1054
        %1099 = vst.msk [vmem:[#allocation2 + $0x20] sm:$0xff] %vm1094, %v1055
        %1100 = vst.msk [vmem:[#allocation2 + $0x28] sm:$0xff] %vm1094, %v1056
        %1101 = vst.msk [vmem:[#allocation2 + $0x30] sm:$0xff] %vm1094, %v1057
        %1102 = vst.msk [vmem:[#allocation2 + $0x38] sm:$0xff] %vm1094, %v1058
        %1103 = vst.msk [vmem:[#allocation2 + $0x40] sm:$0xff] %vm1094, %v1059
        %1104 = vst.msk [vmem:[#allocation2 + $0x48] sm:$0xff] %vm1094, %v1060
        %1105 = vst.msk [vmem:[#allocation2 + $0x50] sm:$0xff] %vm1094, %v1061
        %1106 = vst.msk [vmem:[#allocation2 + $0x58] sm:$0xff] %vm1094, %v1062
        %1107 = vst.msk [vmem:[#allocation2 + $0x60] sm:$0xff] %vm1094, %v1063
        %1108 = vst.msk [vmem:[#allocation2 + $0x68] sm:$0xff] %vm1094, %v1064
        %1109 = vst.msk [vmem:[#allocation2 + $0x70] sm:$0xff] %vm1094, %v1065
        %1110 = vst.msk [vmem:[#allocation2 + $0x78] sm:$0xff] %vm1094, %v1066
        %1111 = vst.msk [vmem:[#allocation2 + $0x80] sm:$0xff] %vm1094, %v1067
        %1112 = vst.msk [vmem:[#allocation2 + $0x88] sm:$0xff] %vm1094, %v1068
        %1113 = vst.msk [vmem:[#allocation2 + $0x90] sm:$0xff] %vm1094, %v1069
        %1114 = vst.msk [vmem:[#allocation2 + $0x98] sm:$0xff] %vm1094, %v1070
        %1115 = vst.msk [vmem:[#allocation2 + $0xa0] sm:$0xff] %vm1094, %v1071
        %1116 = vst.msk [vmem:[#allocation2 + $0xa8] sm:$0xff] %vm1094, %v1072
        %1117 = vst.msk [vmem:[#allocation2 + $0xb0] sm:$0xff] %vm1094, %v1073
        %1118 = vst.msk [vmem:[#allocation2 + $0xb8] sm:$0xff] %vm1094, %v1074
        %1119 = vst.msk [vmem:[#allocation2 + $0xc0] sm:$0xff] %vm1094, %v1075
        %1120 = vst.msk [vmem:[#allocation2 + $0xc8] sm:$0xff] %vm1094, %v1076
        %1121 = vst.msk [vmem:[#allocation2 + $0xd0] sm:$0xff] %vm1094, %v1077
        %1122 = vst.msk [vmem:[#allocation2 + $0xd8] sm:$0xff] %vm1094, %v1078
        %1123 = vst.msk [vmem:[#allocation2 + $0xe0] sm:$0xff] %vm1094, %v1079
        %1124 = vst.msk [vmem:[#allocation2 + $0xe8] sm:$0xff] %vm1094, %v1080
        %1125 = vst.msk [vmem:[#allocation2 + $0xf0] sm:$0xff] %vm1094, %v1081
        %1126 = vst.msk [vmem:[#allocation2 + $0xf8] sm:$0xff] %vm1094, %v1082
        %1127 = vst.msk [vmem:[#allocation2 + $0x100] sm:$0xff] %vm1094, %v1083
        %1128 = vst.msk [vmem:[#allocation2 + $0x108] sm:$0xff] %vm1094, %v1084
        %1129 = vst.msk [vmem:[#allocation2 + $0x110] sm:$0xff] %vm1094, %v1085
        %1130 = vst.msk [vmem:[#allocation2 + $0x118] sm:$0xff] %vm1094, %v1086
        %1131 = vst.msk [vmem:[#allocation2 + $0x120] sm:$0xff] %vm1094, %v1087
        %1132 = vst.msk [vmem:[#allocation2 + $0x128] sm:$0xff] %vm1094, %v1088
        %1133 = vst.msk [vmem:[#allocation2 + $0x130] sm:$0xff] %vm1094, %v1089
        %1134 = vst.msk [vmem:[#allocation2 + $0x138] sm:$0xff] %vm1094, %v1090
        %1135 = vst.msk [vmem:[#allocation2 + $0x140] sm:$0xff] %vm1094, %v1091
        %1136 = vst.msk [vmem:[#allocation2 + $0x148] sm:$0xff] %vm1094, %v1092
        %vm1137 = vcmask 29696
        %1138 = vst.msk [vmem:[#allocation2 + $0x150] sm:$0x3f] %vm1137, %v1093
        %v1139 = vld [vmem:[#allocation2] sm:$0xff]
        %v1140 = vld [vmem:[#allocation2 + $0x8] sm:$0xff]
        %v1141 = vld [vmem:[#allocation2 + $0x10] sm:$0xff]
        %v1142 = vld [vmem:[#allocation2 + $0x18] sm:$0xff]
        %v1143 = vld [vmem:[#allocation2 + $0x20] sm:$0xff]
        %v1144 = vld [vmem:[#allocation2 + $0x28] sm:$0xff]
        %v1145 = vld [vmem:[#allocation2 + $0x30] sm:$0xff]
        %v1146 = vld [vmem:[#allocation2 + $0x38] sm:$0xff]
        %v1147 = vld [vmem:[#allocation2 + $0x40] sm:$0xff]
        %v1148 = vld [vmem:[#allocation2 + $0x48] sm:$0xff]
        %v1149 = vld [vmem:[#allocation2 + $0x50] sm:$0xff]
        %v1150 = vld [vmem:[#allocation2 + $0x58] sm:$0xff]
        %v1151 = vld [vmem:[#allocation2 + $0x60] sm:$0xff]
        %v1152 = vld [vmem:[#allocation2 + $0x68] sm:$0xff]
        %v1153 = vld [vmem:[#allocation2 + $0x70] sm:$0xff]
        %v1154 = vld [vmem:[#allocation2 + $0x78] sm:$0xff]
        %v1155 = vld [vmem:[#allocation2 + $0x80] sm:$0xff]
        %v1156 = vld [vmem:[#allocation2 + $0x88] sm:$0xff]
        %v1157 = vld [vmem:[#allocation2 + $0x90] sm:$0xff]
        %v1158 = vld [vmem:[#allocation2 + $0x98] sm:$0xff]
        %v1159 = vld [vmem:[#allocation2 + $0xa0] sm:$0xff]
        %v1160 = vld [vmem:[#allocation2 + $0xa8] sm:$0xff]
        %v1161 = vld [vmem:[#allocation2 + $0xb0] sm:$0xff]
        %v1162 = vld [vmem:[#allocation2 + $0xb8] sm:$0xff]
        %v1163 = vld [vmem:[#allocation2 + $0xc0] sm:$0xff]
        %v1164 = vld [vmem:[#allocation2 + $0xc8] sm:$0xff]
        %v1165 = vld [vmem:[#allocation2 + $0xd0] sm:$0xff]
        %v1166 = vld [vmem:[#allocation2 + $0xd8] sm:$0xff]
        %v1167 = vld [vmem:[#allocation2 + $0xe0] sm:$0xff]
        %v1168 = vld [vmem:[#allocation2 + $0xe8] sm:$0xff]
        %v1169 = vld [vmem:[#allocation2 + $0xf0] sm:$0xff]
        %v1170 = vld [vmem:[#allocation2 + $0xf8] sm:$0xff]
        %v1171 = vld [vmem:[#allocation2 + $0x100] sm:$0xff]
        %v1172 = vld [vmem:[#allocation2 + $0x108] sm:$0xff]
        %v1173 = vld [vmem:[#allocation2 + $0x110] sm:$0xff]
        %v1174 = vld [vmem:[#allocation2 + $0x118] sm:$0xff]
        %v1175 = vpack.c.bf16 %v1140, %v1139
        %v1176 = vpack.c.bf16 %v1142, %v1141
        %v1177 = vpack.c.bf16 %v1144, %v1143
        %v1178 = vpack.c.bf16 %v1146, %v1145
        %v1179 = vpack.c.bf16 %v1148, %v1147
        %v1180 = vpack.c.bf16 %v1150, %v1149
        %v1181 = vpack.c.bf16 %v1152, %v1151
        %v1182 = vpack.c.bf16 %v1154, %v1153
        %v1183 = vpack.c.bf16 %v1156, %v1155
        %v1184 = vpack.c.bf16 %v1158, %v1157
        %v1185 = vpack.c.bf16 %v1160, %v1159
        %v1186 = vpack.c.bf16 %v1162, %v1161
        %v1187 = vpack.c.bf16 %v1164, %v1163
        %v1188 = vpack.c.bf16 %v1166, %v1165
        %v1189 = vpack.c.bf16 %v1168, %v1167
        %v1190 = vpack.c.bf16 %v1170, %v1169
        %v1191 = vpack.c.bf16 %v1172, %v1171
        %v1192 = vpack.c.bf16 %v1174, %v1173
        %1193 = vst [vmem:[#allocation4] sm:$0xff] %v1175
        %1194 = vst [vmem:[#allocation4 + $0x48] sm:$0xff] %v1176
        %1195 = vst [vmem:[#allocation4 + $0x90] sm:$0xff] %v1177
        %1196 = vst [vmem:[#allocation4 + $0xd8] sm:$0xff] %v1178
        %1197 = vst [vmem:[#allocation4 + $0x120] sm:$0xff] %v1179
        %1198 = vst [vmem:[#allocation4 + $0x168] sm:$0xff] %v1180
        %1199 = vst [vmem:[#allocation4 + $0x1b0] sm:$0xff] %v1181
        %1200 = vst [vmem:[#allocation4 + $0x1f8] sm:$0xff] %v1182
        %1201 = vst [vmem:[#allocation4 + $0x240] sm:$0xff] %v1183
        %1202 = vst [vmem:[#allocation4 + $0x288] sm:$0xff] %v1184
        %1203 = vst [vmem:[#allocation4 + $0x2d0] sm:$0xff] %v1185
        %1204 = vst [vmem:[#allocation4 + $0x318] sm:$0xff] %v1186
        %1205 = vst [vmem:[#allocation4 + $0x360] sm:$0xff] %v1187
        %1206 = vst [vmem:[#allocation4 + $0x3a8] sm:$0xff] %v1188
        %1207 = vst [vmem:[#allocation4 + $0x3f0] sm:$0xff] %v1189
        %1208 = vst [vmem:[#allocation4 + $0x438] sm:$0xff] %v1190
        %1209 = vst [vmem:[#allocation4 + $0x480] sm:$0xff] %v1191
        %1210 = vst [vmem:[#allocation4 + $0x4c8] sm:$0xff] %v1192
        %v1211 = vld [vmem:[#allocation2 + $0x1] sm:$0xff]
        %v1212 = vld [vmem:[#allocation2 + $0x9] sm:$0xff]
        %v1213 = vld [vmem:[#allocation2 + $0x11] sm:$0xff]
        %v1214 = vld [vmem:[#allocation2 + $0x19] sm:$0xff]
        %v1215 = vld [vmem:[#allocation2 + $0x21] sm:$0xff]
        %v1216 = vld [vmem:[#allocation2 + $0x29] sm:$0xff]
        %v1217 = vld [vmem:[#allocation2 + $0x31] sm:$0xff]
        %v1218 = vld [vmem:[#allocation2 + $0x39] sm:$0xff]
        %v1219 = vld [vmem:[#allocation2 + $0x41] sm:$0xff]
        %v1220 = vld [vmem:[#allocation2 + $0x49] sm:$0xff]
        %v1221 = vld [vmem:[#allocation2 + $0x51] sm:$0xff]
        %v1222 = vld [vmem:[#allocation2 + $0x59] sm:$0xff]
        %v1223 = vld [vmem:[#allocation2 + $0x61] sm:$0xff]
        %v1224 = vld [vmem:[#allocation2 + $0x69] sm:$0xff]
        %v1225 = vld [vmem:[#allocation2 + $0x71] sm:$0xff]
        %v1226 = vld [vmem:[#allocation2 + $0x79] sm:$0xff]
        %v1227 = vld [vmem:[#allocation2 + $0x81] sm:$0xff]
        %v1228 = vld [vmem:[#allocation2 + $0x89] sm:$0xff]
        %v1229 = vld [vmem:[#allocation2 + $0x91] sm:$0xff]
        %v1230 = vld [vmem:[#allocation2 + $0x99] sm:$0xff]
        %v1231 = vld [vmem:[#allocation2 + $0xa1] sm:$0xff]
        %v1232 = vld [vmem:[#allocation2 + $0xa9] sm:$0xff]
        %v1233 = vld [vmem:[#allocation2 + $0xb1] sm:$0xff]
        %v1234 = vld [vmem:[#allocation2 + $0xb9] sm:$0xff]
        %v1235 = vld [vmem:[#allocation2 + $0xc1] sm:$0xff]
        %v1236 = vld [vmem:[#allocation2 + $0xc9] sm:$0xff]
        %v1237 = vld [vmem:[#allocation2 + $0xd1] sm:$0xff]
        %v1238 = vld [vmem:[#allocation2 + $0xd9] sm:$0xff]
        %v1239 = vld [vmem:[#allocation2 + $0xe1] sm:$0xff]
        %v1240 = vld [vmem:[#allocation2 + $0xe9] sm:$0xff]
        %v1241 = vld [vmem:[#allocation2 + $0xf1] sm:$0xff]
        %v1242 = vld [vmem:[#allocation2 + $0xf9] sm:$0xff]
        %v1243 = vld [vmem:[#allocation2 + $0x101] sm:$0xff]
        %v1244 = vld [vmem:[#allocation2 + $0x109] sm:$0xff]
        %v1245 = vld [vmem:[#allocation2 + $0x111] sm:$0xff]
        %v1246 = vld [vmem:[#allocation2 + $0x119] sm:$0xff]
        %v1247 = vpack.c.bf16 %v1212, %v1211
        %v1248 = vpack.c.bf16 %v1214, %v1213
        %v1249 = vpack.c.bf16 %v1216, %v1215
        %v1250 = vpack.c.bf16 %v1218, %v1217
        %v1251 = vpack.c.bf16 %v1220, %v1219
        %v1252 = vpack.c.bf16 %v1222, %v1221
        %v1253 = vpack.c.bf16 %v1224, %v1223
        %v1254 = vpack.c.bf16 %v1226, %v1225
        %v1255 = vpack.c.bf16 %v1228, %v1227
        %v1256 = vpack.c.bf16 %v1230, %v1229
        %v1257 = vpack.c.bf16 %v1232, %v1231
        %v1258 = vpack.c.bf16 %v1234, %v1233
        %v1259 = vpack.c.bf16 %v1236, %v1235
        %v1260 = vpack.c.bf16 %v1238, %v1237
        %v1261 = vpack.c.bf16 %v1240, %v1239
        %v1262 = vpack.c.bf16 %v1242, %v1241
        %v1263 = vpack.c.bf16 %v1244, %v1243
        %v1264 = vpack.c.bf16 %v1246, %v1245
        %1265 = vst [vmem:[#allocation4 + $0x8] sm:$0xff] %v1247
        %1266 = vst [vmem:[#allocation4 + $0x50] sm:$0xff] %v1248
        %1267 = vst [vmem:[#allocation4 + $0x98] sm:$0xff] %v1249
        %1268 = vst [vmem:[#allocation4 + $0xe0] sm:$0xff] %v1250
        %1269 = vst [vmem:[#allocation4 + $0x128] sm:$0xff] %v1251
        %1270 = vst [vmem:[#allocation4 + $0x170] sm:$0xff] %v1252
        %1271 = vst [vmem:[#allocation4 + $0x1b8] sm:$0xff] %v1253
        %1272 = vst [vmem:[#allocation4 + $0x200] sm:$0xff] %v1254
        %1273 = vst [vmem:[#allocation4 + $0x248] sm:$0xff] %v1255
        %1274 = vst [vmem:[#allocation4 + $0x290] sm:$0xff] %v1256
        %1275 = vst [vmem:[#allocation4 + $0x2d8] sm:$0xff] %v1257
        %1276 = vst [vmem:[#allocation4 + $0x320] sm:$0xff] %v1258
        %1277 = vst [vmem:[#allocation4 + $0x368] sm:$0xff] %v1259
        %1278 = vst [vmem:[#allocation4 + $0x3b0] sm:$0xff] %v1260
        %1279 = vst [vmem:[#allocation4 + $0x3f8] sm:$0xff] %v1261
        %1280 = vst [vmem:[#allocation4 + $0x440] sm:$0xff] %v1262
        %1281 = vst [vmem:[#allocation4 + $0x488] sm:$0xff] %v1263
        %1282 = vst [vmem:[#allocation4 + $0x4d0] sm:$0xff] %v1264
        %v1283 = vld [vmem:[#allocation2 + $0x2] sm:$0xff]
        %v1284 = vld [vmem:[#allocation2 + $0xa] sm:$0xff]
        %v1285 = vld [vmem:[#allocation2 + $0x12] sm:$0xff]
        %v1286 = vld [vmem:[#allocation2 + $0x1a] sm:$0xff]
        %v1287 = vld [vmem:[#allocation2 + $0x22] sm:$0xff]
        %v1288 = vld [vmem:[#allocation2 + $0x2a] sm:$0xff]
        %v1289 = vld [vmem:[#allocation2 + $0x32] sm:$0xff]
        %v1290 = vld [vmem:[#allocation2 + $0x3a] sm:$0xff]
        %v1291 = vld [vmem:[#allocation2 + $0x42] sm:$0xff]
        %v1292 = vld [vmem:[#allocation2 + $0x4a] sm:$0xff]
        %v1293 = vld [vmem:[#allocation2 + $0x52] sm:$0xff]
        %v1294 = vld [vmem:[#allocation2 + $0x5a] sm:$0xff]
        %v1295 = vld [vmem:[#allocation2 + $0x62] sm:$0xff]
        %v1296 = vld [vmem:[#allocation2 + $0x6a] sm:$0xff]
        %v1297 = vld [vmem:[#allocation2 + $0x72] sm:$0xff]
        %v1298 = vld [vmem:[#allocation2 + $0x7a] sm:$0xff]
        %v1299 = vld [vmem:[#allocation2 + $0x82] sm:$0xff]
        %v1300 = vld [vmem:[#allocation2 + $0x8a] sm:$0xff]
        %v1301 = vld [vmem:[#allocation2 + $0x92] sm:$0xff]
        %v1302 = vld [vmem:[#allocation2 + $0x9a] sm:$0xff]
        %v1303 = vld [vmem:[#allocation2 + $0xa2] sm:$0xff]
        %v1304 = vld [vmem:[#allocation2 + $0xaa] sm:$0xff]
        %v1305 = vld [vmem:[#allocation2 + $0xb2] sm:$0xff]
        %v1306 = vld [vmem:[#allocation2 + $0xba] sm:$0xff]
        %v1307 = vld [vmem:[#allocation2 + $0xc2] sm:$0xff]
        %v1308 = vld [vmem:[#allocation2 + $0xca] sm:$0xff]
        %v1309 = vld [vmem:[#allocation2 + $0xd2] sm:$0xff]
        %v1310 = vld [vmem:[#allocation2 + $0xda] sm:$0xff]
        %v1311 = vld [vmem:[#allocation2 + $0xe2] sm:$0xff]
        %v1312 = vld [vmem:[#allocation2 + $0xea] sm:$0xff]
        %v1313 = vld [vmem:[#allocation2 + $0xf2] sm:$0xff]
        %v1314 = vld [vmem:[#allocation2 + $0xfa] sm:$0xff]
        %v1315 = vld [vmem:[#allocation2 + $0x102] sm:$0xff]
        %v1316 = vld [vmem:[#allocation2 + $0x10a] sm:$0xff]
        %v1317 = vld [vmem:[#allocation2 + $0x112] sm:$0xff]
        %v1318 = vld [vmem:[#allocation2 + $0x11a] sm:$0xff]
        %v1319 = vpack.c.bf16 %v1284, %v1283
        %v1320 = vpack.c.bf16 %v1286, %v1285
        %v1321 = vpack.c.bf16 %v1288, %v1287
        %v1322 = vpack.c.bf16 %v1290, %v1289
        %v1323 = vpack.c.bf16 %v1292, %v1291
        %v1324 = vpack.c.bf16 %v1294, %v1293
        %v1325 = vpack.c.bf16 %v1296, %v1295
        %v1326 = vpack.c.bf16 %v1298, %v1297
        %v1327 = vpack.c.bf16 %v1300, %v1299
        %v1328 = vpack.c.bf16 %v1302, %v1301
        %v1329 = vpack.c.bf16 %v1304, %v1303
        %v1330 = vpack.c.bf16 %v1306, %v1305
        %v1331 = vpack.c.bf16 %v1308, %v1307
        %v1332 = vpack.c.bf16 %v1310, %v1309
        %v1333 = vpack.c.bf16 %v1312, %v1311
        %v1334 = vpack.c.bf16 %v1314, %v1313
        %v1335 = vpack.c.bf16 %v1316, %v1315
        %v1336 = vpack.c.bf16 %v1318, %v1317
        %1337 = vst [vmem:[#allocation4 + $0x10] sm:$0xff] %v1319
        %1338 = vst [vmem:[#allocation4 + $0x58] sm:$0xff] %v1320
        %1339 = vst [vmem:[#allocation4 + $0xa0] sm:$0xff] %v1321
        %1340 = vst [vmem:[#allocation4 + $0xe8] sm:$0xff] %v1322
        %1341 = vst [vmem:[#allocation4 + $0x130] sm:$0xff] %v1323
        %1342 = vst [vmem:[#allocation4 + $0x178] sm:$0xff] %v1324
        %1343 = vst [vmem:[#allocation4 + $0x1c0] sm:$0xff] %v1325
        %1344 = vst [vmem:[#allocation4 + $0x208] sm:$0xff] %v1326
        %1345 = vst [vmem:[#allocation4 + $0x250] sm:$0xff] %v1327
        %1346 = vst [vmem:[#allocation4 + $0x298] sm:$0xff] %v1328
        %1347 = vst [vmem:[#allocation4 + $0x2e0] sm:$0xff] %v1329
        %1348 = vst [vmem:[#allocation4 + $0x328] sm:$0xff] %v1330
        %1349 = vst [vmem:[#allocation4 + $0x370] sm:$0xff] %v1331
        %1350 = vst [vmem:[#allocation4 + $0x3b8] sm:$0xff] %v1332
        %1351 = vst [vmem:[#allocation4 + $0x400] sm:$0xff] %v1333
        %1352 = vst [vmem:[#allocation4 + $0x448] sm:$0xff] %v1334
        %1353 = vst [vmem:[#allocation4 + $0x490] sm:$0xff] %v1335
        %1354 = vst [vmem:[#allocation4 + $0x4d8] sm:$0xff] %v1336
        %v1355 = vld [vmem:[#allocation2 + $0x12] sm:$0xff]
        %v1356 = vld [vmem:[#allocation2 + $0x1a] sm:$0xff]
        %v1357 = vld [vmem:[#allocation2 + $0x22] sm:$0xff]
        %v1358 = vld [vmem:[#allocation2 + $0x2a] sm:$0xff]
        %v1359 = vld [vmem:[#allocation2 + $0x32] sm:$0xff]
        %v1360 = vld [vmem:[#allocation2 + $0x3a] sm:$0xff]
        %v1361 = vld [vmem:[#allocation2 + $0x42] sm:$0xff]
        %v1362 = vld [vmem:[#allocation2 + $0x4a] sm:$0xff]
        %v1363 = vld [vmem:[#allocation2 + $0x52] sm:$0xff]
        %v1364 = vld [vmem:[#allocation2 + $0x5a] sm:$0xff]
        %v1365 = vld [vmem:[#allocation2 + $0x62] sm:$0xff]
        %v1366 = vld [vmem:[#allocation2 + $0x6a] sm:$0xff]
        %v1367 = vld [vmem:[#allocation2 + $0x72] sm:$0xff]
        %v1368 = vld [vmem:[#allocation2 + $0x7a] sm:$0xff]
        %v1369 = vld [vmem:[#allocation2 + $0x82] sm:$0xff]
        %v1370 = vld [vmem:[#allocation2 + $0x8a] sm:$0xff]
        %v1371 = vld [vmem:[#allocation2 + $0x92] sm:$0xff]
        %v1372 = vld [vmem:[#allocation2 + $0x9a] sm:$0xff]
        %v1373 = vld [vmem:[#allocation2 + $0xa2] sm:$0xff]
        %v1374 = vld [vmem:[#allocation2 + $0xaa] sm:$0xff]
        %v1375 = vld [vmem:[#allocation2 + $0xb2] sm:$0xff]
        %v1376 = vld [vmem:[#allocation2 + $0xba] sm:$0xff]
        %v1377 = vld [vmem:[#allocation2 + $0xc2] sm:$0xff]
        %v1378 = vld [vmem:[#allocation2 + $0xca] sm:$0xff]
        %v1379 = vld [vmem:[#allocation2 + $0xd2] sm:$0xff]
        %v1380 = vld [vmem:[#allocation2 + $0xda] sm:$0xff]
        %v1381 = vld [vmem:[#allocation2 + $0xe2] sm:$0xff]
        %v1382 = vld [vmem:[#allocation2 + $0xea] sm:$0xff]
        %v1383 = vld [vmem:[#allocation2 + $0xf2] sm:$0xff]
        %v1384 = vld [vmem:[#allocation2 + $0xfa] sm:$0xff]
        %v1385 = vld [vmem:[#allocation2 + $0x102] sm:$0xff]
        %v1386 = vld [vmem:[#allocation2 + $0x10a] sm:$0xff]
        %v1387 = vld [vmem:[#allocation2 + $0x112] sm:$0xff]
        %v1388 = vld [vmem:[#allocation2 + $0x11a] sm:$0xff]
        %v1389 = vld [vmem:[#allocation2 + $0x122] sm:$0xff]
        %v1390 = vld [vmem:[#allocation2 + $0x12a] sm:$0xff]
        %v1391 = vpack.c.bf16 %v1356, %v1355
        %v1392 = vpack.c.bf16 %v1358, %v1357
        %v1393 = vpack.c.bf16 %v1360, %v1359
        %v1394 = vpack.c.bf16 %v1362, %v1361
        %v1395 = vpack.c.bf16 %v1364, %v1363
        %v1396 = vpack.c.bf16 %v1366, %v1365
        %v1397 = vpack.c.bf16 %v1368, %v1367
        %v1398 = vpack.c.bf16 %v1370, %v1369
        %v1399 = vpack.c.bf16 %v1372, %v1371
        %v1400 = vpack.c.bf16 %v1374, %v1373
        %v1401 = vpack.c.bf16 %v1376, %v1375
        %v1402 = vpack.c.bf16 %v1378, %v1377
        %v1403 = vpack.c.bf16 %v1380, %v1379
        %v1404 = vpack.c.bf16 %v1382, %v1381
        %v1405 = vpack.c.bf16 %v1384, %v1383
        %v1406 = vpack.c.bf16 %v1386, %v1385
        %v1407 = vpack.c.bf16 %v1388, %v1387
        %v1408 = vpack.c.bf16 %v1390, %v1389
        %1409 = vst [vmem:[#allocation4 + $0x18] sm:$0xff] %v1391
        %1410 = vst [vmem:[#allocation4 + $0x60] sm:$0xff] %v1392
        %1411 = vst [vmem:[#allocation4 + $0xa8] sm:$0xff] %v1393
        %1412 = vst [vmem:[#allocation4 + $0xf0] sm:$0xff] %v1394
        %1413 = vst [vmem:[#allocation4 + $0x138] sm:$0xff] %v1395
        %1414 = vst [vmem:[#allocation4 + $0x180] sm:$0xff] %v1396
        %1415 = vst [vmem:[#allocation4 + $0x1c8] sm:$0xff] %v1397
        %1416 = vst [vmem:[#allocation4 + $0x210] sm:$0xff] %v1398
        %1417 = vst [vmem:[#allocation4 + $0x258] sm:$0xff] %v1399
        %1418 = vst [vmem:[#allocation4 + $0x2a0] sm:$0xff] %v1400
        %1419 = vst [vmem:[#allocation4 + $0x2e8] sm:$0xff] %v1401
        %1420 = vst [vmem:[#allocation4 + $0x330] sm:$0xff] %v1402
        %1421 = vst [vmem:[#allocation4 + $0x378] sm:$0xff] %v1403
        %1422 = vst [vmem:[#allocation4 + $0x3c0] sm:$0xff] %v1404
        %1423 = vst [vmem:[#allocation4 + $0x408] sm:$0xff] %v1405
        %1424 = vst [vmem:[#allocation4 + $0x450] sm:$0xff] %v1406
        %1425 = vst [vmem:[#allocation4 + $0x498] sm:$0xff] %v1407
        %1426 = vst [vmem:[#allocation4 + $0x4e0] sm:$0xff] %v1408
        %v1427 = vld [vmem:[#allocation2 + $0x13] sm:$0xff]
        %v1428 = vld [vmem:[#allocation2 + $0x1b] sm:$0xff]
        %v1429 = vld [vmem:[#allocation2 + $0x23] sm:$0xff]
        %v1430 = vld [vmem:[#allocation2 + $0x2b] sm:$0xff]
        %v1431 = vld [vmem:[#allocation2 + $0x33] sm:$0xff]
        %v1432 = vld [vmem:[#allocation2 + $0x3b] sm:$0xff]
        %v1433 = vld [vmem:[#allocation2 + $0x43] sm:$0xff]
        %v1434 = vld [vmem:[#allocation2 + $0x4b] sm:$0xff]
        %v1435 = vld [vmem:[#allocation2 + $0x53] sm:$0xff]
        %v1436 = vld [vmem:[#allocation2 + $0x5b] sm:$0xff]
        %v1437 = vld [vmem:[#allocation2 + $0x63] sm:$0xff]
        %v1438 = vld [vmem:[#allocation2 + $0x6b] sm:$0xff]
        %v1439 = vld [vmem:[#allocation2 + $0x73] sm:$0xff]
        %v1440 = vld [vmem:[#allocation2 + $0x7b] sm:$0xff]
        %v1441 = vld [vmem:[#allocation2 + $0x83] sm:$0xff]
        %v1442 = vld [vmem:[#allocation2 + $0x8b] sm:$0xff]
        %v1443 = vld [vmem:[#allocation2 + $0x93] sm:$0xff]
        %v1444 = vld [vmem:[#allocation2 + $0x9b] sm:$0xff]
        %v1445 = vld [vmem:[#allocation2 + $0xa3] sm:$0xff]
        %v1446 = vld [vmem:[#allocation2 + $0xab] sm:$0xff]
        %v1447 = vld [vmem:[#allocation2 + $0xb3] sm:$0xff]
        %v1448 = vld [vmem:[#allocation2 + $0xbb] sm:$0xff]
        %v1449 = vld [vmem:[#allocation2 + $0xc3] sm:$0xff]
        %v1450 = vld [vmem:[#allocation2 + $0xcb] sm:$0xff]
        %v1451 = vld [vmem:[#allocation2 + $0xd3] sm:$0xff]
        %v1452 = vld [vmem:[#allocation2 + $0xdb] sm:$0xff]
        %v1453 = vld [vmem:[#allocation2 + $0xe3] sm:$0xff]
        %v1454 = vld [vmem:[#allocation2 + $0xeb] sm:$0xff]
        %v1455 = vld [vmem:[#allocation2 + $0xf3] sm:$0xff]
        %v1456 = vld [vmem:[#allocation2 + $0xfb] sm:$0xff]
        %v1457 = vld [vmem:[#allocation2 + $0x103] sm:$0xff]
        %v1458 = vld [vmem:[#allocation2 + $0x10b] sm:$0xff]
        %v1459 = vld [vmem:[#allocation2 + $0x113] sm:$0xff]
        %v1460 = vld [vmem:[#allocation2 + $0x11b] sm:$0xff]
        %v1461 = vld [vmem:[#allocation2 + $0x123] sm:$0xff]
        %v1462 = vld [vmem:[#allocation2 + $0x12b] sm:$0xff]
        %v1463 = vpack.c.bf16 %v1428, %v1427
        %v1464 = vpack.c.bf16 %v1430, %v1429
        %v1465 = vpack.c.bf16 %v1432, %v1431
        %v1466 = vpack.c.bf16 %v1434, %v1433
        %v1467 = vpack.c.bf16 %v1436, %v1435
        %v1468 = vpack.c.bf16 %v1438, %v1437
        %v1469 = vpack.c.bf16 %v1440, %v1439
        %v1470 = vpack.c.bf16 %v1442, %v1441
        %v1471 = vpack.c.bf16 %v1444, %v1443
        %v1472 = vpack.c.bf16 %v1446, %v1445
        %v1473 = vpack.c.bf16 %v1448, %v1447
        %v1474 = vpack.c.bf16 %v1450, %v1449
        %v1475 = vpack.c.bf16 %v1452, %v1451
        %v1476 = vpack.c.bf16 %v1454, %v1453
        %v1477 = vpack.c.bf16 %v1456, %v1455
        %v1478 = vpack.c.bf16 %v1458, %v1457
        %v1479 = vpack.c.bf16 %v1460, %v1459
        %v1480 = vpack.c.bf16 %v1462, %v1461
        %1481 = vst [vmem:[#allocation4 + $0x20] sm:$0xff] %v1463
        %1482 = vst [vmem:[#allocation4 + $0x68] sm:$0xff] %v1464
        %1483 = vst [vmem:[#allocation4 + $0xb0] sm:$0xff] %v1465
        %1484 = vst [vmem:[#allocation4 + $0xf8] sm:$0xff] %v1466
        %1485 = vst [vmem:[#allocation4 + $0x140] sm:$0xff] %v1467
        %1486 = vst [vmem:[#allocation4 + $0x188] sm:$0xff] %v1468
        %1487 = vst [vmem:[#allocation4 + $0x1d0] sm:$0xff] %v1469
        %1488 = vst [vmem:[#allocation4 + $0x218] sm:$0xff] %v1470
        %1489 = vst [vmem:[#allocation4 + $0x260] sm:$0xff] %v1471
        %1490 = vst [vmem:[#allocation4 + $0x2a8] sm:$0xff] %v1472
        %1491 = vst [vmem:[#allocation4 + $0x2f0] sm:$0xff] %v1473
        %1492 = vst [vmem:[#allocation4 + $0x338] sm:$0xff] %v1474
        %1493 = vst [vmem:[#allocation4 + $0x380] sm:$0xff] %v1475
        %1494 = vst [vmem:[#allocation4 + $0x3c8] sm:$0xff] %v1476
        %1495 = vst [vmem:[#allocation4 + $0x410] sm:$0xff] %v1477
        %1496 = vst [vmem:[#allocation4 + $0x458] sm:$0xff] %v1478
        %1497 = vst [vmem:[#allocation4 + $0x4a0] sm:$0xff] %v1479
        %1498 = vst [vmem:[#allocation4 + $0x4e8] sm:$0xff] %v1480
        %v1499 = vld [vmem:[#allocation2 + $0x14] sm:$0xff]
        %v1500 = vld [vmem:[#allocation2 + $0x1c] sm:$0xff]
        %v1501 = vld [vmem:[#allocation2 + $0x24] sm:$0xff]
        %v1502 = vld [vmem:[#allocation2 + $0x2c] sm:$0xff]
        %v1503 = vld [vmem:[#allocation2 + $0x34] sm:$0xff]
        %v1504 = vld [vmem:[#allocation2 + $0x3c] sm:$0xff]
        %v1505 = vld [vmem:[#allocation2 + $0x44] sm:$0xff]
        %v1506 = vld [vmem:[#allocation2 + $0x4c] sm:$0xff]
        %v1507 = vld [vmem:[#allocation2 + $0x54] sm:$0xff]
        %v1508 = vld [vmem:[#allocation2 + $0x5c] sm:$0xff]
        %v1509 = vld [vmem:[#allocation2 + $0x64] sm:$0xff]
        %v1510 = vld [vmem:[#allocation2 + $0x6c] sm:$0xff]
        %v1511 = vld [vmem:[#allocation2 + $0x74] sm:$0xff]
        %v1512 = vld [vmem:[#allocation2 + $0x7c] sm:$0xff]
        %v1513 = vld [vmem:[#allocation2 + $0x84] sm:$0xff]
        %v1514 = vld [vmem:[#allocation2 + $0x8c] sm:$0xff]
        %v1515 = vld [vmem:[#allocation2 + $0x94] sm:$0xff]
        %v1516 = vld [vmem:[#allocation2 + $0x9c] sm:$0xff]
        %v1517 = vld [vmem:[#allocation2 + $0xa4] sm:$0xff]
        %v1518 = vld [vmem:[#allocation2 + $0xac] sm:$0xff]
        %v1519 = vld [vmem:[#allocation2 + $0xb4] sm:$0xff]
        %v1520 = vld [vmem:[#allocation2 + $0xbc] sm:$0xff]
        %v1521 = vld [vmem:[#allocation2 + $0xc4] sm:$0xff]
        %v1522 = vld [vmem:[#allocation2 + $0xcc] sm:$0xff]
        %v1523 = vld [vmem:[#allocation2 + $0xd4] sm:$0xff]
        %v1524 = vld [vmem:[#allocation2 + $0xdc] sm:$0xff]
        %v1525 = vld [vmem:[#allocation2 + $0xe4] sm:$0xff]
        %v1526 = vld [vmem:[#allocation2 + $0xec] sm:$0xff]
        %v1527 = vld [vmem:[#allocation2 + $0xf4] sm:$0xff]
        %v1528 = vld [vmem:[#allocation2 + $0xfc] sm:$0xff]
        %v1529 = vld [vmem:[#allocation2 + $0x104] sm:$0xff]
        %v1530 = vld [vmem:[#allocation2 + $0x10c] sm:$0xff]
        %v1531 = vld [vmem:[#allocation2 + $0x114] sm:$0xff]
        %v1532 = vld [vmem:[#allocation2 + $0x11c] sm:$0xff]
        %v1533 = vld [vmem:[#allocation2 + $0x124] sm:$0xff]
        %v1534 = vld [vmem:[#allocation2 + $0x12c] sm:$0xff]
        %v1535 = vpack.c.bf16 %v1500, %v1499
        %v1536 = vpack.c.bf16 %v1502, %v1501
        %v1537 = vpack.c.bf16 %v1504, %v1503
        %v1538 = vpack.c.bf16 %v1506, %v1505
        %v1539 = vpack.c.bf16 %v1508, %v1507
        %v1540 = vpack.c.bf16 %v1510, %v1509
        %v1541 = vpack.c.bf16 %v1512, %v1511
        %v1542 = vpack.c.bf16 %v1514, %v1513
        %v1543 = vpack.c.bf16 %v1516, %v1515
        %v1544 = vpack.c.bf16 %v1518, %v1517
        %v1545 = vpack.c.bf16 %v1520, %v1519
        %v1546 = vpack.c.bf16 %v1522, %v1521
        %v1547 = vpack.c.bf16 %v1524, %v1523
        %v1548 = vpack.c.bf16 %v1526, %v1525
        %v1549 = vpack.c.bf16 %v1528, %v1527
        %v1550 = vpack.c.bf16 %v1530, %v1529
        %v1551 = vpack.c.bf16 %v1532, %v1531
        %v1552 = vpack.c.bf16 %v1534, %v1533
        %1553 = vst [vmem:[#allocation4 + $0x28] sm:$0xff] %v1535
        %1554 = vst [vmem:[#allocation4 + $0x70] sm:$0xff] %v1536
        %1555 = vst [vmem:[#allocation4 + $0xb8] sm:$0xff] %v1537
        %1556 = vst [vmem:[#allocation4 + $0x100] sm:$0xff] %v1538
        %1557 = vst [vmem:[#allocation4 + $0x148] sm:$0xff] %v1539
        %1558 = vst [vmem:[#allocation4 + $0x190] sm:$0xff] %v1540
        %1559 = vst [vmem:[#allocation4 + $0x1d8] sm:$0xff] %v1541
        %1560 = vst [vmem:[#allocation4 + $0x220] sm:$0xff] %v1542
        %1561 = vst [vmem:[#allocation4 + $0x268] sm:$0xff] %v1543
        %1562 = vst [vmem:[#allocation4 + $0x2b0] sm:$0xff] %v1544
        %1563 = vst [vmem:[#allocation4 + $0x2f8] sm:$0xff] %v1545
        %1564 = vst [vmem:[#allocation4 + $0x340] sm:$0xff] %v1546
        %1565 = vst [vmem:[#allocation4 + $0x388] sm:$0xff] %v1547
        %1566 = vst [vmem:[#allocation4 + $0x3d0] sm:$0xff] %v1548
        %1567 = vst [vmem:[#allocation4 + $0x418] sm:$0xff] %v1549
        %1568 = vst [vmem:[#allocation4 + $0x460] sm:$0xff] %v1550
        %1569 = vst [vmem:[#allocation4 + $0x4a8] sm:$0xff] %v1551
        %1570 = vst [vmem:[#allocation4 + $0x4f0] sm:$0xff] %v1552
        %v1571 = vld [vmem:[#allocation2 + $0x24] sm:$0xff]
        %v1572 = vld [vmem:[#allocation2 + $0x2c] sm:$0xff]
        %v1573 = vld [vmem:[#allocation2 + $0x34] sm:$0xff]
        %v1574 = vld [vmem:[#allocation2 + $0x3c] sm:$0xff]
        %v1575 = vld [vmem:[#allocation2 + $0x44] sm:$0xff]
        %v1576 = vld [vmem:[#allocation2 + $0x4c] sm:$0xff]
        %v1577 = vld [vmem:[#allocation2 + $0x54] sm:$0xff]
        %v1578 = vld [vmem:[#allocation2 + $0x5c] sm:$0xff]
        %v1579 = vld [vmem:[#allocation2 + $0x64] sm:$0xff]
        %v1580 = vld [vmem:[#allocation2 + $0x6c] sm:$0xff]
        %v1581 = vld [vmem:[#allocation2 + $0x74] sm:$0xff]
        %v1582 = vld [vmem:[#allocation2 + $0x7c] sm:$0xff]
        %v1583 = vld [vmem:[#allocation2 + $0x84] sm:$0xff]
        %v1584 = vld [vmem:[#allocation2 + $0x8c] sm:$0xff]
        %v1585 = vld [vmem:[#allocation2 + $0x94] sm:$0xff]
        %v1586 = vld [vmem:[#allocation2 + $0x9c] sm:$0xff]
        %v1587 = vld [vmem:[#allocation2 + $0xa4] sm:$0xff]
        %v1588 = vld [vmem:[#allocation2 + $0xac] sm:$0xff]
        %v1589 = vld [vmem:[#allocation2 + $0xb4] sm:$0xff]
        %v1590 = vld [vmem:[#allocation2 + $0xbc] sm:$0xff]
        %v1591 = vld [vmem:[#allocation2 + $0xc4] sm:$0xff]
        %v1592 = vld [vmem:[#allocation2 + $0xcc] sm:$0xff]
        %v1593 = vld [vmem:[#allocation2 + $0xd4] sm:$0xff]
        %v1594 = vld [vmem:[#allocation2 + $0xdc] sm:$0xff]
        %v1595 = vld [vmem:[#allocation2 + $0xe4] sm:$0xff]
        %v1596 = vld [vmem:[#allocation2 + $0xec] sm:$0xff]
        %v1597 = vld [vmem:[#allocation2 + $0xf4] sm:$0xff]
        %v1598 = vld [vmem:[#allocation2 + $0xfc] sm:$0xff]
        %v1599 = vld [vmem:[#allocation2 + $0x104] sm:$0xff]
        %v1600 = vld [vmem:[#allocation2 + $0x10c] sm:$0xff]
        %v1601 = vld [vmem:[#allocation2 + $0x114] sm:$0xff]
        %v1602 = vld [vmem:[#allocation2 + $0x11c] sm:$0xff]
        %v1603 = vld [vmem:[#allocation2 + $0x124] sm:$0xff]
        %v1604 = vld [vmem:[#allocation2 + $0x12c] sm:$0xff]
        %v1605 = vld [vmem:[#allocation2 + $0x134] sm:$0xff]
        %v1606 = vld [vmem:[#allocation2 + $0x13c] sm:$0xff]
        %v1607 = vpack.c.bf16 %v1572, %v1571
        %v1608 = vpack.c.bf16 %v1574, %v1573
        %v1609 = vpack.c.bf16 %v1576, %v1575
        %v1610 = vpack.c.bf16 %v1578, %v1577
        %v1611 = vpack.c.bf16 %v1580, %v1579
        %v1612 = vpack.c.bf16 %v1582, %v1581
        %v1613 = vpack.c.bf16 %v1584, %v1583
        %v1614 = vpack.c.bf16 %v1586, %v1585
        %v1615 = vpack.c.bf16 %v1588, %v1587
        %v1616 = vpack.c.bf16 %v1590, %v1589
        %v1617 = vpack.c.bf16 %v1592, %v1591
        %v1618 = vpack.c.bf16 %v1594, %v1593
        %v1619 = vpack.c.bf16 %v1596, %v1595
        %v1620 = vpack.c.bf16 %v1598, %v1597
        %v1621 = vpack.c.bf16 %v1600, %v1599
        %v1622 = vpack.c.bf16 %v1602, %v1601
        %v1623 = vpack.c.bf16 %v1604, %v1603
        %v1624 = vpack.c.bf16 %v1606, %v1605
        %1625 = vst [vmem:[#allocation4 + $0x30] sm:$0xff] %v1607
        %1626 = vst [vmem:[#allocation4 + $0x78] sm:$0xff] %v1608
        %1627 = vst [vmem:[#allocation4 + $0xc0] sm:$0xff] %v1609
        %1628 = vst [vmem:[#allocation4 + $0x108] sm:$0xff] %v1610
        %1629 = vst [vmem:[#allocation4 + $0x150] sm:$0xff] %v1611
        %1630 = vst [vmem:[#allocation4 + $0x198] sm:$0xff] %v1612
        %1631 = vst [vmem:[#allocation4 + $0x1e0] sm:$0xff] %v1613
        %1632 = vst [vmem:[#allocation4 + $0x228] sm:$0xff] %v1614
        %1633 = vst [vmem:[#allocation4 + $0x270] sm:$0xff] %v1615
        %1634 = vst [vmem:[#allocation4 + $0x2b8] sm:$0xff] %v1616
        %1635 = vst [vmem:[#allocation4 + $0x300] sm:$0xff] %v1617
        %1636 = vst [vmem:[#allocation4 + $0x348] sm:$0xff] %v1618
        %1637 = vst [vmem:[#allocation4 + $0x390] sm:$0xff] %v1619
        %1638 = vst [vmem:[#allocation4 + $0x3d8] sm:$0xff] %v1620
        %1639 = vst [vmem:[#allocation4 + $0x420] sm:$0xff] %v1621
        %1640 = vst [vmem:[#allocation4 + $0x468] sm:$0xff] %v1622
        %1641 = vst [vmem:[#allocation4 + $0x4b0] sm:$0xff] %v1623
        %1642 = vst [vmem:[#allocation4 + $0x4f8] sm:$0xff] %v1624
        %v1643 = vld [vmem:[#allocation2 + $0x25] sm:$0xff]
        %v1644 = vld [vmem:[#allocation2 + $0x2d] sm:$0xff]
        %v1645 = vld [vmem:[#allocation2 + $0x35] sm:$0xff]
        %v1646 = vld [vmem:[#allocation2 + $0x3d] sm:$0xff]
        %v1647 = vld [vmem:[#allocation2 + $0x45] sm:$0xff]
        %v1648 = vld [vmem:[#allocation2 + $0x4d] sm:$0xff]
        %v1649 = vld [vmem:[#allocation2 + $0x55] sm:$0xff]
        %v1650 = vld [vmem:[#allocation2 + $0x5d] sm:$0xff]
        %v1651 = vld [vmem:[#allocation2 + $0x65] sm:$0xff]
        %v1652 = vld [vmem:[#allocation2 + $0x6d] sm:$0xff]
        %v1653 = vld [vmem:[#allocation2 + $0x75] sm:$0xff]
        %v1654 = vld [vmem:[#allocation2 + $0x7d] sm:$0xff]
        %v1655 = vld [vmem:[#allocation2 + $0x85] sm:$0xff]
        %v1656 = vld [vmem:[#allocation2 + $0x8d] sm:$0xff]
        %v1657 = vld [vmem:[#allocation2 + $0x95] sm:$0xff]
        %v1658 = vld [vmem:[#allocation2 + $0x9d] sm:$0xff]
        %v1659 = vld [vmem:[#allocation2 + $0xa5] sm:$0xff]
        %v1660 = vld [vmem:[#allocation2 + $0xad] sm:$0xff]
        %v1661 = vld [vmem:[#allocation2 + $0xb5] sm:$0xff]
        %v1662 = vld [vmem:[#allocation2 + $0xbd] sm:$0xff]
        %v1663 = vld [vmem:[#allocation2 + $0xc5] sm:$0xff]
        %v1664 = vld [vmem:[#allocation2 + $0xcd] sm:$0xff]
        %v1665 = vld [vmem:[#allocation2 + $0xd5] sm:$0xff]
        %v1666 = vld [vmem:[#allocation2 + $0xdd] sm:$0xff]
        %v1667 = vld [vmem:[#allocation2 + $0xe5] sm:$0xff]
        %v1668 = vld [vmem:[#allocation2 + $0xed] sm:$0xff]
        %v1669 = vld [vmem:[#allocation2 + $0xf5] sm:$0xff]
        %v1670 = vld [vmem:[#allocation2 + $0xfd] sm:$0xff]
        %v1671 = vld [vmem:[#allocation2 + $0x105] sm:$0xff]
        %v1672 = vld [vmem:[#allocation2 + $0x10d] sm:$0xff]
        %v1673 = vld [vmem:[#allocation2 + $0x115] sm:$0xff]
        %v1674 = vld [vmem:[#allocation2 + $0x11d] sm:$0xff]
        %v1675 = vld [vmem:[#allocation2 + $0x125] sm:$0xff]
        %v1676 = vld [vmem:[#allocation2 + $0x12d] sm:$0xff]
        %v1677 = vld [vmem:[#allocation2 + $0x135] sm:$0xff]
        %v1678 = vld [vmem:[#allocation2 + $0x13d] sm:$0xff]
        %v1679 = vpack.c.bf16 %v1644, %v1643
        %v1680 = vpack.c.bf16 %v1646, %v1645
        %v1681 = vpack.c.bf16 %v1648, %v1647
        %v1682 = vpack.c.bf16 %v1650, %v1649
        %v1683 = vpack.c.bf16 %v1652, %v1651
        %v1684 = vpack.c.bf16 %v1654, %v1653
        %v1685 = vpack.c.bf16 %v1656, %v1655
        %v1686 = vpack.c.bf16 %v1658, %v1657
        %v1687 = vpack.c.bf16 %v1660, %v1659
        %v1688 = vpack.c.bf16 %v1662, %v1661
        %v1689 = vpack.c.bf16 %v1664, %v1663
        %v1690 = vpack.c.bf16 %v1666, %v1665
        %v1691 = vpack.c.bf16 %v1668, %v1667
        %v1692 = vpack.c.bf16 %v1670, %v1669
        %v1693 = vpack.c.bf16 %v1672, %v1671
        %v1694 = vpack.c.bf16 %v1674, %v1673
        %v1695 = vpack.c.bf16 %v1676, %v1675
        %v1696 = vpack.c.bf16 %v1678, %v1677
        %1697 = vst [vmem:[#allocation4 + $0x38] sm:$0xff] %v1679
        %1698 = vst [vmem:[#allocation4 + $0x80] sm:$0xff] %v1680
        %1699 = vst [vmem:[#allocation4 + $0xc8] sm:$0xff] %v1681
        %1700 = vst [vmem:[#allocation4 + $0x110] sm:$0xff] %v1682
        %1701 = vst [vmem:[#allocation4 + $0x158] sm:$0xff] %v1683
        %1702 = vst [vmem:[#allocation4 + $0x1a0] sm:$0xff] %v1684
        %1703 = vst [vmem:[#allocation4 + $0x1e8] sm:$0xff] %v1685
        %1704 = vst [vmem:[#allocation4 + $0x230] sm:$0xff] %v1686
        %1705 = vst [vmem:[#allocation4 + $0x278] sm:$0xff] %v1687
        %1706 = vst [vmem:[#allocation4 + $0x2c0] sm:$0xff] %v1688
        %1707 = vst [vmem:[#allocation4 + $0x308] sm:$0xff] %v1689
        %1708 = vst [vmem:[#allocation4 + $0x350] sm:$0xff] %v1690
        %1709 = vst [vmem:[#allocation4 + $0x398] sm:$0xff] %v1691
        %1710 = vst [vmem:[#allocation4 + $0x3e0] sm:$0xff] %v1692
        %1711 = vst [vmem:[#allocation4 + $0x428] sm:$0xff] %v1693
        %1712 = vst [vmem:[#allocation4 + $0x470] sm:$0xff] %v1694
        %1713 = vst [vmem:[#allocation4 + $0x4b8] sm:$0xff] %v1695
        %1714 = vst [vmem:[#allocation4 + $0x500] sm:$0xff] %v1696
        %v1715 = vld [vmem:[#allocation2 + $0x26] sm:$0xff]
        %v1716 = vld [vmem:[#allocation2 + $0x2e] sm:$0xff]
        %v1717 = vld [vmem:[#allocation2 + $0x36] sm:$0xff]
        %v1718 = vld [vmem:[#allocation2 + $0x3e] sm:$0xff]
        %v1719 = vld [vmem:[#allocation2 + $0x46] sm:$0xff]
        %v1720 = vld [vmem:[#allocation2 + $0x4e] sm:$0xff]
        %v1721 = vld [vmem:[#allocation2 + $0x56] sm:$0xff]
        %v1722 = vld [vmem:[#allocation2 + $0x5e] sm:$0xff]
        %v1723 = vld [vmem:[#allocation2 + $0x66] sm:$0xff]
        %v1724 = vld [vmem:[#allocation2 + $0x6e] sm:$0xff]
        %v1725 = vld [vmem:[#allocation2 + $0x76] sm:$0xff]
        %v1726 = vld [vmem:[#allocation2 + $0x7e] sm:$0xff]
        %v1727 = vld [vmem:[#allocation2 + $0x86] sm:$0xff]
        %v1728 = vld [vmem:[#allocation2 + $0x8e] sm:$0xff]
        %v1729 = vld [vmem:[#allocation2 + $0x96] sm:$0xff]
        %v1730 = vld [vmem:[#allocation2 + $0x9e] sm:$0xff]
        %v1731 = vld [vmem:[#allocation2 + $0xa6] sm:$0xff]
        %v1732 = vld [vmem:[#allocation2 + $0xae] sm:$0xff]
        %v1733 = vld [vmem:[#allocation2 + $0xb6] sm:$0xff]
        %v1734 = vld [vmem:[#allocation2 + $0xbe] sm:$0xff]
        %v1735 = vld [vmem:[#allocation2 + $0xc6] sm:$0xff]
        %v1736 = vld [vmem:[#allocation2 + $0xce] sm:$0xff]
        %v1737 = vld [vmem:[#allocation2 + $0xd6] sm:$0xff]
        %v1738 = vld [vmem:[#allocation2 + $0xde] sm:$0xff]
        %v1739 = vld [vmem:[#allocation2 + $0xe6] sm:$0xff]
        %v1740 = vld [vmem:[#allocation2 + $0xee] sm:$0xff]
        %v1741 = vld [vmem:[#allocation2 + $0xf6] sm:$0xff]
        %v1742 = vld [vmem:[#allocation2 + $0xfe] sm:$0xff]
        %v1743 = vld [vmem:[#allocation2 + $0x106] sm:$0xff]
        %v1744 = vld [vmem:[#allocation2 + $0x10e] sm:$0xff]
        %v1745 = vld [vmem:[#allocation2 + $0x116] sm:$0xff]
        %v1746 = vld [vmem:[#allocation2 + $0x11e] sm:$0xff]
        %v1747 = vld [vmem:[#allocation2 + $0x126] sm:$0xff]
        %v1748 = vld [vmem:[#allocation2 + $0x12e] sm:$0xff]
        %v1749 = vld [vmem:[#allocation2 + $0x136] sm:$0xff]
        %v1750 = vld [vmem:[#allocation2 + $0x13e] sm:$0xff]
        %v1751 = vpack.c.bf16 %v1716, %v1715
        %v1752 = vpack.c.bf16 %v1718, %v1717
        %v1753 = vpack.c.bf16 %v1720, %v1719
        %v1754 = vpack.c.bf16 %v1722, %v1721
        %v1755 = vpack.c.bf16 %v1724, %v1723
        %v1756 = vpack.c.bf16 %v1726, %v1725
        %v1757 = vpack.c.bf16 %v1728, %v1727
        %v1758 = vpack.c.bf16 %v1730, %v1729
        %v1759 = vpack.c.bf16 %v1732, %v1731
        %v1760 = vpack.c.bf16 %v1734, %v1733
        %v1761 = vpack.c.bf16 %v1736, %v1735
        %v1762 = vpack.c.bf16 %v1738, %v1737
        %v1763 = vpack.c.bf16 %v1740, %v1739
        %v1764 = vpack.c.bf16 %v1742, %v1741
        %v1765 = vpack.c.bf16 %v1744, %v1743
        %v1766 = vpack.c.bf16 %v1746, %v1745
        %v1767 = vpack.c.bf16 %v1748, %v1747
        %v1768 = vpack.c.bf16 %v1750, %v1749
        %1769 = vst [vmem:[#allocation4 + $0x40] sm:$0xff] %v1751
        %1770 = vst [vmem:[#allocation4 + $0x88] sm:$0xff] %v1752
        %1771 = vst [vmem:[#allocation4 + $0xd0] sm:$0xff] %v1753
        %1772 = vst [vmem:[#allocation4 + $0x118] sm:$0xff] %v1754
        %1773 = vst [vmem:[#allocation4 + $0x160] sm:$0xff] %v1755
        %1774 = vst [vmem:[#allocation4 + $0x1a8] sm:$0xff] %v1756
        %1775 = vst [vmem:[#allocation4 + $0x1f0] sm:$0xff] %v1757
        %1776 = vst [vmem:[#allocation4 + $0x238] sm:$0xff] %v1758
        %1777 = vst [vmem:[#allocation4 + $0x280] sm:$0xff] %v1759
        %1778 = vst [vmem:[#allocation4 + $0x2c8] sm:$0xff] %v1760
        %1779 = vst [vmem:[#allocation4 + $0x310] sm:$0xff] %v1761
        %1780 = vst [vmem:[#allocation4 + $0x358] sm:$0xff] %v1762
        %1781 = vst [vmem:[#allocation4 + $0x3a0] sm:$0xff] %v1763
        %1782 = vst [vmem:[#allocation4 + $0x3e8] sm:$0xff] %v1764
        %1783 = vst [vmem:[#allocation4 + $0x430] sm:$0xff] %v1765
        %1784 = vst [vmem:[#allocation4 + $0x478] sm:$0xff] %v1766
        %1785 = vst [vmem:[#allocation4 + $0x4c0] sm:$0xff] %v1767
        %1786 = vst [vmem:[#allocation4 + $0x508] sm:$0xff] %v1768
        %v1787 = vld [vmem:[#allocation4] sm:$0xff]
        %v1788 = vld [vmem:[#allocation4 + $0x8] sm:$0xff]
        %v1789 = vld [vmem:[#allocation4 + $0x10] sm:$0xff]
        %v1790 = vld [vmem:[#allocation4 + $0x18] sm:$0xff]
        %v1791 = vld [vmem:[#allocation4 + $0x20] sm:$0xff]
        %v1792 = vld [vmem:[#allocation4 + $0x28] sm:$0xff]
        %v1793 = vld [vmem:[#allocation4 + $0x30] sm:$0xff]
        %v1794 = vld [vmem:[#allocation4 + $0x38] sm:$0xff]
        %v1795 = vld [vmem:[#allocation4 + $0x40] sm:$0xff]
        %v1796 = vld [vmem:[#allocation4 + $0x48] sm:$0xff]
        %v1797 = vld [vmem:[#allocation4 + $0x50] sm:$0xff]
        %v1798 = vld [vmem:[#allocation4 + $0x58] sm:$0xff]
        %v1799 = vld [vmem:[#allocation4 + $0x60] sm:$0xff]
        %v1800 = vld [vmem:[#allocation4 + $0x68] sm:$0xff]
        %v1801 = vld [vmem:[#allocation4 + $0x70] sm:$0xff]
        %v1802 = vld [vmem:[#allocation4 + $0x78] sm:$0xff]
        %v1803 = vld [vmem:[#allocation4 + $0x80] sm:$0xff]
        %v1804 = vld [vmem:[#allocation4 + $0x88] sm:$0xff]
        %v1805 = vld [vmem:[#allocation4 + $0x90] sm:$0xff]
        %v1806 = vld [vmem:[#allocation4 + $0x98] sm:$0xff]
        %v1807 = vld [vmem:[#allocation4 + $0xa0] sm:$0xff]
        %v1808 = vld [vmem:[#allocation4 + $0xa8] sm:$0xff]
        %v1809 = vld [vmem:[#allocation4 + $0xb0] sm:$0xff]
        %v1810 = vld [vmem:[#allocation4 + $0xb8] sm:$0xff]
        %v1811 = vld [vmem:[#allocation4 + $0xc0] sm:$0xff]
        %v1812 = vld [vmem:[#allocation4 + $0xc8] sm:$0xff]
        %v1813 = vld [vmem:[#allocation4 + $0xd0] sm:$0xff]
        %v1814 = vld [vmem:[#allocation4 + $0xd8] sm:$0xff]
        %v1815 = vld [vmem:[#allocation4 + $0xe0] sm:$0xff]
        %v1816 = vld [vmem:[#allocation4 + $0xe8] sm:$0xff]
        %v1817 = vld [vmem:[#allocation4 + $0xf0] sm:$0xff]
        %v1818 = vld [vmem:[#allocation4 + $0xf8] sm:$0xff]
        %v1819 = vld [vmem:[#allocation4 + $0x100] sm:$0xff]
        %v1820 = vld [vmem:[#allocation4 + $0x108] sm:$0xff]
        %v1821 = vld [vmem:[#allocation4 + $0x110] sm:$0xff]
        %v1822 = vld [vmem:[#allocation4 + $0x118] sm:$0xff]
        %v1823 = vld [vmem:[#allocation4 + $0x120] sm:$0xff]
        %v1824 = vld [vmem:[#allocation4 + $0x128] sm:$0xff]
        %v1825 = vld [vmem:[#allocation4 + $0x130] sm:$0xff]
        %v1826 = vld [vmem:[#allocation4 + $0x138] sm:$0xff]
        %v1827 = vld [vmem:[#allocation4 + $0x140] sm:$0xff]
        %v1828 = vld [vmem:[#allocation4 + $0x148] sm:$0xff]
        %v1829 = vld [vmem:[#allocation4 + $0x150] sm:$0xff]
        %v1830 = vld [vmem:[#allocation4 + $0x158] sm:$0xff]
        %v1831 = vld [vmem:[#allocation4 + $0x160] sm:$0xff]
        %v1832 = vld [vmem:[#allocation4 + $0x168] sm:$0xff]
        %v1833 = vld [vmem:[#allocation4 + $0x170] sm:$0xff]
        %v1834 = vld [vmem:[#allocation4 + $0x178] sm:$0xff]
        %v1835 = vld [vmem:[#allocation4 + $0x180] sm:$0xff]
        %v1836 = vld [vmem:[#allocation4 + $0x188] sm:$0xff]
        %v1837 = vld [vmem:[#allocation4 + $0x190] sm:$0xff]
        %v1838 = vld [vmem:[#allocation4 + $0x198] sm:$0xff]
        %v1839 = vld [vmem:[#allocation4 + $0x1a0] sm:$0xff]
        %v1840 = vld [vmem:[#allocation4 + $0x1a8] sm:$0xff]
        %v1841 = vld [vmem:[#allocation4 + $0x1b0] sm:$0xff]
        %v1842 = vld [vmem:[#allocation4 + $0x1b8] sm:$0xff]
        %v1843 = vld [vmem:[#allocation4 + $0x1c0] sm:$0xff]
        %v1844 = vld [vmem:[#allocation4 + $0x1c8] sm:$0xff]
        %v1845 = vld [vmem:[#allocation4 + $0x1d0] sm:$0xff]
        %v1846 = vld [vmem:[#allocation4 + $0x1d8] sm:$0xff]
        %v1847 = vld [vmem:[#allocation4 + $0x1e0] sm:$0xff]
        %v1848 = vld [vmem:[#allocation4 + $0x1e8] sm:$0xff]
        %v1849 = vld [vmem:[#allocation4 + $0x1f0] sm:$0xff]
        %v1850 = vld [vmem:[#allocation4 + $0x1f8] sm:$0xff]
        %v1851 = vld [vmem:[#allocation4 + $0x200] sm:$0xff]
        %v1852 = vld [vmem:[#allocation4 + $0x208] sm:$0xff]
        %v1853 = vld [vmem:[#allocation4 + $0x210] sm:$0xff]
        %v1854 = vld [vmem:[#allocation4 + $0x218] sm:$0xff]
        %v1855 = vld [vmem:[#allocation4 + $0x220] sm:$0xff]
        %v1856 = vld [vmem:[#allocation4 + $0x228] sm:$0xff]
        %v1857 = vld [vmem:[#allocation4 + $0x230] sm:$0xff]
        %v1858 = vld [vmem:[#allocation4 + $0x238] sm:$0xff]
        %v1859 = vld [vmem:[#allocation4 + $0x240] sm:$0xff]
        %v1860 = vld [vmem:[#allocation4 + $0x248] sm:$0xff]
        %v1861 = vld [vmem:[#allocation4 + $0x250] sm:$0xff]
        %v1862 = vld [vmem:[#allocation4 + $0x258] sm:$0xff]
        %v1863 = vld [vmem:[#allocation4 + $0x260] sm:$0xff]
        %v1864 = vld [vmem:[#allocation4 + $0x268] sm:$0xff]
        %v1865 = vld [vmem:[#allocation4 + $0x270] sm:$0xff]
        %v1866 = vld [vmem:[#allocation4 + $0x278] sm:$0xff]
        %v1867 = vld [vmem:[#allocation4 + $0x280] sm:$0xff]
        %v1868 = vld [vmem:[#allocation4 + $0x288] sm:$0xff]
        %v1869 = vld [vmem:[#allocation4 + $0x290] sm:$0xff]
        %v1870 = vld [vmem:[#allocation4 + $0x298] sm:$0xff]
        %v1871 = vld [vmem:[#allocation4 + $0x2a0] sm:$0xff]
        %v1872 = vld [vmem:[#allocation4 + $0x2a8] sm:$0xff]
        %v1873 = vld [vmem:[#allocation4 + $0x2b0] sm:$0xff]
        %v1874 = vld [vmem:[#allocation4 + $0x2b8] sm:$0xff]
        %v1875 = vld [vmem:[#allocation4 + $0x2c0] sm:$0xff]
        %v1876 = vld [vmem:[#allocation4 + $0x2c8] sm:$0xff]
        %v1877 = vld [vmem:[#allocation4 + $0x2d0] sm:$0xff]
        %v1878 = vld [vmem:[#allocation4 + $0x2d8] sm:$0xff]
        %v1879 = vld [vmem:[#allocation4 + $0x2e0] sm:$0xff]
        %v1880 = vld [vmem:[#allocation4 + $0x2e8] sm:$0xff]
        %v1881 = vld [vmem:[#allocation4 + $0x2f0] sm:$0xff]
        %v1882 = vld [vmem:[#allocation4 + $0x2f8] sm:$0xff]
        %v1883 = vld [vmem:[#allocation4 + $0x300] sm:$0xff]
        %v1884 = vld [vmem:[#allocation4 + $0x308] sm:$0xff]
        %v1885 = vld [vmem:[#allocation4 + $0x310] sm:$0xff]
        %v1886 = vld [vmem:[#allocation4 + $0x318] sm:$0xff]
        %v1887 = vld [vmem:[#allocation4 + $0x320] sm:$0xff]
        %v1888 = vld [vmem:[#allocation4 + $0x328] sm:$0xff]
        %v1889 = vld [vmem:[#allocation4 + $0x330] sm:$0xff]
        %v1890 = vld [vmem:[#allocation4 + $0x338] sm:$0xff]
        %v1891 = vld [vmem:[#allocation4 + $0x340] sm:$0xff]
        %v1892 = vld [vmem:[#allocation4 + $0x348] sm:$0xff]
        %v1893 = vld [vmem:[#allocation4 + $0x350] sm:$0xff]
        %v1894 = vld [vmem:[#allocation4 + $0x358] sm:$0xff]
        %v1895 = vld [vmem:[#allocation4 + $0x360] sm:$0xff]
        %v1896 = vld [vmem:[#allocation4 + $0x368] sm:$0xff]
        %v1897 = vld [vmem:[#allocation4 + $0x370] sm:$0xff]
        %v1898 = vld [vmem:[#allocation4 + $0x378] sm:$0xff]
        %v1899 = vld [vmem:[#allocation4 + $0x380] sm:$0xff]
        %v1900 = vld [vmem:[#allocation4 + $0x388] sm:$0xff]
        %v1901 = vld [vmem:[#allocation4 + $0x390] sm:$0xff]
        %v1902 = vld [vmem:[#allocation4 + $0x398] sm:$0xff]
        %v1903 = vld [vmem:[#allocation4 + $0x3a0] sm:$0xff]
        %v1904 = vld [vmem:[#allocation4 + $0x3a8] sm:$0xff]
        %v1905 = vld [vmem:[#allocation4 + $0x3b0] sm:$0xff]
        %v1906 = vld [vmem:[#allocation4 + $0x3b8] sm:$0xff]
        %v1907 = vld [vmem:[#allocation4 + $0x3c0] sm:$0xff]
        %v1908 = vld [vmem:[#allocation4 + $0x3c8] sm:$0xff]
        %v1909 = vld [vmem:[#allocation4 + $0x3d0] sm:$0xff]
        %v1910 = vld [vmem:[#allocation4 + $0x3d8] sm:$0xff]
        %v1911 = vld [vmem:[#allocation4 + $0x3e0] sm:$0xff]
        %v1912 = vld [vmem:[#allocation4 + $0x3e8] sm:$0xff]
        %v1913 = vld [vmem:[#allocation4 + $0x3f0] sm:$0xff]
        %v1914 = vld [vmem:[#allocation4 + $0x3f8] sm:$0xff]
        %v1915 = vld [vmem:[#allocation4 + $0x400] sm:$0xff]
        %v1916 = vld [vmem:[#allocation4 + $0x408] sm:$0xff]
        %v1917 = vld [vmem:[#allocation4 + $0x410] sm:$0xff]
        %v1918 = vld [vmem:[#allocation4 + $0x418] sm:$0xff]
        %v1919 = vld [vmem:[#allocation4 + $0x420] sm:$0xff]
        %v1920 = vld [vmem:[#allocation4 + $0x428] sm:$0xff]
        %v1921 = vld [vmem:[#allocation4 + $0x430] sm:$0xff]
        %v1922 = vld [vmem:[#allocation4 + $0x438] sm:$0xff]
        %v1923 = vld [vmem:[#allocation4 + $0x440] sm:$0xff]
        %v1924 = vld [vmem:[#allocation4 + $0x448] sm:$0xff]
        %v1925 = vld [vmem:[#allocation4 + $0x450] sm:$0xff]
        %v1926 = vld [vmem:[#allocation4 + $0x458] sm:$0xff]
        %v1927 = vld [vmem:[#allocation4 + $0x460] sm:$0xff]
        %v1928 = vld [vmem:[#allocation4 + $0x468] sm:$0xff]
        %v1929 = vld [vmem:[#allocation4 + $0x470] sm:$0xff]
        %v1930 = vld [vmem:[#allocation4 + $0x478] sm:$0xff]
        %v1931 = vld [vmem:[#allocation4 + $0x480] sm:$0xff]
        %v1932 = vld [vmem:[#allocation4 + $0x488] sm:$0xff]
        %v1933 = vld [vmem:[#allocation4 + $0x490] sm:$0xff]
        %v1934 = vld [vmem:[#allocation4 + $0x498] sm:$0xff]
        %v1935 = vld [vmem:[#allocation4 + $0x4a0] sm:$0xff]
        %v1936 = vld [vmem:[#allocation4 + $0x4a8] sm:$0xff]
        %v1937 = vld [vmem:[#allocation4 + $0x4b0] sm:$0xff]
        %v1938 = vld [vmem:[#allocation4 + $0x4b8] sm:$0xff]
        %v1939 = vld [vmem:[#allocation4 + $0x4c0] sm:$0xff]
        %v1940 = vld [vmem:[#allocation4 + $0x4c8] sm:$0xff]
        %v1941 = vld [vmem:[#allocation4 + $0x4d0] sm:$0xff]
        %v1942 = vld [vmem:[#allocation4 + $0x4d8] sm:$0xff]
        %v1943 = vld [vmem:[#allocation4 + $0x4e0] sm:$0xff]
        %v1944 = vld [vmem:[#allocation4 + $0x4e8] sm:$0xff]
        %v1945 = vld [vmem:[#allocation4 + $0x4f0] sm:$0xff]
        %v1946 = vld [vmem:[#allocation4 + $0x4f8] sm:$0xff]
        %v1947 = vld [vmem:[#allocation4 + $0x500] sm:$0xff]
        %v1948 = vld [vmem:[#allocation4 + $0x508] sm:$0xff]
        %v1949 = vld [vmem:[#allocation5] sm:$0xf]
        %v1950 = vld [vmem:[#allocation5 + $0x4] sm:$0xf]
        %v1951 = vld [vmem:[#allocation5 + $0x8] sm:$0xf]
        %v1952 = vld [vmem:[#allocation5 + $0xc] sm:$0xf]
        %v1953 = vld [vmem:[#allocation5 + $0x10] sm:$0xf]
        %v1954 = vld [vmem:[#allocation5 + $0x14] sm:$0xf]
        %v1955 = vld [vmem:[#allocation5 + $0x18] sm:$0xf]
        %v1956 = vld [vmem:[#allocation5 + $0x1c] sm:$0xf]
        %v1957 = vld [vmem:[#allocation5 + $0x20] sm:$0xf]
        %v1958 = vld [vmem:[#allocation5 + $0x24] sm:$0xf]
        %v1959 = vld [vmem:[#allocation5 + $0x28] sm:$0xf]
        %v1960 = vld [vmem:[#allocation5 + $0x2c] sm:$0xf]
        %v1961 = vld [vmem:[#allocation5 + $0x30] sm:$0xf]
        %v1962 = vld [vmem:[#allocation5 + $0x34] sm:$0xf]
        %v1963 = vld [vmem:[#allocation5 + $0x38] sm:$0xf]
        %v1964 = vld [vmem:[#allocation5 + $0x3c] sm:$0xf]
        %v1965 = vld [vmem:[#allocation5 + $0x40] sm:$0xf]
        %v1966 = vld [vmem:[#allocation5 + $0x44] sm:$0xf]
        %v1967 = vld [vmem:[#allocation5 + $0x48] sm:$0xf]
        %v1968 = vld [vmem:[#allocation5 + $0x4c] sm:$0xf]
        %v1969 = vld [vmem:[#allocation5 + $0x50] sm:$0xf]
        %v1970 = vld [vmem:[#allocation5 + $0x54] sm:$0xf]
        %v1971 = vld [vmem:[#allocation5 + $0x58] sm:$0xf]
        %v1972 = vld [vmem:[#allocation5 + $0x5c] sm:$0xf]
        %v1973 = vld [vmem:[#allocation5 + $0x60] sm:$0xf]
        %v1974 = vld [vmem:[#allocation5 + $0x64] sm:$0xf]
        %v1975 = vld [vmem:[#allocation5 + $0x68] sm:$0xf]
        %v1976 = vld [vmem:[#allocation5 + $0x6c] sm:$0xf]
        %v1977 = vld [vmem:[#allocation5 + $0x70] sm:$0xf]
        %v1978 = vld [vmem:[#allocation5 + $0x74] sm:$0xf]
        %v1979 = vld [vmem:[#allocation5 + $0x78] sm:$0xf]
        %v1980 = vld [vmem:[#allocation5 + $0x7c] sm:$0xf]
        %v1981 = vld [vmem:[#allocation5 + $0x80] sm:$0xf]
        %v1982 = vld [vmem:[#allocation5 + $0x84] sm:$0xf]
        %v1983 = vld [vmem:[#allocation5 + $0x88] sm:$0xf]
        %v1984 = vld [vmem:[#allocation5 + $0x8c] sm:$0xf]
        %v1985 = vld [vmem:[#allocation5 + $0x90] sm:$0xf]
        %v1986 = vld [vmem:[#allocation5 + $0x94] sm:$0xf]
        %v1987 = vld [vmem:[#allocation5 + $0x98] sm:$0xf]
        %v1988 = vld [vmem:[#allocation5 + $0x9c] sm:$0xf]
        %v1989 = vld [vmem:[#allocation5 + $0xa0] sm:$0xf]
        %v1990 = vld [vmem:[#allocation5 + $0xa4] sm:$0xf]
        %v1991 = vld [vmem:[#allocation5 + $0xa8] sm:$0xf]
        %v1992 = vld [vmem:[#allocation5 + $0xac] sm:$0xf]
        %v1993 = vld [vmem:[#allocation5 + $0xb0] sm:$0xf]
        %v1994 = vld [vmem:[#allocation5 + $0xb4] sm:$0xf]
        %v1995 = vld [vmem:[#allocation5 + $0xb8] sm:$0xf]
        %v1996 = vld [vmem:[#allocation5 + $0xbc] sm:$0xf]
        %v1997 = vld [vmem:[#allocation5 + $0xc0] sm:$0xf]
        %v1998 = vld [vmem:[#allocation5 + $0xc4] sm:$0xf]
        %v1999 = vld [vmem:[#allocation5 + $0xc8] sm:$0xf]
        %v2000 = vld [vmem:[#allocation5 + $0xcc] sm:$0xf]
        %v2001 = vld [vmem:[#allocation5 + $0xd0] sm:$0xf]
        %v2002 = vld [vmem:[#allocation5 + $0xd4] sm:$0xf]
        %v2003 = vld [vmem:[#allocation5 + $0xd8] sm:$0xf]
        %v2004 = vld [vmem:[#allocation5 + $0xdc] sm:$0xf]
        %v2005 = vld [vmem:[#allocation5 + $0xe0] sm:$0xf]
        %v2006 = vld [vmem:[#allocation5 + $0xe4] sm:$0xf]
        %v2007 = vld [vmem:[#allocation5 + $0xe8] sm:$0xf]
        %v2008 = vld [vmem:[#allocation5 + $0xec] sm:$0xf]
        %v2009 = vld [vmem:[#allocation5 + $0xf0] sm:$0xf]
        %v2010 = vld [vmem:[#allocation5 + $0xf4] sm:$0xf]
        %v2011 = vld [vmem:[#allocation5 + $0xf8] sm:$0xf]
        %v2012 = vld [vmem:[#allocation5 + $0xfc] sm:$0xf]
        %v2013 = vld [vmem:[#allocation5 + $0x100] sm:$0xf]
        %v2014 = vld [vmem:[#allocation5 + $0x104] sm:$0xf]
        %v2015 = vld [vmem:[#allocation5 + $0x108] sm:$0xf]
        %v2016 = vld [vmem:[#allocation5 + $0x10c] sm:$0xf]
        %v2017 = vld [vmem:[#allocation5 + $0x110] sm:$0xf]
        %v2018 = vld [vmem:[#allocation5 + $0x114] sm:$0xf]
        %v2019 = vld [vmem:[#allocation5 + $0x118] sm:$0xf]
        %v2020 = vld [vmem:[#allocation5 + $0x11c] sm:$0xf]
        %v2021 = vld [vmem:[#allocation5 + $0x120] sm:$0xf]
        %v2022 = vld [vmem:[#allocation5 + $0x124] sm:$0xf]
        %v2023 = vld [vmem:[#allocation5 + $0x128] sm:$0xf]
        %v2024 = vld [vmem:[#allocation5 + $0x12c] sm:$0xf]
        %v2025 = vld [vmem:[#allocation5 + $0x130] sm:$0xf]
        %v2026 = vld [vmem:[#allocation5 + $0x134] sm:$0xf]
        %v2027 = vld [vmem:[#allocation5 + $0x138] sm:$0xf]
        %v2028 = vld [vmem:[#allocation5 + $0x13c] sm:$0xf]
        %v2029 = vld [vmem:[#allocation5 + $0x140] sm:$0xf]
        %v2030 = vld [vmem:[#allocation5 + $0x144] sm:$0xf]
        %v2031 = vld [vmem:[#allocation5 + $0x148] sm:$0xf]
        %v2032 = vld [vmem:[#allocation5 + $0x14c] sm:$0xf]
        %v2033 = vld [vmem:[#allocation5 + $0x150] sm:$0xf]
        %v2034 = vld [vmem:[#allocation5 + $0x154] sm:$0xf]
        %v2035 = vld [vmem:[#allocation5 + $0x158] sm:$0xf]
        %v2036 = vld [vmem:[#allocation5 + $0x15c] sm:$0xf]
        %v2037 = vld [vmem:[#allocation5 + $0x160] sm:$0xf]
        %v2038 = vld [vmem:[#allocation5 + $0x164] sm:$0xf]
        %v2039 = vld [vmem:[#allocation5 + $0x168] sm:$0xf]
        %v2040 = vld [vmem:[#allocation5 + $0x16c] sm:$0xf]
        %v2041 = vld [vmem:[#allocation5 + $0x170] sm:$0xf]
        %v2042 = vld [vmem:[#allocation5 + $0x174] sm:$0xf]
        %v2043 = vld [vmem:[#allocation5 + $0x178] sm:$0xf]
        %v2044 = vld [vmem:[#allocation5 + $0x17c] sm:$0xf]
        %v2045 = vld [vmem:[#allocation5 + $0x180] sm:$0xf]
        %v2046 = vld [vmem:[#allocation5 + $0x184] sm:$0xf]
        %v2047 = vld [vmem:[#allocation5 + $0x188] sm:$0xf]
        %v2048 = vld [vmem:[#allocation5 + $0x18c] sm:$0xf]
        %v2049 = vld [vmem:[#allocation5 + $0x190] sm:$0xf]
        %v2050 = vld [vmem:[#allocation5 + $0x194] sm:$0xf]
        %v2051 = vld [vmem:[#allocation5 + $0x198] sm:$0xf]
        %v2052 = vld [vmem:[#allocation5 + $0x19c] sm:$0xf]
        %v2053 = vld [vmem:[#allocation5 + $0x1a0] sm:$0xf]
        %v2054 = vld [vmem:[#allocation5 + $0x1a4] sm:$0xf]
        %v2055 = vld [vmem:[#allocation5 + $0x1a8] sm:$0xf]
        %v2056 = vld [vmem:[#allocation5 + $0x1ac] sm:$0xf]
        %v2057 = vld [vmem:[#allocation5 + $0x1b0] sm:$0xf]
        %v2058 = vld [vmem:[#allocation5 + $0x1b4] sm:$0xf]
        %v2059 = vld [vmem:[#allocation5 + $0x1b8] sm:$0xf]
        %v2060 = vld [vmem:[#allocation5 + $0x1bc] sm:$0xf]
        %v2061 = vld [vmem:[#allocation5 + $0x1c0] sm:$0xf]
        %v2062 = vld [vmem:[#allocation5 + $0x1c4] sm:$0xf]
        %v2063 = vld [vmem:[#allocation5 + $0x1c8] sm:$0xf]
        %v2064 = vld [vmem:[#allocation5 + $0x1cc] sm:$0xf]
        %v2065 = vld [vmem:[#allocation5 + $0x1d0] sm:$0xf]
        %v2066 = vld [vmem:[#allocation5 + $0x1d4] sm:$0xf]
        %v2067 = vld [vmem:[#allocation5 + $0x1d8] sm:$0xf]
        %v2068 = vld [vmem:[#allocation5 + $0x1dc] sm:$0xf]
        %v2069 = vld [vmem:[#allocation5 + $0x1e0] sm:$0xf]
        %v2070 = vld [vmem:[#allocation5 + $0x1e4] sm:$0xf]
        %v2071 = vld [vmem:[#allocation5 + $0x1e8] sm:$0xf]
        %v2072 = vld [vmem:[#allocation5 + $0x1ec] sm:$0xf]
        %v2073 = vld [vmem:[#allocation5 + $0x1f0] sm:$0xf]
        %v2074 = vld [vmem:[#allocation5 + $0x1f4] sm:$0xf]
        %v2075 = vld [vmem:[#allocation5 + $0x1f8] sm:$0xf]
        %v2076 = vld [vmem:[#allocation5 + $0x1fc] sm:$0xf]
        %v2077 = vld [vmem:[#allocation5 + $0x200] sm:$0xf]
        %v2078 = vld [vmem:[#allocation5 + $0x204] sm:$0xf]
        %v2079 = vld [vmem:[#allocation5 + $0x208] sm:$0xf]
        %v2080 = vld [vmem:[#allocation5 + $0x20c] sm:$0xf]
        %v2081 = vld [vmem:[#allocation5 + $0x210] sm:$0xf]
        %v2082 = vld [vmem:[#allocation5 + $0x214] sm:$0xf]
        %v2083 = vld [vmem:[#allocation5 + $0x218] sm:$0xf]
        %v2084 = vld [vmem:[#allocation5 + $0x21c] sm:$0xf]
        %v2085 = vld [vmem:[#allocation5 + $0x220] sm:$0xf]
        %v2086 = vld [vmem:[#allocation5 + $0x224] sm:$0xf]
        %v2087 = vld [vmem:[#allocation5 + $0x228] sm:$0xf]
        %v2088 = vld [vmem:[#allocation5 + $0x22c] sm:$0xf]
        %v2089 = vld [vmem:[#allocation5 + $0x230] sm:$0xf]
        %v2090 = vld [vmem:[#allocation5 + $0x234] sm:$0xf]
        %v2091 = vld [vmem:[#allocation5 + $0x238] sm:$0xf]
        %v2092 = vld [vmem:[#allocation5 + $0x23c] sm:$0xf]
        %v2237 = vunpack.c.l.b16 %v1949
        %v2238 = vunpack.c.l.b16 %v1950
        %v2239 = vunpack.c.l.b16 %v1951
        %v2240 = vunpack.c.l.b16 %v1952
        %v2241 = vunpack.c.l.b16 %v1953
        %v2242 = vunpack.c.l.b16 %v1954
        %v2243 = vunpack.c.l.b16 %v1955
        %v2244 = vunpack.c.l.b16 %v1956
        %v2245 = vunpack.c.l.b16 %v1957
        %v2246 = vunpack.c.l.b16 %v1958
        %v2247 = vunpack.c.l.b16 %v1959
        %v2248 = vunpack.c.l.b16 %v1960
        %v2249 = vunpack.c.l.b16 %v1961
        %v2250 = vunpack.c.l.b16 %v1962
        %v2251 = vunpack.c.l.b16 %v1963
        %v2252 = vunpack.c.l.b16 %v1964
        %v2253 = vunpack.c.l.b16 %v1965
        %v2254 = vunpack.c.l.b16 %v1966
        %v2255 = vunpack.c.l.b16 %v1967
        %v2256 = vunpack.c.l.b16 %v1968
        %v2257 = vunpack.c.l.b16 %v1969
        %v2258 = vunpack.c.l.b16 %v1970
        %v2259 = vunpack.c.l.b16 %v1971
        %v2260 = vunpack.c.l.b16 %v1972
        %v2261 = vunpack.c.l.b16 %v1973
        %v2262 = vunpack.c.l.b16 %v1974
        %v2263 = vunpack.c.l.b16 %v1975
        %v2264 = vunpack.c.l.b16 %v1976
        %v2265 = vunpack.c.l.b16 %v1977
        %v2266 = vunpack.c.l.b16 %v1978
        %v2267 = vunpack.c.l.b16 %v1979
        %v2268 = vunpack.c.l.b16 %v1980
        %v2269 = vunpack.c.l.b16 %v1981
        %v2270 = vunpack.c.l.b16 %v1982
        %v2271 = vunpack.c.l.b16 %v1983
        %v2272 = vunpack.c.l.b16 %v1984
        %v2273 = vunpack.c.l.b16 %v1985
        %v2274 = vunpack.c.l.b16 %v1986
        %v2275 = vunpack.c.l.b16 %v1987
        %v2276 = vunpack.c.l.b16 %v1988
        %v2277 = vunpack.c.l.b16 %v1989
        %v2278 = vunpack.c.l.b16 %v1990
        %v2279 = vunpack.c.l.b16 %v1991
        %v2280 = vunpack.c.l.b16 %v1992
        %v2281 = vunpack.c.l.b16 %v1993
        %v2282 = vunpack.c.l.b16 %v1994
        %v2283 = vunpack.c.l.b16 %v1995
        %v2284 = vunpack.c.l.b16 %v1996
        %v2285 = vunpack.c.l.b16 %v1997
        %v2286 = vunpack.c.l.b16 %v1998
        %v2287 = vunpack.c.l.b16 %v1999
        %v2288 = vunpack.c.l.b16 %v2000
        %v2289 = vunpack.c.l.b16 %v2001
        %v2290 = vunpack.c.l.b16 %v2002
        %v2291 = vunpack.c.l.b16 %v2003
        %v2292 = vunpack.c.l.b16 %v2004
        %v2293 = vunpack.c.l.b16 %v2005
        %v2294 = vunpack.c.l.b16 %v2006
        %v2295 = vunpack.c.l.b16 %v2007
        %v2296 = vunpack.c.l.b16 %v2008
        %v2297 = vunpack.c.l.b16 %v2009
        %v2298 = vunpack.c.l.b16 %v2010
        %v2299 = vunpack.c.l.b16 %v2011
        %v2300 = vunpack.c.l.b16 %v2012
        %v2301 = vunpack.c.l.b16 %v2013
        %v2302 = vunpack.c.l.b16 %v2014
        %v2303 = vunpack.c.l.b16 %v2015
        %v2304 = vunpack.c.l.b16 %v2016
        %v2305 = vunpack.c.l.b16 %v2017
        %v2306 = vunpack.c.l.b16 %v2018
        %v2307 = vunpack.c.l.b16 %v2019
        %v2308 = vunpack.c.l.b16 %v2020
        %v2309 = vunpack.c.l.b16 %v2021
        %v2310 = vunpack.c.l.b16 %v2022
        %v2311 = vunpack.c.l.b16 %v2023
        %v2312 = vunpack.c.l.b16 %v2024
        %v2313 = vunpack.c.l.b16 %v2025
        %v2314 = vunpack.c.l.b16 %v2026
        %v2315 = vunpack.c.l.b16 %v2027
        %v2316 = vunpack.c.l.b16 %v2028
        %v2317 = vunpack.c.l.b16 %v2029
        %v2318 = vunpack.c.l.b16 %v2030
        %v2319 = vunpack.c.l.b16 %v2031
        %v2320 = vunpack.c.l.b16 %v2032
        %v2321 = vunpack.c.l.b16 %v2033
        %v2322 = vunpack.c.l.b16 %v2034
        %v2323 = vunpack.c.l.b16 %v2035
        %v2324 = vunpack.c.l.b16 %v2036
        %v2325 = vunpack.c.l.b16 %v2037
        %v2326 = vunpack.c.l.b16 %v2038
        %v2327 = vunpack.c.l.b16 %v2039
        %v2328 = vunpack.c.l.b16 %v2040
        %v2329 = vunpack.c.l.b16 %v2041
        %v2330 = vunpack.c.l.b16 %v2042
        %v2331 = vunpack.c.l.b16 %v2043
        %v2332 = vunpack.c.l.b16 %v2044
        %v2333 = vunpack.c.l.b16 %v2045
        %v2334 = vunpack.c.l.b16 %v2046
        %v2335 = vunpack.c.l.b16 %v2047
        %v2336 = vunpack.c.l.b16 %v2048
        %v2337 = vunpack.c.l.b16 %v2049
        %v2338 = vunpack.c.l.b16 %v2050
        %v2339 = vunpack.c.l.b16 %v2051
        %v2340 = vunpack.c.l.b16 %v2052
        %v2341 = vunpack.c.l.b16 %v2053
        %v2342 = vunpack.c.l.b16 %v2054
        %v2343 = vunpack.c.l.b16 %v2055
        %v2344 = vunpack.c.l.b16 %v2056
        %v2345 = vunpack.c.l.b16 %v2057
        %v2346 = vunpack.c.l.b16 %v2058
        %v2347 = vunpack.c.l.b16 %v2059
        %v2348 = vunpack.c.l.b16 %v2060
        %v2349 = vunpack.c.l.b16 %v2061
        %v2350 = vunpack.c.l.b16 %v2062
        %v2351 = vunpack.c.l.b16 %v2063
        %v2352 = vunpack.c.l.b16 %v2064
        %v2353 = vunpack.c.l.b16 %v2065
        %v2354 = vunpack.c.l.b16 %v2066
        %v2355 = vunpack.c.l.b16 %v2067
        %v2356 = vunpack.c.l.b16 %v2068
        %v2357 = vunpack.c.l.b16 %v2069
        %v2358 = vunpack.c.l.b16 %v2070
        %v2359 = vunpack.c.l.b16 %v2071
        %v2360 = vunpack.c.l.b16 %v2072
        %v2361 = vunpack.c.l.b16 %v2073
        %v2362 = vunpack.c.l.b16 %v2074
        %v2363 = vunpack.c.l.b16 %v2075
        %v2364 = vunpack.c.l.b16 %v2076
        %v2365 = vunpack.c.l.b16 %v2077
        %v2366 = vunpack.c.l.b16 %v2078
        %v2367 = vunpack.c.l.b16 %v2079
        %v2368 = vunpack.c.l.b16 %v2080
        %v2369 = vunpack.c.l.b16 %v2081
        %v2370 = vunpack.c.l.b16 %v2082
        %v2371 = vunpack.c.l.b16 %v2083
        %v2372 = vunpack.c.l.b16 %v2084
        %v2373 = vunpack.c.l.b16 %v2085
        %v2374 = vunpack.c.l.b16 %v2086
        %v2375 = vunpack.c.l.b16 %v2087
        %v2376 = vunpack.c.l.b16 %v2088
        %v2377 = vunpack.c.l.b16 %v2089
        %v2378 = vunpack.c.l.b16 %v2090
        %v2379 = vunpack.c.l.b16 %v2091
        %v2380 = vunpack.c.l.b16 %v2092
        %v2381 = vpack.c.b16 %v2238, %v2237
        %v2382 = vpack.c.b16 %v2240, %v2239
        %v2383 = vpack.c.b16 %v2242, %v2241
        %v2384 = vpack.c.b16 %v2244, %v2243
        %v2385 = vpack.c.b16 %v2246, %v2245
        %v2386 = vpack.c.b16 %v2248, %v2247
        %v2387 = vpack.c.b16 %v2250, %v2249
        %v2388 = vpack.c.b16 %v2252, %v2251
        %v2389 = vpack.c.b16 %v2254, %v2253
        %v2390 = vpack.c.b16 %v2256, %v2255
        %v2391 = vpack.c.b16 %v2258, %v2257
        %v2392 = vpack.c.b16 %v2260, %v2259
        %v2393 = vpack.c.b16 %v2262, %v2261
        %v2394 = vpack.c.b16 %v2264, %v2263
        %v2395 = vpack.c.b16 %v2266, %v2265
        %v2396 = vpack.c.b16 %v2268, %v2267
        %v2397 = vpack.c.b16 %v2270, %v2269
        %v2398 = vpack.c.b16 %v2272, %v2271
        %v2399 = vpack.c.b16 %v2274, %v2273
        %v2400 = vpack.c.b16 %v2276, %v2275
        %v2401 = vpack.c.b16 %v2278, %v2277
        %v2402 = vpack.c.b16 %v2280, %v2279
        %v2403 = vpack.c.b16 %v2282, %v2281
        %v2404 = vpack.c.b16 %v2284, %v2283
        %v2405 = vpack.c.b16 %v2286, %v2285
        %v2406 = vpack.c.b16 %v2288, %v2287
        %v2407 = vpack.c.b16 %v2290, %v2289
        %v2408 = vpack.c.b16 %v2292, %v2291
        %v2409 = vpack.c.b16 %v2294, %v2293
        %v2410 = vpack.c.b16 %v2296, %v2295
        %v2411 = vpack.c.b16 %v2298, %v2297
        %v2412 = vpack.c.b16 %v2300, %v2299
        %v2413 = vpack.c.b16 %v2302, %v2301
        %v2414 = vpack.c.b16 %v2304, %v2303
        %v2415 = vpack.c.b16 %v2306, %v2305
        %v2416 = vpack.c.b16 %v2308, %v2307
        %v2417 = vpack.c.b16 %v2310, %v2309
        %v2418 = vpack.c.b16 %v2312, %v2311
        %v2419 = vpack.c.b16 %v2314, %v2313
        %v2420 = vpack.c.b16 %v2316, %v2315
        %v2421 = vpack.c.b16 %v2318, %v2317
        %v2422 = vpack.c.b16 %v2320, %v2319
        %v2423 = vpack.c.b16 %v2322, %v2321
        %v2424 = vpack.c.b16 %v2324, %v2323
        %v2425 = vpack.c.b16 %v2326, %v2325
        %v2426 = vpack.c.b16 %v2328, %v2327
        %v2427 = vpack.c.b16 %v2330, %v2329
        %v2428 = vpack.c.b16 %v2332, %v2331
        %v2429 = vpack.c.b16 %v2334, %v2333
        %v2430 = vpack.c.b16 %v2336, %v2335
        %v2431 = vpack.c.b16 %v2338, %v2337
        %v2432 = vpack.c.b16 %v2340, %v2339
        %v2433 = vpack.c.b16 %v2342, %v2341
        %v2434 = vpack.c.b16 %v2344, %v2343
        %v2435 = vpack.c.b16 %v2346, %v2345
        %v2436 = vpack.c.b16 %v2348, %v2347
        %v2437 = vpack.c.b16 %v2350, %v2349
        %v2438 = vpack.c.b16 %v2352, %v2351
        %v2439 = vpack.c.b16 %v2354, %v2353
        %v2440 = vpack.c.b16 %v2356, %v2355
        %v2441 = vpack.c.b16 %v2358, %v2357
        %v2442 = vpack.c.b16 %v2360, %v2359
        %v2443 = vpack.c.b16 %v2362, %v2361
        %v2444 = vpack.c.b16 %v2364, %v2363
        %v2445 = vpack.c.b16 %v2366, %v2365
        %v2446 = vpack.c.b16 %v2368, %v2367
        %v2447 = vpack.c.b16 %v2370, %v2369
        %v2448 = vpack.c.b16 %v2372, %v2371
        %v2449 = vpack.c.b16 %v2374, %v2373
        %v2450 = vpack.c.b16 %v2376, %v2375
        %v2451 = vpack.c.b16 %v2378, %v2377
        %v2452 = vpack.c.b16 %v2380, %v2379
        %2525 = vmatprep.subr.bf16.mxu0 0
        %2526 = vmatpush1.bf16.msra.mxu0 %v2381
        %2527 = vmatprep.subr.bf16.mxu0 0
        %2528 = vmatpush1.bf16.msra.mxu0 %v2382
        %2529 = vmatprep.subr.bf16.mxu0 0
        %2530 = vmatpush1.bf16.msra.mxu0 %v2383
        %2531 = vmatprep.subr.bf16.mxu0 0
        %2532 = vmatpush1.bf16.msra.mxu0 %v2384
        %2533 = vmatprep.subr.bf16.mxu0 0
        %2534 = vmatpush1.bf16.msra.mxu0 %v2385
        %2535 = vmatprep.subr.bf16.mxu0 0
        %2536 = vmatpush1.bf16.msra.mxu0 %v2386
        %2537 = vmatprep.subr.bf16.mxu0 0
        %2538 = vmatpush1.bf16.msra.mxu0 %v2387
        %2539 = vmatprep.subr.bf16.mxu0 0
        %2540 = vmatpush1.bf16.msra.mxu0 %v2388
        %2541 = vmatprep.subr.bf16.mxu0 0
        %2542 = vmatpush1.bf16.msra.mxu0 %v2389
        %2543 = vmatprep.subr.bf16.mxu0 0
        %2544 = vmatpush1.bf16.msra.mxu0 %v2390
        %2545 = vmatprep.subr.bf16.mxu0 0
        %2546 = vmatpush1.bf16.msra.mxu0 %v2391
        %2547 = vmatprep.subr.bf16.mxu0 0
        %2548 = vmatpush1.bf16.msra.mxu0 %v2392
        %2549 = vmatprep.subr.bf16.mxu0 0
        %2550 = vmatpush1.bf16.msra.mxu0 %v2393
        %2551 = vmatprep.subr.bf16.mxu0 0
        %2552 = vmatpush1.bf16.msra.mxu0 %v2394
        %2553 = vmatprep.subr.bf16.mxu0 0
        %2554 = vmatpush1.bf16.msra.mxu0 %v2395
        %2555 = vmatprep.subr.bf16.mxu0 0
        %2556 = vmatpush1.bf16.msra.mxu0 %v2396
        %2557 = vmatprep.mubr.bf16.mxu0 %v1788
        %2558 = vmatmul.mubr.bf16.gmra.mrb[0].mxu0 %v1787
        %v2559 = vpop.f32.mrb[0].mxu0
        %v2560 = vadd.f32 0.0, %v2559
        %v2561 = vpop.f32.mrb[0].mxu0
        %v2562 = vpop.f32.mrb[0].mxu0
        %v2563 = vadd.f32 0.0, %v2562
        %v2564 = vpop.f32.mrb[0].mxu0
        %2565 = vmatprep.mubr.bf16.mxu0 %v1797
        %2566 = vmatmul.mubr.bf16.gmra.mrb[0].mxu0 %v1796
        %v2567 = vpop.f32.mrb[0].mxu0
        %v2568 = vadd.f32 0.0, %v2567
        %v2569 = vpop.f32.mrb[0].mxu0
        %v2570 = vpop.f32.mrb[0].mxu0
        %v2571 = vadd.f32 0.0, %v2570
        %v2572 = vpop.f32.mrb[0].mxu0
        %2573 = vmatprep.mubr.bf16.mxu0 %v1806
        %2574 = vmatmul.mubr.bf16.gmra.mrb[0].mxu0 %v1805
        %v2575 = vpop.f32.mrb[0].mxu0
        %v2576 = vadd.f32 0.0, %v2575
        %v2577 = vpop.f32.mrb[0].mxu0
        %v2578 = vpop.f32.mrb[0].mxu0
        %v2579 = vadd.f32 0.0, %v2578
        %v2580 = vpop.f32.mrb[0].mxu0
        %2581 = vmatprep.mubr.bf16.mxu0 %v1815
        %2582 = vmatmul.mubr.bf16.gmra.mrb[0].mxu0 %v1814
        %v2583 = vpop.f32.mrb[0].mxu0
        %v2584 = vadd.f32 0.0, %v2583
        %v2585 = vpop.f32.mrb[0].mxu0
        %v2586 = vpop.f32.mrb[0].mxu0
        %v2587 = vadd.f32 0.0, %v2586
        %v2588 = vpop.f32.mrb[0].mxu0
        %2589 = vmatprep.mubr.bf16.mxu0 %v1824
        %2590 = vmatmul.mubr.bf16.gmra.mrb[0].mxu0 %v1823
        %v2591 = vpop.f32.mrb[0].mxu0
        %v2592 = vadd.f32 0.0, %v2591
        %v2593 = vpop.f32.mrb[0].mxu0
        %v2594 = vpop.f32.mrb[0].mxu0
        %v2595 = vadd.f32 0.0, %v2594
        %v2596 = vpop.f32.mrb[0].mxu0
        %2597 = vmatprep.mubr.bf16.mxu0 %v1833
        %2598 = vmatmul.mubr.bf16.gmra.mrb[0].mxu0 %v1832
        %v2599 = vpop.f32.mrb[0].mxu0
        %v2600 = vadd.f32 0.0, %v2599
        %v2601 = vpop.f32.mrb[0].mxu0
        %v2602 = vpop.f32.mrb[0].mxu0
        %v2603 = vadd.f32 0.0, %v2602
        %v2604 = vpop.f32.mrb[0].mxu0
        %2605 = vmatprep.mubr.bf16.mxu0 %v1842
        %2606 = vmatmul.mubr.bf16.gmra.mrb[0].mxu0 %v1841
        %v2607 = vpop.f32.mrb[0].mxu0
        %v2608 = vadd.f32 0.0, %v2607
        %v2609 = vpop.f32.mrb[0].mxu0
        %v2610 = vpop.f32.mrb[0].mxu0
        %v2611 = vadd.f32 0.0, %v2610
        %v2612 = vpop.f32.mrb[0].mxu0
        %2613 = vmatprep.mubr.bf16.mxu0 %v1851
        %2614 = vmatmul.mubr.bf16.gmra.mrb[0].mxu0 %v1850
        %v2615 = vpop.f32.mrb[0].mxu0
        %v2616 = vadd.f32 0.0, %v2615
        %v2617 = vpop.f32.mrb[0].mxu0
        %v2618 = vpop.f32.mrb[0].mxu0
        %v2619 = vadd.f32 0.0, %v2618
        %v2620 = vpop.f32.mrb[0].mxu0
        %2621 = vmatprep.mubr.bf16.mxu0 %v1860
        %2622 = vmatmul.mubr.bf16.gmra.mrb[0].mxu0 %v1859
        %v2623 = vpop.f32.mrb[0].mxu0
        %v2624 = vadd.f32 0.0, %v2623
        %v2625 = vpop.f32.mrb[0].mxu0
        %v2626 = vpop.f32.mrb[0].mxu0
        %v2627 = vadd.f32 0.0, %v2626
        %v2628 = vpop.f32.mrb[0].mxu0
        %2629 = vmatprep.mubr.bf16.mxu0 %v1869
        %2630 = vmatmul.mubr.bf16.gmra.mrb[0].mxu0 %v1868
        %v2631 = vpop.f32.mrb[0].mxu0
        %v2632 = vadd.f32 0.0, %v2631
        %v2633 = vpop.f32.mrb[0].mxu0
        %v2634 = vpop.f32.mrb[0].mxu0
        %v2635 = vadd.f32 0.0, %v2634
        %v2636 = vpop.f32.mrb[0].mxu0
        %2637 = vmatprep.mubr.bf16.mxu0 %v1878
        %2638 = vmatmul.mubr.bf16.gmra.mrb[0].mxu0 %v1877
        %v2639 = vpop.f32.mrb[0].mxu0
        %v2640 = vadd.f32 0.0, %v2639
        %v2641 = vpop.f32.mrb[0].mxu0
        %v2642 = vpop.f32.mrb[0].mxu0
        %v2643 = vadd.f32 0.0, %v2642
        %v2644 = vpop.f32.mrb[0].mxu0
        %2645 = vmatprep.mubr.bf16.mxu0 %v1887
        %2646 = vmatmul.mubr.bf16.gmra.mrb[0].mxu0 %v1886
        %v2647 = vpop.f32.mrb[0].mxu0
        %v2648 = vadd.f32 0.0, %v2647
        %v2649 = vpop.f32.mrb[0].mxu0
        %v2650 = vpop.f32.mrb[0].mxu0
        %v2651 = vadd.f32 0.0, %v2650
        %v2652 = vpop.f32.mrb[0].mxu0
        %2653 = vmatprep.mubr.bf16.mxu0 %v1896
        %2654 = vmatmul.mubr.bf16.gmra.mrb[0].mxu0 %v1895
        %v2655 = vpop.f32.mrb[0].mxu0
        %v2656 = vadd.f32 0.0, %v2655
        %v2657 = vpop.f32.mrb[0].mxu0
        %v2658 = vpop.f32.mrb[0].mxu0
        %v2659 = vadd.f32 0.0, %v2658
        %v2660 = vpop.f32.mrb[0].mxu0
        %2661 = vmatprep.mubr.bf16.mxu0 %v1905
        %2662 = vmatmul.mubr.bf16.gmra.mrb[0].mxu0 %v1904
        %v2663 = vpop.f32.mrb[0].mxu0
        %v2664 = vadd.f32 0.0, %v2663
        %v2665 = vpop.f32.mrb[0].mxu0
        %v2666 = vpop.f32.mrb[0].mxu0
        %v2667 = vadd.f32 0.0, %v2666
        %v2668 = vpop.f32.mrb[0].mxu0
        %2669 = vmatprep.mubr.bf16.mxu0 %v1914
        %2670 = vmatmul.mubr.bf16.gmra.mrb[0].mxu0 %v1913
        %v2671 = vpop.f32.mrb[0].mxu0
        %v2672 = vadd.f32 0.0, %v2671
        %v2673 = vpop.f32.mrb[0].mxu0
        %v2674 = vpop.f32.mrb[0].mxu0
        %v2675 = vadd.f32 0.0, %v2674
        %v2676 = vpop.f32.mrb[0].mxu0
        %2677 = vmatprep.mubr.bf16.mxu0 %v1923
        %2678 = vmatmul.mubr.bf16.gmra.mrb[0].mxu0 %v1922
        %v2679 = vpop.f32.mrb[0].mxu0
        %v2680 = vadd.f32 0.0, %v2679
        %v2681 = vpop.f32.mrb[0].mxu0
        %v2682 = vpop.f32.mrb[0].mxu0
        %v2683 = vadd.f32 0.0, %v2682
        %v2684 = vpop.f32.mrb[0].mxu0
        %2685 = vmatprep.mubr.bf16.mxu0 %v1932
        %2686 = vmatmul.mubr.bf16.gmra.mrb[0].mxu0 %v1931
        %v2687 = vpop.f32.mrb[0].mxu0
        %v2688 = vadd.f32 0.0, %v2687
        %v2689 = vpop.f32.mrb[0].mxu0
        %v2690 = vpop.f32.mrb[0].mxu0
        %v2691 = vadd.f32 0.0, %v2690
        %v2692 = vpop.f32.mrb[0].mxu0
        %2693 = vmatprep.mubr.bf16.mxu0 %v1941
        %2694 = vmatmul.mubr.bf16.gmra.mrb[0].mxu0 %v1940
        %v2695 = vpop.f32.mrb[0].mxu0
        %v2696 = vadd.f32 0.0, %v2695
        %v2697 = vpop.f32.mrb[0].mxu0
        %v2698 = vpop.f32.mrb[0].mxu0
        %v2699 = vadd.f32 0.0, %v2698
        %v2700 = vpop.f32.mrb[0].mxu0
        %2701 = vdwg.mxu0
        %2702 = vmatprep.subr.bf16.mxu0 0
        %2703 = vmatpush1.bf16.msra.mxu0 %v2397
        %2704 = vmatprep.subr.bf16.mxu0 0
        %2705 = vmatpush1.bf16.msra.mxu0 %v2398
        %2706 = vmatprep.subr.bf16.mxu0 0
        %2707 = vmatpush1.bf16.msra.mxu0 %v2399
        %2708 = vmatprep.subr.bf16.mxu0 0
        %2709 = vmatpush1.bf16.msra.mxu0 %v2400
        %2710 = vmatprep.subr.bf16.mxu0 0
        %2711 = vmatpush1.bf16.msra.mxu0 %v2401
        %2712 = vmatprep.subr.bf16.mxu0 0
        %2713 = vmatpush1.bf16.msra.mxu0 %v2402
        %2714 = vmatprep.subr.bf16.mxu0 0
        %2715 = vmatpush1.bf16.msra.mxu0 %v2403
        %2716 = vmatprep.subr.bf16.mxu0 0
        %2717 = vmatpush1.bf16.msra.mxu0 %v2404
        %2718 = vmatprep.subr.bf16.mxu0 0
        %2719 = vmatpush1.bf16.msra.mxu0 %v2405
        %2720 = vmatprep.subr.bf16.mxu0 0
        %2721 = vmatpush1.bf16.msra.mxu0 %v2406
        %2722 = vmatprep.subr.bf16.mxu0 0
        %2723 = vmatpush1.bf16.msra.mxu0 %v2407
        %2724 = vmatprep.subr.bf16.mxu0 0
        %2725 = vmatpush1.bf16.msra.mxu0 %v2408
        %2726 = vmatprep.subr.bf16.mxu0 0
        %2727 = vmatpush1.bf16.msra.mxu0 %v2409
        %2728 = vmatprep.subr.bf16.mxu0 0
        %2729 = vmatpush1.bf16.msra.mxu0 %v2410
        %2730 = vmatprep.subr.bf16.mxu0 0
        %2731 = vmatpush1.bf16.msra.mxu0 %v2411
        %2732 = vmatprep.subr.bf16.mxu0 0
        %2733 = vmatpush1.bf16.msra.mxu0 %v2412
        %2734 = vmatprep.mubr.bf16.mxu0 %v1790
        %2735 = vmatmul.mubr.bf16.gmra.mrb[0].mxu0 %v1789
        %v2736 = vpop.f32.mrb[0].mxu0
        %v2737 = vadd.f32 %v2560, %v2736
        %v2738 = vpop.f32.mrb[0].mxu0
        %v2739 = vpop.f32.mrb[0].mxu0
        %v2740 = vadd.f32 %v2563, %v2739
        %v2741 = vpop.f32.mrb[0].mxu0
        %2742 = vmatprep.mubr.bf16.mxu0 %v1799
        %2743 = vmatmul.mubr.bf16.gmra.mrb[0].mxu0 %v1798
        %v2744 = vpop.f32.mrb[0].mxu0
        %v2745 = vadd.f32 %v2568, %v2744
        %v2746 = vpop.f32.mrb[0].mxu0
        %v2747 = vpop.f32.mrb[0].mxu0
        %v2748 = vadd.f32 %v2571, %v2747
        %v2749 = vpop.f32.mrb[0].mxu0
        %2750 = vmatprep.mubr.bf16.mxu0 %v1808
        %2751 = vmatmul.mubr.bf16.gmra.mrb[0].mxu0 %v1807
        %v2752 = vpop.f32.mrb[0].mxu0
        %v2753 = vadd.f32 %v2576, %v2752
        %v2754 = vpop.f32.mrb[0].mxu0
        %v2755 = vpop.f32.mrb[0].mxu0
        %v2756 = vadd.f32 %v2579, %v2755
        %v2757 = vpop.f32.mrb[0].mxu0
        %2758 = vmatprep.mubr.bf16.mxu0 %v1817
        %2759 = vmatmul.mubr.bf16.gmra.mrb[0].mxu0 %v1816
        %v2760 = vpop.f32.mrb[0].mxu0
        %v2761 = vadd.f32 %v2584, %v2760
        %v2762 = vpop.f32.mrb[0].mxu0
        %v2763 = vpop.f32.mrb[0].mxu0
        %v2764 = vadd.f32 %v2587, %v2763
        %v2765 = vpop.f32.mrb[0].mxu0
        %2766 = vmatprep.mubr.bf16.mxu0 %v1826
        %2767 = vmatmul.mubr.bf16.gmra.mrb[0].mxu0 %v1825
        %v2768 = vpop.f32.mrb[0].mxu0
        %v2769 = vadd.f32 %v2592, %v2768
        %v2770 = vpop.f32.mrb[0].mxu0
        %v2771 = vpop.f32.mrb[0].mxu0
        %v2772 = vadd.f32 %v2595, %v2771
        %v2773 = vpop.f32.mrb[0].mxu0
        %2774 = vmatprep.mubr.bf16.mxu0 %v1835
        %2775 = vmatmul.mubr.bf16.gmra.mrb[0].mxu0 %v1834
        %v2776 = vpop.f32.mrb[0].mxu0
        %v2777 = vadd.f32 %v2600, %v2776
        %v2778 = vpop.f32.mrb[0].mxu0
        %v2779 = vpop.f32.mrb[0].mxu0
        %v2780 = vadd.f32 %v2603, %v2779
        %v2781 = vpop.f32.mrb[0].mxu0
        %2782 = vmatprep.mubr.bf16.mxu0 %v1844
        %2783 = vmatmul.mubr.bf16.gmra.mrb[0].mxu0 %v1843
        %v2784 = vpop.f32.mrb[0].mxu0
        %v2785 = vadd.f32 %v2608, %v2784
        %v2786 = vpop.f32.mrb[0].mxu0
        %v2787 = vpop.f32.mrb[0].mxu0
        %v2788 = vadd.f32 %v2611, %v2787
        %v2789 = vpop.f32.mrb[0].mxu0
        %2790 = vmatprep.mubr.bf16.mxu0 %v1853
        %2791 = vmatmul.mubr.bf16.gmra.mrb[0].mxu0 %v1852
        %v2792 = vpop.f32.mrb[0].mxu0
        %v2793 = vadd.f32 %v2616, %v2792
        %v2794 = vpop.f32.mrb[0].mxu0
        %v2795 = vpop.f32.mrb[0].mxu0
        %v2796 = vadd.f32 %v2619, %v2795
        %v2797 = vpop.f32.mrb[0].mxu0
        %2798 = vmatprep.mubr.bf16.mxu0 %v1862
        %2799 = vmatmul.mubr.bf16.gmra.mrb[0].mxu0 %v1861
        %v2800 = vpop.f32.mrb[0].mxu0
        %v2801 = vadd.f32 %v2624, %v2800
        %v2802 = vpop.f32.mrb[0].mxu0
        %v2803 = vpop.f32.mrb[0].mxu0
        %v2804 = vadd.f32 %v2627, %v2803
        %v2805 = vpop.f32.mrb[0].mxu0
        %2806 = vmatprep.mubr.bf16.mxu0 %v1871
        %2807 = vmatmul.mubr.bf16.gmra.mrb[0].mxu0 %v1870
        %v2808 = vpop.f32.mrb[0].mxu0
        %v2809 = vadd.f32 %v2632, %v2808
        %v2810 = vpop.f32.mrb[0].mxu0
        %v2811 = vpop.f32.mrb[0].mxu0
        %v2812 = vadd.f32 %v2635, %v2811
        %v2813 = vpop.f32.mrb[0].mxu0
        %2814 = vmatprep.mubr.bf16.mxu0 %v1880
        %2815 = vmatmul.mubr.bf16.gmra.mrb[0].mxu0 %v1879
        %v2816 = vpop.f32.mrb[0].mxu0
        %v2817 = vadd.f32 %v2640, %v2816
        %v2818 = vpop.f32.mrb[0].mxu0
        %v2819 = vpop.f32.mrb[0].mxu0
        %v2820 = vadd.f32 %v2643, %v2819
        %v2821 = vpop.f32.mrb[0].mxu0
        %2822 = vmatprep.mubr.bf16.mxu0 %v1889
        %2823 = vmatmul.mubr.bf16.gmra.mrb[0].mxu0 %v1888
        %v2824 = vpop.f32.mrb[0].mxu0
        %v2825 = vadd.f32 %v2648, %v2824
        %v2826 = vpop.f32.mrb[0].mxu0
        %v2827 = vpop.f32.mrb[0].mxu0
        %v2828 = vadd.f32 %v2651, %v2827
        %v2829 = vpop.f32.mrb[0].mxu0
        %2830 = vmatprep.mubr.bf16.mxu0 %v1898
        %2831 = vmatmul.mubr.bf16.gmra.mrb[0].mxu0 %v1897
        %v2832 = vpop.f32.mrb[0].mxu0
        %v2833 = vadd.f32 %v2656, %v2832
        %v2834 = vpop.f32.mrb[0].mxu0
        %v2835 = vpop.f32.mrb[0].mxu0
        %v2836 = vadd.f32 %v2659, %v2835
        %v2837 = vpop.f32.mrb[0].mxu0
        %2838 = vmatprep.mubr.bf16.mxu0 %v1907
        %2839 = vmatmul.mubr.bf16.gmra.mrb[0].mxu0 %v1906
        %v2840 = vpop.f32.mrb[0].mxu0
        %v2841 = vadd.f32 %v2664, %v2840
        %v2842 = vpop.f32.mrb[0].mxu0
        %v2843 = vpop.f32.mrb[0].mxu0
        %v2844 = vadd.f32 %v2667, %v2843
        %v2845 = vpop.f32.mrb[0].mxu0
        %2846 = vmatprep.mubr.bf16.mxu0 %v1916
        %2847 = vmatmul.mubr.bf16.gmra.mrb[0].mxu0 %v1915
        %v2848 = vpop.f32.mrb[0].mxu0
        %v2849 = vadd.f32 %v2672, %v2848
        %v2850 = vpop.f32.mrb[0].mxu0
        %v2851 = vpop.f32.mrb[0].mxu0
        %v2852 = vadd.f32 %v2675, %v2851
        %v2853 = vpop.f32.mrb[0].mxu0
        %2854 = vmatprep.mubr.bf16.mxu0 %v1925
        %2855 = vmatmul.mubr.bf16.gmra.mrb[0].mxu0 %v1924
        %v2856 = vpop.f32.mrb[0].mxu0
        %v2857 = vadd.f32 %v2680, %v2856
        %v2858 = vpop.f32.mrb[0].mxu0
        %v2859 = vpop.f32.mrb[0].mxu0
        %v2860 = vadd.f32 %v2683, %v2859
        %v2861 = vpop.f32.mrb[0].mxu0
        %2862 = vmatprep.mubr.bf16.mxu0 %v1934
        %2863 = vmatmul.mubr.bf16.gmra.mrb[0].mxu0 %v1933
        %v2864 = vpop.f32.mrb[0].mxu0
        %v2865 = vadd.f32 %v2688, %v2864
        %v2866 = vpop.f32.mrb[0].mxu0
        %v2867 = vpop.f32.mrb[0].mxu0
        %v2868 = vadd.f32 %v2691, %v2867
        %v2869 = vpop.f32.mrb[0].mxu0
        %2870 = vmatprep.mubr.bf16.mxu0 %v1943
        %2871 = vmatmul.mubr.bf16.gmra.mrb[0].mxu0 %v1942
        %v2872 = vpop.f32.mrb[0].mxu0
        %v2873 = vadd.f32 %v2696, %v2872
        %v2874 = vpop.f32.mrb[0].mxu0
        %v2875 = vpop.f32.mrb[0].mxu0
        %v2876 = vadd.f32 %v2699, %v2875
        %v2877 = vpop.f32.mrb[0].mxu0
        %2878 = vdwg.mxu0
        %2879 = vmatprep.subr.bf16.mxu0 0
        %2880 = vmatpush1.bf16.msra.mxu0 %v2413
        %2881 = vmatprep.subr.bf16.mxu0 0
        %2882 = vmatpush1.bf16.msra.mxu0 %v2414
        %2883 = vmatprep.subr.bf16.mxu0 0
        %2884 = vmatpush1.bf16.msra.mxu0 %v2415
        %2885 = vmatprep.subr.bf16.mxu0 0
        %2886 = vmatpush1.bf16.msra.mxu0 %v2416
        %2887 = vmatprep.subr.bf16.mxu0 0
        %2888 = vmatpush1.bf16.msra.mxu0 %v2417
        %2889 = vmatprep.subr.bf16.mxu0 0
        %2890 = vmatpush1.bf16.msra.mxu0 %v2418
        %2891 = vmatprep.subr.bf16.mxu0 0
        %2892 = vmatpush1.bf16.msra.mxu0 %v2419
        %2893 = vmatprep.subr.bf16.mxu0 0
        %2894 = vmatpush1.bf16.msra.mxu0 %v2420
        %2895 = vmatprep.subr.bf16.mxu0 0
        %2896 = vmatpush1.bf16.msra.mxu0 %v2421
        %2897 = vmatprep.subr.bf16.mxu0 0
        %2898 = vmatpush1.bf16.msra.mxu0 %v2422
        %2899 = vmatprep.subr.bf16.mxu0 0
        %2900 = vmatpush1.bf16.msra.mxu0 %v2423
        %2901 = vmatprep.subr.bf16.mxu0 0
        %2902 = vmatpush1.bf16.msra.mxu0 %v2424
        %2903 = vmatprep.subr.bf16.mxu0 0
        %2904 = vmatpush1.bf16.msra.mxu0 %v2425
        %2905 = vmatprep.subr.bf16.mxu0 0
        %2906 = vmatpush1.bf16.msra.mxu0 %v2426
        %2907 = vmatprep.subr.bf16.mxu0 0
        %2908 = vmatpush1.bf16.msra.mxu0 %v2427
        %2909 = vmatprep.subr.bf16.mxu0 0
        %2910 = vmatpush1.bf16.msra.mxu0 %v2428
        %2911 = vmatprep.mubr.bf16.mxu0 %v1792
        %2912 = vmatmul.mubr.bf16.gmra.mrb[0].mxu0 %v1791
        %v2913 = vpop.f32.mrb[0].mxu0
        %v2914 = vadd.f32 %v2737, %v2913
        %v2915 = vpop.f32.mrb[0].mxu0
        %v2916 = vpop.f32.mrb[0].mxu0
        %v2917 = vadd.f32 %v2740, %v2916
        %v2918 = vpop.f32.mrb[0].mxu0
        %2919 = vmatprep.mubr.bf16.mxu0 %v1801
        %2920 = vmatmul.mubr.bf16.gmra.mrb[0].mxu0 %v1800
        %v2921 = vpop.f32.mrb[0].mxu0
        %v2922 = vadd.f32 %v2745, %v2921
        %v2923 = vpop.f32.mrb[0].mxu0
        %v2924 = vpop.f32.mrb[0].mxu0
        %v2925 = vadd.f32 %v2748, %v2924
        %v2926 = vpop.f32.mrb[0].mxu0
        %2927 = vmatprep.mubr.bf16.mxu0 %v1810
        %2928 = vmatmul.mubr.bf16.gmra.mrb[0].mxu0 %v1809
        %v2929 = vpop.f32.mrb[0].mxu0
        %v2930 = vadd.f32 %v2753, %v2929
        %v2931 = vpop.f32.mrb[0].mxu0
        %v2932 = vpop.f32.mrb[0].mxu0
        %v2933 = vadd.f32 %v2756, %v2932
        %v2934 = vpop.f32.mrb[0].mxu0
        %2935 = vmatprep.mubr.bf16.mxu0 %v1819
        %2936 = vmatmul.mubr.bf16.gmra.mrb[0].mxu0 %v1818
        %v2937 = vpop.f32.mrb[0].mxu0
        %v2938 = vadd.f32 %v2761, %v2937
        %v2939 = vpop.f32.mrb[0].mxu0
        %v2940 = vpop.f32.mrb[0].mxu0
        %v2941 = vadd.f32 %v2764, %v2940
        %v2942 = vpop.f32.mrb[0].mxu0
        %2943 = vmatprep.mubr.bf16.mxu0 %v1828
        %2944 = vmatmul.mubr.bf16.gmra.mrb[0].mxu0 %v1827
        %v2945 = vpop.f32.mrb[0].mxu0
        %v2946 = vadd.f32 %v2769, %v2945
        %v2947 = vpop.f32.mrb[0].mxu0
        %v2948 = vpop.f32.mrb[0].mxu0
        %v2949 = vadd.f32 %v2772, %v2948
        %v2950 = vpop.f32.mrb[0].mxu0
        %2951 = vmatprep.mubr.bf16.mxu0 %v1837
        %2952 = vmatmul.mubr.bf16.gmra.mrb[0].mxu0 %v1836
        %v2953 = vpop.f32.mrb[0].mxu0
        %v2954 = vadd.f32 %v2777, %v2953
        %v2955 = vpop.f32.mrb[0].mxu0
        %v2956 = vpop.f32.mrb[0].mxu0
        %v2957 = vadd.f32 %v2780, %v2956
        %v2958 = vpop.f32.mrb[0].mxu0
        %2959 = vmatprep.mubr.bf16.mxu0 %v1846
        %2960 = vmatmul.mubr.bf16.gmra.mrb[0].mxu0 %v1845
        %v2961 = vpop.f32.mrb[0].mxu0
        %v2962 = vadd.f32 %v2785, %v2961
        %v2963 = vpop.f32.mrb[0].mxu0
        %v2964 = vpop.f32.mrb[0].mxu0
        %v2965 = vadd.f32 %v2788, %v2964
        %v2966 = vpop.f32.mrb[0].mxu0
        %2967 = vmatprep.mubr.bf16.mxu0 %v1855
        %2968 = vmatmul.mubr.bf16.gmra.mrb[0].mxu0 %v1854
        %v2969 = vpop.f32.mrb[0].mxu0
        %v2970 = vadd.f32 %v2793, %v2969
        %v2971 = vpop.f32.mrb[0].mxu0
        %v2972 = vpop.f32.mrb[0].mxu0
        %v2973 = vadd.f32 %v2796, %v2972
        %v2974 = vpop.f32.mrb[0].mxu0
        %2975 = vmatprep.mubr.bf16.mxu0 %v1864
        %2976 = vmatmul.mubr.bf16.gmra.mrb[0].mxu0 %v1863
        %v2977 = vpop.f32.mrb[0].mxu0
        %v2978 = vadd.f32 %v2801, %v2977
        %v2979 = vpop.f32.mrb[0].mxu0
        %v2980 = vpop.f32.mrb[0].mxu0
        %v2981 = vadd.f32 %v2804, %v2980
        %v2982 = vpop.f32.mrb[0].mxu0
        %2983 = vmatprep.mubr.bf16.mxu0 %v1873
        %2984 = vmatmul.mubr.bf16.gmra.mrb[0].mxu0 %v1872
        %v2985 = vpop.f32.mrb[0].mxu0
        %v2986 = vadd.f32 %v2809, %v2985
        %v2987 = vpop.f32.mrb[0].mxu0
        %v2988 = vpop.f32.mrb[0].mxu0
        %v2989 = vadd.f32 %v2812, %v2988
        %v2990 = vpop.f32.mrb[0].mxu0
        %2991 = vmatprep.mubr.bf16.mxu0 %v1882
        %2992 = vmatmul.mubr.bf16.gmra.mrb[0].mxu0 %v1881
        %v2993 = vpop.f32.mrb[0].mxu0
        %v2994 = vadd.f32 %v2817, %v2993
        %v2995 = vpop.f32.mrb[0].mxu0
        %v2996 = vpop.f32.mrb[0].mxu0
        %v2997 = vadd.f32 %v2820, %v2996
        %v2998 = vpop.f32.mrb[0].mxu0
        %2999 = vmatprep.mubr.bf16.mxu0 %v1891
        %3000 = vmatmul.mubr.bf16.gmra.mrb[0].mxu0 %v1890
        %v3001 = vpop.f32.mrb[0].mxu0
        %v3002 = vadd.f32 %v2825, %v3001
        %v3003 = vpop.f32.mrb[0].mxu0
        %v3004 = vpop.f32.mrb[0].mxu0
        %v3005 = vadd.f32 %v2828, %v3004
        %v3006 = vpop.f32.mrb[0].mxu0
        %3007 = vmatprep.mubr.bf16.mxu0 %v1900
        %3008 = vmatmul.mubr.bf16.gmra.mrb[0].mxu0 %v1899
        %v3009 = vpop.f32.mrb[0].mxu0
        %v3010 = vadd.f32 %v2833, %v3009
        %v3011 = vpop.f32.mrb[0].mxu0
        %v3012 = vpop.f32.mrb[0].mxu0
        %v3013 = vadd.f32 %v2836, %v3012
        %v3014 = vpop.f32.mrb[0].mxu0
        %3015 = vmatprep.mubr.bf16.mxu0 %v1909
        %3016 = vmatmul.mubr.bf16.gmra.mrb[0].mxu0 %v1908
        %v3017 = vpop.f32.mrb[0].mxu0
        %v3018 = vadd.f32 %v2841, %v3017
        %v3019 = vpop.f32.mrb[0].mxu0
        %v3020 = vpop.f32.mrb[0].mxu0
        %v3021 = vadd.f32 %v2844, %v3020
        %v3022 = vpop.f32.mrb[0].mxu0
        %3023 = vmatprep.mubr.bf16.mxu0 %v1918
        %3024 = vmatmul.mubr.bf16.gmra.mrb[0].mxu0 %v1917
        %v3025 = vpop.f32.mrb[0].mxu0
        %v3026 = vadd.f32 %v2849, %v3025
        %v3027 = vpop.f32.mrb[0].mxu0
        %v3028 = vpop.f32.mrb[0].mxu0
        %v3029 = vadd.f32 %v2852, %v3028
        %v3030 = vpop.f32.mrb[0].mxu0
        %3031 = vmatprep.mubr.bf16.mxu0 %v1927
        %3032 = vmatmul.mubr.bf16.gmra.mrb[0].mxu0 %v1926
        %v3033 = vpop.f32.mrb[0].mxu0
        %v3034 = vadd.f32 %v2857, %v3033
        %v3035 = vpop.f32.mrb[0].mxu0
        %v3036 = vpop.f32.mrb[0].mxu0
        %v3037 = vadd.f32 %v2860, %v3036
        %v3038 = vpop.f32.mrb[0].mxu0
        %3039 = vmatprep.mubr.bf16.mxu0 %v1936
        %3040 = vmatmul.mubr.bf16.gmra.mrb[0].mxu0 %v1935
        %v3041 = vpop.f32.mrb[0].mxu0
        %v3042 = vadd.f32 %v2865, %v3041
        %v3043 = vpop.f32.mrb[0].mxu0
        %v3044 = vpop.f32.mrb[0].mxu0
        %v3045 = vadd.f32 %v2868, %v3044
        %v3046 = vpop.f32.mrb[0].mxu0
        %3047 = vmatprep.mubr.bf16.mxu0 %v1945
        %3048 = vmatmul.mubr.bf16.gmra.mrb[0].mxu0 %v1944
        %v3049 = vpop.f32.mrb[0].mxu0
        %v3050 = vadd.f32 %v2873, %v3049
        %v3051 = vpop.f32.mrb[0].mxu0
        %v3052 = vpop.f32.mrb[0].mxu0
        %v3053 = vadd.f32 %v2876, %v3052
        %v3054 = vpop.f32.mrb[0].mxu0
        %3055 = vdwg.mxu0
        %3056 = vmatprep.subr.bf16.mxu0 0
        %3057 = vmatpush1.bf16.msra.mxu0 %v2429
        %3058 = vmatprep.subr.bf16.mxu0 0
        %3059 = vmatpush1.bf16.msra.mxu0 %v2430
        %3060 = vmatprep.subr.bf16.mxu0 0
        %3061 = vmatpush1.bf16.msra.mxu0 %v2431
        %3062 = vmatprep.subr.bf16.mxu0 0
        %3063 = vmatpush1.bf16.msra.mxu0 %v2432
        %3064 = vmatprep.subr.bf16.mxu0 0
        %3065 = vmatpush1.bf16.msra.mxu0 %v2433
        %3066 = vmatprep.subr.bf16.mxu0 0
        %3067 = vmatpush1.bf16.msra.mxu0 %v2434
        %3068 = vmatprep.subr.bf16.mxu0 0
        %3069 = vmatpush1.bf16.msra.mxu0 %v2435
        %3070 = vmatprep.subr.bf16.mxu0 0
        %3071 = vmatpush1.bf16.msra.mxu0 %v2436
        %3072 = vmatprep.subr.bf16.mxu0 0
        %3073 = vmatpush1.bf16.msra.mxu0 %v2437
        %3074 = vmatprep.subr.bf16.mxu0 0
        %3075 = vmatpush1.bf16.msra.mxu0 %v2438
        %3076 = vmatprep.subr.bf16.mxu0 0
        %3077 = vmatpush1.bf16.msra.mxu0 %v2439
        %3078 = vmatprep.subr.bf16.mxu0 0
        %3079 = vmatpush1.bf16.msra.mxu0 %v2440
        %3080 = vmatprep.subr.bf16.mxu0 0
        %3081 = vmatpush1.bf16.msra.mxu0 %v2441
        %3082 = vmatprep.subr.bf16.mxu0 0
        %3083 = vmatpush1.bf16.msra.mxu0 %v2442
        %3084 = vmatprep.subr.bf16.mxu0 0
        %3085 = vmatpush1.bf16.msra.mxu0 %v2443
        %3086 = vmatprep.subr.bf16.mxu0 0
        %3087 = vmatpush1.bf16.msra.mxu0 %v2444
        %3088 = vmatprep.mubr.bf16.mxu0 %v1794
        %3089 = vmatmul.mubr.bf16.gmra.mrb[0].mxu0 %v1793
        %v3090 = vpop.f32.mrb[0].mxu0
        %v3091 = vadd.f32 %v2914, %v3090
        %v3092 = vpop.f32.mrb[0].mxu0
        %v3093 = vpop.f32.mrb[0].mxu0
        %v3094 = vadd.f32 %v2917, %v3093
        %v3095 = vpop.f32.mrb[0].mxu0
        %3096 = vmatprep.mubr.bf16.mxu0 %v1803
        %3097 = vmatmul.mubr.bf16.gmra.mrb[0].mxu0 %v1802
        %v3098 = vpop.f32.mrb[0].mxu0
        %v3099 = vadd.f32 %v2922, %v3098
        %v3100 = vpop.f32.mrb[0].mxu0
        %v3101 = vpop.f32.mrb[0].mxu0
        %v3102 = vadd.f32 %v2925, %v3101
        %v3103 = vpop.f32.mrb[0].mxu0
        %3104 = vmatprep.mubr.bf16.mxu0 %v1812
        %3105 = vmatmul.mubr.bf16.gmra.mrb[0].mxu0 %v1811
        %v3106 = vpop.f32.mrb[0].mxu0
        %v3107 = vadd.f32 %v2930, %v3106
        %v3108 = vpop.f32.mrb[0].mxu0
        %v3109 = vpop.f32.mrb[0].mxu0
        %v3110 = vadd.f32 %v2933, %v3109
        %v3111 = vpop.f32.mrb[0].mxu0
        %3112 = vmatprep.mubr.bf16.mxu0 %v1821
        %3113 = vmatmul.mubr.bf16.gmra.mrb[0].mxu0 %v1820
        %v3114 = vpop.f32.mrb[0].mxu0
        %v3115 = vadd.f32 %v2938, %v3114
        %v3116 = vpop.f32.mrb[0].mxu0
        %v3117 = vpop.f32.mrb[0].mxu0
        %v3118 = vadd.f32 %v2941, %v3117
        %v3119 = vpop.f32.mrb[0].mxu0
        %3120 = vmatprep.mubr.bf16.mxu0 %v1830
        %3121 = vmatmul.mubr.bf16.gmra.mrb[0].mxu0 %v1829
        %v3122 = vpop.f32.mrb[0].mxu0
        %v3123 = vadd.f32 %v2946, %v3122
        %v3124 = vpop.f32.mrb[0].mxu0
        %v3125 = vpop.f32.mrb[0].mxu0
        %v3126 = vadd.f32 %v2949, %v3125
        %v3127 = vpop.f32.mrb[0].mxu0
        %3128 = vmatprep.mubr.bf16.mxu0 %v1839
        %3129 = vmatmul.mubr.bf16.gmra.mrb[0].mxu0 %v1838
        %v3130 = vpop.f32.mrb[0].mxu0
        %v3131 = vadd.f32 %v2954, %v3130
        %v3132 = vpop.f32.mrb[0].mxu0
        %v3133 = vpop.f32.mrb[0].mxu0
        %v3134 = vadd.f32 %v2957, %v3133
        %v3135 = vpop.f32.mrb[0].mxu0
        %3136 = vmatprep.mubr.bf16.mxu0 %v1848
        %3137 = vmatmul.mubr.bf16.gmra.mrb[0].mxu0 %v1847
        %v3138 = vpop.f32.mrb[0].mxu0
        %v3139 = vadd.f32 %v2962, %v3138
        %v3140 = vpop.f32.mrb[0].mxu0
        %v3141 = vpop.f32.mrb[0].mxu0
        %v3142 = vadd.f32 %v2965, %v3141
        %v3143 = vpop.f32.mrb[0].mxu0
        %3144 = vmatprep.mubr.bf16.mxu0 %v1857
        %3145 = vmatmul.mubr.bf16.gmra.mrb[0].mxu0 %v1856
        %v3146 = vpop.f32.mrb[0].mxu0
        %v3147 = vadd.f32 %v2970, %v3146
        %v3148 = vpop.f32.mrb[0].mxu0
        %v3149 = vpop.f32.mrb[0].mxu0
        %v3150 = vadd.f32 %v2973, %v3149
        %v3151 = vpop.f32.mrb[0].mxu0
        %3152 = vmatprep.mubr.bf16.mxu0 %v1866
        %3153 = vmatmul.mubr.bf16.gmra.mrb[0].mxu0 %v1865
        %v3154 = vpop.f32.mrb[0].mxu0
        %v3155 = vadd.f32 %v2978, %v3154
        %v3156 = vpop.f32.mrb[0].mxu0
        %v3157 = vpop.f32.mrb[0].mxu0
        %v3158 = vadd.f32 %v2981, %v3157
        %v3159 = vpop.f32.mrb[0].mxu0
        %3160 = vmatprep.mubr.bf16.mxu0 %v1875
        %3161 = vmatmul.mubr.bf16.gmra.mrb[0].mxu0 %v1874
        %v3162 = vpop.f32.mrb[0].mxu0
        %v3163 = vadd.f32 %v2986, %v3162
        %v3164 = vpop.f32.mrb[0].mxu0
        %v3165 = vpop.f32.mrb[0].mxu0
        %v3166 = vadd.f32 %v2989, %v3165
        %v3167 = vpop.f32.mrb[0].mxu0
        %3168 = vmatprep.mubr.bf16.mxu0 %v1884
        %3169 = vmatmul.mubr.bf16.gmra.mrb[0].mxu0 %v1883
        %v3170 = vpop.f32.mrb[0].mxu0
        %v3171 = vadd.f32 %v2994, %v3170
        %v3172 = vpop.f32.mrb[0].mxu0
        %v3173 = vpop.f32.mrb[0].mxu0
        %v3174 = vadd.f32 %v2997, %v3173
        %v3175 = vpop.f32.mrb[0].mxu0
        %3176 = vmatprep.mubr.bf16.mxu0 %v1893
        %3177 = vmatmul.mubr.bf16.gmra.mrb[0].mxu0 %v1892
        %v3178 = vpop.f32.mrb[0].mxu0
        %v3179 = vadd.f32 %v3002, %v3178
        %v3180 = vpop.f32.mrb[0].mxu0
        %v3181 = vpop.f32.mrb[0].mxu0
        %v3182 = vadd.f32 %v3005, %v3181
        %v3183 = vpop.f32.mrb[0].mxu0
        %3184 = vmatprep.mubr.bf16.mxu0 %v1902
        %3185 = vmatmul.mubr.bf16.gmra.mrb[0].mxu0 %v1901
        %v3186 = vpop.f32.mrb[0].mxu0
        %v3187 = vadd.f32 %v3010, %v3186
        %v3188 = vpop.f32.mrb[0].mxu0
        %v3189 = vpop.f32.mrb[0].mxu0
        %v3190 = vadd.f32 %v3013, %v3189
        %v3191 = vpop.f32.mrb[0].mxu0
        %3192 = vmatprep.mubr.bf16.mxu0 %v1911
        %3193 = vmatmul.mubr.bf16.gmra.mrb[0].mxu0 %v1910
        %v3194 = vpop.f32.mrb[0].mxu0
        %v3195 = vadd.f32 %v3018, %v3194
        %v3196 = vpop.f32.mrb[0].mxu0
        %v3197 = vpop.f32.mrb[0].mxu0
        %v3198 = vadd.f32 %v3021, %v3197
        %v3199 = vpop.f32.mrb[0].mxu0
        %3200 = vmatprep.mubr.bf16.mxu0 %v1920
        %3201 = vmatmul.mubr.bf16.gmra.mrb[0].mxu0 %v1919
        %v3202 = vpop.f32.mrb[0].mxu0
        %v3203 = vadd.f32 %v3026, %v3202
        %v3204 = vpop.f32.mrb[0].mxu0
        %v3205 = vpop.f32.mrb[0].mxu0
        %v3206 = vadd.f32 %v3029, %v3205
        %v3207 = vpop.f32.mrb[0].mxu0
        %3208 = vmatprep.mubr.bf16.mxu0 %v1929
        %3209 = vmatmul.mubr.bf16.gmra.mrb[0].mxu0 %v1928
        %v3210 = vpop.f32.mrb[0].mxu0
        %v3211 = vadd.f32 %v3034, %v3210
        %v3212 = vpop.f32.mrb[0].mxu0
        %v3213 = vpop.f32.mrb[0].mxu0
        %v3214 = vadd.f32 %v3037, %v3213
        %v3215 = vpop.f32.mrb[0].mxu0
        %3216 = vmatprep.mubr.bf16.mxu0 %v1938
        %3217 = vmatmul.mubr.bf16.gmra.mrb[0].mxu0 %v1937
        %v3218 = vpop.f32.mrb[0].mxu0
        %v3219 = vadd.f32 %v3042, %v3218
        %v3220 = vpop.f32.mrb[0].mxu0
        %v3221 = vpop.f32.mrb[0].mxu0
        %v3222 = vadd.f32 %v3045, %v3221
        %v3223 = vpop.f32.mrb[0].mxu0
        %3224 = vmatprep.mubr.bf16.mxu0 %v1947
        %3225 = vmatmul.mubr.bf16.gmra.mrb[0].mxu0 %v1946
        %v3226 = vpop.f32.mrb[0].mxu0
        %v3227 = vadd.f32 %v3050, %v3226
        %v3228 = vpop.f32.mrb[0].mxu0
        %v3229 = vpop.f32.mrb[0].mxu0
        %v3230 = vadd.f32 %v3053, %v3229
        %v3231 = vpop.f32.mrb[0].mxu0
        %3232 = vdwg.mxu0
        %3233 = vmatprep.subr.bf16.mxu0 0
        %3234 = vmatpush1.bf16.msra.mxu0 %v2445
        %3235 = vmatprep.subr.bf16.mxu0 0
        %3236 = vmatpush1.bf16.msra.mxu0 %v2446
        %3237 = vmatprep.subr.bf16.mxu0 0
        %3238 = vmatpush1.bf16.msra.mxu0 %v2447
        %3239 = vmatprep.subr.bf16.mxu0 0
        %3240 = vmatpush1.bf16.msra.mxu0 %v2448
        %3241 = vmatprep.subr.bf16.mxu0 0
        %3242 = vmatpush1.bf16.msra.mxu0 %v2449
        %3243 = vmatprep.subr.bf16.mxu0 0
        %3244 = vmatpush1.bf16.msra.mxu0 %v2450
        %3245 = vmatprep.subr.bf16.mxu0 0
        %3246 = vmatpush1.bf16.msra.mxu0 %v2451
        %3247 = vmatprep.subr.bf16.mxu0 0
        %3248 = vmatpush1.bf16.msra.mxu0 %v2452
        %3249 = vmatprep.subr.bf16.mxu0 0
        %3250 = vmatpush1.bf16.msra.mxu0 0
        %3251 = vmatprep.subr.bf16.mxu0 0
        %3252 = vmatpush1.bf16.msra.mxu0 0
        %3253 = vmatprep.subr.bf16.mxu0 0
        %3254 = vmatpush1.bf16.msra.mxu0 0
        %3255 = vmatprep.subr.bf16.mxu0 0
        %3256 = vmatpush1.bf16.msra.mxu0 0
        %3257 = vmatprep.subr.bf16.mxu0 0
        %3258 = vmatpush1.bf16.msra.mxu0 0
        %3259 = vmatprep.subr.bf16.mxu0 0
        %3260 = vmatpush1.bf16.msra.mxu0 0
        %3261 = vmatprep.subr.bf16.mxu0 0
        %3262 = vmatpush1.bf16.msra.mxu0 0
        %3263 = vmatprep.subr.bf16.mxu0 0
        %3264 = vmatpush1.bf16.msra.mxu0 0
        %3265 = vmatprep.mubr.bf16.mxu0 0
        %3266 = vmatmul.mubr.bf16.gmra.mrb[0].mxu0 %v1795
        %v3267 = vpop.f32.mrb[0].mxu0
        %v3268 = vadd.f32 %v3091, %v3267
        %v3269 = vpop.f32.mrb[0].mxu0
        %v3270 = vpop.f32.mrb[0].mxu0
        %v3271 = vadd.f32 %v3094, %v3270
        %v3272 = vpop.f32.mrb[0].mxu0
        %3273 = vmatprep.mubr.bf16.mxu0 0
        %3274 = vmatmul.mubr.bf16.gmra.mrb[0].mxu0 %v1804
        %v3275 = vpop.f32.mrb[0].mxu0
        %v3276 = vadd.f32 %v3099, %v3275
        %v3277 = vpop.f32.mrb[0].mxu0
        %v3278 = vpop.f32.mrb[0].mxu0
        %v3279 = vadd.f32 %v3102, %v3278
        %v3280 = vpop.f32.mrb[0].mxu0
        %3281 = vmatprep.mubr.bf16.mxu0 0
        %3282 = vmatmul.mubr.bf16.gmra.mrb[0].mxu0 %v1813
        %v3283 = vpop.f32.mrb[0].mxu0
        %v3284 = vadd.f32 %v3107, %v3283
        %v3285 = vpop.f32.mrb[0].mxu0
        %v3286 = vpop.f32.mrb[0].mxu0
        %v3287 = vadd.f32 %v3110, %v3286
        %v3288 = vpop.f32.mrb[0].mxu0
        %3289 = vmatprep.mubr.bf16.mxu0 0
        %3290 = vmatmul.mubr.bf16.gmra.mrb[0].mxu0 %v1822
        %v3291 = vpop.f32.mrb[0].mxu0
        %v3292 = vadd.f32 %v3115, %v3291
        %v3293 = vpop.f32.mrb[0].mxu0
        %v3294 = vpop.f32.mrb[0].mxu0
        %v3295 = vadd.f32 %v3118, %v3294
        %v3296 = vpop.f32.mrb[0].mxu0
        %3297 = vmatprep.mubr.bf16.mxu0 0
        %3298 = vmatmul.mubr.bf16.gmra.mrb[0].mxu0 %v1831
        %v3299 = vpop.f32.mrb[0].mxu0
        %v3300 = vadd.f32 %v3123, %v3299
        %v3301 = vpop.f32.mrb[0].mxu0
        %v3302 = vpop.f32.mrb[0].mxu0
        %v3303 = vadd.f32 %v3126, %v3302
        %v3304 = vpop.f32.mrb[0].mxu0
        %3305 = vmatprep.mubr.bf16.mxu0 0
        %3306 = vmatmul.mubr.bf16.gmra.mrb[0].mxu0 %v1840
        %v3307 = vpop.f32.mrb[0].mxu0
        %v3308 = vadd.f32 %v3131, %v3307
        %v3309 = vpop.f32.mrb[0].mxu0
        %v3310 = vpop.f32.mrb[0].mxu0
        %v3311 = vadd.f32 %v3134, %v3310
        %v3312 = vpop.f32.mrb[0].mxu0
        %3313 = vmatprep.mubr.bf16.mxu0 0
        %3314 = vmatmul.mubr.bf16.gmra.mrb[0].mxu0 %v1849
        %v3315 = vpop.f32.mrb[0].mxu0
        %v3316 = vadd.f32 %v3139, %v3315
        %v3317 = vpop.f32.mrb[0].mxu0
        %v3318 = vpop.f32.mrb[0].mxu0
        %v3319 = vadd.f32 %v3142, %v3318
        %v3320 = vpop.f32.mrb[0].mxu0
        %3321 = vmatprep.mubr.bf16.mxu0 0
        %3322 = vmatmul.mubr.bf16.gmra.mrb[0].mxu0 %v1858
        %v3323 = vpop.f32.mrb[0].mxu0
        %v3324 = vadd.f32 %v3147, %v3323
        %v3325 = vpop.f32.mrb[0].mxu0
        %v3326 = vpop.f32.mrb[0].mxu0
        %v3327 = vadd.f32 %v3150, %v3326
        %v3328 = vpop.f32.mrb[0].mxu0
        %3329 = vmatprep.mubr.bf16.mxu0 0
        %3330 = vmatmul.mubr.bf16.gmra.mrb[0].mxu0 %v1867
        %v3331 = vpop.f32.mrb[0].mxu0
        %v3332 = vadd.f32 %v3155, %v3331
        %v3333 = vpop.f32.mrb[0].mxu0
        %v3334 = vpop.f32.mrb[0].mxu0
        %v3335 = vadd.f32 %v3158, %v3334
        %v3336 = vpop.f32.mrb[0].mxu0
        %3337 = vmatprep.mubr.bf16.mxu0 0
        %3338 = vmatmul.mubr.bf16.gmra.mrb[0].mxu0 %v1876
        %v3339 = vpop.f32.mrb[0].mxu0
        %v3340 = vadd.f32 %v3163, %v3339
        %v3341 = vpop.f32.mrb[0].mxu0
        %v3342 = vpop.f32.mrb[0].mxu0
        %v3343 = vadd.f32 %v3166, %v3342
        %v3344 = vpop.f32.mrb[0].mxu0
        %3345 = vmatprep.mubr.bf16.mxu0 0
        %3346 = vmatmul.mubr.bf16.gmra.mrb[0].mxu0 %v1885
        %v3347 = vpop.f32.mrb[0].mxu0
        %v3348 = vadd.f32 %v3171, %v3347
        %v3349 = vpop.f32.mrb[0].mxu0
        %v3350 = vpop.f32.mrb[0].mxu0
        %v3351 = vadd.f32 %v3174, %v3350
        %v3352 = vpop.f32.mrb[0].mxu0
        %3353 = vmatprep.mubr.bf16.mxu0 0
        %3354 = vmatmul.mubr.bf16.gmra.mrb[0].mxu0 %v1894
        %v3355 = vpop.f32.mrb[0].mxu0
        %v3356 = vadd.f32 %v3179, %v3355
        %v3357 = vpop.f32.mrb[0].mxu0
        %v3358 = vpop.f32.mrb[0].mxu0
        %v3359 = vadd.f32 %v3182, %v3358
        %v3360 = vpop.f32.mrb[0].mxu0
        %3361 = vmatprep.mubr.bf16.mxu0 0
        %3362 = vmatmul.mubr.bf16.gmra.mrb[0].mxu0 %v1903
        %v3363 = vpop.f32.mrb[0].mxu0
        %v3364 = vadd.f32 %v3187, %v3363
        %v3365 = vpop.f32.mrb[0].mxu0
        %v3366 = vpop.f32.mrb[0].mxu0
        %v3367 = vadd.f32 %v3190, %v3366
        %v3368 = vpop.f32.mrb[0].mxu0
        %3369 = vmatprep.mubr.bf16.mxu0 0
        %3370 = vmatmul.mubr.bf16.gmra.mrb[0].mxu0 %v1912
        %v3371 = vpop.f32.mrb[0].mxu0
        %v3372 = vadd.f32 %v3195, %v3371
        %v3373 = vpop.f32.mrb[0].mxu0
        %v3374 = vpop.f32.mrb[0].mxu0
        %v3375 = vadd.f32 %v3198, %v3374
        %v3376 = vpop.f32.mrb[0].mxu0
        %3377 = vmatprep.mubr.bf16.mxu0 0
        %3378 = vmatmul.mubr.bf16.gmra.mrb[0].mxu0 %v1921
        %v3379 = vpop.f32.mrb[0].mxu0
        %v3380 = vadd.f32 %v3203, %v3379
        %v3381 = vpop.f32.mrb[0].mxu0
        %v3382 = vpop.f32.mrb[0].mxu0
        %v3383 = vadd.f32 %v3206, %v3382
        %v3384 = vpop.f32.mrb[0].mxu0
        %3385 = vmatprep.mubr.bf16.mxu0 0
        %3386 = vmatmul.mubr.bf16.gmra.mrb[0].mxu0 %v1930
        %v3387 = vpop.f32.mrb[0].mxu0
        %v3388 = vadd.f32 %v3211, %v3387
        %v3389 = vpop.f32.mrb[0].mxu0
        %v3390 = vpop.f32.mrb[0].mxu0
        %v3391 = vadd.f32 %v3214, %v3390
        %v3392 = vpop.f32.mrb[0].mxu0
        %3393 = vmatprep.mubr.bf16.mxu0 0
        %3394 = vmatmul.mubr.bf16.gmra.mrb[0].mxu0 %v1939
        %v3395 = vpop.f32.mrb[0].mxu0
        %v3396 = vadd.f32 %v3219, %v3395
        %v3397 = vpop.f32.mrb[0].mxu0
        %v3398 = vpop.f32.mrb[0].mxu0
        %v3399 = vadd.f32 %v3222, %v3398
        %v3400 = vpop.f32.mrb[0].mxu0
        %3401 = vmatprep.mubr.bf16.mxu0 0
        %3402 = vmatmul.mubr.bf16.gmra.mrb[0].mxu0 %v1948
        %v3403 = vpop.f32.mrb[0].mxu0
        %v3404 = vadd.f32 %v3227, %v3403
        %v3405 = vpop.f32.mrb[0].mxu0
        %v3406 = vpop.f32.mrb[0].mxu0
        %v3407 = vadd.f32 %v3230, %v3406
        %v3408 = vpop.f32.mrb[0].mxu0
        %3409 = vdwg.mxu0
        %v3410 = vld [vmem:[%s2] sm:$0x1]
        %v3412 = vlaneseq
        %v3413 = vshrl.u32 %v3412, 7
        %v3414 = vsub.s32 0, %v3413
        %v3415 = vrot.slane %v3410, %v3414
        %v3417 = vmul.f32 %v3268, %v3415
        %v3418 = vmul.f32 %v3271, %v3415
        %v3419 = vmul.f32 %v3276, %v3415
        %v3420 = vmul.f32 %v3279, %v3415
        %v3421 = vmul.f32 %v3284, %v3415
        %v3422 = vmul.f32 %v3287, %v3415
        %v3423 = vmul.f32 %v3292, %v3415
        %v3424 = vmul.f32 %v3295, %v3415
        %v3425 = vmul.f32 %v3300, %v3415
        %v3426 = vmul.f32 %v3303, %v3415
        %v3427 = vmul.f32 %v3308, %v3415
        %v3428 = vmul.f32 %v3311, %v3415
        %v3429 = vmul.f32 %v3316, %v3415
        %v3430 = vmul.f32 %v3319, %v3415
        %v3431 = vmul.f32 %v3324, %v3415
        %v3432 = vmul.f32 %v3327, %v3415
        %v3433 = vmul.f32 %v3332, %v3415
        %v3434 = vmul.f32 %v3335, %v3415
        %v3435 = vmul.f32 %v3340, %v3415
        %v3436 = vmul.f32 %v3343, %v3415
        %v3437 = vmul.f32 %v3348, %v3415
        %v3438 = vmul.f32 %v3351, %v3415
        %v3439 = vmul.f32 %v3356, %v3415
        %v3440 = vmul.f32 %v3359, %v3415
        %v3441 = vmul.f32 %v3364, %v3415
        %v3442 = vmul.f32 %v3367, %v3415
        %v3443 = vmul.f32 %v3372, %v3415
        %v3444 = vmul.f32 %v3375, %v3415
        %v3445 = vmul.f32 %v3380, %v3415
        %v3446 = vmul.f32 %v3383, %v3415
        %v3447 = vmul.f32 %v3388, %v3415
        %v3448 = vmul.f32 %v3391, %v3415
        %v3449 = vmul.f32 %v3396, %v3415
        %v3450 = vmul.f32 %v3399, %v3415
        %v3451 = vmul.f32 %v3404, %v3415
        %v3452 = vmul.f32 %v3407, %v3415
        %v3453 = vld [vmem:[%s3] sm:$0x1]
        %v3455 = vlaneseq
        %v3456 = vshrl.u32 %v3455, 7
        %v3457 = vsub.s32 0, %v3456
        %v3458 = vrot.slane %v3453, %v3457
        %v3460 = vadd.f32 %v3417, %v3458
        %v3461 = vadd.f32 %v3418, %v3458
        %v3462 = vadd.f32 %v3419, %v3458
        %v3463 = vadd.f32 %v3420, %v3458
        %v3464 = vadd.f32 %v3421, %v3458
        %v3465 = vadd.f32 %v3422, %v3458
        %v3466 = vadd.f32 %v3423, %v3458
        %v3467 = vadd.f32 %v3424, %v3458
        %v3468 = vadd.f32 %v3425, %v3458
        %v3469 = vadd.f32 %v3426, %v3458
        %v3470 = vadd.f32 %v3427, %v3458
        %v3471 = vadd.f32 %v3428, %v3458
        %v3472 = vadd.f32 %v3429, %v3458
        %v3473 = vadd.f32 %v3430, %v3458
        %v3474 = vadd.f32 %v3431, %v3458
        %v3475 = vadd.f32 %v3432, %v3458
        %v3476 = vadd.f32 %v3433, %v3458
        %v3477 = vadd.f32 %v3434, %v3458
        %v3478 = vadd.f32 %v3435, %v3458
        %v3479 = vadd.f32 %v3436, %v3458
        %v3480 = vadd.f32 %v3437, %v3458
        %v3481 = vadd.f32 %v3438, %v3458
        %v3482 = vadd.f32 %v3439, %v3458
        %v3483 = vadd.f32 %v3440, %v3458
        %v3484 = vadd.f32 %v3441, %v3458
        %v3485 = vadd.f32 %v3442, %v3458
        %v3486 = vadd.f32 %v3443, %v3458
        %v3487 = vadd.f32 %v3444, %v3458
        %v3488 = vadd.f32 %v3445, %v3458
        %v3489 = vadd.f32 %v3446, %v3458
        %v3490 = vadd.f32 %v3447, %v3458
        %v3491 = vadd.f32 %v3448, %v3458
        %v3492 = vadd.f32 %v3449, %v3458
        %v3493 = vadd.f32 %v3450, %v3458
        %v3494 = vadd.f32 %v3451, %v3458
        %v3495 = vadd.f32 %v3452, %v3458
        %v3496 = vmax.f32 %v3460, 0.0
        %v3497 = vmax.f32 %v3461, 0.0
        %v3498 = vmax.f32 %v3462, 0.0
        %v3499 = vmax.f32 %v3463, 0.0
        %v3500 = vmax.f32 %v3464, 0.0
        %v3501 = vmax.f32 %v3465, 0.0
        %v3502 = vmax.f32 %v3466, 0.0
        %v3503 = vmax.f32 %v3467, 0.0
        %v3504 = vmax.f32 %v3468, 0.0
        %v3505 = vmax.f32 %v3469, 0.0
        %v3506 = vmax.f32 %v3470, 0.0
        %v3507 = vmax.f32 %v3471, 0.0
        %v3508 = vmax.f32 %v3472, 0.0
        %v3509 = vmax.f32 %v3473, 0.0
        %v3510 = vmax.f32 %v3474, 0.0
        %v3511 = vmax.f32 %v3475, 0.0
        %v3512 = vmax.f32 %v3476, 0.0
        %v3513 = vmax.f32 %v3477, 0.0
        %v3514 = vmax.f32 %v3478, 0.0
        %v3515 = vmax.f32 %v3479, 0.0
        %v3516 = vmax.f32 %v3480, 0.0
        %v3517 = vmax.f32 %v3481, 0.0
        %v3518 = vmax.f32 %v3482, 0.0
        %v3519 = vmax.f32 %v3483, 0.0
        %v3520 = vmax.f32 %v3484, 0.0
        %v3521 = vmax.f32 %v3485, 0.0
        %v3522 = vmax.f32 %v3486, 0.0
        %v3523 = vmax.f32 %v3487, 0.0
        %v3524 = vmax.f32 %v3488, 0.0
        %v3525 = vmax.f32 %v3489, 0.0
        %v3526 = vmax.f32 %v3490, 0.0
        %v3527 = vmax.f32 %v3491, 0.0
        %v3528 = vmax.f32 %v3492, 0.0
        %v3529 = vmax.f32 %v3493, 0.0
        %v3530 = vmax.f32 %v3494, 0.0
        %v3531 = vmax.f32 %v3495, 0.0
        %v3532 = vsel %vm972, 1, 0
        %v3533 = vsel %vm973, 1, 0
        %v3534 = vsel %vm974, 1, 0
        %v3535 = vsel %vm975, 1, 0
        %v3536 = vsel %vm976, 1, 0
        %v3537 = vsel %vm977, 1, 0
        %v3538 = vsel %vm978, 1, 0
        %v3539 = vsel %vm979, 1, 0
        %v3540 = vsel %vm980, 1, 0
        %v3541 = vsel %vm981, 1, 0
        %v3542 = vsel %vm982, 1, 0
        %v3543 = vsel %vm983, 1, 0
        %v3544 = vsel %vm984, 1, 0
        %v3545 = vsel %vm985, 1, 0
        %v3546 = vsel %vm986, 1, 0
        %v3547 = vsel %vm987, 1, 0
        %v3548 = vsel %vm988, 1, 0
        %v3549 = vsel %vm989, 1, 0
        %v3550 = vsel %vm990, 1, 0
        %v3551 = vsel %vm991, 1, 0
        %v3552 = vsel %vm992, 1, 0
        %v3553 = vsel %vm993, 1, 0
        %v3554 = vsel %vm994, 1, 0
        %v3555 = vsel %vm995, 1, 0
        %v3556 = vsel %vm996, 1, 0
        %v3557 = vsel %vm997, 1, 0
        %v3558 = vsel %vm998, 1, 0
        %v3559 = vsel %vm999, 1, 0
        %v3560 = vsel %vm1000, 1, 0
        %v3561 = vsel %vm1001, 1, 0
        %v3562 = vsel %vm1002, 1, 0
        %v3563 = vsel %vm1003, 1, 0
        %v3564 = vsel %vm1004, 1, 0
        %v3565 = vsel %vm1005, 1, 0
        %v3566 = vsel %vm1006, 1, 0
        %v3567 = vsel %vm1007, 1, 0
        %vm3568 = vcmp.eq.s32.totalorder %v3532, 1
        %vm3569 = vcmp.eq.s32.totalorder %v3533, 1
        %vm3570 = vcmp.eq.s32.totalorder %v3534, 1
        %vm3571 = vcmp.eq.s32.totalorder %v3535, 1
        %vm3572 = vcmp.eq.s32.totalorder %v3536, 1
        %vm3573 = vcmp.eq.s32.totalorder %v3537, 1
        %vm3574 = vcmp.eq.s32.totalorder %v3538, 1
        %vm3575 = vcmp.eq.s32.totalorder %v3539, 1
        %vm3576 = vcmp.eq.s32.totalorder %v3540, 1
        %vm3577 = vcmp.eq.s32.totalorder %v3541, 1
        %vm3578 = vcmp.eq.s32.totalorder %v3542, 1
        %vm3579 = vcmp.eq.s32.totalorder %v3543, 1
        %vm3580 = vcmp.eq.s32.totalorder %v3544, 1
        %vm3581 = vcmp.eq.s32.totalorder %v3545, 1
        %vm3582 = vcmp.eq.s32.totalorder %v3546, 1
        %vm3583 = vcmp.eq.s32.totalorder %v3547, 1
        %vm3584 = vcmp.eq.s32.totalorder %v3548, 1
        %vm3585 = vcmp.eq.s32.totalorder %v3549, 1
        %vm3586 = vcmp.eq.s32.totalorder %v3550, 1
        %vm3587 = vcmp.eq.s32.totalorder %v3551, 1
        %vm3588 = vcmp.eq.s32.totalorder %v3552, 1
        %vm3589 = vcmp.eq.s32.totalorder %v3553, 1
        %vm3590 = vcmp.eq.s32.totalorder %v3554, 1
        %vm3591 = vcmp.eq.s32.totalorder %v3555, 1
        %vm3592 = vcmp.eq.s32.totalorder %v3556, 1
        %vm3593 = vcmp.eq.s32.totalorder %v3557, 1
        %vm3594 = vcmp.eq.s32.totalorder %v3558, 1
        %vm3595 = vcmp.eq.s32.totalorder %v3559, 1
        %vm3596 = vcmp.eq.s32.totalorder %v3560, 1
        %vm3597 = vcmp.eq.s32.totalorder %v3561, 1
        %vm3598 = vcmp.eq.s32.totalorder %v3562, 1
        %vm3599 = vcmp.eq.s32.totalorder %v3563, 1
        %vm3600 = vcmp.eq.s32.totalorder %v3564, 1
        %vm3601 = vcmp.eq.s32.totalorder %v3565, 1
        %vm3602 = vcmp.eq.s32.totalorder %v3566, 1
        %vm3603 = vcmp.eq.s32.totalorder %v3567, 1
        %v3604 = vsel %vm3568, %v3496, 0.0
        %v3605 = vsel %vm3569, %v3497, 0.0
        %v3606 = vsel %vm3570, %v3498, 0.0
        %v3607 = vsel %vm3571, %v3499, 0.0
        %v3608 = vsel %vm3572, %v3500, 0.0
        %v3609 = vsel %vm3573, %v3501, 0.0
        %v3610 = vsel %vm3574, %v3502, 0.0
        %v3611 = vsel %vm3575, %v3503, 0.0
        %v3612 = vsel %vm3576, %v3504, 0.0
        %v3613 = vsel %vm3577, %v3505, 0.0
        %v3614 = vsel %vm3578, %v3506, 0.0
        %v3615 = vsel %vm3579, %v3507, 0.0
        %v3616 = vsel %vm3580, %v3508, 0.0
        %v3617 = vsel %vm3581, %v3509, 0.0
        %v3618 = vsel %vm3582, %v3510, 0.0
        %v3619 = vsel %vm3583, %v3511, 0.0
        %v3620 = vsel %vm3584, %v3512, 0.0
        %v3621 = vsel %vm3585, %v3513, 0.0
        %v3622 = vsel %vm3586, %v3514, 0.0
        %v3623 = vsel %vm3587, %v3515, 0.0
        %v3624 = vsel %vm3588, %v3516, 0.0
        %v3625 = vsel %vm3589, %v3517, 0.0
        %v3626 = vsel %vm3590, %v3518, 0.0
        %v3627 = vsel %vm3591, %v3519, 0.0
        %v3628 = vsel %vm3592, %v3520, 0.0
        %v3629 = vsel %vm3593, %v3521, 0.0
        %v3630 = vsel %vm3594, %v3522, 0.0
        %v3631 = vsel %vm3595, %v3523, 0.0
        %v3632 = vsel %vm3596, %v3524, 0.0
        %v3633 = vsel %vm3597, %v3525, 0.0
        %v3634 = vsel %vm3598, %v3526, 0.0
        %v3635 = vsel %vm3599, %v3527, 0.0
        %v3636 = vsel %vm3600, %v3528, 0.0
        %v3637 = vsel %vm3601, %v3529, 0.0
        %v3638 = vsel %vm3602, %v3530, 0.0
        %v3639 = vsel %vm3603, %v3531, 0.0
        %3640 = vst [vmem:[#allocation3 + $0x18] sm:$0xff] %v3604
        %3641 = vst [vmem:[#allocation3 + $0x20] sm:$0xff] %v3605
        %3642 = vst [vmem:[#allocation3 + $0x28] sm:$0xff] %v3606
        %3643 = vst [vmem:[#allocation3 + $0x30] sm:$0xff] %v3607
        %3644 = vst [vmem:[#allocation3 + $0x38] sm:$0xff] %v3608
        %3645 = vst [vmem:[#allocation3 + $0x40] sm:$0xff] %v3609
        %3646 = vst [vmem:[#allocation3 + $0x48] sm:$0xff] %v3610
        %3647 = vst [vmem:[#allocation3 + $0x50] sm:$0xff] %v3611
        %3648 = vst [vmem:[#allocation3 + $0x58] sm:$0xff] %v3612
        %3649 = vst [vmem:[#allocation3 + $0x60] sm:$0xff] %v3613
        %3650 = vst [vmem:[#allocation3 + $0x68] sm:$0xff] %v3614
        %3651 = vst [vmem:[#allocation3 + $0x70] sm:$0xff] %v3615
        %3652 = vst [vmem:[#allocation3 + $0x78] sm:$0xff] %v3616
        %3653 = vst [vmem:[#allocation3 + $0x80] sm:$0xff] %v3617
        %3654 = vst [vmem:[#allocation3 + $0x88] sm:$0xff] %v3618
        %3655 = vst [vmem:[#allocation3 + $0x90] sm:$0xff] %v3619
        %3656 = vst [vmem:[#allocation3 + $0x98] sm:$0xff] %v3620
        %3657 = vst [vmem:[#allocation3 + $0xa0] sm:$0xff] %v3621
        %3658 = vst [vmem:[#allocation3 + $0xa8] sm:$0xff] %v3622
        %3659 = vst [vmem:[#allocation3 + $0xb0] sm:$0xff] %v3623
        %3660 = vst [vmem:[#allocation3 + $0xb8] sm:$0xff] %v3624
        %3661 = vst [vmem:[#allocation3 + $0xc0] sm:$0xff] %v3625
        %3662 = vst [vmem:[#allocation3 + $0xc8] sm:$0xff] %v3626
        %3663 = vst [vmem:[#allocation3 + $0xd0] sm:$0xff] %v3627
        %3664 = vst [vmem:[#allocation3 + $0xd8] sm:$0xff] %v3628
        %3665 = vst [vmem:[#allocation3 + $0xe0] sm:$0xff] %v3629
        %3666 = vst [vmem:[#allocation3 + $0xe8] sm:$0xff] %v3630
        %3667 = vst [vmem:[#allocation3 + $0xf0] sm:$0xff] %v3631
        %3668 = vst [vmem:[#allocation3 + $0xf8] sm:$0xff] %v3632
        %3669 = vst [vmem:[#allocation3 + $0x100] sm:$0xff] %v3633
        %3670 = vst [vmem:[#allocation3 + $0x108] sm:$0xff] %v3634
        %3671 = vst [vmem:[#allocation3 + $0x110] sm:$0xff] %v3635
        %3672 = vst [vmem:[#allocation3 + $0x118] sm:$0xff] %v3636
        %3673 = vst [vmem:[#allocation3 + $0x120] sm:$0xff] %v3637
        %3674 = vst [vmem:[#allocation3 + $0x128] sm:$0xff] %v3638
        %3675 = vst [vmem:[#allocation3 + $0x130] sm:$0xff] %v3639
        %v3676 = vld [vmem:[#allocation3 + $0x5] sm:$0xff]
        %v3677 = vld [vmem:[#allocation3 + $0xd] sm:$0xff]
        %v3678 = vld [vmem:[#allocation3 + $0x15] sm:$0xff]
        %v3679 = vld [vmem:[#allocation3 + $0x1d] sm:$0xff]
        %v3680 = vld [vmem:[#allocation3 + $0x25] sm:$0xff]
        %v3681 = vld [vmem:[#allocation3 + $0x2d] sm:$0xff]
        %v3682 = vld [vmem:[#allocation3 + $0x35] sm:$0xff]
        %v3683 = vld [vmem:[#allocation3 + $0x3d] sm:$0xff]
        %v3684 = vld [vmem:[#allocation3 + $0x45] sm:$0xff]
        %v3685 = vld [vmem:[#allocation3 + $0x4d] sm:$0xff]
        %v3686 = vld [vmem:[#allocation3 + $0x55] sm:$0xff]
        %v3687 = vld [vmem:[#allocation3 + $0x5d] sm:$0xff]
        %v3688 = vld [vmem:[#allocation3 + $0x65] sm:$0xff]
        %v3689 = vld [vmem:[#allocation3 + $0x6d] sm:$0xff]
        %v3690 = vld [vmem:[#allocation3 + $0x75] sm:$0xff]
        %v3691 = vld [vmem:[#allocation3 + $0x7d] sm:$0xff]
        %v3692 = vld [vmem:[#allocation3 + $0x85] sm:$0xff]
        %v3693 = vld [vmem:[#allocation3 + $0x8d] sm:$0xff]
        %v3694 = vld [vmem:[#allocation3 + $0x95] sm:$0xff]
        %v3695 = vld [vmem:[#allocation3 + $0x9d] sm:$0xff]
        %v3696 = vld [vmem:[#allocation3 + $0xa5] sm:$0xff]
        %v3697 = vld [vmem:[#allocation3 + $0xad] sm:$0xff]
        %v3698 = vld [vmem:[#allocation3 + $0xb5] sm:$0xff]
        %v3699 = vld [vmem:[#allocation3 + $0xbd] sm:$0xff]
        %v3700 = vld [vmem:[#allocation3 + $0xc5] sm:$0xff]
        %v3701 = vld [vmem:[#allocation3 + $0xcd] sm:$0xff]
        %v3702 = vld [vmem:[#allocation3 + $0xd5] sm:$0xff]
        %v3703 = vld [vmem:[#allocation3 + $0xdd] sm:$0xff]
        %v3704 = vld [vmem:[#allocation3 + $0xe5] sm:$0xff]
        %v3705 = vld [vmem:[#allocation3 + $0xed] sm:$0xff]
        %v3706 = vld [vmem:[#allocation3 + $0xf5] sm:$0xff]
        %v3707 = vld [vmem:[#allocation3 + $0xfd] sm:$0xff]
        %v3708 = vld [vmem:[#allocation3 + $0x105] sm:$0xff]
        %v3709 = vld [vmem:[#allocation3 + $0x10d] sm:$0xff]
        %v3710 = vld [vmem:[#allocation3 + $0x115] sm:$0xff]
        %v3711 = vld [vmem:[#allocation3 + $0x11d] sm:$0xff]
        %v3712 = vpack.c.bf16 %v3677, %v3676
        %v3713 = vpack.c.bf16 %v3679, %v3678
        %v3714 = vpack.c.bf16 %v3681, %v3680
        %v3715 = vpack.c.bf16 %v3683, %v3682
        %v3716 = vpack.c.bf16 %v3685, %v3684
        %v3717 = vpack.c.bf16 %v3687, %v3686
        %v3718 = vpack.c.bf16 %v3689, %v3688
        %v3719 = vpack.c.bf16 %v3691, %v3690
        %v3720 = vpack.c.bf16 %v3693, %v3692
        %v3721 = vpack.c.bf16 %v3695, %v3694
        %v3722 = vpack.c.bf16 %v3697, %v3696
        %v3723 = vpack.c.bf16 %v3699, %v3698
        %v3724 = vpack.c.bf16 %v3701, %v3700
        %v3725 = vpack.c.bf16 %v3703, %v3702
        %v3726 = vpack.c.bf16 %v3705, %v3704
        %v3727 = vpack.c.bf16 %v3707, %v3706
        %v3728 = vpack.c.bf16 %v3709, %v3708
        %v3729 = vpack.c.bf16 %v3711, %v3710
        %3730 = vst [vmem:[#allocation4] sm:$0xff] %v3712
        %3731 = vst [vmem:[#allocation4 + $0x48] sm:$0xff] %v3713
        %3732 = vst [vmem:[#allocation4 + $0x90] sm:$0xff] %v3714
        %3733 = vst [vmem:[#allocation4 + $0xd8] sm:$0xff] %v3715
        %3734 = vst [vmem:[#allocation4 + $0x120] sm:$0xff] %v3716
        %3735 = vst [vmem:[#allocation4 + $0x168] sm:$0xff] %v3717
        %3736 = vst [vmem:[#allocation4 + $0x1b0] sm:$0xff] %v3718
        %3737 = vst [vmem:[#allocation4 + $0x1f8] sm:$0xff] %v3719
        %3738 = vst [vmem:[#allocation4 + $0x240] sm:$0xff] %v3720
        %3739 = vst [vmem:[#allocation4 + $0x288] sm:$0xff] %v3721
        %3740 = vst [vmem:[#allocation4 + $0x2d0] sm:$0xff] %v3722
        %3741 = vst [vmem:[#allocation4 + $0x318] sm:$0xff] %v3723
        %3742 = vst [vmem:[#allocation4 + $0x360] sm:$0xff] %v3724
        %3743 = vst [vmem:[#allocation4 + $0x3a8] sm:$0xff] %v3725
        %3744 = vst [vmem:[#allocation4 + $0x3f0] sm:$0xff] %v3726
        %3745 = vst [vmem:[#allocation4 + $0x438] sm:$0xff] %v3727
        %3746 = vst [vmem:[#allocation4 + $0x480] sm:$0xff] %v3728
        %3747 = vst [vmem:[#allocation4 + $0x4c8] sm:$0xff] %v3729
        %v3748 = vld [vmem:[#allocation3 + $0x6] sm:$0xff]
        %v3749 = vld [vmem:[#allocation3 + $0xe] sm:$0xff]
        %v3750 = vld [vmem:[#allocation3 + $0x16] sm:$0xff]
        %v3751 = vld [vmem:[#allocation3 + $0x1e] sm:$0xff]
        %v3752 = vld [vmem:[#allocation3 + $0x26] sm:$0xff]
        %v3753 = vld [vmem:[#allocation3 + $0x2e] sm:$0xff]
        %v3754 = vld [vmem:[#allocation3 + $0x36] sm:$0xff]
        %v3755 = vld [vmem:[#allocation3 + $0x3e] sm:$0xff]
        %v3756 = vld [vmem:[#allocation3 + $0x46] sm:$0xff]
        %v3757 = vld [vmem:[#allocation3 + $0x4e] sm:$0xff]
        %v3758 = vld [vmem:[#allocation3 + $0x56] sm:$0xff]
        %v3759 = vld [vmem:[#allocation3 + $0x5e] sm:$0xff]
        %v3760 = vld [vmem:[#allocation3 + $0x66] sm:$0xff]
        %v3761 = vld [vmem:[#allocation3 + $0x6e] sm:$0xff]
        %v3762 = vld [vmem:[#allocation3 + $0x76] sm:$0xff]
        %v3763 = vld [vmem:[#allocation3 + $0x7e] sm:$0xff]
        %v3764 = vld [vmem:[#allocation3 + $0x86] sm:$0xff]
        %v3765 = vld [vmem:[#allocation3 + $0x8e] sm:$0xff]
        %v3766 = vld [vmem:[#allocation3 + $0x96] sm:$0xff]
        %v3767 = vld [vmem:[#allocation3 + $0x9e] sm:$0xff]
        %v3768 = vld [vmem:[#allocation3 + $0xa6] sm:$0xff]
        %v3769 = vld [vmem:[#allocation3 + $0xae] sm:$0xff]
        %v3770 = vld [vmem:[#allocation3 + $0xb6] sm:$0xff]
        %v3771 = vld [vmem:[#allocation3 + $0xbe] sm:$0xff]
        %v3772 = vld [vmem:[#allocation3 + $0xc6] sm:$0xff]
        %v3773 = vld [vmem:[#allocation3 + $0xce] sm:$0xff]
        %v3774 = vld [vmem:[#allocation3 + $0xd6] sm:$0xff]
        %v3775 = vld [vmem:[#allocation3 + $0xde] sm:$0xff]
        %v3776 = vld [vmem:[#allocation3 + $0xe6] sm:$0xff]
        %v3777 = vld [vmem:[#allocation3 + $0xee] sm:$0xff]
        %v3778 = vld [vmem:[#allocation3 + $0xf6] sm:$0xff]
        %v3779 = vld [vmem:[#allocation3 + $0xfe] sm:$0xff]
        %v3780 = vld [vmem:[#allocation3 + $0x106] sm:$0xff]
        %v3781 = vld [vmem:[#allocation3 + $0x10e] sm:$0xff]
        %v3782 = vld [vmem:[#allocation3 + $0x116] sm:$0xff]
        %v3783 = vld [vmem:[#allocation3 + $0x11e] sm:$0xff]
        %v3784 = vpack.c.bf16 %v3749, %v3748
        %v3785 = vpack.c.bf16 %v3751, %v3750
        %v3786 = vpack.c.bf16 %v3753, %v3752
        %v3787 = vpack.c.bf16 %v3755, %v3754
        %v3788 = vpack.c.bf16 %v3757, %v3756
        %v3789 = vpack.c.bf16 %v3759, %v3758
        %v3790 = vpack.c.bf16 %v3761, %v3760
        %v3791 = vpack.c.bf16 %v3763, %v3762
        %v3792 = vpack.c.bf16 %v3765, %v3764
        %v3793 = vpack.c.bf16 %v3767, %v3766
        %v3794 = vpack.c.bf16 %v3769, %v3768
        %v3795 = vpack.c.bf16 %v3771, %v3770
        %v3796 = vpack.c.bf16 %v3773, %v3772
        %v3797 = vpack.c.bf16 %v3775, %v3774
        %v3798 = vpack.c.bf16 %v3777, %v3776
        %v3799 = vpack.c.bf16 %v3779, %v3778
        %v3800 = vpack.c.bf16 %v3781, %v3780
        %v3801 = vpack.c.bf16 %v3783, %v3782
        %3802 = vst [vmem:[#allocation4 + $0x8] sm:$0xff] %v3784
        %3803 = vst [vmem:[#allocation4 + $0x50] sm:$0xff] %v3785
        %3804 = vst [vmem:[#allocation4 + $0x98] sm:$0xff] %v3786
        %3805 = vst [vmem:[#allocation4 + $0xe0] sm:$0xff] %v3787
        %3806 = vst [vmem:[#allocation4 + $0x128] sm:$0xff] %v3788
        %3807 = vst [vmem:[#allocation4 + $0x170] sm:$0xff] %v3789
        %3808 = vst [vmem:[#allocation4 + $0x1b8] sm:$0xff] %v3790
        %3809 = vst [vmem:[#allocation4 + $0x200] sm:$0xff] %v3791
        %3810 = vst [vmem:[#allocation4 + $0x248] sm:$0xff] %v3792
        %3811 = vst [vmem:[#allocation4 + $0x290] sm:$0xff] %v3793
        %3812 = vst [vmem:[#allocation4 + $0x2d8] sm:$0xff] %v3794
        %3813 = vst [vmem:[#allocation4 + $0x320] sm:$0xff] %v3795
        %3814 = vst [vmem:[#allocation4 + $0x368] sm:$0xff] %v3796
        %3815 = vst [vmem:[#allocation4 + $0x3b0] sm:$0xff] %v3797
        %3816 = vst [vmem:[#allocation4 + $0x3f8] sm:$0xff] %v3798
        %3817 = vst [vmem:[#allocation4 + $0x440] sm:$0xff] %v3799
        %3818 = vst [vmem:[#allocation4 + $0x488] sm:$0xff] %v3800
        %3819 = vst [vmem:[#allocation4 + $0x4d0] sm:$0xff] %v3801
        %v3820 = vld [vmem:[#allocation3 + $0x7] sm:$0xff]
        %v3821 = vld [vmem:[#allocation3 + $0xf] sm:$0xff]
        %v3822 = vld [vmem:[#allocation3 + $0x17] sm:$0xff]
        %v3823 = vld [vmem:[#allocation3 + $0x1f] sm:$0xff]
        %v3824 = vld [vmem:[#allocation3 + $0x27] sm:$0xff]
        %v3825 = vld [vmem:[#allocation3 + $0x2f] sm:$0xff]
        %v3826 = vld [vmem:[#allocation3 + $0x37] sm:$0xff]
        %v3827 = vld [vmem:[#allocation3 + $0x3f] sm:$0xff]
        %v3828 = vld [vmem:[#allocation3 + $0x47] sm:$0xff]
        %v3829 = vld [vmem:[#allocation3 + $0x4f] sm:$0xff]
        %v3830 = vld [vmem:[#allocation3 + $0x57] sm:$0xff]
        %v3831 = vld [vmem:[#allocation3 + $0x5f] sm:$0xff]
        %v3832 = vld [vmem:[#allocation3 + $0x67] sm:$0xff]
        %v3833 = vld [vmem:[#allocation3 + $0x6f] sm:$0xff]
        %v3834 = vld [vmem:[#allocation3 + $0x77] sm:$0xff]
        %v3835 = vld [vmem:[#allocation3 + $0x7f] sm:$0xff]
        %v3836 = vld [vmem:[#allocation3 + $0x87] sm:$0xff]
        %v3837 = vld [vmem:[#allocation3 + $0x8f] sm:$0xff]
        %v3838 = vld [vmem:[#allocation3 + $0x97] sm:$0xff]
        %v3839 = vld [vmem:[#allocation3 + $0x9f] sm:$0xff]
        %v3840 = vld [vmem:[#allocation3 + $0xa7] sm:$0xff]
        %v3841 = vld [vmem:[#allocation3 + $0xaf] sm:$0xff]
        %v3842 = vld [vmem:[#allocation3 + $0xb7] sm:$0xff]
        %v3843 = vld [vmem:[#allocation3 + $0xbf] sm:$0xff]
        %v3844 = vld [vmem:[#allocation3 + $0xc7] sm:$0xff]
        %v3845 = vld [vmem:[#allocation3 + $0xcf] sm:$0xff]
        %v3846 = vld [vmem:[#allocation3 + $0xd7] sm:$0xff]
        %v3847 = vld [vmem:[#allocation3 + $0xdf] sm:$0xff]
        %v3848 = vld [vmem:[#allocation3 + $0xe7] sm:$0xff]
        %v3849 = vld [vmem:[#allocation3 + $0xef] sm:$0xff]
        %v3850 = vld [vmem:[#allocation3 + $0xf7] sm:$0xff]
        %v3851 = vld [vmem:[#allocation3 + $0xff] sm:$0xff]
        %v3852 = vld [vmem:[#allocation3 + $0x107] sm:$0xff]
        %v3853 = vld [vmem:[#allocation3 + $0x10f] sm:$0xff]
        %v3854 = vld [vmem:[#allocation3 + $0x117] sm:$0xff]
        %v3855 = vld [vmem:[#allocation3 + $0x11f] sm:$0xff]
        %v3856 = vpack.c.bf16 %v3821, %v3820
        %v3857 = vpack.c.bf16 %v3823, %v3822
        %v3858 = vpack.c.bf16 %v3825, %v3824
        %v3859 = vpack.c.bf16 %v3827, %v3826
        %v3860 = vpack.c.bf16 %v3829, %v3828
        %v3861 = vpack.c.bf16 %v3831, %v3830
        %v3862 = vpack.c.bf16 %v3833, %v3832
        %v3863 = vpack.c.bf16 %v3835, %v3834
        %v3864 = vpack.c.bf16 %v3837, %v3836
        %v3865 = vpack.c.bf16 %v3839, %v3838
        %v3866 = vpack.c.bf16 %v3841, %v3840
        %v3867 = vpack.c.bf16 %v3843, %v3842
        %v3868 = vpack.c.bf16 %v3845, %v3844
        %v3869 = vpack.c.bf16 %v3847, %v3846
        %v3870 = vpack.c.bf16 %v3849, %v3848
        %v3871 = vpack.c.bf16 %v3851, %v3850
        %v3872 = vpack.c.bf16 %v3853, %v3852
        %v3873 = vpack.c.bf16 %v3855, %v3854
        %3874 = vst [vmem:[#allocation4 + $0x10] sm:$0xff] %v3856
        %3875 = vst [vmem:[#allocation4 + $0x58] sm:$0xff] %v3857
        %3876 = vst [vmem:[#allocation4 + $0xa0] sm:$0xff] %v3858
        %3877 = vst [vmem:[#allocation4 + $0xe8] sm:$0xff] %v3859
        %3878 = vst [vmem:[#allocation4 + $0x130] sm:$0xff] %v3860
        %3879 = vst [vmem:[#allocation4 + $0x178] sm:$0xff] %v3861
        %3880 = vst [vmem:[#allocation4 + $0x1c0] sm:$0xff] %v3862
        %3881 = vst [vmem:[#allocation4 + $0x208] sm:$0xff] %v3863
        %3882 = vst [vmem:[#allocation4 + $0x250] sm:$0xff] %v3864
        %3883 = vst [vmem:[#allocation4 + $0x298] sm:$0xff] %v3865
        %3884 = vst [vmem:[#allocation4 + $0x2e0] sm:$0xff] %v3866
        %3885 = vst [vmem:[#allocation4 + $0x328] sm:$0xff] %v3867
        %3886 = vst [vmem:[#allocation4 + $0x370] sm:$0xff] %v3868
        %3887 = vst [vmem:[#allocation4 + $0x3b8] sm:$0xff] %v3869
        %3888 = vst [vmem:[#allocation4 + $0x400] sm:$0xff] %v3870
        %3889 = vst [vmem:[#allocation4 + $0x448] sm:$0xff] %v3871
        %3890 = vst [vmem:[#allocation4 + $0x490] sm:$0xff] %v3872
        %3891 = vst [vmem:[#allocation4 + $0x4d8] sm:$0xff] %v3873
        %v3892 = vld [vmem:[#allocation3 + $0x17] sm:$0xff]
        %v3893 = vld [vmem:[#allocation3 + $0x1f] sm:$0xff]
        %v3894 = vld [vmem:[#allocation3 + $0x27] sm:$0xff]
        %v3895 = vld [vmem:[#allocation3 + $0x2f] sm:$0xff]
        %v3896 = vld [vmem:[#allocation3 + $0x37] sm:$0xff]
        %v3897 = vld [vmem:[#allocation3 + $0x3f] sm:$0xff]
        %v3898 = vld [vmem:[#allocation3 + $0x47] sm:$0xff]
        %v3899 = vld [vmem:[#allocation3 + $0x4f] sm:$0xff]
        %v3900 = vld [vmem:[#allocation3 + $0x57] sm:$0xff]
        %v3901 = vld [vmem:[#allocation3 + $0x5f] sm:$0xff]
        %v3902 = vld [vmem:[#allocation3 + $0x67] sm:$0xff]
        %v3903 = vld [vmem:[#allocation3 + $0x6f] sm:$0xff]
        %v3904 = vld [vmem:[#allocation3 + $0x77] sm:$0xff]
        %v3905 = vld [vmem:[#allocation3 + $0x7f] sm:$0xff]
        %v3906 = vld [vmem:[#allocation3 + $0x87] sm:$0xff]
        %v3907 = vld [vmem:[#allocation3 + $0x8f] sm:$0xff]
        %v3908 = vld [vmem:[#allocation3 + $0x97] sm:$0xff]
        %v3909 = vld [vmem:[#allocation3 + $0x9f] sm:$0xff]
        %v3910 = vld [vmem:[#allocation3 + $0xa7] sm:$0xff]
        %v3911 = vld [vmem:[#allocation3 + $0xaf] sm:$0xff]
        %v3912 = vld [vmem:[#allocation3 + $0xb7] sm:$0xff]
        %v3913 = vld [vmem:[#allocation3 + $0xbf] sm:$0xff]
        %v3914 = vld [vmem:[#allocation3 + $0xc7] sm:$0xff]
        %v3915 = vld [vmem:[#allocation3 + $0xcf] sm:$0xff]
        %v3916 = vld [vmem:[#allocation3 + $0xd7] sm:$0xff]
        %v3917 = vld [vmem:[#allocation3 + $0xdf] sm:$0xff]
        %v3918 = vld [vmem:[#allocation3 + $0xe7] sm:$0xff]
        %v3919 = vld [vmem:[#allocation3 + $0xef] sm:$0xff]
        %v3920 = vld [vmem:[#allocation3 + $0xf7] sm:$0xff]
        %v3921 = vld [vmem:[#allocation3 + $0xff] sm:$0xff]
        %v3922 = vld [vmem:[#allocation3 + $0x107] sm:$0xff]
        %v3923 = vld [vmem:[#allocation3 + $0x10f] sm:$0xff]
        %v3924 = vld [vmem:[#allocation3 + $0x117] sm:$0xff]
        %v3925 = vld [vmem:[#allocation3 + $0x11f] sm:$0xff]
        %v3926 = vld [vmem:[#allocation3 + $0x127] sm:$0xff]
        %v3927 = vld [vmem:[#allocation3 + $0x12f] sm:$0xff]
        %v3928 = vpack.c.bf16 %v3893, %v3892
        %v3929 = vpack.c.bf16 %v3895, %v3894
        %v3930 = vpack.c.bf16 %v3897, %v3896
        %v3931 = vpack.c.bf16 %v3899, %v3898
        %v3932 = vpack.c.bf16 %v3901, %v3900
        %v3933 = vpack.c.bf16 %v3903, %v3902
        %v3934 = vpack.c.bf16 %v3905, %v3904
        %v3935 = vpack.c.bf16 %v3907, %v3906
        %v3936 = vpack.c.bf16 %v3909, %v3908
        %v3937 = vpack.c.bf16 %v3911, %v3910
        %v3938 = vpack.c.bf16 %v3913, %v3912
        %v3939 = vpack.c.bf16 %v3915, %v3914
        %v3940 = vpack.c.bf16 %v3917, %v3916
        %v3941 = vpack.c.bf16 %v3919, %v3918
        %v3942 = vpack.c.bf16 %v3921, %v3920
        %v3943 = vpack.c.bf16 %v3923, %v3922
        %v3944 = vpack.c.bf16 %v3925, %v3924
        %v3945 = vpack.c.bf16 %v3927, %v3926
        %3946 = vst [vmem:[#allocation4 + $0x18] sm:$0xff] %v3928
        %3947 = vst [vmem:[#allocation4 + $0x60] sm:$0xff] %v3929
        %3948 = vst [vmem:[#allocation4 + $0xa8] sm:$0xff] %v3930
        %3949 = vst [vmem:[#allocation4 + $0xf0] sm:$0xff] %v3931
        %3950 = vst [vmem:[#allocation4 + $0x138] sm:$0xff] %v3932
        %3951 = vst [vmem:[#allocation4 + $0x180] sm:$0xff] %v3933
        %3952 = vst [vmem:[#allocation4 + $0x1c8] sm:$0xff] %v3934
        %3953 = vst [vmem:[#allocation4 + $0x210] sm:$0xff] %v3935
        %3954 = vst [vmem:[#allocation4 + $0x258] sm:$0xff] %v3936
        %3955 = vst [vmem:[#allocation4 + $0x2a0] sm:$0xff] %v3937
        %3956 = vst [vmem:[#allocation4 + $0x2e8] sm:$0xff] %v3938
        %3957 = vst [vmem:[#allocation4 + $0x330] sm:$0xff] %v3939
        %3958 = vst [vmem:[#allocation4 + $0x378] sm:$0xff] %v3940
        %3959 = vst [vmem:[#allocation4 + $0x3c0] sm:$0xff] %v3941
        %3960 = vst [vmem:[#allocation4 + $0x408] sm:$0xff] %v3942
        %3961 = vst [vmem:[#allocation4 + $0x450] sm:$0xff] %v3943
        %3962 = vst [vmem:[#allocation4 + $0x498] sm:$0xff] %v3944
        %3963 = vst [vmem:[#allocation4 + $0x4e0] sm:$0xff] %v3945
        %v3964 = vld [vmem:[#allocation3 + $0x18] sm:$0xff]
        %v3965 = vld [vmem:[#allocation3 + $0x20] sm:$0xff]
        %v3966 = vld [vmem:[#allocation3 + $0x28] sm:$0xff]
        %v3967 = vld [vmem:[#allocation3 + $0x30] sm:$0xff]
        %v3968 = vld [vmem:[#allocation3 + $0x38] sm:$0xff]
        %v3969 = vld [vmem:[#allocation3 + $0x40] sm:$0xff]
        %v3970 = vld [vmem:[#allocation3 + $0x48] sm:$0xff]
        %v3971 = vld [vmem:[#allocation3 + $0x50] sm:$0xff]
        %v3972 = vld [vmem:[#allocation3 + $0x58] sm:$0xff]
        %v3973 = vld [vmem:[#allocation3 + $0x60] sm:$0xff]
        %v3974 = vld [vmem:[#allocation3 + $0x68] sm:$0xff]
        %v3975 = vld [vmem:[#allocation3 + $0x70] sm:$0xff]
        %v3976 = vld [vmem:[#allocation3 + $0x78] sm:$0xff]
        %v3977 = vld [vmem:[#allocation3 + $0x80] sm:$0xff]
        %v3978 = vld [vmem:[#allocation3 + $0x88] sm:$0xff]
        %v3979 = vld [vmem:[#allocation3 + $0x90] sm:$0xff]
        %v3980 = vld [vmem:[#allocation3 + $0x98] sm:$0xff]
        %v3981 = vld [vmem:[#allocation3 + $0xa0] sm:$0xff]
        %v3982 = vld [vmem:[#allocation3 + $0xa8] sm:$0xff]
        %v3983 = vld [vmem:[#allocation3 + $0xb0] sm:$0xff]
        %v3984 = vld [vmem:[#allocation3 + $0xb8] sm:$0xff]
        %v3985 = vld [vmem:[#allocation3 + $0xc0] sm:$0xff]
        %v3986 = vld [vmem:[#allocation3 + $0xc8] sm:$0xff]
        %v3987 = vld [vmem:[#allocation3 + $0xd0] sm:$0xff]
        %v3988 = vld [vmem:[#allocation3 + $0xd8] sm:$0xff]
        %v3989 = vld [vmem:[#allocation3 + $0xe0] sm:$0xff]
        %v3990 = vld [vmem:[#allocation3 + $0xe8] sm:$0xff]
        %v3991 = vld [vmem:[#allocation3 + $0xf0] sm:$0xff]
        %v3992 = vld [vmem:[#allocation3 + $0xf8] sm:$0xff]
        %v3993 = vld [vmem:[#allocation3 + $0x100] sm:$0xff]
        %v3994 = vld [vmem:[#allocation3 + $0x108] sm:$0xff]
        %v3995 = vld [vmem:[#allocation3 + $0x110] sm:$0xff]
        %v3996 = vld [vmem:[#allocation3 + $0x118] sm:$0xff]
        %v3997 = vld [vmem:[#allocation3 + $0x120] sm:$0xff]
        %v3998 = vld [vmem:[#allocation3 + $0x128] sm:$0xff]
        %v3999 = vld [vmem:[#allocation3 + $0x130] sm:$0xff]
        %v4000 = vpack.c.bf16 %v3965, %v3964
        %v4001 = vpack.c.bf16 %v3967, %v3966
        %v4002 = vpack.c.bf16 %v3969, %v3968
        %v4003 = vpack.c.bf16 %v3971, %v3970
        %v4004 = vpack.c.bf16 %v3973, %v3972
        %v4005 = vpack.c.bf16 %v3975, %v3974
        %v4006 = vpack.c.bf16 %v3977, %v3976
        %v4007 = vpack.c.bf16 %v3979, %v3978
        %v4008 = vpack.c.bf16 %v3981, %v3980
        %v4009 = vpack.c.bf16 %v3983, %v3982
        %v4010 = vpack.c.bf16 %v3985, %v3984
        %v4011 = vpack.c.bf16 %v3987, %v3986
        %v4012 = vpack.c.bf16 %v3989, %v3988
        %v4013 = vpack.c.bf16 %v3991, %v3990
        %v4014 = vpack.c.bf16 %v3993, %v3992
        %v4015 = vpack.c.bf16 %v3995, %v3994
        %v4016 = vpack.c.bf16 %v3997, %v3996
        %v4017 = vpack.c.bf16 %v3999, %v3998
        %4018 = vst [vmem:[#allocation4 + $0x20] sm:$0xff] %v4000
        %4019 = vst [vmem:[#allocation4 + $0x68] sm:$0xff] %v4001
        %4020 = vst [vmem:[#allocation4 + $0xb0] sm:$0xff] %v4002
        %4021 = vst [vmem:[#allocation4 + $0xf8] sm:$0xff] %v4003
        %4022 = vst [vmem:[#allocation4 + $0x140] sm:$0xff] %v4004
        %4023 = vst [vmem:[#allocation4 + $0x188] sm:$0xff] %v4005
        %4024 = vst [vmem:[#allocation4 + $0x1d0] sm:$0xff] %v4006
        %4025 = vst [vmem:[#allocation4 + $0x218] sm:$0xff] %v4007
        %4026 = vst [vmem:[#allocation4 + $0x260] sm:$0xff] %v4008
        %4027 = vst [vmem:[#allocation4 + $0x2a8] sm:$0xff] %v4009
        %4028 = vst [vmem:[#allocation4 + $0x2f0] sm:$0xff] %v4010
        %4029 = vst [vmem:[#allocation4 + $0x338] sm:$0xff] %v4011
        %4030 = vst [vmem:[#allocation4 + $0x380] sm:$0xff] %v4012
        %4031 = vst [vmem:[#allocation4 + $0x3c8] sm:$0xff] %v4013
        %4032 = vst [vmem:[#allocation4 + $0x410] sm:$0xff] %v4014
        %4033 = vst [vmem:[#allocation4 + $0x458] sm:$0xff] %v4015
        %4034 = vst [vmem:[#allocation4 + $0x4a0] sm:$0xff] %v4016
        %4035 = vst [vmem:[#allocation4 + $0x4e8] sm:$0xff] %v4017
        %v4036 = vld [vmem:[#allocation3 + $0x19] sm:$0xff]
        %v4037 = vld [vmem:[#allocation3 + $0x21] sm:$0xff]
        %v4038 = vld [vmem:[#allocation3 + $0x29] sm:$0xff]
        %v4039 = vld [vmem:[#allocation3 + $0x31] sm:$0xff]
        %v4040 = vld [vmem:[#allocation3 + $0x39] sm:$0xff]
        %v4041 = vld [vmem:[#allocation3 + $0x41] sm:$0xff]
        %v4042 = vld [vmem:[#allocation3 + $0x49] sm:$0xff]
        %v4043 = vld [vmem:[#allocation3 + $0x51] sm:$0xff]
        %v4044 = vld [vmem:[#allocation3 + $0x59] sm:$0xff]
        %v4045 = vld [vmem:[#allocation3 + $0x61] sm:$0xff]
        %v4046 = vld [vmem:[#allocation3 + $0x69] sm:$0xff]
        %v4047 = vld [vmem:[#allocation3 + $0x71] sm:$0xff]
        %v4048 = vld [vmem:[#allocation3 + $0x79] sm:$0xff]
        %v4049 = vld [vmem:[#allocation3 + $0x81] sm:$0xff]
        %v4050 = vld [vmem:[#allocation3 + $0x89] sm:$0xff]
        %v4051 = vld [vmem:[#allocation3 + $0x91] sm:$0xff]
        %v4052 = vld [vmem:[#allocation3 + $0x99] sm:$0xff]
        %v4053 = vld [vmem:[#allocation3 + $0xa1] sm:$0xff]
        %v4054 = vld [vmem:[#allocation3 + $0xa9] sm:$0xff]
        %v4055 = vld [vmem:[#allocation3 + $0xb1] sm:$0xff]
        %v4056 = vld [vmem:[#allocation3 + $0xb9] sm:$0xff]
        %v4057 = vld [vmem:[#allocation3 + $0xc1] sm:$0xff]
        %v4058 = vld [vmem:[#allocation3 + $0xc9] sm:$0xff]
        %v4059 = vld [vmem:[#allocation3 + $0xd1] sm:$0xff]
        %v4060 = vld [vmem:[#allocation3 + $0xd9] sm:$0xff]
        %v4061 = vld [vmem:[#allocation3 + $0xe1] sm:$0xff]
        %v4062 = vld [vmem:[#allocation3 + $0xe9] sm:$0xff]
        %v4063 = vld [vmem:[#allocation3 + $0xf1] sm:$0xff]
        %v4064 = vld [vmem:[#allocation3 + $0xf9] sm:$0xff]
        %v4065 = vld [vmem:[#allocation3 + $0x101] sm:$0xff]
        %v4066 = vld [vmem:[#allocation3 + $0x109] sm:$0xff]
        %v4067 = vld [vmem:[#allocation3 + $0x111] sm:$0xff]
        %v4068 = vld [vmem:[#allocation3 + $0x119] sm:$0xff]
        %v4069 = vld [vmem:[#allocation3 + $0x121] sm:$0xff]
        %v4070 = vld [vmem:[#allocation3 + $0x129] sm:$0xff]
        %v4071 = vld [vmem:[#allocation3 + $0x131] sm:$0xff]
        %v4072 = vpack.c.bf16 %v4037, %v4036
        %v4073 = vpack.c.bf16 %v4039, %v4038
        %v4074 = vpack.c.bf16 %v4041, %v4040
        %v4075 = vpack.c.bf16 %v4043, %v4042
        %v4076 = vpack.c.bf16 %v4045, %v4044
        %v4077 = vpack.c.bf16 %v4047, %v4046
        %v4078 = vpack.c.bf16 %v4049, %v4048
        %v4079 = vpack.c.bf16 %v4051, %v4050
        %v4080 = vpack.c.bf16 %v4053, %v4052
        %v4081 = vpack.c.bf16 %v4055, %v4054
        %v4082 = vpack.c.bf16 %v4057, %v4056
        %v4083 = vpack.c.bf16 %v4059, %v4058
        %v4084 = vpack.c.bf16 %v4061, %v4060
        %v4085 = vpack.c.bf16 %v4063, %v4062
        %v4086 = vpack.c.bf16 %v4065, %v4064
        %v4087 = vpack.c.bf16 %v4067, %v4066
        %v4088 = vpack.c.bf16 %v4069, %v4068
        %v4089 = vpack.c.bf16 %v4071, %v4070
        %4090 = vst [vmem:[#allocation4 + $0x28] sm:$0xff] %v4072
        %4091 = vst [vmem:[#allocation4 + $0x70] sm:$0xff] %v4073
        %4092 = vst [vmem:[#allocation4 + $0xb8] sm:$0xff] %v4074
        %4093 = vst [vmem:[#allocation4 + $0x100] sm:$0xff] %v4075
        %4094 = vst [vmem:[#allocation4 + $0x148] sm:$0xff] %v4076
        %4095 = vst [vmem:[#allocation4 + $0x190] sm:$0xff] %v4077
        %4096 = vst [vmem:[#allocation4 + $0x1d8] sm:$0xff] %v4078
        %4097 = vst [vmem:[#allocation4 + $0x220] sm:$0xff] %v4079
        %4098 = vst [vmem:[#allocation4 + $0x268] sm:$0xff] %v4080
        %4099 = vst [vmem:[#allocation4 + $0x2b0] sm:$0xff] %v4081
        %4100 = vst [vmem:[#allocation4 + $0x2f8] sm:$0xff] %v4082
        %4101 = vst [vmem:[#allocation4 + $0x340] sm:$0xff] %v4083
        %4102 = vst [vmem:[#allocation4 + $0x388] sm:$0xff] %v4084
        %4103 = vst [vmem:[#allocation4 + $0x3d0] sm:$0xff] %v4085
        %4104 = vst [vmem:[#allocation4 + $0x418] sm:$0xff] %v4086
        %4105 = vst [vmem:[#allocation4 + $0x460] sm:$0xff] %v4087
        %4106 = vst [vmem:[#allocation4 + $0x4a8] sm:$0xff] %v4088
        %4107 = vst [vmem:[#allocation4 + $0x4f0] sm:$0xff] %v4089
        %v4108 = vld [vmem:[#allocation3 + $0x29] sm:$0xff]
        %v4109 = vld [vmem:[#allocation3 + $0x31] sm:$0xff]
        %v4110 = vld [vmem:[#allocation3 + $0x39] sm:$0xff]
        %v4111 = vld [vmem:[#allocation3 + $0x41] sm:$0xff]
        %v4112 = vld [vmem:[#allocation3 + $0x49] sm:$0xff]
        %v4113 = vld [vmem:[#allocation3 + $0x51] sm:$0xff]
        %v4114 = vld [vmem:[#allocation3 + $0x59] sm:$0xff]
        %v4115 = vld [vmem:[#allocation3 + $0x61] sm:$0xff]
        %v4116 = vld [vmem:[#allocation3 + $0x69] sm:$0xff]
        %v4117 = vld [vmem:[#allocation3 + $0x71] sm:$0xff]
        %v4118 = vld [vmem:[#allocation3 + $0x79] sm:$0xff]
        %v4119 = vld [vmem:[#allocation3 + $0x81] sm:$0xff]
        %v4120 = vld [vmem:[#allocation3 + $0x89] sm:$0xff]
        %v4121 = vld [vmem:[#allocation3 + $0x91] sm:$0xff]
        %v4122 = vld [vmem:[#allocation3 + $0x99] sm:$0xff]
        %v4123 = vld [vmem:[#allocation3 + $0xa1] sm:$0xff]
        %v4124 = vld [vmem:[#allocation3 + $0xa9] sm:$0xff]
        %v4125 = vld [vmem:[#allocation3 + $0xb1] sm:$0xff]
        %v4126 = vld [vmem:[#allocation3 + $0xb9] sm:$0xff]
        %v4127 = vld [vmem:[#allocation3 + $0xc1] sm:$0xff]
        %v4128 = vld [vmem:[#allocation3 + $0xc9] sm:$0xff]
        %v4129 = vld [vmem:[#allocation3 + $0xd1] sm:$0xff]
        %v4130 = vld [vmem:[#allocation3 + $0xd9] sm:$0xff]
        %v4131 = vld [vmem:[#allocation3 + $0xe1] sm:$0xff]
        %v4132 = vld [vmem:[#allocation3 + $0xe9] sm:$0xff]
        %v4133 = vld [vmem:[#allocation3 + $0xf1] sm:$0xff]
        %v4134 = vld [vmem:[#allocation3 + $0xf9] sm:$0xff]
        %v4135 = vld [vmem:[#allocation3 + $0x101] sm:$0xff]
        %v4136 = vld [vmem:[#allocation3 + $0x109] sm:$0xff]
        %v4137 = vld [vmem:[#allocation3 + $0x111] sm:$0xff]
        %v4138 = vld [vmem:[#allocation3 + $0x119] sm:$0xff]
        %v4139 = vld [vmem:[#allocation3 + $0x121] sm:$0xff]
        %v4140 = vld [vmem:[#allocation3 + $0x129] sm:$0xff]
        %v4141 = vld [vmem:[#allocation3 + $0x131] sm:$0xff]
        %v4142 = vld [vmem:[#allocation3 + $0x139] sm:$0xff]
        %v4143 = vld [vmem:[#allocation3 + $0x141] sm:$0xff]
        %v4144 = vpack.c.bf16 %v4109, %v4108
        %v4145 = vpack.c.bf16 %v4111, %v4110
        %v4146 = vpack.c.bf16 %v4113, %v4112
        %v4147 = vpack.c.bf16 %v4115, %v4114
        %v4148 = vpack.c.bf16 %v4117, %v4116
        %v4149 = vpack.c.bf16 %v4119, %v4118
        %v4150 = vpack.c.bf16 %v4121, %v4120
        %v4151 = vpack.c.bf16 %v4123, %v4122
        %v4152 = vpack.c.bf16 %v4125, %v4124
        %v4153 = vpack.c.bf16 %v4127, %v4126
        %v4154 = vpack.c.bf16 %v4129, %v4128
        %v4155 = vpack.c.bf16 %v4131, %v4130
        %v4156 = vpack.c.bf16 %v4133, %v4132
        %v4157 = vpack.c.bf16 %v4135, %v4134
        %v4158 = vpack.c.bf16 %v4137, %v4136
        %v4159 = vpack.c.bf16 %v4139, %v4138
        %v4160 = vpack.c.bf16 %v4141, %v4140
        %v4161 = vpack.c.bf16 %v4143, %v4142
        %4162 = vst [vmem:[#allocation4 + $0x30] sm:$0xff] %v4144
        %4163 = vst [vmem:[#allocation4 + $0x78] sm:$0xff] %v4145
        %4164 = vst [vmem:[#allocation4 + $0xc0] sm:$0xff] %v4146
        %4165 = vst [vmem:[#allocation4 + $0x108] sm:$0xff] %v4147
        %4166 = vst [vmem:[#allocation4 + $0x150] sm:$0xff] %v4148
        %4167 = vst [vmem:[#allocation4 + $0x198] sm:$0xff] %v4149
        %4168 = vst [vmem:[#allocation4 + $0x1e0] sm:$0xff] %v4150
        %4169 = vst [vmem:[#allocation4 + $0x228] sm:$0xff] %v4151
        %4170 = vst [vmem:[#allocation4 + $0x270] sm:$0xff] %v4152
        %4171 = vst [vmem:[#allocation4 + $0x2b8] sm:$0xff] %v4153
        %4172 = vst [vmem:[#allocation4 + $0x300] sm:$0xff] %v4154
        %4173 = vst [vmem:[#allocation4 + $0x348] sm:$0xff] %v4155
        %4174 = vst [vmem:[#allocation4 + $0x390] sm:$0xff] %v4156
        %4175 = vst [vmem:[#allocation4 + $0x3d8] sm:$0xff] %v4157
        %4176 = vst [vmem:[#allocation4 + $0x420] sm:$0xff] %v4158
        %4177 = vst [vmem:[#allocation4 + $0x468] sm:$0xff] %v4159
        %4178 = vst [vmem:[#allocation4 + $0x4b0] sm:$0xff] %v4160
        %4179 = vst [vmem:[#allocation4 + $0x4f8] sm:$0xff] %v4161
        %v4180 = vld [vmem:[#allocation3 + $0x2a] sm:$0xff]
        %v4181 = vld [vmem:[#allocation3 + $0x32] sm:$0xff]
        %v4182 = vld [vmem:[#allocation3 + $0x3a] sm:$0xff]
        %v4183 = vld [vmem:[#allocation3 + $0x42] sm:$0xff]
        %v4184 = vld [vmem:[#allocation3 + $0x4a] sm:$0xff]
        %v4185 = vld [vmem:[#allocation3 + $0x52] sm:$0xff]
        %v4186 = vld [vmem:[#allocation3 + $0x5a] sm:$0xff]
        %v4187 = vld [vmem:[#allocation3 + $0x62] sm:$0xff]
        %v4188 = vld [vmem:[#allocation3 + $0x6a] sm:$0xff]
        %v4189 = vld [vmem:[#allocation3 + $0x72] sm:$0xff]
        %v4190 = vld [vmem:[#allocation3 + $0x7a] sm:$0xff]
        %v4191 = vld [vmem:[#allocation3 + $0x82] sm:$0xff]
        %v4192 = vld [vmem:[#allocation3 + $0x8a] sm:$0xff]
        %v4193 = vld [vmem:[#allocation3 + $0x92] sm:$0xff]
        %v4194 = vld [vmem:[#allocation3 + $0x9a] sm:$0xff]
        %v4195 = vld [vmem:[#allocation3 + $0xa2] sm:$0xff]
        %v4196 = vld [vmem:[#allocation3 + $0xaa] sm:$0xff]
        %v4197 = vld [vmem:[#allocation3 + $0xb2] sm:$0xff]
        %v4198 = vld [vmem:[#allocation3 + $0xba] sm:$0xff]
        %v4199 = vld [vmem:[#allocation3 + $0xc2] sm:$0xff]
        %v4200 = vld [vmem:[#allocation3 + $0xca] sm:$0xff]
        %v4201 = vld [vmem:[#allocation3 + $0xd2] sm:$0xff]
        %v4202 = vld [vmem:[#allocation3 + $0xda] sm:$0xff]
        %v4203 = vld [vmem:[#allocation3 + $0xe2] sm:$0xff]
        %v4204 = vld [vmem:[#allocation3 + $0xea] sm:$0xff]
        %v4205 = vld [vmem:[#allocation3 + $0xf2] sm:$0xff]
        %v4206 = vld [vmem:[#allocation3 + $0xfa] sm:$0xff]
        %v4207 = vld [vmem:[#allocation3 + $0x102] sm:$0xff]
        %v4208 = vld [vmem:[#allocation3 + $0x10a] sm:$0xff]
        %v4209 = vld [vmem:[#allocation3 + $0x112] sm:$0xff]
        %v4210 = vld [vmem:[#allocation3 + $0x11a] sm:$0xff]
        %v4211 = vld [vmem:[#allocation3 + $0x122] sm:$0xff]
        %v4212 = vld [vmem:[#allocation3 + $0x12a] sm:$0xff]
        %v4213 = vld [vmem:[#allocation3 + $0x132] sm:$0xff]
        %v4214 = vld [vmem:[#allocation3 + $0x13a] sm:$0xff]
        %v4215 = vld [vmem:[#allocation3 + $0x142] sm:$0xff]
        %v4216 = vpack.c.bf16 %v4181, %v4180
        %v4217 = vpack.c.bf16 %v4183, %v4182
        %v4218 = vpack.c.bf16 %v4185, %v4184
        %v4219 = vpack.c.bf16 %v4187, %v4186
        %v4220 = vpack.c.bf16 %v4189, %v4188
        %v4221 = vpack.c.bf16 %v4191, %v4190
        %v4222 = vpack.c.bf16 %v4193, %v4192
        %v4223 = vpack.c.bf16 %v4195, %v4194
        %v4224 = vpack.c.bf16 %v4197, %v4196
        %v4225 = vpack.c.bf16 %v4199, %v4198
        %v4226 = vpack.c.bf16 %v4201, %v4200
        %v4227 = vpack.c.bf16 %v4203, %v4202
        %v4228 = vpack.c.bf16 %v4205, %v4204
        %v4229 = vpack.c.bf16 %v4207, %v4206
        %v4230 = vpack.c.bf16 %v4209, %v4208
        %v4231 = vpack.c.bf16 %v4211, %v4210
        %v4232 = vpack.c.bf16 %v4213, %v4212
        %v4233 = vpack.c.bf16 %v4215, %v4214
        %4234 = vst [vmem:[#allocation4 + $0x38] sm:$0xff] %v4216
        %4235 = vst [vmem:[#allocation4 + $0x80] sm:$0xff] %v4217
        %4236 = vst [vmem:[#allocation4 + $0xc8] sm:$0xff] %v4218
        %4237 = vst [vmem:[#allocation4 + $0x110] sm:$0xff] %v4219
        %4238 = vst [vmem:[#allocation4 + $0x158] sm:$0xff] %v4220
        %4239 = vst [vmem:[#allocation4 + $0x1a0] sm:$0xff] %v4221
        %4240 = vst [vmem:[#allocation4 + $0x1e8] sm:$0xff] %v4222
        %4241 = vst [vmem:[#allocation4 + $0x230] sm:$0xff] %v4223
        %4242 = vst [vmem:[#allocation4 + $0x278] sm:$0xff] %v4224
        %4243 = vst [vmem:[#allocation4 + $0x2c0] sm:$0xff] %v4225
        %4244 = vst [vmem:[#allocation4 + $0x308] sm:$0xff] %v4226
        %4245 = vst [vmem:[#allocation4 + $0x350] sm:$0xff] %v4227
        %4246 = vst [vmem:[#allocation4 + $0x398] sm:$0xff] %v4228
        %4247 = vst [vmem:[#allocation4 + $0x3e0] sm:$0xff] %v4229
        %4248 = vst [vmem:[#allocation4 + $0x428] sm:$0xff] %v4230
        %4249 = vst [vmem:[#allocation4 + $0x470] sm:$0xff] %v4231
        %4250 = vst [vmem:[#allocation4 + $0x4b8] sm:$0xff] %v4232
        %4251 = vst [vmem:[#allocation4 + $0x500] sm:$0xff] %v4233
        %v4252 = vld [vmem:[#allocation3 + $0x2b] sm:$0xff]
        %v4253 = vld [vmem:[#allocation3 + $0x33] sm:$0xff]
        %v4254 = vld [vmem:[#allocation3 + $0x3b] sm:$0xff]
        %v4255 = vld [vmem:[#allocation3 + $0x43] sm:$0xff]
        %v4256 = vld [vmem:[#allocation3 + $0x4b] sm:$0xff]
        %v4257 = vld [vmem:[#allocation3 + $0x53] sm:$0xff]
        %v4258 = vld [vmem:[#allocation3 + $0x5b] sm:$0xff]
        %v4259 = vld [vmem:[#allocation3 + $0x63] sm:$0xff]
        %v4260 = vld [vmem:[#allocation3 + $0x6b] sm:$0xff]
        %v4261 = vld [vmem:[#allocation3 + $0x73] sm:$0xff]
        %v4262 = vld [vmem:[#allocation3 + $0x7b] sm:$0xff]
        %v4263 = vld [vmem:[#allocation3 + $0x83] sm:$0xff]
        %v4264 = vld [vmem:[#allocation3 + $0x8b] sm:$0xff]
        %v4265 = vld [vmem:[#allocation3 + $0x93] sm:$0xff]
        %v4266 = vld [vmem:[#allocation3 + $0x9b] sm:$0xff]
        %v4267 = vld [vmem:[#allocation3 + $0xa3] sm:$0xff]
        %v4268 = vld [vmem:[#allocation3 + $0xab] sm:$0xff]
        %v4269 = vld [vmem:[#allocation3 + $0xb3] sm:$0xff]
        %v4270 = vld [vmem:[#allocation3 + $0xbb] sm:$0xff]
        %v4271 = vld [vmem:[#allocation3 + $0xc3] sm:$0xff]
        %v4272 = vld [vmem:[#allocation3 + $0xcb] sm:$0xff]
        %v4273 = vld [vmem:[#allocation3 + $0xd3] sm:$0xff]
        %v4274 = vld [vmem:[#allocation3 + $0xdb] sm:$0xff]
        %v4275 = vld [vmem:[#allocation3 + $0xe3] sm:$0xff]
        %v4276 = vld [vmem:[#allocation3 + $0xeb] sm:$0xff]
        %v4277 = vld [vmem:[#allocation3 + $0xf3] sm:$0xff]
        %v4278 = vld [vmem:[#allocation3 + $0xfb] sm:$0xff]
        %v4279 = vld [vmem:[#allocation3 + $0x103] sm:$0xff]
        %v4280 = vld [vmem:[#allocation3 + $0x10b] sm:$0xff]
        %v4281 = vld [vmem:[#allocation3 + $0x113] sm:$0xff]
        %v4282 = vld [vmem:[#allocation3 + $0x11b] sm:$0xff]
        %v4283 = vld [vmem:[#allocation3 + $0x123] sm:$0xff]
        %v4284 = vld [vmem:[#allocation3 + $0x12b] sm:$0xff]
        %v4285 = vld [vmem:[#allocation3 + $0x133] sm:$0xff]
        %v4286 = vld [vmem:[#allocation3 + $0x13b] sm:$0xff]
        %v4287 = vld [vmem:[#allocation3 + $0x143] sm:$0xff]
        %v4288 = vpack.c.bf16 %v4253, %v4252
        %v4289 = vpack.c.bf16 %v4255, %v4254
        %v4290 = vpack.c.bf16 %v4257, %v4256
        %v4291 = vpack.c.bf16 %v4259, %v4258
        %v4292 = vpack.c.bf16 %v4261, %v4260
        %v4293 = vpack.c.bf16 %v4263, %v4262
        %v4294 = vpack.c.bf16 %v4265, %v4264
        %v4295 = vpack.c.bf16 %v4267, %v4266
        %v4296 = vpack.c.bf16 %v4269, %v4268
        %v4297 = vpack.c.bf16 %v4271, %v4270
        %v4298 = vpack.c.bf16 %v4273, %v4272
        %v4299 = vpack.c.bf16 %v4275, %v4274
        %v4300 = vpack.c.bf16 %v4277, %v4276
        %v4301 = vpack.c.bf16 %v4279, %v4278
        %v4302 = vpack.c.bf16 %v4281, %v4280
        %v4303 = vpack.c.bf16 %v4283, %v4282
        %v4304 = vpack.c.bf16 %v4285, %v4284
        %v4305 = vpack.c.bf16 %v4287, %v4286
        %4306 = vst [vmem:[#allocation4 + $0x40] sm:$0xff] %v4288
        %4307 = vst [vmem:[#allocation4 + $0x88] sm:$0xff] %v4289
        %4308 = vst [vmem:[#allocation4 + $0xd0] sm:$0xff] %v4290
        %4309 = vst [vmem:[#allocation4 + $0x118] sm:$0xff] %v4291
        %4310 = vst [vmem:[#allocation4 + $0x160] sm:$0xff] %v4292
        %4311 = vst [vmem:[#allocation4 + $0x1a8] sm:$0xff] %v4293
        %4312 = vst [vmem:[#allocation4 + $0x1f0] sm:$0xff] %v4294
        %4313 = vst [vmem:[#allocation4 + $0x238] sm:$0xff] %v4295
        %4314 = vst [vmem:[#allocation4 + $0x280] sm:$0xff] %v4296
        %4315 = vst [vmem:[#allocation4 + $0x2c8] sm:$0xff] %v4297
        %4316 = vst [vmem:[#allocation4 + $0x310] sm:$0xff] %v4298
        %4317 = vst [vmem:[#allocation4 + $0x358] sm:$0xff] %v4299
        %4318 = vst [vmem:[#allocation4 + $0x3a0] sm:$0xff] %v4300
        %4319 = vst [vmem:[#allocation4 + $0x3e8] sm:$0xff] %v4301
        %4320 = vst [vmem:[#allocation4 + $0x430] sm:$0xff] %v4302
        %4321 = vst [vmem:[#allocation4 + $0x478] sm:$0xff] %v4303
        %4322 = vst [vmem:[#allocation4 + $0x4c0] sm:$0xff] %v4304
        %4323 = vst [vmem:[#allocation4 + $0x508] sm:$0xff] %v4305
        %v4324 = vld [vmem:[#allocation4] sm:$0xff]
        %v4325 = vld [vmem:[#allocation4 + $0x8] sm:$0xff]
        %v4326 = vld [vmem:[#allocation4 + $0x10] sm:$0xff]
        %v4327 = vld [vmem:[#allocation4 + $0x18] sm:$0xff]
        %v4328 = vld [vmem:[#allocation4 + $0x20] sm:$0xff]
        %v4329 = vld [vmem:[#allocation4 + $0x28] sm:$0xff]
        %v4330 = vld [vmem:[#allocation4 + $0x30] sm:$0xff]
        %v4331 = vld [vmem:[#allocation4 + $0x38] sm:$0xff]
        %v4332 = vld [vmem:[#allocation4 + $0x40] sm:$0xff]
        %v4333 = vld [vmem:[#allocation4 + $0x48] sm:$0xff]
        %v4334 = vld [vmem:[#allocation4 + $0x50] sm:$0xff]
        %v4335 = vld [vmem:[#allocation4 + $0x58] sm:$0xff]
        %v4336 = vld [vmem:[#allocation4 + $0x60] sm:$0xff]
        %v4337 = vld [vmem:[#allocation4 + $0x68] sm:$0xff]
        %v4338 = vld [vmem:[#allocation4 + $0x70] sm:$0xff]
        %v4339 = vld [vmem:[#allocation4 + $0x78] sm:$0xff]
        %v4340 = vld [vmem:[#allocation4 + $0x80] sm:$0xff]
        %v4341 = vld [vmem:[#allocation4 + $0x88] sm:$0xff]
        %v4342 = vld [vmem:[#allocation4 + $0x90] sm:$0xff]
        %v4343 = vld [vmem:[#allocation4 + $0x98] sm:$0xff]
        %v4344 = vld [vmem:[#allocation4 + $0xa0] sm:$0xff]
        %v4345 = vld [vmem:[#allocation4 + $0xa8] sm:$0xff]
        %v4346 = vld [vmem:[#allocation4 + $0xb0] sm:$0xff]
        %v4347 = vld [vmem:[#allocation4 + $0xb8] sm:$0xff]
        %v4348 = vld [vmem:[#allocation4 + $0xc0] sm:$0xff]
        %v4349 = vld [vmem:[#allocation4 + $0xc8] sm:$0xff]
        %v4350 = vld [vmem:[#allocation4 + $0xd0] sm:$0xff]
        %v4351 = vld [vmem:[#allocation4 + $0xd8] sm:$0xff]
        %v4352 = vld [vmem:[#allocation4 + $0xe0] sm:$0xff]
        %v4353 = vld [vmem:[#allocation4 + $0xe8] sm:$0xff]
        %v4354 = vld [vmem:[#allocation4 + $0xf0] sm:$0xff]
        %v4355 = vld [vmem:[#allocation4 + $0xf8] sm:$0xff]
        %v4356 = vld [vmem:[#allocation4 + $0x100] sm:$0xff]
        %v4357 = vld [vmem:[#allocation4 + $0x108] sm:$0xff]
        %v4358 = vld [vmem:[#allocation4 + $0x110] sm:$0xff]
        %v4359 = vld [vmem:[#allocation4 + $0x118] sm:$0xff]
        %v4360 = vld [vmem:[#allocation4 + $0x120] sm:$0xff]
        %v4361 = vld [vmem:[#allocation4 + $0x128] sm:$0xff]
        %v4362 = vld [vmem:[#allocation4 + $0x130] sm:$0xff]
        %v4363 = vld [vmem:[#allocation4 + $0x138] sm:$0xff]
        %v4364 = vld [vmem:[#allocation4 + $0x140] sm:$0xff]
        %v4365 = vld [vmem:[#allocation4 + $0x148] sm:$0xff]
        %v4366 = vld [vmem:[#allocation4 + $0x150] sm:$0xff]
        %v4367 = vld [vmem:[#allocation4 + $0x158] sm:$0xff]
        %v4368 = vld [vmem:[#allocation4 + $0x160] sm:$0xff]
        %v4369 = vld [vmem:[#allocation4 + $0x168] sm:$0xff]
        %v4370 = vld [vmem:[#allocation4 + $0x170] sm:$0xff]
        %v4371 = vld [vmem:[#allocation4 + $0x178] sm:$0xff]
        %v4372 = vld [vmem:[#allocation4 + $0x180] sm:$0xff]
        %v4373 = vld [vmem:[#allocation4 + $0x188] sm:$0xff]
        %v4374 = vld [vmem:[#allocation4 + $0x190] sm:$0xff]
        %v4375 = vld [vmem:[#allocation4 + $0x198] sm:$0xff]
        %v4376 = vld [vmem:[#allocation4 + $0x1a0] sm:$0xff]
        %v4377 = vld [vmem:[#allocation4 + $0x1a8] sm:$0xff]
        %v4378 = vld [vmem:[#allocation4 + $0x1b0] sm:$0xff]
        %v4379 = vld [vmem:[#allocation4 + $0x1b8] sm:$0xff]
        %v4380 = vld [vmem:[#allocation4 + $0x1c0] sm:$0xff]
        %v4381 = vld [vmem:[#allocation4 + $0x1c8] sm:$0xff]
        %v4382 = vld [vmem:[#allocation4 + $0x1d0] sm:$0xff]
        %v4383 = vld [vmem:[#allocation4 + $0x1d8] sm:$0xff]
        %v4384 = vld [vmem:[#allocation4 + $0x1e0] sm:$0xff]
        %v4385 = vld [vmem:[#allocation4 + $0x1e8] sm:$0xff]
        %v4386 = vld [vmem:[#allocation4 + $0x1f0] sm:$0xff]
        %v4387 = vld [vmem:[#allocation4 + $0x1f8] sm:$0xff]
        %v4388 = vld [vmem:[#allocation4 + $0x200] sm:$0xff]
        %v4389 = vld [vmem:[#allocation4 + $0x208] sm:$0xff]
        %v4390 = vld [vmem:[#allocation4 + $0x210] sm:$0xff]
        %v4391 = vld [vmem:[#allocation4 + $0x218] sm:$0xff]
        %v4392 = vld [vmem:[#allocation4 + $0x220] sm:$0xff]
        %v4393 = vld [vmem:[#allocation4 + $0x228] sm:$0xff]
        %v4394 = vld [vmem:[#allocation4 + $0x230] sm:$0xff]
        %v4395 = vld [vmem:[#allocation4 + $0x238] sm:$0xff]
        %v4396 = vld [vmem:[#allocation4 + $0x240] sm:$0xff]
        %v4397 = vld [vmem:[#allocation4 + $0x248] sm:$0xff]
        %v4398 = vld [vmem:[#allocation4 + $0x250] sm:$0xff]
        %v4399 = vld [vmem:[#allocation4 + $0x258] sm:$0xff]
        %v4400 = vld [vmem:[#allocation4 + $0x260] sm:$0xff]
        %v4401 = vld [vmem:[#allocation4 + $0x268] sm:$0xff]
        %v4402 = vld [vmem:[#allocation4 + $0x270] sm:$0xff]
        %v4403 = vld [vmem:[#allocation4 + $0x278] sm:$0xff]
        %v4404 = vld [vmem:[#allocation4 + $0x280] sm:$0xff]
        %v4405 = vld [vmem:[#allocation4 + $0x288] sm:$0xff]
        %v4406 = vld [vmem:[#allocation4 + $0x290] sm:$0xff]
        %v4407 = vld [vmem:[#allocation4 + $0x298] sm:$0xff]
        %v4408 = vld [vmem:[#allocation4 + $0x2a0] sm:$0xff]
        %v4409 = vld [vmem:[#allocation4 + $0x2a8] sm:$0xff]
        %v4410 = vld [vmem:[#allocation4 + $0x2b0] sm:$0xff]
        %v4411 = vld [vmem:[#allocation4 + $0x2b8] sm:$0xff]
        %v4412 = vld [vmem:[#allocation4 + $0x2c0] sm:$0xff]
        %v4413 = vld [vmem:[#allocation4 + $0x2c8] sm:$0xff]
        %v4414 = vld [vmem:[#allocation4 + $0x2d0] sm:$0xff]
        %v4415 = vld [vmem:[#allocation4 + $0x2d8] sm:$0xff]
        %v4416 = vld [vmem:[#allocation4 + $0x2e0] sm:$0xff]
        %v4417 = vld [vmem:[#allocation4 + $0x2e8] sm:$0xff]
        %v4418 = vld [vmem:[#allocation4 + $0x2f0] sm:$0xff]
        %v4419 = vld [vmem:[#allocation4 + $0x2f8] sm:$0xff]
        %v4420 = vld [vmem:[#allocation4 + $0x300] sm:$0xff]
        %v4421 = vld [vmem:[#allocation4 + $0x308] sm:$0xff]
        %v4422 = vld [vmem:[#allocation4 + $0x310] sm:$0xff]
        %v4423 = vld [vmem:[#allocation4 + $0x318] sm:$0xff]
        %v4424 = vld [vmem:[#allocation4 + $0x320] sm:$0xff]
        %v4425 = vld [vmem:[#allocation4 + $0x328] sm:$0xff]
        %v4426 = vld [vmem:[#allocation4 + $0x330] sm:$0xff]
        %v4427 = vld [vmem:[#allocation4 + $0x338] sm:$0xff]
        %v4428 = vld [vmem:[#allocation4 + $0x340] sm:$0xff]
        %v4429 = vld [vmem:[#allocation4 + $0x348] sm:$0xff]
        %v4430 = vld [vmem:[#allocation4 + $0x350] sm:$0xff]
        %v4431 = vld [vmem:[#allocation4 + $0x358] sm:$0xff]
        %v4432 = vld [vmem:[#allocation4 + $0x360] sm:$0xff]
        %v4433 = vld [vmem:[#allocation4 + $0x368] sm:$0xff]
        %v4434 = vld [vmem:[#allocation4 + $0x370] sm:$0xff]
        %v4435 = vld [vmem:[#allocation4 + $0x378] sm:$0xff]
        %v4436 = vld [vmem:[#allocation4 + $0x380] sm:$0xff]
        %v4437 = vld [vmem:[#allocation4 + $0x388] sm:$0xff]
        %v4438 = vld [vmem:[#allocation4 + $0x390] sm:$0xff]
        %v4439 = vld [vmem:[#allocation4 + $0x398] sm:$0xff]
        %v4440 = vld [vmem:[#allocation4 + $0x3a0] sm:$0xff]
        %v4441 = vld [vmem:[#allocation4 + $0x3a8] sm:$0xff]
        %v4442 = vld [vmem:[#allocation4 + $0x3b0] sm:$0xff]
        %v4443 = vld [vmem:[#allocation4 + $0x3b8] sm:$0xff]
        %v4444 = vld [vmem:[#allocation4 + $0x3c0] sm:$0xff]
        %v4445 = vld [vmem:[#allocation4 + $0x3c8] sm:$0xff]
        %v4446 = vld [vmem:[#allocation4 + $0x3d0] sm:$0xff]
        %v4447 = vld [vmem:[#allocation4 + $0x3d8] sm:$0xff]
        %v4448 = vld [vmem:[#allocation4 + $0x3e0] sm:$0xff]
        %v4449 = vld [vmem:[#allocation4 + $0x3e8] sm:$0xff]
        %v4450 = vld [vmem:[#allocation4 + $0x3f0] sm:$0xff]
        %v4451 = vld [vmem:[#allocation4 + $0x3f8] sm:$0xff]
        %v4452 = vld [vmem:[#allocation4 + $0x400] sm:$0xff]
        %v4453 = vld [vmem:[#allocation4 + $0x408] sm:$0xff]
        %v4454 = vld [vmem:[#allocation4 + $0x410] sm:$0xff]
        %v4455 = vld [vmem:[#allocation4 + $0x418] sm:$0xff]
        %v4456 = vld [vmem:[#allocation4 + $0x420] sm:$0xff]
        %v4457 = vld [vmem:[#allocation4 + $0x428] sm:$0xff]
        %v4458 = vld [vmem:[#allocation4 + $0x430] sm:$0xff]
        %v4459 = vld [vmem:[#allocation4 + $0x438] sm:$0xff]
        %v4460 = vld [vmem:[#allocation4 + $0x440] sm:$0xff]
        %v4461 = vld [vmem:[#allocation4 + $0x448] sm:$0xff]
        %v4462 = vld [vmem:[#allocation4 + $0x450] sm:$0xff]
        %v4463 = vld [vmem:[#allocation4 + $0x458] sm:$0xff]
        %v4464 = vld [vmem:[#allocation4 + $0x460] sm:$0xff]
        %v4465 = vld [vmem:[#allocation4 + $0x468] sm:$0xff]
        %v4466 = vld [vmem:[#allocation4 + $0x470] sm:$0xff]
        %v4467 = vld [vmem:[#allocation4 + $0x478] sm:$0xff]
        %v4468 = vld [vmem:[#allocation4 + $0x480] sm:$0xff]
        %v4469 = vld [vmem:[#allocation4 + $0x488] sm:$0xff]
        %v4470 = vld [vmem:[#allocation4 + $0x490] sm:$0xff]
        %v4471 = vld [vmem:[#allocation4 + $0x498] sm:$0xff]
        %v4472 = vld [vmem:[#allocation4 + $0x4a0] sm:$0xff]
        %v4473 = vld [vmem:[#allocation4 + $0x4a8] sm:$0xff]
        %v4474 = vld [vmem:[#allocation4 + $0x4b0] sm:$0xff]
        %v4475 = vld [vmem:[#allocation4 + $0x4b8] sm:$0xff]
        %v4476 = vld [vmem:[#allocation4 + $0x4c0] sm:$0xff]
        %v4477 = vld [vmem:[#allocation4 + $0x4c8] sm:$0xff]
        %v4478 = vld [vmem:[#allocation4 + $0x4d0] sm:$0xff]
        %v4479 = vld [vmem:[#allocation4 + $0x4d8] sm:$0xff]
        %v4480 = vld [vmem:[#allocation4 + $0x4e0] sm:$0xff]
        %v4481 = vld [vmem:[#allocation4 + $0x4e8] sm:$0xff]
        %v4482 = vld [vmem:[#allocation4 + $0x4f0] sm:$0xff]
        %v4483 = vld [vmem:[#allocation4 + $0x4f8] sm:$0xff]
        %v4484 = vld [vmem:[#allocation4 + $0x500] sm:$0xff]
        %v4485 = vld [vmem:[#allocation4 + $0x508] sm:$0xff]
        %v4486 = vld [vmem:[#allocation7] sm:$0xf]
        %v4487 = vld [vmem:[#allocation7 + $0x4] sm:$0xf]
        %v4488 = vld [vmem:[#allocation7 + $0x8] sm:$0xf]
        %v4489 = vld [vmem:[#allocation7 + $0xc] sm:$0xf]
        %v4490 = vld [vmem:[#allocation7 + $0x10] sm:$0xf]
        %v4491 = vld [vmem:[#allocation7 + $0x14] sm:$0xf]
        %v4492 = vld [vmem:[#allocation7 + $0x18] sm:$0xf]
        %v4493 = vld [vmem:[#allocation7 + $0x1c] sm:$0xf]
        %v4494 = vld [vmem:[#allocation7 + $0x20] sm:$0xf]
        %v4495 = vld [vmem:[#allocation7 + $0x24] sm:$0xf]
        %v4496 = vld [vmem:[#allocation7 + $0x28] sm:$0xf]
        %v4497 = vld [vmem:[#allocation7 + $0x2c] sm:$0xf]
        %v4498 = vld [vmem:[#allocation7 + $0x30] sm:$0xf]
        %v4499 = vld [vmem:[#allocation7 + $0x34] sm:$0xf]
        %v4500 = vld [vmem:[#allocation7 + $0x38] sm:$0xf]
        %v4501 = vld [vmem:[#allocation7 + $0x3c] sm:$0xf]
        %v4502 = vld [vmem:[#allocation7 + $0x40] sm:$0xf]
        %v4503 = vld [vmem:[#allocation7 + $0x44] sm:$0xf]
        %v4504 = vld [vmem:[#allocation7 + $0x48] sm:$0xf]
        %v4505 = vld [vmem:[#allocation7 + $0x4c] sm:$0xf]
        %v4506 = vld [vmem:[#allocation7 + $0x50] sm:$0xf]
        %v4507 = vld [vmem:[#allocation7 + $0x54] sm:$0xf]
        %v4508 = vld [vmem:[#allocation7 + $0x58] sm:$0xf]
        %v4509 = vld [vmem:[#allocation7 + $0x5c] sm:$0xf]
        %v4510 = vld [vmem:[#allocation7 + $0x60] sm:$0xf]
        %v4511 = vld [vmem:[#allocation7 + $0x64] sm:$0xf]
        %v4512 = vld [vmem:[#allocation7 + $0x68] sm:$0xf]
        %v4513 = vld [vmem:[#allocation7 + $0x6c] sm:$0xf]
        %v4514 = vld [vmem:[#allocation7 + $0x70] sm:$0xf]
        %v4515 = vld [vmem:[#allocation7 + $0x74] sm:$0xf]
        %v4516 = vld [vmem:[#allocation7 + $0x78] sm:$0xf]
        %v4517 = vld [vmem:[#allocation7 + $0x7c] sm:$0xf]
        %v4518 = vld [vmem:[#allocation7 + $0x80] sm:$0xf]
        %v4519 = vld [vmem:[#allocation7 + $0x84] sm:$0xf]
        %v4520 = vld [vmem:[#allocation7 + $0x88] sm:$0xf]
        %v4521 = vld [vmem:[#allocation7 + $0x8c] sm:$0xf]
        %v4522 = vld [vmem:[#allocation7 + $0x90] sm:$0xf]
        %v4523 = vld [vmem:[#allocation7 + $0x94] sm:$0xf]
        %v4524 = vld [vmem:[#allocation7 + $0x98] sm:$0xf]
        %v4525 = vld [vmem:[#allocation7 + $0x9c] sm:$0xf]
        %v4526 = vld [vmem:[#allocation7 + $0xa0] sm:$0xf]
        %v4527 = vld [vmem:[#allocation7 + $0xa4] sm:$0xf]
        %v4528 = vld [vmem:[#allocation7 + $0xa8] sm:$0xf]
        %v4529 = vld [vmem:[#allocation7 + $0xac] sm:$0xf]
        %v4530 = vld [vmem:[#allocation7 + $0xb0] sm:$0xf]
        %v4531 = vld [vmem:[#allocation7 + $0xb4] sm:$0xf]
        %v4532 = vld [vmem:[#allocation7 + $0xb8] sm:$0xf]
        %v4533 = vld [vmem:[#allocation7 + $0xbc] sm:$0xf]
        %v4534 = vld [vmem:[#allocation7 + $0xc0] sm:$0xf]
        %v4535 = vld [vmem:[#allocation7 + $0xc4] sm:$0xf]
        %v4536 = vld [vmem:[#allocation7 + $0xc8] sm:$0xf]
        %v4537 = vld [vmem:[#allocation7 + $0xcc] sm:$0xf]
        %v4538 = vld [vmem:[#allocation7 + $0xd0] sm:$0xf]
        %v4539 = vld [vmem:[#allocation7 + $0xd4] sm:$0xf]
        %v4540 = vld [vmem:[#allocation7 + $0xd8] sm:$0xf]
        %v4541 = vld [vmem:[#allocation7 + $0xdc] sm:$0xf]
        %v4542 = vld [vmem:[#allocation7 + $0xe0] sm:$0xf]
        %v4543 = vld [vmem:[#allocation7 + $0xe4] sm:$0xf]
        %v4544 = vld [vmem:[#allocation7 + $0xe8] sm:$0xf]
        %v4545 = vld [vmem:[#allocation7 + $0xec] sm:$0xf]
        %v4546 = vld [vmem:[#allocation7 + $0xf0] sm:$0xf]
        %v4547 = vld [vmem:[#allocation7 + $0xf4] sm:$0xf]
        %v4548 = vld [vmem:[#allocation7 + $0xf8] sm:$0xf]
        %v4549 = vld [vmem:[#allocation7 + $0xfc] sm:$0xf]
        %v4550 = vld [vmem:[#allocation7 + $0x100] sm:$0xf]
        %v4551 = vld [vmem:[#allocation7 + $0x104] sm:$0xf]
        %v4552 = vld [vmem:[#allocation7 + $0x108] sm:$0xf]
        %v4553 = vld [vmem:[#allocation7 + $0x10c] sm:$0xf]
        %v4554 = vld [vmem:[#allocation7 + $0x110] sm:$0xf]
        %v4555 = vld [vmem:[#allocation7 + $0x114] sm:$0xf]
        %v4556 = vld [vmem:[#allocation7 + $0x118] sm:$0xf]
        %v4557 = vld [vmem:[#allocation7 + $0x11c] sm:$0xf]
        %v4558 = vld [vmem:[#allocation7 + $0x120] sm:$0xf]
        %v4559 = vld [vmem:[#allocation7 + $0x124] sm:$0xf]
        %v4560 = vld [vmem:[#allocation7 + $0x128] sm:$0xf]
        %v4561 = vld [vmem:[#allocation7 + $0x12c] sm:$0xf]
        %v4562 = vld [vmem:[#allocation7 + $0x130] sm:$0xf]
        %v4563 = vld [vmem:[#allocation7 + $0x134] sm:$0xf]
        %v4564 = vld [vmem:[#allocation7 + $0x138] sm:$0xf]
        %v4565 = vld [vmem:[#allocation7 + $0x13c] sm:$0xf]
        %v4566 = vld [vmem:[#allocation7 + $0x140] sm:$0xf]
        %v4567 = vld [vmem:[#allocation7 + $0x144] sm:$0xf]
        %v4568 = vld [vmem:[#allocation7 + $0x148] sm:$0xf]
        %v4569 = vld [vmem:[#allocation7 + $0x14c] sm:$0xf]
        %v4570 = vld [vmem:[#allocation7 + $0x150] sm:$0xf]
        %v4571 = vld [vmem:[#allocation7 + $0x154] sm:$0xf]
        %v4572 = vld [vmem:[#allocation7 + $0x158] sm:$0xf]
        %v4573 = vld [vmem:[#allocation7 + $0x15c] sm:$0xf]
        %v4574 = vld [vmem:[#allocation7 + $0x160] sm:$0xf]
        %v4575 = vld [vmem:[#allocation7 + $0x164] sm:$0xf]
        %v4576 = vld [vmem:[#allocation7 + $0x168] sm:$0xf]
        %v4577 = vld [vmem:[#allocation7 + $0x16c] sm:$0xf]
        %v4578 = vld [vmem:[#allocation7 + $0x170] sm:$0xf]
        %v4579 = vld [vmem:[#allocation7 + $0x174] sm:$0xf]
        %v4580 = vld [vmem:[#allocation7 + $0x178] sm:$0xf]
        %v4581 = vld [vmem:[#allocation7 + $0x17c] sm:$0xf]
        %v4582 = vld [vmem:[#allocation7 + $0x180] sm:$0xf]
        %v4583 = vld [vmem:[#allocation7 + $0x184] sm:$0xf]
        %v4584 = vld [vmem:[#allocation7 + $0x188] sm:$0xf]
        %v4585 = vld [vmem:[#allocation7 + $0x18c] sm:$0xf]
        %v4586 = vld [vmem:[#allocation7 + $0x190] sm:$0xf]
        %v4587 = vld [vmem:[#allocation7 + $0x194] sm:$0xf]
        %v4588 = vld [vmem:[#allocation7 + $0x198] sm:$0xf]
        %v4589 = vld [vmem:[#allocation7 + $0x19c] sm:$0xf]
        %v4590 = vld [vmem:[#allocation7 + $0x1a0] sm:$0xf]
        %v4591 = vld [vmem:[#allocation7 + $0x1a4] sm:$0xf]
        %v4592 = vld [vmem:[#allocation7 + $0x1a8] sm:$0xf]
        %v4593 = vld [vmem:[#allocation7 + $0x1ac] sm:$0xf]
        %v4594 = vld [vmem:[#allocation7 + $0x1b0] sm:$0xf]
        %v4595 = vld [vmem:[#allocation7 + $0x1b4] sm:$0xf]
        %v4596 = vld [vmem:[#allocation7 + $0x1b8] sm:$0xf]
        %v4597 = vld [vmem:[#allocation7 + $0x1bc] sm:$0xf]
        %v4598 = vld [vmem:[#allocation7 + $0x1c0] sm:$0xf]
        %v4599 = vld [vmem:[#allocation7 + $0x1c4] sm:$0xf]
        %v4600 = vld [vmem:[#allocation7 + $0x1c8] sm:$0xf]
        %v4601 = vld [vmem:[#allocation7 + $0x1cc] sm:$0xf]
        %v4602 = vld [vmem:[#allocation7 + $0x1d0] sm:$0xf]
        %v4603 = vld [vmem:[#allocation7 + $0x1d4] sm:$0xf]
        %v4604 = vld [vmem:[#allocation7 + $0x1d8] sm:$0xf]
        %v4605 = vld [vmem:[#allocation7 + $0x1dc] sm:$0xf]
        %v4606 = vld [vmem:[#allocation7 + $0x1e0] sm:$0xf]
        %v4607 = vld [vmem:[#allocation7 + $0x1e4] sm:$0xf]
        %v4608 = vld [vmem:[#allocation7 + $0x1e8] sm:$0xf]
        %v4609 = vld [vmem:[#allocation7 + $0x1ec] sm:$0xf]
        %v4610 = vld [vmem:[#allocation7 + $0x1f0] sm:$0xf]
        %v4611 = vld [vmem:[#allocation7 + $0x1f4] sm:$0xf]
        %v4612 = vld [vmem:[#allocation7 + $0x1f8] sm:$0xf]
        %v4613 = vld [vmem:[#allocation7 + $0x1fc] sm:$0xf]
        %v4614 = vld [vmem:[#allocation7 + $0x200] sm:$0xf]
        %v4615 = vld [vmem:[#allocation7 + $0x204] sm:$0xf]
        %v4616 = vld [vmem:[#allocation7 + $0x208] sm:$0xf]
        %v4617 = vld [vmem:[#allocation7 + $0x20c] sm:$0xf]
        %v4618 = vld [vmem:[#allocation7 + $0x210] sm:$0xf]
        %v4619 = vld [vmem:[#allocation7 + $0x214] sm:$0xf]
        %v4620 = vld [vmem:[#allocation7 + $0x218] sm:$0xf]
        %v4621 = vld [vmem:[#allocation7 + $0x21c] sm:$0xf]
        %v4622 = vld [vmem:[#allocation7 + $0x220] sm:$0xf]
        %v4623 = vld [vmem:[#allocation7 + $0x224] sm:$0xf]
        %v4624 = vld [vmem:[#allocation7 + $0x228] sm:$0xf]
        %v4625 = vld [vmem:[#allocation7 + $0x22c] sm:$0xf]
        %v4626 = vld [vmem:[#allocation7 + $0x230] sm:$0xf]
        %v4627 = vld [vmem:[#allocation7 + $0x234] sm:$0xf]
        %v4628 = vld [vmem:[#allocation7 + $0x238] sm:$0xf]
        %v4629 = vld [vmem:[#allocation7 + $0x23c] sm:$0xf]
        %v4774 = vunpack.c.l.b16 %v4486
        %v4775 = vunpack.c.l.b16 %v4487
        %v4776 = vunpack.c.l.b16 %v4488
        %v4777 = vunpack.c.l.b16 %v4489
        %v4778 = vunpack.c.l.b16 %v4490
        %v4779 = vunpack.c.l.b16 %v4491
        %v4780 = vunpack.c.l.b16 %v4492
        %v4781 = vunpack.c.l.b16 %v4493
        %v4782 = vunpack.c.l.b16 %v4494
        %v4783 = vunpack.c.l.b16 %v4495
        %v4784 = vunpack.c.l.b16 %v4496
        %v4785 = vunpack.c.l.b16 %v4497
        %v4786 = vunpack.c.l.b16 %v4498
        %v4787 = vunpack.c.l.b16 %v4499
        %v4788 = vunpack.c.l.b16 %v4500
        %v4789 = vunpack.c.l.b16 %v4501
        %v4790 = vunpack.c.l.b16 %v4502
        %v4791 = vunpack.c.l.b16 %v4503
        %v4792 = vunpack.c.l.b16 %v4504
        %v4793 = vunpack.c.l.b16 %v4505
        %v4794 = vunpack.c.l.b16 %v4506
        %v4795 = vunpack.c.l.b16 %v4507
        %v4796 = vunpack.c.l.b16 %v4508
        %v4797 = vunpack.c.l.b16 %v4509
        %v4798 = vunpack.c.l.b16 %v4510
        %v4799 = vunpack.c.l.b16 %v4511
        %v4800 = vunpack.c.l.b16 %v4512
        %v4801 = vunpack.c.l.b16 %v4513
        %v4802 = vunpack.c.l.b16 %v4514
        %v4803 = vunpack.c.l.b16 %v4515
        %v4804 = vunpack.c.l.b16 %v4516
        %v4805 = vunpack.c.l.b16 %v4517
        %v4806 = vunpack.c.l.b16 %v4518
        %v4807 = vunpack.c.l.b16 %v4519
        %v4808 = vunpack.c.l.b16 %v4520
        %v4809 = vunpack.c.l.b16 %v4521
        %v4810 = vunpack.c.l.b16 %v4522
        %v4811 = vunpack.c.l.b16 %v4523
        %v4812 = vunpack.c.l.b16 %v4524
        %v4813 = vunpack.c.l.b16 %v4525
        %v4814 = vunpack.c.l.b16 %v4526
        %v4815 = vunpack.c.l.b16 %v4527
        %v4816 = vunpack.c.l.b16 %v4528
        %v4817 = vunpack.c.l.b16 %v4529
        %v4818 = vunpack.c.l.b16 %v4530
        %v4819 = vunpack.c.l.b16 %v4531
        %v4820 = vunpack.c.l.b16 %v4532
        %v4821 = vunpack.c.l.b16 %v4533
        %v4822 = vunpack.c.l.b16 %v4534
        %v4823 = vunpack.c.l.b16 %v4535
        %v4824 = vunpack.c.l.b16 %v4536
        %v4825 = vunpack.c.l.b16 %v4537
        %v4826 = vunpack.c.l.b16 %v4538
        %v4827 = vunpack.c.l.b16 %v4539
        %v4828 = vunpack.c.l.b16 %v4540
        %v4829 = vunpack.c.l.b16 %v4541
        %v4830 = vunpack.c.l.b16 %v4542
        %v4831 = vunpack.c.l.b16 %v4543
        %v4832 = vunpack.c.l.b16 %v4544
        %v4833 = vunpack.c.l.b16 %v4545
        %v4834 = vunpack.c.l.b16 %v4546
        %v4835 = vunpack.c.l.b16 %v4547
        %v4836 = vunpack.c.l.b16 %v4548
        %v4837 = vunpack.c.l.b16 %v4549
        %v4838 = vunpack.c.l.b16 %v4550
        %v4839 = vunpack.c.l.b16 %v4551
        %v4840 = vunpack.c.l.b16 %v4552
        %v4841 = vunpack.c.l.b16 %v4553
        %v4842 = vunpack.c.l.b16 %v4554
        %v4843 = vunpack.c.l.b16 %v4555
        %v4844 = vunpack.c.l.b16 %v4556
        %v4845 = vunpack.c.l.b16 %v4557
        %v4846 = vunpack.c.l.b16 %v4558
        %v4847 = vunpack.c.l.b16 %v4559
        %v4848 = vunpack.c.l.b16 %v4560
        %v4849 = vunpack.c.l.b16 %v4561
        %v4850 = vunpack.c.l.b16 %v4562
        %v4851 = vunpack.c.l.b16 %v4563
        %v4852 = vunpack.c.l.b16 %v4564
        %v4853 = vunpack.c.l.b16 %v4565
        %v4854 = vunpack.c.l.b16 %v4566
        %v4855 = vunpack.c.l.b16 %v4567
        %v4856 = vunpack.c.l.b16 %v4568
        %v4857 = vunpack.c.l.b16 %v4569
        %v4858 = vunpack.c.l.b16 %v4570
        %v4859 = vunpack.c.l.b16 %v4571
        %v4860 = vunpack.c.l.b16 %v4572
        %v4861 = vunpack.c.l.b16 %v4573
        %v4862 = vunpack.c.l.b16 %v4574
        %v4863 = vunpack.c.l.b16 %v4575
        %v4864 = vunpack.c.l.b16 %v4576
        %v4865 = vunpack.c.l.b16 %v4577
        %v4866 = vunpack.c.l.b16 %v4578
        %v4867 = vunpack.c.l.b16 %v4579
        %v4868 = vunpack.c.l.b16 %v4580
        %v4869 = vunpack.c.l.b16 %v4581
        %v4870 = vunpack.c.l.b16 %v4582
        %v4871 = vunpack.c.l.b16 %v4583
        %v4872 = vunpack.c.l.b16 %v4584
        %v4873 = vunpack.c.l.b16 %v4585
        %v4874 = vunpack.c.l.b16 %v4586
        %v4875 = vunpack.c.l.b16 %v4587
        %v4876 = vunpack.c.l.b16 %v4588
        %v4877 = vunpack.c.l.b16 %v4589
        %v4878 = vunpack.c.l.b16 %v4590
        %v4879 = vunpack.c.l.b16 %v4591
        %v4880 = vunpack.c.l.b16 %v4592
        %v4881 = vunpack.c.l.b16 %v4593
        %v4882 = vunpack.c.l.b16 %v4594
        %v4883 = vunpack.c.l.b16 %v4595
        %v4884 = vunpack.c.l.b16 %v4596
        %v4885 = vunpack.c.l.b16 %v4597
        %v4886 = vunpack.c.l.b16 %v4598
        %v4887 = vunpack.c.l.b16 %v4599
        %v4888 = vunpack.c.l.b16 %v4600
        %v4889 = vunpack.c.l.b16 %v4601
        %v4890 = vunpack.c.l.b16 %v4602
        %v4891 = vunpack.c.l.b16 %v4603
        %v4892 = vunpack.c.l.b16 %v4604
        %v4893 = vunpack.c.l.b16 %v4605
        %v4894 = vunpack.c.l.b16 %v4606
        %v4895 = vunpack.c.l.b16 %v4607
        %v4896 = vunpack.c.l.b16 %v4608
        %v4897 = vunpack.c.l.b16 %v4609
        %v4898 = vunpack.c.l.b16 %v4610
        %v4899 = vunpack.c.l.b16 %v4611
        %v4900 = vunpack.c.l.b16 %v4612
        %v4901 = vunpack.c.l.b16 %v4613
        %v4902 = vunpack.c.l.b16 %v4614
        %v4903 = vunpack.c.l.b16 %v4615
        %v4904 = vunpack.c.l.b16 %v4616
        %v4905 = vunpack.c.l.b16 %v4617
        %v4906 = vunpack.c.l.b16 %v4618
        %v4907 = vunpack.c.l.b16 %v4619
        %v4908 = vunpack.c.l.b16 %v4620
        %v4909 = vunpack.c.l.b16 %v4621
        %v4910 = vunpack.c.l.b16 %v4622
        %v4911 = vunpack.c.l.b16 %v4623
        %v4912 = vunpack.c.l.b16 %v4624
        %v4913 = vunpack.c.l.b16 %v4625
        %v4914 = vunpack.c.l.b16 %v4626
        %v4915 = vunpack.c.l.b16 %v4627
        %v4916 = vunpack.c.l.b16 %v4628
        %v4917 = vunpack.c.l.b16 %v4629
        %v4918 = vpack.c.b16 %v4775, %v4774
        %v4919 = vpack.c.b16 %v4777, %v4776
        %v4920 = vpack.c.b16 %v4779, %v4778
        %v4921 = vpack.c.b16 %v4781, %v4780
        %v4922 = vpack.c.b16 %v4783, %v4782
        %v4923 = vpack.c.b16 %v4785, %v4784
        %v4924 = vpack.c.b16 %v4787, %v4786
        %v4925 = vpack.c.b16 %v4789, %v4788
        %v4926 = vpack.c.b16 %v4791, %v4790
        %v4927 = vpack.c.b16 %v4793, %v4792
        %v4928 = vpack.c.b16 %v4795, %v4794
        %v4929 = vpack.c.b16 %v4797, %v4796
        %v4930 = vpack.c.b16 %v4799, %v4798
        %v4931 = vpack.c.b16 %v4801, %v4800
        %v4932 = vpack.c.b16 %v4803, %v4802
        %v4933 = vpack.c.b16 %v4805, %v4804
        %v4934 = vpack.c.b16 %v4807, %v4806
        %v4935 = vpack.c.b16 %v4809, %v4808
        %v4936 = vpack.c.b16 %v4811, %v4810
        %v4937 = vpack.c.b16 %v4813, %v4812
        %v4938 = vpack.c.b16 %v4815, %v4814
        %v4939 = vpack.c.b16 %v4817, %v4816
        %v4940 = vpack.c.b16 %v4819, %v4818
        %v4941 = vpack.c.b16 %v4821, %v4820
        %v4942 = vpack.c.b16 %v4823, %v4822
        %v4943 = vpack.c.b16 %v4825, %v4824
        %v4944 = vpack.c.b16 %v4827, %v4826
        %v4945 = vpack.c.b16 %v4829, %v4828
        %v4946 = vpack.c.b16 %v4831, %v4830
        %v4947 = vpack.c.b16 %v4833, %v4832
        %v4948 = vpack.c.b16 %v4835, %v4834
        %v4949 = vpack.c.b16 %v4837, %v4836
        %v4950 = vpack.c.b16 %v4839, %v4838
        %v4951 = vpack.c.b16 %v4841, %v4840
        %v4952 = vpack.c.b16 %v4843, %v4842
        %v4953 = vpack.c.b16 %v4845, %v4844
        %v4954 = vpack.c.b16 %v4847, %v4846
        %v4955 = vpack.c.b16 %v4849, %v4848
        %v4956 = vpack.c.b16 %v4851, %v4850
        %v4957 = vpack.c.b16 %v4853, %v4852
        %v4958 = vpack.c.b16 %v4855, %v4854
        %v4959 = vpack.c.b16 %v4857, %v4856
        %v4960 = vpack.c.b16 %v4859, %v4858
        %v4961 = vpack.c.b16 %v4861, %v4860
        %v4962 = vpack.c.b16 %v4863, %v4862
        %v4963 = vpack.c.b16 %v4865, %v4864
        %v4964 = vpack.c.b16 %v4867, %v4866
        %v4965 = vpack.c.b16 %v4869, %v4868
        %v4966 = vpack.c.b16 %v4871, %v4870
        %v4967 = vpack.c.b16 %v4873, %v4872
        %v4968 = vpack.c.b16 %v4875, %v4874
        %v4969 = vpack.c.b16 %v4877, %v4876
        %v4970 = vpack.c.b16 %v4879, %v4878
        %v4971 = vpack.c.b16 %v4881, %v4880
        %v4972 = vpack.c.b16 %v4883, %v4882
        %v4973 = vpack.c.b16 %v4885, %v4884
        %v4974 = vpack.c.b16 %v4887, %v4886
        %v4975 = vpack.c.b16 %v4889, %v4888
        %v4976 = vpack.c.b16 %v4891, %v4890
        %v4977 = vpack.c.b16 %v4893, %v4892
        %v4978 = vpack.c.b16 %v4895, %v4894
        %v4979 = vpack.c.b16 %v4897, %v4896
        %v4980 = vpack.c.b16 %v4899, %v4898
        %v4981 = vpack.c.b16 %v4901, %v4900
        %v4982 = vpack.c.b16 %v4903, %v4902
        %v4983 = vpack.c.b16 %v4905, %v4904
        %v4984 = vpack.c.b16 %v4907, %v4906
        %v4985 = vpack.c.b16 %v4909, %v4908
        %v4986 = vpack.c.b16 %v4911, %v4910
        %v4987 = vpack.c.b16 %v4913, %v4912
        %v4988 = vpack.c.b16 %v4915, %v4914
        %v4989 = vpack.c.b16 %v4917, %v4916
        %5062 = vmatprep.subr.bf16.mxu0 0
        %5063 = vmatpush1.bf16.msra.mxu0 %v4918
        %5064 = vmatprep.subr.bf16.mxu0 0
        %5065 = vmatpush1.bf16.msra.mxu0 %v4919
        %5066 = vmatprep.subr.bf16.mxu0 0
        %5067 = vmatpush1.bf16.msra.mxu0 %v4920
        %5068 = vmatprep.subr.bf16.mxu0 0
        %5069 = vmatpush1.bf16.msra.mxu0 %v4921
        %5070 = vmatprep.subr.bf16.mxu0 0
        %5071 = vmatpush1.bf16.msra.mxu0 %v4922
        %5072 = vmatprep.subr.bf16.mxu0 0
        %5073 = vmatpush1.bf16.msra.mxu0 %v4923
        %5074 = vmatprep.subr.bf16.mxu0 0
        %5075 = vmatpush1.bf16.msra.mxu0 %v4924
        %5076 = vmatprep.subr.bf16.mxu0 0
        %5077 = vmatpush1.bf16.msra.mxu0 %v4925
        %5078 = vmatprep.subr.bf16.mxu0 0
        %5079 = vmatpush1.bf16.msra.mxu0 %v4926
        %5080 = vmatprep.subr.bf16.mxu0 0
        %5081 = vmatpush1.bf16.msra.mxu0 %v4927
        %5082 = vmatprep.subr.bf16.mxu0 0
        %5083 = vmatpush1.bf16.msra.mxu0 %v4928
        %5084 = vmatprep.subr.bf16.mxu0 0
        %5085 = vmatpush1.bf16.msra.mxu0 %v4929
        %5086 = vmatprep.subr.bf16.mxu0 0
        %5087 = vmatpush1.bf16.msra.mxu0 %v4930
        %5088 = vmatprep.subr.bf16.mxu0 0
        %5089 = vmatpush1.bf16.msra.mxu0 %v4931
        %5090 = vmatprep.subr.bf16.mxu0 0
        %5091 = vmatpush1.bf16.msra.mxu0 %v4932
        %5092 = vmatprep.subr.bf16.mxu0 0
        %5093 = vmatpush1.bf16.msra.mxu0 %v4933
        %5094 = vmatprep.mubr.bf16.mxu0 %v4325
        %5095 = vmatmul.mubr.bf16.gmra.mrb[0].mxu0 %v4324
        %v5096 = vpop.f32.mrb[0].mxu0
        %v5097 = vadd.f32 0.0, %v5096
        %v5098 = vpop.f32.mrb[0].mxu0
        %v5099 = vpop.f32.mrb[0].mxu0
        %v5100 = vadd.f32 0.0, %v5099
        %v5101 = vpop.f32.mrb[0].mxu0
        %5102 = vmatprep.mubr.bf16.mxu0 %v4334
        %5103 = vmatmul.mubr.bf16.gmra.mrb[0].mxu0 %v4333
        %v5104 = vpop.f32.mrb[0].mxu0
        %v5105 = vadd.f32 0.0, %v5104
        %v5106 = vpop.f32.mrb[0].mxu0
        %v5107 = vpop.f32.mrb[0].mxu0
        %v5108 = vadd.f32 0.0, %v5107
        %v5109 = vpop.f32.mrb[0].mxu0
        %5110 = vmatprep.mubr.bf16.mxu0 %v4343
        %5111 = vmatmul.mubr.bf16.gmra.mrb[0].mxu0 %v4342
        %v5112 = vpop.f32.mrb[0].mxu0
        %v5113 = vadd.f32 0.0, %v5112
        %v5114 = vpop.f32.mrb[0].mxu0
        %v5115 = vpop.f32.mrb[0].mxu0
        %v5116 = vadd.f32 0.0, %v5115
        %v5117 = vpop.f32.mrb[0].mxu0
        %5118 = vmatprep.mubr.bf16.mxu0 %v4352
        %5119 = vmatmul.mubr.bf16.gmra.mrb[0].mxu0 %v4351
        %v5120 = vpop.f32.mrb[0].mxu0
        %v5121 = vadd.f32 0.0, %v5120
        %v5122 = vpop.f32.mrb[0].mxu0
        %v5123 = vpop.f32.mrb[0].mxu0
        %v5124 = vadd.f32 0.0, %v5123
        %v5125 = vpop.f32.mrb[0].mxu0
        %5126 = vmatprep.mubr.bf16.mxu0 %v4361
        %5127 = vmatmul.mubr.bf16.gmra.mrb[0].mxu0 %v4360
        %v5128 = vpop.f32.mrb[0].mxu0
        %v5129 = vadd.f32 0.0, %v5128
        %v5130 = vpop.f32.mrb[0].mxu0
        %v5131 = vpop.f32.mrb[0].mxu0
        %v5132 = vadd.f32 0.0, %v5131
        %v5133 = vpop.f32.mrb[0].mxu0
        %5134 = vmatprep.mubr.bf16.mxu0 %v4370
        %5135 = vmatmul.mubr.bf16.gmra.mrb[0].mxu0 %v4369
        %v5136 = vpop.f32.mrb[0].mxu0
        %v5137 = vadd.f32 0.0, %v5136
        %v5138 = vpop.f32.mrb[0].mxu0
        %v5139 = vpop.f32.mrb[0].mxu0
        %v5140 = vadd.f32 0.0, %v5139
        %v5141 = vpop.f32.mrb[0].mxu0
        %5142 = vmatprep.mubr.bf16.mxu0 %v4379
        %5143 = vmatmul.mubr.bf16.gmra.mrb[0].mxu0 %v4378
        %v5144 = vpop.f32.mrb[0].mxu0
        %v5145 = vadd.f32 0.0, %v5144
        %v5146 = vpop.f32.mrb[0].mxu0
        %v5147 = vpop.f32.mrb[0].mxu0
        %v5148 = vadd.f32 0.0, %v5147
        %v5149 = vpop.f32.mrb[0].mxu0
        %5150 = vmatprep.mubr.bf16.mxu0 %v4388
        %5151 = vmatmul.mubr.bf16.gmra.mrb[0].mxu0 %v4387
        %v5152 = vpop.f32.mrb[0].mxu0
        %v5153 = vadd.f32 0.0, %v5152
        %v5154 = vpop.f32.mrb[0].mxu0
        %v5155 = vpop.f32.mrb[0].mxu0
        %v5156 = vadd.f32 0.0, %v5155
        %v5157 = vpop.f32.mrb[0].mxu0
        %5158 = vmatprep.mubr.bf16.mxu0 %v4397
        %5159 = vmatmul.mubr.bf16.gmra.mrb[0].mxu0 %v4396
        %v5160 = vpop.f32.mrb[0].mxu0
        %v5161 = vadd.f32 0.0, %v5160
        %v5162 = vpop.f32.mrb[0].mxu0
        %v5163 = vpop.f32.mrb[0].mxu0
        %v5164 = vadd.f32 0.0, %v5163
        %v5165 = vpop.f32.mrb[0].mxu0
        %5166 = vmatprep.mubr.bf16.mxu0 %v4406
        %5167 = vmatmul.mubr.bf16.gmra.mrb[0].mxu0 %v4405
        %v5168 = vpop.f32.mrb[0].mxu0
        %v5169 = vadd.f32 0.0, %v5168
        %v5170 = vpop.f32.mrb[0].mxu0
        %v5171 = vpop.f32.mrb[0].mxu0
        %v5172 = vadd.f32 0.0, %v5171
        %v5173 = vpop.f32.mrb[0].mxu0
        %5174 = vmatprep.mubr.bf16.mxu0 %v4415
        %5175 = vmatmul.mubr.bf16.gmra.mrb[0].mxu0 %v4414
        %v5176 = vpop.f32.mrb[0].mxu0
        %v5177 = vadd.f32 0.0, %v5176
        %v5178 = vpop.f32.mrb[0].mxu0
        %v5179 = vpop.f32.mrb[0].mxu0
        %v5180 = vadd.f32 0.0, %v5179
        %v5181 = vpop.f32.mrb[0].mxu0
        %5182 = vmatprep.mubr.bf16.mxu0 %v4424
        %5183 = vmatmul.mubr.bf16.gmra.mrb[0].mxu0 %v4423
        %v5184 = vpop.f32.mrb[0].mxu0
        %v5185 = vadd.f32 0.0, %v5184
        %v5186 = vpop.f32.mrb[0].mxu0
        %v5187 = vpop.f32.mrb[0].mxu0
        %v5188 = vadd.f32 0.0, %v5187
        %v5189 = vpop.f32.mrb[0].mxu0
        %5190 = vmatprep.mubr.bf16.mxu0 %v4433
        %5191 = vmatmul.mubr.bf16.gmra.mrb[0].mxu0 %v4432
        %v5192 = vpop.f32.mrb[0].mxu0
        %v5193 = vadd.f32 0.0, %v5192
        %v5194 = vpop.f32.mrb[0].mxu0
        %v5195 = vpop.f32.mrb[0].mxu0
        %v5196 = vadd.f32 0.0, %v5195
        %v5197 = vpop.f32.mrb[0].mxu0
        %5198 = vmatprep.mubr.bf16.mxu0 %v4442
        %5199 = vmatmul.mubr.bf16.gmra.mrb[0].mxu0 %v4441
        %v5200 = vpop.f32.mrb[0].mxu0
        %v5201 = vadd.f32 0.0, %v5200
        %v5202 = vpop.f32.mrb[0].mxu0
        %v5203 = vpop.f32.mrb[0].mxu0
        %v5204 = vadd.f32 0.0, %v5203
        %v5205 = vpop.f32.mrb[0].mxu0
        %5206 = vmatprep.mubr.bf16.mxu0 %v4451
        %5207 = vmatmul.mubr.bf16.gmra.mrb[0].mxu0 %v4450
        %v5208 = vpop.f32.mrb[0].mxu0
        %v5209 = vadd.f32 0.0, %v5208
        %v5210 = vpop.f32.mrb[0].mxu0
        %v5211 = vpop.f32.mrb[0].mxu0
        %v5212 = vadd.f32 0.0, %v5211
        %v5213 = vpop.f32.mrb[0].mxu0
        %5214 = vmatprep.mubr.bf16.mxu0 %v4460
        %5215 = vmatmul.mubr.bf16.gmra.mrb[0].mxu0 %v4459
        %v5216 = vpop.f32.mrb[0].mxu0
        %v5217 = vadd.f32 0.0, %v5216
        %v5218 = vpop.f32.mrb[0].mxu0
        %v5219 = vpop.f32.mrb[0].mxu0
        %v5220 = vadd.f32 0.0, %v5219
        %v5221 = vpop.f32.mrb[0].mxu0
        %5222 = vmatprep.mubr.bf16.mxu0 %v4469
        %5223 = vmatmul.mubr.bf16.gmra.mrb[0].mxu0 %v4468
        %v5224 = vpop.f32.mrb[0].mxu0
        %v5225 = vadd.f32 0.0, %v5224
        %v5226 = vpop.f32.mrb[0].mxu0
        %v5227 = vpop.f32.mrb[0].mxu0
        %v5228 = vadd.f32 0.0, %v5227
        %v5229 = vpop.f32.mrb[0].mxu0
        %5230 = vmatprep.mubr.bf16.mxu0 %v4478
        %5231 = vmatmul.mubr.bf16.gmra.mrb[0].mxu0 %v4477
        %v5232 = vpop.f32.mrb[0].mxu0
        %v5233 = vadd.f32 0.0, %v5232
        %v5234 = vpop.f32.mrb[0].mxu0
        %v5235 = vpop.f32.mrb[0].mxu0
        %v5236 = vadd.f32 0.0, %v5235
        %v5237 = vpop.f32.mrb[0].mxu0
        %5238 = vdwg.mxu0
        %5239 = vmatprep.subr.bf16.mxu0 0
        %5240 = vmatpush1.bf16.msra.mxu0 %v4934
        %5241 = vmatprep.subr.bf16.mxu0 0
        %5242 = vmatpush1.bf16.msra.mxu0 %v4935
        %5243 = vmatprep.subr.bf16.mxu0 0
        %5244 = vmatpush1.bf16.msra.mxu0 %v4936
        %5245 = vmatprep.subr.bf16.mxu0 0
        %5246 = vmatpush1.bf16.msra.mxu0 %v4937
        %5247 = vmatprep.subr.bf16.mxu0 0
        %5248 = vmatpush1.bf16.msra.mxu0 %v4938
        %5249 = vmatprep.subr.bf16.mxu0 0
        %5250 = vmatpush1.bf16.msra.mxu0 %v4939
        %5251 = vmatprep.subr.bf16.mxu0 0
        %5252 = vmatpush1.bf16.msra.mxu0 %v4940
        %5253 = vmatprep.subr.bf16.mxu0 0
        %5254 = vmatpush1.bf16.msra.mxu0 %v4941
        %5255 = vmatprep.subr.bf16.mxu0 0
        %5256 = vmatpush1.bf16.msra.mxu0 %v4942
        %5257 = vmatprep.subr.bf16.mxu0 0
        %5258 = vmatpush1.bf16.msra.mxu0 %v4943
        %5259 = vmatprep.subr.bf16.mxu0 0
        %5260 = vmatpush1.bf16.msra.mxu0 %v4944
        %5261 = vmatprep.subr.bf16.mxu0 0
        %5262 = vmatpush1.bf16.msra.mxu0 %v4945
        %5263 = vmatprep.subr.bf16.mxu0 0
        %5264 = vmatpush1.bf16.msra.mxu0 %v4946
        %5265 = vmatprep.subr.bf16.mxu0 0
        %5266 = vmatpush1.bf16.msra.mxu0 %v4947
        %5267 = vmatprep.subr.bf16.mxu0 0
        %5268 = vmatpush1.bf16.msra.mxu0 %v4948
        %5269 = vmatprep.subr.bf16.mxu0 0
        %5270 = vmatpush1.bf16.msra.mxu0 %v4949
        %5271 = vmatprep.mubr.bf16.mxu0 %v4327
        %5272 = vmatmul.mubr.bf16.gmra.mrb[0].mxu0 %v4326
        %v5273 = vpop.f32.mrb[0].mxu0
        %v5274 = vadd.f32 %v5097, %v5273
        %v5275 = vpop.f32.mrb[0].mxu0
        %v5276 = vpop.f32.mrb[0].mxu0
        %v5277 = vadd.f32 %v5100, %v5276
        %v5278 = vpop.f32.mrb[0].mxu0
        %5279 = vmatprep.mubr.bf16.mxu0 %v4336
        %5280 = vmatmul.mubr.bf16.gmra.mrb[0].mxu0 %v4335
        %v5281 = vpop.f32.mrb[0].mxu0
        %v5282 = vadd.f32 %v5105, %v5281
        %v5283 = vpop.f32.mrb[0].mxu0
        %v5284 = vpop.f32.mrb[0].mxu0
        %v5285 = vadd.f32 %v5108, %v5284
        %v5286 = vpop.f32.mrb[0].mxu0
        %5287 = vmatprep.mubr.bf16.mxu0 %v4345
        %5288 = vmatmul.mubr.bf16.gmra.mrb[0].mxu0 %v4344
        %v5289 = vpop.f32.mrb[0].mxu0
        %v5290 = vadd.f32 %v5113, %v5289
        %v5291 = vpop.f32.mrb[0].mxu0
        %v5292 = vpop.f32.mrb[0].mxu0
        %v5293 = vadd.f32 %v5116, %v5292
        %v5294 = vpop.f32.mrb[0].mxu0
        %5295 = vmatprep.mubr.bf16.mxu0 %v4354
        %5296 = vmatmul.mubr.bf16.gmra.mrb[0].mxu0 %v4353
        %v5297 = vpop.f32.mrb[0].mxu0
        %v5298 = vadd.f32 %v5121, %v5297
        %v5299 = vpop.f32.mrb[0].mxu0
        %v5300 = vpop.f32.mrb[0].mxu0
        %v5301 = vadd.f32 %v5124, %v5300
        %v5302 = vpop.f32.mrb[0].mxu0
        %5303 = vmatprep.mubr.bf16.mxu0 %v4363
        %5304 = vmatmul.mubr.bf16.gmra.mrb[0].mxu0 %v4362
        %v5305 = vpop.f32.mrb[0].mxu0
        %v5306 = vadd.f32 %v5129, %v5305
        %v5307 = vpop.f32.mrb[0].mxu0
        %v5308 = vpop.f32.mrb[0].mxu0
        %v5309 = vadd.f32 %v5132, %v5308
        %v5310 = vpop.f32.mrb[0].mxu0
        %5311 = vmatprep.mubr.bf16.mxu0 %v4372
        %5312 = vmatmul.mubr.bf16.gmra.mrb[0].mxu0 %v4371
        %v5313 = vpop.f32.mrb[0].mxu0
        %v5314 = vadd.f32 %v5137, %v5313
        %v5315 = vpop.f32.mrb[0].mxu0
        %v5316 = vpop.f32.mrb[0].mxu0
        %v5317 = vadd.f32 %v5140, %v5316
        %v5318 = vpop.f32.mrb[0].mxu0
        %5319 = vmatprep.mubr.bf16.mxu0 %v4381
        %5320 = vmatmul.mubr.bf16.gmra.mrb[0].mxu0 %v4380
        %v5321 = vpop.f32.mrb[0].mxu0
        %v5322 = vadd.f32 %v5145, %v5321
        %v5323 = vpop.f32.mrb[0].mxu0
        %v5324 = vpop.f32.mrb[0].mxu0
        %v5325 = vadd.f32 %v5148, %v5324
        %v5326 = vpop.f32.mrb[0].mxu0
        %5327 = vmatprep.mubr.bf16.mxu0 %v4390
        %5328 = vmatmul.mubr.bf16.gmra.mrb[0].mxu0 %v4389
        %v5329 = vpop.f32.mrb[0].mxu0
        %v5330 = vadd.f32 %v5153, %v5329
        %v5331 = vpop.f32.mrb[0].mxu0
        %v5332 = vpop.f32.mrb[0].mxu0
        %v5333 = vadd.f32 %v5156, %v5332
        %v5334 = vpop.f32.mrb[0].mxu0
        %5335 = vmatprep.mubr.bf16.mxu0 %v4399
        %5336 = vmatmul.mubr.bf16.gmra.mrb[0].mxu0 %v4398
        %v5337 = vpop.f32.mrb[0].mxu0
        %v5338 = vadd.f32 %v5161, %v5337
        %v5339 = vpop.f32.mrb[0].mxu0
        %v5340 = vpop.f32.mrb[0].mxu0
        %v5341 = vadd.f32 %v5164, %v5340
        %v5342 = vpop.f32.mrb[0].mxu0
        %5343 = vmatprep.mubr.bf16.mxu0 %v4408
        %5344 = vmatmul.mubr.bf16.gmra.mrb[0].mxu0 %v4407
        %v5345 = vpop.f32.mrb[0].mxu0
        %v5346 = vadd.f32 %v5169, %v5345
        %v5347 = vpop.f32.mrb[0].mxu0
        %v5348 = vpop.f32.mrb[0].mxu0
        %v5349 = vadd.f32 %v5172, %v5348
        %v5350 = vpop.f32.mrb[0].mxu0
        %5351 = vmatprep.mubr.bf16.mxu0 %v4417
        %5352 = vmatmul.mubr.bf16.gmra.mrb[0].mxu0 %v4416
        %v5353 = vpop.f32.mrb[0].mxu0
        %v5354 = vadd.f32 %v5177, %v5353
        %v5355 = vpop.f32.mrb[0].mxu0
        %v5356 = vpop.f32.mrb[0].mxu0
        %v5357 = vadd.f32 %v5180, %v5356
        %v5358 = vpop.f32.mrb[0].mxu0
        %5359 = vmatprep.mubr.bf16.mxu0 %v4426
        %5360 = vmatmul.mubr.bf16.gmra.mrb[0].mxu0 %v4425
        %v5361 = vpop.f32.mrb[0].mxu0
        %v5362 = vadd.f32 %v5185, %v5361
        %v5363 = vpop.f32.mrb[0].mxu0
        %v5364 = vpop.f32.mrb[0].mxu0
        %v5365 = vadd.f32 %v5188, %v5364
        %v5366 = vpop.f32.mrb[0].mxu0
        %5367 = vmatprep.mubr.bf16.mxu0 %v4435
        %5368 = vmatmul.mubr.bf16.gmra.mrb[0].mxu0 %v4434
        %v5369 = vpop.f32.mrb[0].mxu0
        %v5370 = vadd.f32 %v5193, %v5369
        %v5371 = vpop.f32.mrb[0].mxu0
        %v5372 = vpop.f32.mrb[0].mxu0
        %v5373 = vadd.f32 %v5196, %v5372
        %v5374 = vpop.f32.mrb[0].mxu0
        %5375 = vmatprep.mubr.bf16.mxu0 %v4444
        %5376 = vmatmul.mubr.bf16.gmra.mrb[0].mxu0 %v4443
        %v5377 = vpop.f32.mrb[0].mxu0
        %v5378 = vadd.f32 %v5201, %v5377
        %v5379 = vpop.f32.mrb[0].mxu0
        %v5380 = vpop.f32.mrb[0].mxu0
        %v5381 = vadd.f32 %v5204, %v5380
        %v5382 = vpop.f32.mrb[0].mxu0
        %5383 = vmatprep.mubr.bf16.mxu0 %v4453
        %5384 = vmatmul.mubr.bf16.gmra.mrb[0].mxu0 %v4452
        %v5385 = vpop.f32.mrb[0].mxu0
        %v5386 = vadd.f32 %v5209, %v5385
        %v5387 = vpop.f32.mrb[0].mxu0
        %v5388 = vpop.f32.mrb[0].mxu0
        %v5389 = vadd.f32 %v5212, %v5388
        %v5390 = vpop.f32.mrb[0].mxu0
        %5391 = vmatprep.mubr.bf16.mxu0 %v4462
        %5392 = vmatmul.mubr.bf16.gmra.mrb[0].mxu0 %v4461
        %v5393 = vpop.f32.mrb[0].mxu0
        %v5394 = vadd.f32 %v5217, %v5393
        %v5395 = vpop.f32.mrb[0].mxu0
        %v5396 = vpop.f32.mrb[0].mxu0
        %v5397 = vadd.f32 %v5220, %v5396
        %v5398 = vpop.f32.mrb[0].mxu0
        %5399 = vmatprep.mubr.bf16.mxu0 %v4471
        %5400 = vmatmul.mubr.bf16.gmra.mrb[0].mxu0 %v4470
        %v5401 = vpop.f32.mrb[0].mxu0
        %v5402 = vadd.f32 %v5225, %v5401
        %v5403 = vpop.f32.mrb[0].mxu0
        %v5404 = vpop.f32.mrb[0].mxu0
        %v5405 = vadd.f32 %v5228, %v5404
        %v5406 = vpop.f32.mrb[0].mxu0
        %5407 = vmatprep.mubr.bf16.mxu0 %v4480
        %5408 = vmatmul.mubr.bf16.gmra.mrb[0].mxu0 %v4479
        %v5409 = vpop.f32.mrb[0].mxu0
        %v5410 = vadd.f32 %v5233, %v5409
        %v5411 = vpop.f32.mrb[0].mxu0
        %v5412 = vpop.f32.mrb[0].mxu0
        %v5413 = vadd.f32 %v5236, %v5412
        %v5414 = vpop.f32.mrb[0].mxu0
        %5415 = vdwg.mxu0
        %5416 = vmatprep.subr.bf16.mxu0 0
        %5417 = vmatpush1.bf16.msra.mxu0 %v4950
        %5418 = vmatprep.subr.bf16.mxu0 0
        %5419 = vmatpush1.bf16.msra.mxu0 %v4951
        %5420 = vmatprep.subr.bf16.mxu0 0
        %5421 = vmatpush1.bf16.msra.mxu0 %v4952
        %5422 = vmatprep.subr.bf16.mxu0 0
        %5423 = vmatpush1.bf16.msra.mxu0 %v4953
        %5424 = vmatprep.subr.bf16.mxu0 0
        %5425 = vmatpush1.bf16.msra.mxu0 %v4954
        %5426 = vmatprep.subr.bf16.mxu0 0
        %5427 = vmatpush1.bf16.msra.mxu0 %v4955
        %5428 = vmatprep.subr.bf16.mxu0 0
        %5429 = vmatpush1.bf16.msra.mxu0 %v4956
        %5430 = vmatprep.subr.bf16.mxu0 0
        %5431 = vmatpush1.bf16.msra.mxu0 %v4957
        %5432 = vmatprep.subr.bf16.mxu0 0
        %5433 = vmatpush1.bf16.msra.mxu0 %v4958
        %5434 = vmatprep.subr.bf16.mxu0 0
        %5435 = vmatpush1.bf16.msra.mxu0 %v4959
        %5436 = vmatprep.subr.bf16.mxu0 0
        %5437 = vmatpush1.bf16.msra.mxu0 %v4960
        %5438 = vmatprep.subr.bf16.mxu0 0
        %5439 = vmatpush1.bf16.msra.mxu0 %v4961
        %5440 = vmatprep.subr.bf16.mxu0 0
        %5441 = vmatpush1.bf16.msra.mxu0 %v4962
        %5442 = vmatprep.subr.bf16.mxu0 0
        %5443 = vmatpush1.bf16.msra.mxu0 %v4963
        %5444 = vmatprep.subr.bf16.mxu0 0
        %5445 = vmatpush1.bf16.msra.mxu0 %v4964
        %5446 = vmatprep.subr.bf16.mxu0 0
        %5447 = vmatpush1.bf16.msra.mxu0 %v4965
        %5448 = vmatprep.mubr.bf16.mxu0 %v4329
        %5449 = vmatmul.mubr.bf16.gmra.mrb[0].mxu0 %v4328
        %v5450 = vpop.f32.mrb[0].mxu0
        %v5451 = vadd.f32 %v5274, %v5450
        %v5452 = vpop.f32.mrb[0].mxu0
        %v5453 = vpop.f32.mrb[0].mxu0
        %v5454 = vadd.f32 %v5277, %v5453
        %v5455 = vpop.f32.mrb[0].mxu0
        %5456 = vmatprep.mubr.bf16.mxu0 %v4338
        %5457 = vmatmul.mubr.bf16.gmra.mrb[0].mxu0 %v4337
        %v5458 = vpop.f32.mrb[0].mxu0
        %v5459 = vadd.f32 %v5282, %v5458
        %v5460 = vpop.f32.mrb[0].mxu0
        %v5461 = vpop.f32.mrb[0].mxu0
        %v5462 = vadd.f32 %v5285, %v5461
        %v5463 = vpop.f32.mrb[0].mxu0
        %5464 = vmatprep.mubr.bf16.mxu0 %v4347
        %5465 = vmatmul.mubr.bf16.gmra.mrb[0].mxu0 %v4346
        %v5466 = vpop.f32.mrb[0].mxu0
        %v5467 = vadd.f32 %v5290, %v5466
        %v5468 = vpop.f32.mrb[0].mxu0
        %v5469 = vpop.f32.mrb[0].mxu0
        %v5470 = vadd.f32 %v5293, %v5469
        %v5471 = vpop.f32.mrb[0].mxu0
        %5472 = vmatprep.mubr.bf16.mxu0 %v4356
        %5473 = vmatmul.mubr.bf16.gmra.mrb[0].mxu0 %v4355
        %v5474 = vpop.f32.mrb[0].mxu0
        %v5475 = vadd.f32 %v5298, %v5474
        %v5476 = vpop.f32.mrb[0].mxu0
        %v5477 = vpop.f32.mrb[0].mxu0
        %v5478 = vadd.f32 %v5301, %v5477
        %v5479 = vpop.f32.mrb[0].mxu0
        %5480 = vmatprep.mubr.bf16.mxu0 %v4365
        %5481 = vmatmul.mubr.bf16.gmra.mrb[0].mxu0 %v4364
        %v5482 = vpop.f32.mrb[0].mxu0
        %v5483 = vadd.f32 %v5306, %v5482
        %v5484 = vpop.f32.mrb[0].mxu0
        %v5485 = vpop.f32.mrb[0].mxu0
        %v5486 = vadd.f32 %v5309, %v5485
        %v5487 = vpop.f32.mrb[0].mxu0
        %5488 = vmatprep.mubr.bf16.mxu0 %v4374
        %5489 = vmatmul.mubr.bf16.gmra.mrb[0].mxu0 %v4373
        %v5490 = vpop.f32.mrb[0].mxu0
        %v5491 = vadd.f32 %v5314, %v5490
        %v5492 = vpop.f32.mrb[0].mxu0
        %v5493 = vpop.f32.mrb[0].mxu0
        %v5494 = vadd.f32 %v5317, %v5493
        %v5495 = vpop.f32.mrb[0].mxu0
        %5496 = vmatprep.mubr.bf16.mxu0 %v4383
        %5497 = vmatmul.mubr.bf16.gmra.mrb[0].mxu0 %v4382
        %v5498 = vpop.f32.mrb[0].mxu0
        %v5499 = vadd.f32 %v5322, %v5498
        %v5500 = vpop.f32.mrb[0].mxu0
        %v5501 = vpop.f32.mrb[0].mxu0
        %v5502 = vadd.f32 %v5325, %v5501
        %v5503 = vpop.f32.mrb[0].mxu0
        %5504 = vmatprep.mubr.bf16.mxu0 %v4392
        %5505 = vmatmul.mubr.bf16.gmra.mrb[0].mxu0 %v4391
        %v5506 = vpop.f32.mrb[0].mxu0
        %v5507 = vadd.f32 %v5330, %v5506
        %v5508 = vpop.f32.mrb[0].mxu0
        %v5509 = vpop.f32.mrb[0].mxu0
        %v5510 = vadd.f32 %v5333, %v5509
        %v5511 = vpop.f32.mrb[0].mxu0
        %5512 = vmatprep.mubr.bf16.mxu0 %v4401
        %5513 = vmatmul.mubr.bf16.gmra.mrb[0].mxu0 %v4400
        %v5514 = vpop.f32.mrb[0].mxu0
        %v5515 = vadd.f32 %v5338, %v5514
        %v5516 = vpop.f32.mrb[0].mxu0
        %v5517 = vpop.f32.mrb[0].mxu0
        %v5518 = vadd.f32 %v5341, %v5517
        %v5519 = vpop.f32.mrb[0].mxu0
        %5520 = vmatprep.mubr.bf16.mxu0 %v4410
        %5521 = vmatmul.mubr.bf16.gmra.mrb[0].mxu0 %v4409
        %v5522 = vpop.f32.mrb[0].mxu0
        %v5523 = vadd.f32 %v5346, %v5522
        %v5524 = vpop.f32.mrb[0].mxu0
        %v5525 = vpop.f32.mrb[0].mxu0
        %v5526 = vadd.f32 %v5349, %v5525
        %v5527 = vpop.f32.mrb[0].mxu0
        %5528 = vmatprep.mubr.bf16.mxu0 %v4419
        %5529 = vmatmul.mubr.bf16.gmra.mrb[0].mxu0 %v4418
        %v5530 = vpop.f32.mrb[0].mxu0
        %v5531 = vadd.f32 %v5354, %v5530
        %v5532 = vpop.f32.mrb[0].mxu0
        %v5533 = vpop.f32.mrb[0].mxu0
        %v5534 = vadd.f32 %v5357, %v5533
        %v5535 = vpop.f32.mrb[0].mxu0
        %5536 = vmatprep.mubr.bf16.mxu0 %v4428
        %5537 = vmatmul.mubr.bf16.gmra.mrb[0].mxu0 %v4427
        %v5538 = vpop.f32.mrb[0].mxu0
        %v5539 = vadd.f32 %v5362, %v5538
        %v5540 = vpop.f32.mrb[0].mxu0
        %v5541 = vpop.f32.mrb[0].mxu0
        %v5542 = vadd.f32 %v5365, %v5541
        %v5543 = vpop.f32.mrb[0].mxu0
        %5544 = vmatprep.mubr.bf16.mxu0 %v4437
        %5545 = vmatmul.mubr.bf16.gmra.mrb[0].mxu0 %v4436
        %v5546 = vpop.f32.mrb[0].mxu0
        %v5547 = vadd.f32 %v5370, %v5546
        %v5548 = vpop.f32.mrb[0].mxu0
        %v5549 = vpop.f32.mrb[0].mxu0
        %v5550 = vadd.f32 %v5373, %v5549
        %v5551 = vpop.f32.mrb[0].mxu0
        %5552 = vmatprep.mubr.bf16.mxu0 %v4446
        %5553 = vmatmul.mubr.bf16.gmra.mrb[0].mxu0 %v4445
        %v5554 = vpop.f32.mrb[0].mxu0
        %v5555 = vadd.f32 %v5378, %v5554
        %v5556 = vpop.f32.mrb[0].mxu0
        %v5557 = vpop.f32.mrb[0].mxu0
        %v5558 = vadd.f32 %v5381, %v5557
        %v5559 = vpop.f32.mrb[0].mxu0
        %5560 = vmatprep.mubr.bf16.mxu0 %v4455
        %5561 = vmatmul.mubr.bf16.gmra.mrb[0].mxu0 %v4454
        %v5562 = vpop.f32.mrb[0].mxu0
        %v5563 = vadd.f32 %v5386, %v5562
        %v5564 = vpop.f32.mrb[0].mxu0
        %v5565 = vpop.f32.mrb[0].mxu0
        %v5566 = vadd.f32 %v5389, %v5565
        %v5567 = vpop.f32.mrb[0].mxu0
        %5568 = vmatprep.mubr.bf16.mxu0 %v4464
        %5569 = vmatmul.mubr.bf16.gmra.mrb[0].mxu0 %v4463
        %v5570 = vpop.f32.mrb[0].mxu0
        %v5571 = vadd.f32 %v5394, %v5570
        %v5572 = vpop.f32.mrb[0].mxu0
        %v5573 = vpop.f32.mrb[0].mxu0
        %v5574 = vadd.f32 %v5397, %v5573
        %v5575 = vpop.f32.mrb[0].mxu0
        %5576 = vmatprep.mubr.bf16.mxu0 %v4473
        %5577 = vmatmul.mubr.bf16.gmra.mrb[0].mxu0 %v4472
        %v5578 = vpop.f32.mrb[0].mxu0
        %v5579 = vadd.f32 %v5402, %v5578
        %v5580 = vpop.f32.mrb[0].mxu0
        %v5581 = vpop.f32.mrb[0].mxu0
        %v5582 = vadd.f32 %v5405, %v5581
        %v5583 = vpop.f32.mrb[0].mxu0
        %5584 = vmatprep.mubr.bf16.mxu0 %v4482
        %5585 = vmatmul.mubr.bf16.gmra.mrb[0].mxu0 %v4481
        %v5586 = vpop.f32.mrb[0].mxu0
        %v5587 = vadd.f32 %v5410, %v5586
        %v5588 = vpop.f32.mrb[0].mxu0
        %v5589 = vpop.f32.mrb[0].mxu0
        %v5590 = vadd.f32 %v5413, %v5589
        %v5591 = vpop.f32.mrb[0].mxu0
        %5592 = vdwg.mxu0
        %5593 = vmatprep.subr.bf16.mxu0 0
        %5594 = vmatpush1.bf16.msra.mxu0 %v4966
        %5595 = vmatprep.subr.bf16.mxu0 0
        %5596 = vmatpush1.bf16.msra.mxu0 %v4967
        %5597 = vmatprep.subr.bf16.mxu0 0
        %5598 = vmatpush1.bf16.msra.mxu0 %v4968
        %5599 = vmatprep.subr.bf16.mxu0 0
        %5600 = vmatpush1.bf16.msra.mxu0 %v4969
        %5601 = vmatprep.subr.bf16.mxu0 0
        %5602 = vmatpush1.bf16.msra.mxu0 %v4970
        %5603 = vmatprep.subr.bf16.mxu0 0
        %5604 = vmatpush1.bf16.msra.mxu0 %v4971
        %5605 = vmatprep.subr.bf16.mxu0 0
        %5606 = vmatpush1.bf16.msra.mxu0 %v4972
        %5607 = vmatprep.subr.bf16.mxu0 0
        %5608 = vmatpush1.bf16.msra.mxu0 %v4973
        %5609 = vmatprep.subr.bf16.mxu0 0
        %5610 = vmatpush1.bf16.msra.mxu0 %v4974
        %5611 = vmatprep.subr.bf16.mxu0 0
        %5612 = vmatpush1.bf16.msra.mxu0 %v4975
        %5613 = vmatprep.subr.bf16.mxu0 0
        %5614 = vmatpush1.bf16.msra.mxu0 %v4976
        %5615 = vmatprep.subr.bf16.mxu0 0
        %5616 = vmatpush1.bf16.msra.mxu0 %v4977
        %5617 = vmatprep.subr.bf16.mxu0 0
        %5618 = vmatpush1.bf16.msra.mxu0 %v4978
        %5619 = vmatprep.subr.bf16.mxu0 0
        %5620 = vmatpush1.bf16.msra.mxu0 %v4979
        %5621 = vmatprep.subr.bf16.mxu0 0
        %5622 = vmatpush1.bf16.msra.mxu0 %v4980
        %5623 = vmatprep.subr.bf16.mxu0 0
        %5624 = vmatpush1.bf16.msra.mxu0 %v4981
        %5625 = vmatprep.mubr.bf16.mxu0 %v4331
        %5626 = vmatmul.mubr.bf16.gmra.mrb[0].mxu0 %v4330
        %v5627 = vpop.f32.mrb[0].mxu0
        %v5628 = vadd.f32 %v5451, %v5627
        %v5629 = vpop.f32.mrb[0].mxu0
        %v5630 = vpop.f32.mrb[0].mxu0
        %v5631 = vadd.f32 %v5454, %v5630
        %v5632 = vpop.f32.mrb[0].mxu0
        %5633 = vmatprep.mubr.bf16.mxu0 %v4340
        %5634 = vmatmul.mubr.bf16.gmra.mrb[0].mxu0 %v4339
        %v5635 = vpop.f32.mrb[0].mxu0
        %v5636 = vadd.f32 %v5459, %v5635
        %v5637 = vpop.f32.mrb[0].mxu0
        %v5638 = vpop.f32.mrb[0].mxu0
        %v5639 = vadd.f32 %v5462, %v5638
        %v5640 = vpop.f32.mrb[0].mxu0
        %5641 = vmatprep.mubr.bf16.mxu0 %v4349
        %5642 = vmatmul.mubr.bf16.gmra.mrb[0].mxu0 %v4348
        %v5643 = vpop.f32.mrb[0].mxu0
        %v5644 = vadd.f32 %v5467, %v5643
        %v5645 = vpop.f32.mrb[0].mxu0
        %v5646 = vpop.f32.mrb[0].mxu0
        %v5647 = vadd.f32 %v5470, %v5646
        %v5648 = vpop.f32.mrb[0].mxu0
        %5649 = vmatprep.mubr.bf16.mxu0 %v4358
        %5650 = vmatmul.mubr.bf16.gmra.mrb[0].mxu0 %v4357
        %v5651 = vpop.f32.mrb[0].mxu0
        %v5652 = vadd.f32 %v5475, %v5651
        %v5653 = vpop.f32.mrb[0].mxu0
        %v5654 = vpop.f32.mrb[0].mxu0
        %v5655 = vadd.f32 %v5478, %v5654
        %v5656 = vpop.f32.mrb[0].mxu0
        %5657 = vmatprep.mubr.bf16.mxu0 %v4367
        %5658 = vmatmul.mubr.bf16.gmra.mrb[0].mxu0 %v4366
        %v5659 = vpop.f32.mrb[0].mxu0
        %v5660 = vadd.f32 %v5483, %v5659
        %v5661 = vpop.f32.mrb[0].mxu0
        %v5662 = vpop.f32.mrb[0].mxu0
        %v5663 = vadd.f32 %v5486, %v5662
        %v5664 = vpop.f32.mrb[0].mxu0
        %5665 = vmatprep.mubr.bf16.mxu0 %v4376
        %5666 = vmatmul.mubr.bf16.gmra.mrb[0].mxu0 %v4375
        %v5667 = vpop.f32.mrb[0].mxu0
        %v5668 = vadd.f32 %v5491, %v5667
        %v5669 = vpop.f32.mrb[0].mxu0
        %v5670 = vpop.f32.mrb[0].mxu0
        %v5671 = vadd.f32 %v5494, %v5670
        %v5672 = vpop.f32.mrb[0].mxu0
        %5673 = vmatprep.mubr.bf16.mxu0 %v4385
        %5674 = vmatmul.mubr.bf16.gmra.mrb[0].mxu0 %v4384
        %v5675 = vpop.f32.mrb[0].mxu0
        %v5676 = vadd.f32 %v5499, %v5675
        %v5677 = vpop.f32.mrb[0].mxu0
        %v5678 = vpop.f32.mrb[0].mxu0
        %v5679 = vadd.f32 %v5502, %v5678
        %v5680 = vpop.f32.mrb[0].mxu0
        %5681 = vmatprep.mubr.bf16.mxu0 %v4394
        %5682 = vmatmul.mubr.bf16.gmra.mrb[0].mxu0 %v4393
        %v5683 = vpop.f32.mrb[0].mxu0
        %v5684 = vadd.f32 %v5507, %v5683
        %v5685 = vpop.f32.mrb[0].mxu0
        %v5686 = vpop.f32.mrb[0].mxu0
        %v5687 = vadd.f32 %v5510, %v5686
        %v5688 = vpop.f32.mrb[0].mxu0
        %5689 = vmatprep.mubr.bf16.mxu0 %v4403
        %5690 = vmatmul.mubr.bf16.gmra.mrb[0].mxu0 %v4402
        %v5691 = vpop.f32.mrb[0].mxu0
        %v5692 = vadd.f32 %v5515, %v5691
        %v5693 = vpop.f32.mrb[0].mxu0
        %v5694 = vpop.f32.mrb[0].mxu0
        %v5695 = vadd.f32 %v5518, %v5694
        %v5696 = vpop.f32.mrb[0].mxu0
        %5697 = vmatprep.mubr.bf16.mxu0 %v4412
        %5698 = vmatmul.mubr.bf16.gmra.mrb[0].mxu0 %v4411
        %v5699 = vpop.f32.mrb[0].mxu0
        %v5700 = vadd.f32 %v5523, %v5699
        %v5701 = vpop.f32.mrb[0].mxu0
        %v5702 = vpop.f32.mrb[0].mxu0
        %v5703 = vadd.f32 %v5526, %v5702
        %v5704 = vpop.f32.mrb[0].mxu0
        %5705 = vmatprep.mubr.bf16.mxu0 %v4421
        %5706 = vmatmul.mubr.bf16.gmra.mrb[0].mxu0 %v4420
        %v5707 = vpop.f32.mrb[0].mxu0
        %v5708 = vadd.f32 %v5531, %v5707
        %v5709 = vpop.f32.mrb[0].mxu0
        %v5710 = vpop.f32.mrb[0].mxu0
        %v5711 = vadd.f32 %v5534, %v5710
        %v5712 = vpop.f32.mrb[0].mxu0
        %5713 = vmatprep.mubr.bf16.mxu0 %v4430
        %5714 = vmatmul.mubr.bf16.gmra.mrb[0].mxu0 %v4429
        %v5715 = vpop.f32.mrb[0].mxu0
        %v5716 = vadd.f32 %v5539, %v5715
        %v5717 = vpop.f32.mrb[0].mxu0
        %v5718 = vpop.f32.mrb[0].mxu0
        %v5719 = vadd.f32 %v5542, %v5718
        %v5720 = vpop.f32.mrb[0].mxu0
        %5721 = vmatprep.mubr.bf16.mxu0 %v4439
        %5722 = vmatmul.mubr.bf16.gmra.mrb[0].mxu0 %v4438
        %v5723 = vpop.f32.mrb[0].mxu0
        %v5724 = vadd.f32 %v5547, %v5723
        %v5725 = vpop.f32.mrb[0].mxu0
        %v5726 = vpop.f32.mrb[0].mxu0
        %v5727 = vadd.f32 %v5550, %v5726
        %v5728 = vpop.f32.mrb[0].mxu0
        %5729 = vmatprep.mubr.bf16.mxu0 %v4448
        %5730 = vmatmul.mubr.bf16.gmra.mrb[0].mxu0 %v4447
        %v5731 = vpop.f32.mrb[0].mxu0
        %v5732 = vadd.f32 %v5555, %v5731
        %v5733 = vpop.f32.mrb[0].mxu0
        %v5734 = vpop.f32.mrb[0].mxu0
        %v5735 = vadd.f32 %v5558, %v5734
        %v5736 = vpop.f32.mrb[0].mxu0
        %5737 = vmatprep.mubr.bf16.mxu0 %v4457
        %5738 = vmatmul.mubr.bf16.gmra.mrb[0].mxu0 %v4456
        %v5739 = vpop.f32.mrb[0].mxu0
        %v5740 = vadd.f32 %v5563, %v5739
        %v5741 = vpop.f32.mrb[0].mxu0
        %v5742 = vpop.f32.mrb[0].mxu0
        %v5743 = vadd.f32 %v5566, %v5742
        %v5744 = vpop.f32.mrb[0].mxu0
        %5745 = vmatprep.mubr.bf16.mxu0 %v4466
        %5746 = vmatmul.mubr.bf16.gmra.mrb[0].mxu0 %v4465
        %v5747 = vpop.f32.mrb[0].mxu0
        %v5748 = vadd.f32 %v5571, %v5747
        %v5749 = vpop.f32.mrb[0].mxu0
        %v5750 = vpop.f32.mrb[0].mxu0
        %v5751 = vadd.f32 %v5574, %v5750
        %v5752 = vpop.f32.mrb[0].mxu0
        %5753 = vmatprep.mubr.bf16.mxu0 %v4475
        %5754 = vmatmul.mubr.bf16.gmra.mrb[0].mxu0 %v4474
        %v5755 = vpop.f32.mrb[0].mxu0
        %v5756 = vadd.f32 %v5579, %v5755
        %v5757 = vpop.f32.mrb[0].mxu0
        %v5758 = vpop.f32.mrb[0].mxu0
        %v5759 = vadd.f32 %v5582, %v5758
        %v5760 = vpop.f32.mrb[0].mxu0
        %5761 = vmatprep.mubr.bf16.mxu0 %v4484
        %5762 = vmatmul.mubr.bf16.gmra.mrb[0].mxu0 %v4483
        %v5763 = vpop.f32.mrb[0].mxu0
        %v5764 = vadd.f32 %v5587, %v5763
        %v5765 = vpop.f32.mrb[0].mxu0
        %v5766 = vpop.f32.mrb[0].mxu0
        %v5767 = vadd.f32 %v5590, %v5766
        %v5768 = vpop.f32.mrb[0].mxu0
        %5769 = vdwg.mxu0
        %5770 = vmatprep.subr.bf16.mxu0 0
        %5771 = vmatpush1.bf16.msra.mxu0 %v4982
        %5772 = vmatprep.subr.bf16.mxu0 0
        %5773 = vmatpush1.bf16.msra.mxu0 %v4983
        %5774 = vmatprep.subr.bf16.mxu0 0
        %5775 = vmatpush1.bf16.msra.mxu0 %v4984
        %5776 = vmatprep.subr.bf16.mxu0 0
        %5777 = vmatpush1.bf16.msra.mxu0 %v4985
        %5778 = vmatprep.subr.bf16.mxu0 0
        %5779 = vmatpush1.bf16.msra.mxu0 %v4986
        %5780 = vmatprep.subr.bf16.mxu0 0
        %5781 = vmatpush1.bf16.msra.mxu0 %v4987
        %5782 = vmatprep.subr.bf16.mxu0 0
        %5783 = vmatpush1.bf16.msra.mxu0 %v4988
        %5784 = vmatprep.subr.bf16.mxu0 0
        %5785 = vmatpush1.bf16.msra.mxu0 %v4989
        %5786 = vmatprep.subr.bf16.mxu0 0
        %5787 = vmatpush1.bf16.msra.mxu0 0
        %5788 = vmatprep.subr.bf16.mxu0 0
        %5789 = vmatpush1.bf16.msra.mxu0 0
        %5790 = vmatprep.subr.bf16.mxu0 0
        %5791 = vmatpush1.bf16.msra.mxu0 0
        %5792 = vmatprep.subr.bf16.mxu0 0
        %5793 = vmatpush1.bf16.msra.mxu0 0
        %5794 = vmatprep.subr.bf16.mxu0 0
        %5795 = vmatpush1.bf16.msra.mxu0 0
        %5796 = vmatprep.subr.bf16.mxu0 0
        %5797 = vmatpush1.bf16.msra.mxu0 0
        %5798 = vmatprep.subr.bf16.mxu0 0
        %5799 = vmatpush1.bf16.msra.mxu0 0
        %5800 = vmatprep.subr.bf16.mxu0 0
        %5801 = vmatpush1.bf16.msra.mxu0 0
        %5802 = vmatprep.mubr.bf16.mxu0 0
        %5803 = vmatmul.mubr.bf16.gmra.mrb[0].mxu0 %v4332
        %v5804 = vpop.f32.mrb[0].mxu0
        %v5805 = vadd.f32 %v5628, %v5804
        %v5806 = vpop.f32.mrb[0].mxu0
        %v5807 = vpop.f32.mrb[0].mxu0
        %v5808 = vadd.f32 %v5631, %v5807
        %v5809 = vpop.f32.mrb[0].mxu0
        %5810 = vmatprep.mubr.bf16.mxu0 0
        %5811 = vmatmul.mubr.bf16.gmra.mrb[0].mxu0 %v4341
        %v5812 = vpop.f32.mrb[0].mxu0
        %v5813 = vadd.f32 %v5636, %v5812
        %v5814 = vpop.f32.mrb[0].mxu0
        %v5815 = vpop.f32.mrb[0].mxu0
        %v5816 = vadd.f32 %v5639, %v5815
        %v5817 = vpop.f32.mrb[0].mxu0
        %5818 = vmatprep.mubr.bf16.mxu0 0
        %5819 = vmatmul.mubr.bf16.gmra.mrb[0].mxu0 %v4350
        %v5820 = vpop.f32.mrb[0].mxu0
        %v5821 = vadd.f32 %v5644, %v5820
        %v5822 = vpop.f32.mrb[0].mxu0
        %v5823 = vpop.f32.mrb[0].mxu0
        %v5824 = vadd.f32 %v5647, %v5823
        %v5825 = vpop.f32.mrb[0].mxu0
        %5826 = vmatprep.mubr.bf16.mxu0 0
        %5827 = vmatmul.mubr.bf16.gmra.mrb[0].mxu0 %v4359
        %v5828 = vpop.f32.mrb[0].mxu0
        %v5829 = vadd.f32 %v5652, %v5828
        %v5830 = vpop.f32.mrb[0].mxu0
        %v5831 = vpop.f32.mrb[0].mxu0
        %v5832 = vadd.f32 %v5655, %v5831
        %v5833 = vpop.f32.mrb[0].mxu0
        %5834 = vmatprep.mubr.bf16.mxu0 0
        %5835 = vmatmul.mubr.bf16.gmra.mrb[0].mxu0 %v4368
        %v5836 = vpop.f32.mrb[0].mxu0
        %v5837 = vadd.f32 %v5660, %v5836
        %v5838 = vpop.f32.mrb[0].mxu0
        %v5839 = vpop.f32.mrb[0].mxu0
        %v5840 = vadd.f32 %v5663, %v5839
        %v5841 = vpop.f32.mrb[0].mxu0
        %5842 = vmatprep.mubr.bf16.mxu0 0
        %5843 = vmatmul.mubr.bf16.gmra.mrb[0].mxu0 %v4377
        %v5844 = vpop.f32.mrb[0].mxu0
        %v5845 = vadd.f32 %v5668, %v5844
        %v5846 = vpop.f32.mrb[0].mxu0
        %v5847 = vpop.f32.mrb[0].mxu0
        %v5848 = vadd.f32 %v5671, %v5847
        %v5849 = vpop.f32.mrb[0].mxu0
        %5850 = vmatprep.mubr.bf16.mxu0 0
        %5851 = vmatmul.mubr.bf16.gmra.mrb[0].mxu0 %v4386
        %v5852 = vpop.f32.mrb[0].mxu0
        %v5853 = vadd.f32 %v5676, %v5852
        %v5854 = vpop.f32.mrb[0].mxu0
        %v5855 = vpop.f32.mrb[0].mxu0
        %v5856 = vadd.f32 %v5679, %v5855
        %v5857 = vpop.f32.mrb[0].mxu0
        %5858 = vmatprep.mubr.bf16.mxu0 0
        %5859 = vmatmul.mubr.bf16.gmra.mrb[0].mxu0 %v4395
        %v5860 = vpop.f32.mrb[0].mxu0
        %v5861 = vadd.f32 %v5684, %v5860
        %v5862 = vpop.f32.mrb[0].mxu0
        %v5863 = vpop.f32.mrb[0].mxu0
        %v5864 = vadd.f32 %v5687, %v5863
        %v5865 = vpop.f32.mrb[0].mxu0
        %5866 = vmatprep.mubr.bf16.mxu0 0
        %5867 = vmatmul.mubr.bf16.gmra.mrb[0].mxu0 %v4404
        %v5868 = vpop.f32.mrb[0].mxu0
        %v5869 = vadd.f32 %v5692, %v5868
        %v5870 = vpop.f32.mrb[0].mxu0
        %v5871 = vpop.f32.mrb[0].mxu0
        %v5872 = vadd.f32 %v5695, %v5871
        %v5873 = vpop.f32.mrb[0].mxu0
        %5874 = vmatprep.mubr.bf16.mxu0 0
        %5875 = vmatmul.mubr.bf16.gmra.mrb[0].mxu0 %v4413
        %v5876 = vpop.f32.mrb[0].mxu0
        %v5877 = vadd.f32 %v5700, %v5876
        %v5878 = vpop.f32.mrb[0].mxu0
        %v5879 = vpop.f32.mrb[0].mxu0
        %v5880 = vadd.f32 %v5703, %v5879
        %v5881 = vpop.f32.mrb[0].mxu0
        %5882 = vmatprep.mubr.bf16.mxu0 0
        %5883 = vmatmul.mubr.bf16.gmra.mrb[0].mxu0 %v4422
        %v5884 = vpop.f32.mrb[0].mxu0
        %v5885 = vadd.f32 %v5708, %v5884
        %v5886 = vpop.f32.mrb[0].mxu0
        %v5887 = vpop.f32.mrb[0].mxu0
        %v5888 = vadd.f32 %v5711, %v5887
        %v5889 = vpop.f32.mrb[0].mxu0
        %5890 = vmatprep.mubr.bf16.mxu0 0
        %5891 = vmatmul.mubr.bf16.gmra.mrb[0].mxu0 %v4431
        %v5892 = vpop.f32.mrb[0].mxu0
        %v5893 = vadd.f32 %v5716, %v5892
        %v5894 = vpop.f32.mrb[0].mxu0
        %v5895 = vpop.f32.mrb[0].mxu0
        %v5896 = vadd.f32 %v5719, %v5895
        %v5897 = vpop.f32.mrb[0].mxu0
        %5898 = vmatprep.mubr.bf16.mxu0 0
        %5899 = vmatmul.mubr.bf16.gmra.mrb[0].mxu0 %v4440
        %v5900 = vpop.f32.mrb[0].mxu0
        %v5901 = vadd.f32 %v5724, %v5900
        %v5902 = vpop.f32.mrb[0].mxu0
        %v5903 = vpop.f32.mrb[0].mxu0
        %v5904 = vadd.f32 %v5727, %v5903
        %v5905 = vpop.f32.mrb[0].mxu0
        %5906 = vmatprep.mubr.bf16.mxu0 0
        %5907 = vmatmul.mubr.bf16.gmra.mrb[0].mxu0 %v4449
        %v5908 = vpop.f32.mrb[0].mxu0
        %v5909 = vadd.f32 %v5732, %v5908
        %v5910 = vpop.f32.mrb[0].mxu0
        %v5911 = vpop.f32.mrb[0].mxu0
        %v5912 = vadd.f32 %v5735, %v5911
        %v5913 = vpop.f32.mrb[0].mxu0
        %5914 = vmatprep.mubr.bf16.mxu0 0
        %5915 = vmatmul.mubr.bf16.gmra.mrb[0].mxu0 %v4458
        %v5916 = vpop.f32.mrb[0].mxu0
        %v5917 = vadd.f32 %v5740, %v5916
        %v5918 = vpop.f32.mrb[0].mxu0
        %v5919 = vpop.f32.mrb[0].mxu0
        %v5920 = vadd.f32 %v5743, %v5919
        %v5921 = vpop.f32.mrb[0].mxu0
        %5922 = vmatprep.mubr.bf16.mxu0 0
        %5923 = vmatmul.mubr.bf16.gmra.mrb[0].mxu0 %v4467
        %v5924 = vpop.f32.mrb[0].mxu0
        %v5925 = vadd.f32 %v5748, %v5924
        %v5926 = vpop.f32.mrb[0].mxu0
        %v5927 = vpop.f32.mrb[0].mxu0
        %v5928 = vadd.f32 %v5751, %v5927
        %v5929 = vpop.f32.mrb[0].mxu0
        %5930 = vmatprep.mubr.bf16.mxu0 0
        %5931 = vmatmul.mubr.bf16.gmra.mrb[0].mxu0 %v4476
        %v5932 = vpop.f32.mrb[0].mxu0
        %v5933 = vadd.f32 %v5756, %v5932
        %v5934 = vpop.f32.mrb[0].mxu0
        %v5935 = vpop.f32.mrb[0].mxu0
        %v5936 = vadd.f32 %v5759, %v5935
        %v5937 = vpop.f32.mrb[0].mxu0
        %5938 = vmatprep.mubr.bf16.mxu0 0
        %5939 = vmatmul.mubr.bf16.gmra.mrb[0].mxu0 %v4485
        %v5940 = vpop.f32.mrb[0].mxu0
        %v5941 = vadd.f32 %v5764, %v5940
        %v5942 = vpop.f32.mrb[0].mxu0
        %v5943 = vpop.f32.mrb[0].mxu0
        %v5944 = vadd.f32 %v5767, %v5943
        %v5945 = vpop.f32.mrb[0].mxu0
        %5946 = vdwg.mxu0
        %v5947 = vld [vmem:[%s5] sm:$0x1]
        %v5949 = vlaneseq
        %v5950 = vshrl.u32 %v5949, 7
        %v5951 = vsub.s32 0, %v5950
        %v5952 = vrot.slane %v5947, %v5951
        %v5954 = vmul.f32 %v5805, %v5952
        %v5955 = vmul.f32 %v5808, %v5952
        %v5956 = vmul.f32 %v5813, %v5952
        %v5957 = vmul.f32 %v5816, %v5952
        %v5958 = vmul.f32 %v5821, %v5952
        %v5959 = vmul.f32 %v5824, %v5952
        %v5960 = vmul.f32 %v5829, %v5952
        %v5961 = vmul.f32 %v5832, %v5952
        %v5962 = vmul.f32 %v5837, %v5952
        %v5963 = vmul.f32 %v5840, %v5952
        %v5964 = vmul.f32 %v5845, %v5952
        %v5965 = vmul.f32 %v5848, %v5952
        %v5966 = vmul.f32 %v5853, %v5952
        %v5967 = vmul.f32 %v5856, %v5952
        %v5968 = vmul.f32 %v5861, %v5952
        %v5969 = vmul.f32 %v5864, %v5952
        %v5970 = vmul.f32 %v5869, %v5952
        %v5971 = vmul.f32 %v5872, %v5952
        %v5972 = vmul.f32 %v5877, %v5952
        %v5973 = vmul.f32 %v5880, %v5952
        %v5974 = vmul.f32 %v5885, %v5952
        %v5975 = vmul.f32 %v5888, %v5952
        %v5976 = vmul.f32 %v5893, %v5952
        %v5977 = vmul.f32 %v5896, %v5952
        %v5978 = vmul.f32 %v5901, %v5952
        %v5979 = vmul.f32 %v5904, %v5952
        %v5980 = vmul.f32 %v5909, %v5952
        %v5981 = vmul.f32 %v5912, %v5952
        %v5982 = vmul.f32 %v5917, %v5952
        %v5983 = vmul.f32 %v5920, %v5952
        %v5984 = vmul.f32 %v5925, %v5952
        %v5985 = vmul.f32 %v5928, %v5952
        %v5986 = vmul.f32 %v5933, %v5952
        %v5987 = vmul.f32 %v5936, %v5952
        %v5988 = vmul.f32 %v5941, %v5952
        %v5989 = vmul.f32 %v5944, %v5952
        %v5990 = vld [vmem:[%s6] sm:$0x1]
        %v5992 = vlaneseq
        %v5993 = vshrl.u32 %v5992, 7
        %v5994 = vsub.s32 0, %v5993
        %v5995 = vrot.slane %v5990, %v5994
        %v5997 = vadd.f32 %v5954, %v5995
        %v5998 = vadd.f32 %v5955, %v5995
        %v5999 = vadd.f32 %v5956, %v5995
        %v6000 = vadd.f32 %v5957, %v5995
        %v6001 = vadd.f32 %v5958, %v5995
        %v6002 = vadd.f32 %v5959, %v5995
        %v6003 = vadd.f32 %v5960, %v5995
        %v6004 = vadd.f32 %v5961, %v5995
        %v6005 = vadd.f32 %v5962, %v5995
        %v6006 = vadd.f32 %v5963, %v5995
        %v6007 = vadd.f32 %v5964, %v5995
        %v6008 = vadd.f32 %v5965, %v5995
        %v6009 = vadd.f32 %v5966, %v5995
        %v6010 = vadd.f32 %v5967, %v5995
        %v6011 = vadd.f32 %v5968, %v5995
        %v6012 = vadd.f32 %v5969, %v5995
        %v6013 = vadd.f32 %v5970, %v5995
        %v6014 = vadd.f32 %v5971, %v5995
        %v6015 = vadd.f32 %v5972, %v5995
        %v6016 = vadd.f32 %v5973, %v5995
        %v6017 = vadd.f32 %v5974, %v5995
        %v6018 = vadd.f32 %v5975, %v5995
        %v6019 = vadd.f32 %v5976, %v5995
        %v6020 = vadd.f32 %v5977, %v5995
        %v6021 = vadd.f32 %v5978, %v5995
        %v6022 = vadd.f32 %v5979, %v5995
        %v6023 = vadd.f32 %v5980, %v5995
        %v6024 = vadd.f32 %v5981, %v5995
        %v6025 = vadd.f32 %v5982, %v5995
        %v6026 = vadd.f32 %v5983, %v5995
        %v6027 = vadd.f32 %v5984, %v5995
        %v6028 = vadd.f32 %v5985, %v5995
        %v6029 = vadd.f32 %v5986, %v5995
        %v6030 = vadd.f32 %v5987, %v5995
        %v6031 = vadd.f32 %v5988, %v5995
        %v6032 = vadd.f32 %v5989, %v5995
        %v6033 = vmax.f32 %v5997, 0.0
        %v6034 = vmax.f32 %v5998, 0.0
        %v6035 = vmax.f32 %v5999, 0.0
        %v6036 = vmax.f32 %v6000, 0.0
        %v6037 = vmax.f32 %v6001, 0.0
        %v6038 = vmax.f32 %v6002, 0.0
        %v6039 = vmax.f32 %v6003, 0.0
        %v6040 = vmax.f32 %v6004, 0.0
        %v6041 = vmax.f32 %v6005, 0.0
        %v6042 = vmax.f32 %v6006, 0.0
        %v6043 = vmax.f32 %v6007, 0.0
        %v6044 = vmax.f32 %v6008, 0.0
        %v6045 = vmax.f32 %v6009, 0.0
        %v6046 = vmax.f32 %v6010, 0.0
        %v6047 = vmax.f32 %v6011, 0.0
        %v6048 = vmax.f32 %v6012, 0.0
        %v6049 = vmax.f32 %v6013, 0.0
        %v6050 = vmax.f32 %v6014, 0.0
        %v6051 = vmax.f32 %v6015, 0.0
        %v6052 = vmax.f32 %v6016, 0.0
        %v6053 = vmax.f32 %v6017, 0.0
        %v6054 = vmax.f32 %v6018, 0.0
        %v6055 = vmax.f32 %v6019, 0.0
        %v6056 = vmax.f32 %v6020, 0.0
        %v6057 = vmax.f32 %v6021, 0.0
        %v6058 = vmax.f32 %v6022, 0.0
        %v6059 = vmax.f32 %v6023, 0.0
        %v6060 = vmax.f32 %v6024, 0.0
        %v6061 = vmax.f32 %v6025, 0.0
        %v6062 = vmax.f32 %v6026, 0.0
        %v6063 = vmax.f32 %v6027, 0.0
        %v6064 = vmax.f32 %v6028, 0.0
        %v6065 = vmax.f32 %v6029, 0.0
        %v6066 = vmax.f32 %v6030, 0.0
        %v6067 = vmax.f32 %v6031, 0.0
        %v6068 = vmax.f32 %v6032, 0.0
        %vm6069 = vcmask 64512
        %6070 = vst.msk [vmem:[%s308] sm:$0xff] %vm6069, %v6033
        %6071 = vst.msk [vmem:[%s308 + $0x8] sm:$0xff] %vm6069, %v6034
        %6072 = vst.msk [vmem:[%s308 + $0x10] sm:$0xff] %vm6069, %v6035
        %6073 = vst.msk [vmem:[%s308 + $0x18] sm:$0xff] %vm6069, %v6036
        %6074 = vst.msk [vmem:[%s308 + $0x20] sm:$0xff] %vm6069, %v6037
        %6075 = vst.msk [vmem:[%s308 + $0x28] sm:$0xff] %vm6069, %v6038
        %6076 = vst.msk [vmem:[%s308 + $0x30] sm:$0xff] %vm6069, %v6039
        %6077 = vst.msk [vmem:[%s308 + $0x38] sm:$0xff] %vm6069, %v6040
        %6078 = vst.msk [vmem:[%s308 + $0x40] sm:$0xff] %vm6069, %v6041
        %6079 = vst.msk [vmem:[%s308 + $0x48] sm:$0xff] %vm6069, %v6042
        %6080 = vst.msk [vmem:[%s308 + $0x50] sm:$0xff] %vm6069, %v6043
        %6081 = vst.msk [vmem:[%s308 + $0x58] sm:$0xff] %vm6069, %v6044
        %6082 = vst.msk [vmem:[%s308 + $0x60] sm:$0xff] %vm6069, %v6045
        %6083 = vst.msk [vmem:[%s308 + $0x68] sm:$0xff] %vm6069, %v6046
        %6084 = vst.msk [vmem:[%s308 + $0x70] sm:$0xff] %vm6069, %v6047
        %6085 = vst.msk [vmem:[%s308 + $0x78] sm:$0xff] %vm6069, %v6048
        %6086 = vst.msk [vmem:[%s308 + $0x80] sm:$0xff] %vm6069, %v6049
        %6087 = vst.msk [vmem:[%s308 + $0x88] sm:$0xff] %vm6069, %v6050
        %6088 = vst.msk [vmem:[%s308 + $0x90] sm:$0xff] %vm6069, %v6051
        %6089 = vst.msk [vmem:[%s308 + $0x98] sm:$0xff] %vm6069, %v6052
        %6090 = vst.msk [vmem:[%s308 + $0xa0] sm:$0xff] %vm6069, %v6053
        %6091 = vst.msk [vmem:[%s308 + $0xa8] sm:$0xff] %vm6069, %v6054
        %6092 = vst.msk [vmem:[%s308 + $0xb0] sm:$0xff] %vm6069, %v6055
        %6093 = vst.msk [vmem:[%s308 + $0xb8] sm:$0xff] %vm6069, %v6056
        %6094 = vst.msk [vmem:[%s308 + $0xc0] sm:$0xff] %vm6069, %v6057
        %6095 = vst.msk [vmem:[%s308 + $0xc8] sm:$0xff] %vm6069, %v6058
        %6096 = vst.msk [vmem:[%s308 + $0xd0] sm:$0xff] %vm6069, %v6059
        %6097 = vst.msk [vmem:[%s308 + $0xd8] sm:$0xff] %vm6069, %v6060
        %6098 = vst.msk [vmem:[%s308 + $0xe0] sm:$0xff] %vm6069, %v6061
        %6099 = vst.msk [vmem:[%s308 + $0xe8] sm:$0xff] %vm6069, %v6062
        %6100 = vst.msk [vmem:[%s308 + $0xf0] sm:$0xff] %vm6069, %v6063
        %6101 = vst.msk [vmem:[%s308 + $0xf8] sm:$0xff] %vm6069, %v6064
        %6102 = vst.msk [vmem:[%s308 + $0x100] sm:$0xff] %vm6069, %v6065
        %6103 = vst.msk [vmem:[%s308 + $0x108] sm:$0xff] %vm6069, %v6066
        %6104 = vst.msk [vmem:[%s308 + $0x110] sm:$0xff] %vm6069, %v6067
        %6105 = vst.msk [vmem:[%s308 + $0x118] sm:$0xff] %vm6069, %v6068
        %p6106 = scmp.lt.s32.totalorder %s20, 1
        %s6107 = scalar_select %p6106, %s20, 1
        %s6108 = smul.addr %s6107, 36
        %s6109 = smul.addr %s6108, 8
        %s6110 = scalar_lea.vmem %s7, %s6109
        // Predicated region
        $region57: #{tpu_custom_call.1} parent=47 // pred_check
          %p6111 = pneg %p190
        $region58: #{tpu_custom_call.1} parent=47 // pred_check_branch
          %6113 = sbr.rel (%p6111) target = $region60
        $region59: #{tpu_custom_call.1} parent=47 // pred_region
          _
        $region60: #{tpu_custom_call.1} parent=47 // pred_fallthru
          _
      $region48: #{tpu_custom_call.1} parent=5 // pred_fallthru
        _
      %p6114 = scmp.le.s32.totalorder 2, %s15
      // Predicated region
      $region61: #{tpu_custom_call.1} parent=5 // pred_check
        %p6115 = pneg %p6114
      $region62: #{tpu_custom_call.1} parent=5 // pred_check_branch
        %6117 = sbr.rel (%p6115) target = $region64
      $region63: #{tpu_custom_call.1} parent=5 // pred_region
        %s6118 = ssub.s32 %s15, 2
        // Predicated region
        $region65: #{tpu_custom_call.1} parent=63 // pred_check
          %p6119 = pneg %p196
        $region66: #{tpu_custom_call.1} parent=63 // pred_check_branch
          %6121 = sbr.rel (%p6119) target = $region68
        $region67: #{tpu_custom_call.1} parent=63 // pred_region
          %p6122 = scmp.lt.s32.totalorder %s21, 1
          %s6123 = scalar_select %p6122, %s21, 1
          %s6124 = smul.addr %s6123, 36
          %s6125 = smul.addr %s6124, 8
          %s6126 = scalar_lea.vmem %s7, %s6125
        $region68: #{tpu_custom_call.1} parent=63 // pred_fallthru
          _
      $region64: #{tpu_custom_call.1} parent=5 // pred_fallthru
        _
    $region6: #{tpu_custom_call.1} parent=1 // loop_footer
      %s19 = sadd.s32 1, %s15
    $region7: #{tpu_custom_call.1} parent=1 // loop_footer_branch
      %14 = sbr.rel target = $region3
    $region8: #{tpu_custom_call.1} parent=1 // loop_exit
      _
    %6127 = vsyncpa [#allocation6], 1
    %s6128 = scalar_lea.sflag [#allocation6], 1
    %6129 = vsyncpa %s6128, 1
    %6130 = vsyncpa [#allocation8], 1

</llo_original>
